<compile_context>
chip_gen: v7x
topology: tpu7x:2x2x1
jax: 0.10.0
libtpu: 0.0.40
codegen_flags: <defaults>
</compile_context>

<pallas_src>
import functools

import numpy as np
import jax
import jax.numpy as jnp
from jax.experimental import pallas as pl
from jax.experimental.pallas import tpu as pltpu


# ----------------------------------------------------------------------------
# Bicubic (antialias=True) resize matrices -- matches PyTorch's
# _upsample_bicubic2d_aa / PIL ImagingResample weight computation.
# ----------------------------------------------------------------------------
def _cubic(x, a=-0.5):
    x = abs(x)
    if x < 1.0:
        return ((a + 2.0) * x - (a + 3.0)) * x * x + 1.0
    if x < 2.0:
        return (((x - 5.0) * x + 8.0) * x - 4.0) * a
    return 0.0


@functools.lru_cache(maxsize=None)
def _resize_matrix(in_size, out_size):
    scale = in_size / out_size
    fscale = max(scale, 1.0)
    support = 2.0 * fscale
    M = np.zeros((out_size, in_size), dtype=np.float64)
    for i in range(out_size):
        center = (i + 0.5) * scale
        xmin = max(int(center - support + 0.5), 0)
        xmax = min(int(center + support + 0.5), in_size)
        ws = [_cubic((x - center + 0.5) / fscale) for x in range(xmin, xmax)]
        tot = sum(ws)
        for k, x in enumerate(range(xmin, xmax)):
            M[i, x] = ws[k] / tot if tot != 0.0 else ws[k]
    return M.astype(np.float32)


# ----------------------------------------------------------------------------
# Pallas kernel: one batch element per grid step.
# ----------------------------------------------------------------------------
def _lift_project_kernel(xp_ref, w1_ref, b1_ref, u_ref, d_ref, w2_ref, b2_ref,
                         o_ref, zp_ref, *, S, L, Cout, u_np, d_np, neg_slope):
    SS = S * S
    S2 = 2 * S

    # ---- conv1: 3x3, padding=1, single im2col matmul (bf16 MXU, f32 acc) ----
    h = jnp.dot(xp_ref[0], w1_ref[...], preferred_element_type=jnp.float32)
    h = h + b1_ref[...]                         # (S*S, L) f32
    h3 = h.reshape(S, S, L)                     # (y, x, c)

    # ---- CNO_LReLu: separable bicubic-aa upsample -> LeakyReLU -> downsample
    # W-direction upsample: constant-folded sparse column combinations (VPU).
    xcols = [h3[:, x, :] for x in range(S)]     # each (S, L) f32
    up_cols = []
    for xo in range(S2):
        acc = None
        for xi in range(S):
            w = float(u_np[xo, xi])
            if w == 0.0:
                continue
            t = w * xcols[xi]
            acc = t if acc is None else acc + t
        if acc is None:
            acc = jnp.zeros((S, L), jnp.float32)
        up_cols.append(acc)
    a1 = jnp.concatenate(up_cols, axis=1)       # (S, 2S*L) f32, [y, (x', c)]

    # H-direction upsample: one small bf16 MXU matmul.
    a2 = jnp.dot(u_ref[...], a1.astype(jnp.bfloat16),
                 preferred_element_type=jnp.float32)       # (2S, 2S*L) f32
    # LeakyReLU (kept in f32 on the VPU).
    a2 = jnp.where(a2 >= 0, a2, neg_slope * a2)
    # H-direction downsample: one small bf16 MXU matmul.
    a3 = jnp.dot(d_ref[...], a2.astype(jnp.bfloat16),
                 preferred_element_type=jnp.float32)       # (S, 2S*L) f32

    # W-direction downsample: constant-folded sparse column combinations,
    # written directly into the zero-padded conv2 input scratch.
    # Zero only the 1-wide border (interior is fully overwritten below);
    # done every grid step so it stays correct under megacore splits.
    zp_ref[0:1, :, :] = jnp.zeros((1, S + 2, L), jnp.float32)
    zp_ref[S + 1:S + 2, :, :] = jnp.zeros((1, S + 2, L), jnp.float32)
    zp_ref[:, 0:1, :] = jnp.zeros((S + 2, 1, L), jnp.float32)
    zp_ref[:, S + 1:S + 2, :] = jnp.zeros((S + 2, 1, L), jnp.float32)

    acols = [a3[:, xi * L:(xi + 1) * L] for xi in range(S2)]   # each (S, L)
    for xo in range(S):
        acc = None
        for xi in range(S2):
            w = float(d_np[xo, xi])
            if w == 0.0:
                continue
            t = w * acols[xi]
            acc = t if acc is None else acc + t
        if acc is None:
            acc = jnp.zeros((S, L), jnp.float32)
        zp_ref[1:S + 1, xo + 1:xo + 2, :] = acc.reshape(S, 1, L)

    # ---- conv2: 3x3, padding=1, single im2col matmul over padded scratch ----
    taps = []
    for dy in range(3):
        for dx in range(3):
            taps.append(zp_ref[dy:dy + S, dx:dx + S, :].reshape(SS, L))
    pat = jnp.concatenate(taps, axis=1).astype(jnp.bfloat16)   # (S*S, 9L)
    out = jnp.dot(pat, w2_ref[...], preferred_element_type=jnp.float32)
    out = out + b2_ref[...]                                    # (S*S, Cout) f32
    o_ref[...] = out.reshape(1, SS, Cout).astype(o_ref.dtype)


# ----------------------------------------------------------------------------
# Wrapper (glue): NCHW <-> NHWC, im2col, weight layout, resize matrices.
# ----------------------------------------------------------------------------
def lift_project_forward(x_nchw, params, *, size):
    w1, b1, w2, b2 = params["w1"], params["b1"], params["w2"], params["b2"]
    B, Cin, S, _ = x_nchw.shape
    assert S == size
    L = w1.shape[0]
    Cout = w2.shape[0]

    # conv1 im2col (XLA-side layout plumbing): (B, S*S, 9*Cin), bf16.
    x_nhwc = jnp.transpose(x_nchw, (0, 2, 3, 1))
    xp = jnp.pad(x_nhwc, ((0, 0), (1, 1), (1, 1), (0, 0)))
    pieces = [xp[:, dy:dy + S, dx:dx + S, :]
              for dy in range(3) for dx in range(3)]
    x_im2col = jnp.concatenate(pieces, axis=-1).reshape(B, S * S, 9 * Cin)
    x_im2col = x_im2col.astype(jnp.bfloat16)

    # Conv weights (O, I, kh, kw) -> im2col layout, bf16; biases stay f32.
    w1_k = jnp.transpose(w1, (2, 3, 1, 0)).reshape(9 * Cin, L).astype(jnp.bfloat16)
    w2_k = jnp.transpose(w2, (2, 3, 1, 0)).reshape(9 * L, Cout).astype(jnp.bfloat16)
    b1_k = b1.reshape(1, L).astype(jnp.float32)
    b2_k = b2.reshape(1, Cout).astype(jnp.float32)

    # Separable bicubic(antialias) resize operators (host-cached, tiny).
    u_np = _resize_matrix(S, 2 * S)      # (2S, S)
    d_np = _resize_matrix(2 * S, S)      # (S, 2S)
    u_b = jnp.asarray(u_np, jnp.bfloat16)
    d_b = jnp.asarray(d_np, jnp.bfloat16)

    kernel = functools.partial(_lift_project_kernel, S=S, L=L, Cout=Cout,
                               u_np=u_np, d_np=d_np, neg_slope=0.01)

    out = pl.pallas_call(
        kernel,
        out_shape=jax.ShapeDtypeStruct((B, S * S, Cout), x_nchw.dtype),
        grid_spec=pltpu.PrefetchScalarGridSpec(
            num_scalar_prefetch=0,
            grid=(B,),
            in_specs=[
                pl.BlockSpec((1, S * S, 9 * Cin), lambda b: (b, 0, 0)),
                pl.BlockSpec((9 * Cin, L), lambda b: (0, 0)),
                pl.BlockSpec((1, L), lambda b: (0, 0)),
                pl.BlockSpec((2 * S, S), lambda b: (0, 0)),
                pl.BlockSpec((S, 2 * S), lambda b: (0, 0)),
                pl.BlockSpec((9 * L, Cout), lambda b: (0, 0)),
                pl.BlockSpec((1, Cout), lambda b: (0, 0)),
            ],
            out_specs=pl.BlockSpec((1, S * S, Cout), lambda b: (b, 0, 0)),
            scratch_shapes=[pltpu.VMEM((S + 2, S + 2, L), jnp.float32)],
        ),
        compiler_params=pltpu.CompilerParams(
            dimension_semantics=("parallel",),
        ),
    )(x_im2col, w1_k, b1_k, u_b, d_b, w2_k, b2_k)

    out = out.reshape(B, S, S, Cout)
    return jnp.transpose(out, (0, 3, 1, 2))    # back to NCHW


# ----------------------------------------------------------------------------
# Pure-JAX reference (same math, XLA ops) for a sanity check.
# ----------------------------------------------------------------------------
def _reference_forward(x_nchw, params, size):
    w1, b1, w2, b2 = params["w1"], params["b1"], params["w2"], params["b2"]
    S = size
    dn_conv = lambda x, w: jax.lax.conv_general_dilated(
        x, w, (1, 1), ((1, 1), (1, 1)),
        dimension_numbers=("NCHW", "OIHW", "NCHW"))
    h = dn_conv(x_nchw, w1) + b1[None, :, None, None]
    U = jnp.asarray(_resize_matrix(S, 2 * S))
    D = jnp.asarray(_resize_matrix(2 * S, S))
    up = jnp.einsum("oh,bchw->bcow", U, h)
    up = jnp.einsum("pw,bcow->bcop", U, up)
    up = jnp.where(up >= 0, up, 0.01 * up)
    dn = jnp.einsum("oh,bchw->bcow", D, up)
    dn = jnp.einsum("pw,bcow->bcop", D, dn)
    return dn_conv(dn, w2) + b2[None, :, None, None]


def init_params(key, in_channels, out_channels, latent_dim):
    k1, k2, k3, k4 = jax.random.split(key, 4)
    bound1 = 1.0 / np.sqrt(in_channels * 9)
    bound2 = 1.0 / np.sqrt(latent_dim * 9)
    return dict(
        w1=jax.random.uniform(k1, (latent_dim, in_channels, 3, 3),
                              jnp.float32, -bound1, bound1),
        b1=jax.random.uniform(k2, (latent_dim,), jnp.float32, -bound1, bound1),
        w2=jax.random.uniform(k3, (out_channels, latent_dim, 3, 3),
                              jnp.float32, -bound2, bound2),
        b2=jax.random.uniform(k4, (out_channels,), jnp.float32, -bound2, bound2),
    )


if __name__ == "__main__":
    B, Cin, Cout, S, LATENT = 2, 4, 4, 16, 64
    key = jax.random.PRNGKey(0)
    kx, kp = jax.random.split(key)
    x = jax.random.normal(kx, (B, Cin, S, S), jnp.float32)
    params = init_params(kp, Cin, Cout, LATENT)

    y = lift_project_forward(x, params, size=S)
    y = jax.block_until_ready(y)
    assert y.shape == (B, Cout, S, S), y.shape

    y_ref = jax.block_until_ready(_reference_forward(x, params, S))
    np.testing.assert_allclose(np.asarray(y), np.asarray(y_ref),
                               rtol=3e-2, atol=3e-2)
    print("KERNEL_OK")
</pallas_src>

<mosaic_0001>
module attributes {stable_mosaic.version = 11 : i64} {
  func.func @_lift_project_kernel(%arg0: i32, %arg1: memref<1x256x36xbf16, #tpu.memory_space<vmem>>, %arg2: memref<36x64xbf16, #tpu.memory_space<vmem>>, %arg3: memref<1x64xf32, #tpu.memory_space<vmem>>, %arg4: memref<32x16xbf16, #tpu.memory_space<vmem>>, %arg5: memref<16x32xbf16, #tpu.memory_space<vmem>>, %arg6: memref<576x4xbf16, #tpu.memory_space<vmem>>, %arg7: memref<1x4xf32, #tpu.memory_space<vmem>>, %arg8: memref<1x256x4xf32, #tpu.memory_space<vmem>>, %arg9: memref<18x18x64xf32, #tpu.memory_space<vmem>>) attributes {dimension_semantics = [#tpu.dimension_semantics<parallel>], iteration_bounds = array<i64: 2>, scalar_prefetch = 0 : i64, scratch_operands = 1 : i64, tpu.core_type = #tpu.core_type<tc>, window_params = [{transform_indices = @transform_0, window_bounds = array<i64: 1, 256, 36>}, {pipeline_mode = #tpu.pipeline_mode<synchronous>, transform_indices = @transform_1, window_bounds = array<i64: 36, 64>}, {pipeline_mode = #tpu.pipeline_mode<synchronous>, transform_indices = @transform_2, window_bounds = array<i64: 1, 64>}, {pipeline_mode = #tpu.pipeline_mode<synchronous>, transform_indices = @transform_3, window_bounds = array<i64: 32, 16>}, {pipeline_mode = #tpu.pipeline_mode<synchronous>, transform_indices = @transform_4, window_bounds = array<i64: 16, 32>}, {pipeline_mode = #tpu.pipeline_mode<synchronous>, transform_indices = @transform_5, window_bounds = array<i64: 576, 4>}, {pipeline_mode = #tpu.pipeline_mode<synchronous>, transform_indices = @transform_6, window_bounds = array<i64: 1, 4>}, {transform_indices = @transform_7, window_bounds = array<i64: 1, 256, 4>}]} {
    %c0 = arith.constant 0 : index
    %c0_0 = arith.constant 0 : index
    %c0_1 = arith.constant 0 : index
    %0 = vector.load %arg1[%c0, %c0_0, %c0_1] : memref<1x256x36xbf16, #tpu.memory_space<vmem>>, vector<1x256x36xbf16>
    %1 = vector.shape_cast %0 : vector<1x256x36xbf16> to vector<256x36xbf16>
    %c0_2 = arith.constant 0 : index
    %c0_3 = arith.constant 0 : index
    %2 = vector.load %arg2[%c0_2, %c0_3] : memref<36x64xbf16, #tpu.memory_space<vmem>>, vector<36x64xbf16>
    %cst = arith.constant dense<0.000000e+00> : vector<256x64xf32>
    %3 = tpu.matmul %1, %2, %cst {dimension_numbers = #tpu.dot_dimension_numbers<[1], [0], [0], [1], [0, 0, 1, 1], [], []>} : vector<256x36xbf16>, vector<36x64xbf16>, vector<256x64xf32> -> vector<256x64xf32>
    %c0_4 = arith.constant 0 : index
    %c0_5 = arith.constant 0 : index
    %4 = vector.load %arg3[%c0_4, %c0_5] : memref<1x64xf32, #tpu.memory_space<vmem>>, vector<1x64xf32>
    %5 = vector.broadcast %4 : vector<1x64xf32> to vector<256x64xf32>
    %6 = arith.addf %3, %5 : vector<256x64xf32>
    %7 = vector.shape_cast %6 : vector<256x64xf32> to vector<16x16x64xf32>
    %8 = vector.extract_strided_slice %7 {offsets = [0, 0, 0], sizes = [16, 1, 64], strides = [1, 1, 1]} : vector<16x16x64xf32> to vector<16x1x64xf32>
    %9 = vector.shape_cast %8 : vector<16x1x64xf32> to vector<16x64xf32>
    %10 = vector.extract_strided_slice %7 {offsets = [0, 1, 0], sizes = [16, 1, 64], strides = [1, 1, 1]} : vector<16x16x64xf32> to vector<16x1x64xf32>
    %11 = vector.shape_cast %10 : vector<16x1x64xf32> to vector<16x64xf32>
    %12 = vector.extract_strided_slice %7 {offsets = [0, 2, 0], sizes = [16, 1, 64], strides = [1, 1, 1]} : vector<16x16x64xf32> to vector<16x1x64xf32>
    %13 = vector.shape_cast %12 : vector<16x1x64xf32> to vector<16x64xf32>
    %14 = vector.extract_strided_slice %7 {offsets = [0, 3, 0], sizes = [16, 1, 64], strides = [1, 1, 1]} : vector<16x16x64xf32> to vector<16x1x64xf32>
    %15 = vector.shape_cast %14 : vector<16x1x64xf32> to vector<16x64xf32>
    %16 = vector.extract_strided_slice %7 {offsets = [0, 4, 0], sizes = [16, 1, 64], strides = [1, 1, 1]} : vector<16x16x64xf32> to vector<16x1x64xf32>
    %17 = vector.shape_cast %16 : vector<16x1x64xf32> to vector<16x64xf32>
    %18 = vector.extract_strided_slice %7 {offsets = [0, 5, 0], sizes = [16, 1, 64], strides = [1, 1, 1]} : vector<16x16x64xf32> to vector<16x1x64xf32>
    %19 = vector.shape_cast %18 : vector<16x1x64xf32> to vector<16x64xf32>
    %20 = vector.extract_strided_slice %7 {offsets = [0, 6, 0], sizes = [16, 1, 64], strides = [1, 1, 1]} : vector<16x16x64xf32> to vector<16x1x64xf32>
    %21 = vector.shape_cast %20 : vector<16x1x64xf32> to vector<16x64xf32>
    %22 = vector.extract_strided_slice %7 {offsets = [0, 7, 0], sizes = [16, 1, 64], strides = [1, 1, 1]} : vector<16x16x64xf32> to vector<16x1x64xf32>
    %23 = vector.shape_cast %22 : vector<16x1x64xf32> to vector<16x64xf32>
    %24 = vector.extract_strided_slice %7 {offsets = [0, 8, 0], sizes = [16, 1, 64], strides = [1, 1, 1]} : vector<16x16x64xf32> to vector<16x1x64xf32>
    %25 = vector.shape_cast %24 : vector<16x1x64xf32> to vector<16x64xf32>
    %26 = vector.extract_strided_slice %7 {offsets = [0, 9, 0], sizes = [16, 1, 64], strides = [1, 1, 1]} : vector<16x16x64xf32> to vector<16x1x64xf32>
    %27 = vector.shape_cast %26 : vector<16x1x64xf32> to vector<16x64xf32>
    %28 = vector.extract_strided_slice %7 {offsets = [0, 10, 0], sizes = [16, 1, 64], strides = [1, 1, 1]} : vector<16x16x64xf32> to vector<16x1x64xf32>
    %29 = vector.shape_cast %28 : vector<16x1x64xf32> to vector<16x64xf32>
    %30 = vector.extract_strided_slice %7 {offsets = [0, 11, 0], sizes = [16, 1, 64], strides = [1, 1, 1]} : vector<16x16x64xf32> to vector<16x1x64xf32>
    %31 = vector.shape_cast %30 : vector<16x1x64xf32> to vector<16x64xf32>
    %32 = vector.extract_strided_slice %7 {offsets = [0, 12, 0], sizes = [16, 1, 64], strides = [1, 1, 1]} : vector<16x16x64xf32> to vector<16x1x64xf32>
    %33 = vector.shape_cast %32 : vector<16x1x64xf32> to vector<16x64xf32>
    %34 = vector.extract_strided_slice %7 {offsets = [0, 13, 0], sizes = [16, 1, 64], strides = [1, 1, 1]} : vector<16x16x64xf32> to vector<16x1x64xf32>
    %35 = vector.shape_cast %34 : vector<16x1x64xf32> to vector<16x64xf32>
    %36 = vector.extract_strided_slice %7 {offsets = [0, 14, 0], sizes = [16, 1, 64], strides = [1, 1, 1]} : vector<16x16x64xf32> to vector<16x1x64xf32>
    %37 = vector.shape_cast %36 : vector<16x1x64xf32> to vector<16x64xf32>
    %38 = vector.extract_strided_slice %7 {offsets = [0, 15, 0], sizes = [16, 1, 64], strides = [1, 1, 1]} : vector<16x16x64xf32> to vector<16x1x64xf32>
    %39 = vector.shape_cast %38 : vector<16x1x64xf32> to vector<16x64xf32>
    %cst_6 = arith.constant 1.08823526 : f32
    %40 = vector.broadcast %cst_6 : f32 to vector<16x64xf32>
    %41 = arith.mulf %40, %9 : vector<16x64xf32>
    %cst_7 = arith.constant -0.0882352963 : f32
    %42 = vector.broadcast %cst_7 : f32 to vector<16x64xf32>
    %43 = arith.mulf %42, %11 : vector<16x64xf32>
    %44 = arith.addf %41, %43 : vector<16x64xf32>
    %cst_8 = arith.constant 0.810218989 : f32
    %45 = vector.broadcast %cst_8 : f32 to vector<16x64xf32>
    %46 = arith.mulf %45, %9 : vector<16x64xf32>
    %cst_9 = arith.constant 0.211678833 : f32
    %47 = vector.broadcast %cst_9 : f32 to vector<16x64xf32>
    %48 = arith.mulf %47, %11 : vector<16x64xf32>
    %49 = arith.addf %46, %48 : vector<16x64xf32>
    %cst_10 = arith.constant -0.0218978096 : f32
    %50 = vector.broadcast %cst_10 : f32 to vector<16x64xf32>
    %51 = arith.mulf %50, %13 : vector<16x64xf32>
    %52 = arith.addf %49, %51 : vector<16x64xf32>
    %cst_11 = arith.constant 0.22137405 : f32
    %53 = vector.broadcast %cst_11 : f32 to vector<16x64xf32>
    %54 = arith.mulf %53, %9 : vector<16x64xf32>
    %cst_12 = arith.constant 0.847328245 : f32
    %55 = vector.broadcast %cst_12 : f32 to vector<16x64xf32>
    %56 = arith.mulf %55, %11 : vector<16x64xf32>
    %57 = arith.addf %54, %56 : vector<16x64xf32>
    %cst_13 = arith.constant -0.068702288 : f32
    %58 = vector.broadcast %cst_13 : f32 to vector<16x64xf32>
    %59 = arith.mulf %58, %13 : vector<16x64xf32>
    %60 = arith.addf %57, %59 : vector<16x64xf32>
    %cst_14 = arith.constant -7.031250e-02 : f32
    %61 = vector.broadcast %cst_14 : f32 to vector<16x64xf32>
    %62 = arith.mulf %61, %9 : vector<16x64xf32>
    %cst_15 = arith.constant 0.8671875 : f32
    %63 = vector.broadcast %cst_15 : f32 to vector<16x64xf32>
    %64 = arith.mulf %63, %11 : vector<16x64xf32>
    %65 = arith.addf %62, %64 : vector<16x64xf32>
    %cst_16 = arith.constant 0.2265625 : f32
    %66 = vector.broadcast %cst_16 : f32 to vector<16x64xf32>
    %67 = arith.mulf %66, %13 : vector<16x64xf32>
    %68 = arith.addf %65, %67 : vector<16x64xf32>
    %cst_17 = arith.constant -2.343750e-02 : f32
    %69 = vector.broadcast %cst_17 : f32 to vector<16x64xf32>
    %70 = arith.mulf %69, %15 : vector<16x64xf32>
    %71 = arith.addf %68, %70 : vector<16x64xf32>
    %cst_18 = arith.constant -2.343750e-02 : f32
    %72 = vector.broadcast %cst_18 : f32 to vector<16x64xf32>
    %73 = arith.mulf %72, %9 : vector<16x64xf32>
    %cst_19 = arith.constant 0.2265625 : f32
    %74 = vector.broadcast %cst_19 : f32 to vector<16x64xf32>
    %75 = arith.mulf %74, %11 : vector<16x64xf32>
    %76 = arith.addf %73, %75 : vector<16x64xf32>
    %cst_20 = arith.constant 0.8671875 : f32
    %77 = vector.broadcast %cst_20 : f32 to vector<16x64xf32>
    %78 = arith.mulf %77, %13 : vector<16x64xf32>
    %79 = arith.addf %76, %78 : vector<16x64xf32>
    %cst_21 = arith.constant -7.031250e-02 : f32
    %80 = vector.broadcast %cst_21 : f32 to vector<16x64xf32>
    %81 = arith.mulf %80, %15 : vector<16x64xf32>
    %82 = arith.addf %79, %81 : vector<16x64xf32>
    %cst_22 = arith.constant -7.031250e-02 : f32
    %83 = vector.broadcast %cst_22 : f32 to vector<16x64xf32>
    %84 = arith.mulf %83, %11 : vector<16x64xf32>
    %cst_23 = arith.constant 0.8671875 : f32
    %85 = vector.broadcast %cst_23 : f32 to vector<16x64xf32>
    %86 = arith.mulf %85, %13 : vector<16x64xf32>
    %87 = arith.addf %84, %86 : vector<16x64xf32>
    %cst_24 = arith.constant 0.2265625 : f32
    %88 = vector.broadcast %cst_24 : f32 to vector<16x64xf32>
    %89 = arith.mulf %88, %15 : vector<16x64xf32>
    %90 = arith.addf %87, %89 : vector<16x64xf32>
    %cst_25 = arith.constant -2.343750e-02 : f32
    %91 = vector.broadcast %cst_25 : f32 to vector<16x64xf32>
    %92 = arith.mulf %91, %17 : vector<16x64xf32>
    %93 = arith.addf %90, %92 : vector<16x64xf32>
    %cst_26 = arith.constant -2.343750e-02 : f32
    %94 = vector.broadcast %cst_26 : f32 to vector<16x64xf32>
    %95 = arith.mulf %94, %11 : vector<16x64xf32>
    %cst_27 = arith.constant 0.2265625 : f32
    %96 = vector.broadcast %cst_27 : f32 to vector<16x64xf32>
    %97 = arith.mulf %96, %13 : vector<16x64xf32>
    %98 = arith.addf %95, %97 : vector<16x64xf32>
    %cst_28 = arith.constant 0.8671875 : f32
    %99 = vector.broadcast %cst_28 : f32 to vector<16x64xf32>
    %100 = arith.mulf %99, %15 : vector<16x64xf32>
    %101 = arith.addf %98, %100 : vector<16x64xf32>
    %cst_29 = arith.constant -7.031250e-02 : f32
    %102 = vector.broadcast %cst_29 : f32 to vector<16x64xf32>
    %103 = arith.mulf %102, %17 : vector<16x64xf32>
    %104 = arith.addf %101, %103 : vector<16x64xf32>
    %cst_30 = arith.constant -7.031250e-02 : f32
    %105 = vector.broadcast %cst_30 : f32 to vector<16x64xf32>
    %106 = arith.mulf %105, %13 : vector<16x64xf32>
    %cst_31 = arith.constant 0.8671875 : f32
    %107 = vector.broadcast %cst_31 : f32 to vector<16x64xf32>
    %108 = arith.mulf %107, %15 : vector<16x64xf32>
    %109 = arith.addf %106, %108 : vector<16x64xf32>
    %cst_32 = arith.constant 0.2265625 : f32
    %110 = vector.broadcast %cst_32 : f32 to vector<16x64xf32>
    %111 = arith.mulf %110, %17 : vector<16x64xf32>
    %112 = arith.addf %109, %111 : vector<16x64xf32>
    %cst_33 = arith.constant -2.343750e-02 : f32
    %113 = vector.broadcast %cst_33 : f32 to vector<16x64xf32>
    %114 = arith.mulf %113, %19 : vector<16x64xf32>
    %115 = arith.addf %112, %114 : vector<16x64xf32>
    %cst_34 = arith.constant -2.343750e-02 : f32
    %116 = vector.broadcast %cst_34 : f32 to vector<16x64xf32>
    %117 = arith.mulf %116, %13 : vector<16x64xf32>
    %cst_35 = arith.constant 0.2265625 : f32
    %118 = vector.broadcast %cst_35 : f32 to vector<16x64xf32>
    %119 = arith.mulf %118, %15 : vector<16x64xf32>
    %120 = arith.addf %117, %119 : vector<16x64xf32>
    %cst_36 = arith.constant 0.8671875 : f32
    %121 = vector.broadcast %cst_36 : f32 to vector<16x64xf32>
    %122 = arith.mulf %121, %17 : vector<16x64xf32>
    %123 = arith.addf %120, %122 : vector<16x64xf32>
    %cst_37 = arith.constant -7.031250e-02 : f32
    %124 = vector.broadcast %cst_37 : f32 to vector<16x64xf32>
    %125 = arith.mulf %124, %19 : vector<16x64xf32>
    %126 = arith.addf %123, %125 : vector<16x64xf32>
    %cst_38 = arith.constant -7.031250e-02 : f32
    %127 = vector.broadcast %cst_38 : f32 to vector<16x64xf32>
    %128 = arith.mulf %127, %15 : vector<16x64xf32>
    %cst_39 = arith.constant 0.8671875 : f32
    %129 = vector.broadcast %cst_39 : f32 to vector<16x64xf32>
    %130 = arith.mulf %129, %17 : vector<16x64xf32>
    %131 = arith.addf %128, %130 : vector<16x64xf32>
    %cst_40 = arith.constant 0.2265625 : f32
    %132 = vector.broadcast %cst_40 : f32 to vector<16x64xf32>
    %133 = arith.mulf %132, %19 : vector<16x64xf32>
    %134 = arith.addf %131, %133 : vector<16x64xf32>
    %cst_41 = arith.constant -2.343750e-02 : f32
    %135 = vector.broadcast %cst_41 : f32 to vector<16x64xf32>
    %136 = arith.mulf %135, %21 : vector<16x64xf32>
    %137 = arith.addf %134, %136 : vector<16x64xf32>
    %cst_42 = arith.constant -2.343750e-02 : f32
    %138 = vector.broadcast %cst_42 : f32 to vector<16x64xf32>
    %139 = arith.mulf %138, %15 : vector<16x64xf32>
    %cst_43 = arith.constant 0.2265625 : f32
    %140 = vector.broadcast %cst_43 : f32 to vector<16x64xf32>
    %141 = arith.mulf %140, %17 : vector<16x64xf32>
    %142 = arith.addf %139, %141 : vector<16x64xf32>
    %cst_44 = arith.constant 0.8671875 : f32
    %143 = vector.broadcast %cst_44 : f32 to vector<16x64xf32>
    %144 = arith.mulf %143, %19 : vector<16x64xf32>
    %145 = arith.addf %142, %144 : vector<16x64xf32>
    %cst_45 = arith.constant -7.031250e-02 : f32
    %146 = vector.broadcast %cst_45 : f32 to vector<16x64xf32>
    %147 = arith.mulf %146, %21 : vector<16x64xf32>
    %148 = arith.addf %145, %147 : vector<16x64xf32>
    %cst_46 = arith.constant -7.031250e-02 : f32
    %149 = vector.broadcast %cst_46 : f32 to vector<16x64xf32>
    %150 = arith.mulf %149, %17 : vector<16x64xf32>
    %cst_47 = arith.constant 0.8671875 : f32
    %151 = vector.broadcast %cst_47 : f32 to vector<16x64xf32>
    %152 = arith.mulf %151, %19 : vector<16x64xf32>
    %153 = arith.addf %150, %152 : vector<16x64xf32>
    %cst_48 = arith.constant 0.2265625 : f32
    %154 = vector.broadcast %cst_48 : f32 to vector<16x64xf32>
    %155 = arith.mulf %154, %21 : vector<16x64xf32>
    %156 = arith.addf %153, %155 : vector<16x64xf32>
    %cst_49 = arith.constant -2.343750e-02 : f32
    %157 = vector.broadcast %cst_49 : f32 to vector<16x64xf32>
    %158 = arith.mulf %157, %23 : vector<16x64xf32>
    %159 = arith.addf %156, %158 : vector<16x64xf32>
    %cst_50 = arith.constant -2.343750e-02 : f32
    %160 = vector.broadcast %cst_50 : f32 to vector<16x64xf32>
    %161 = arith.mulf %160, %17 : vector<16x64xf32>
    %cst_51 = arith.constant 0.2265625 : f32
    %162 = vector.broadcast %cst_51 : f32 to vector<16x64xf32>
    %163 = arith.mulf %162, %19 : vector<16x64xf32>
    %164 = arith.addf %161, %163 : vector<16x64xf32>
    %cst_52 = arith.constant 0.8671875 : f32
    %165 = vector.broadcast %cst_52 : f32 to vector<16x64xf32>
    %166 = arith.mulf %165, %21 : vector<16x64xf32>
    %167 = arith.addf %164, %166 : vector<16x64xf32>
    %cst_53 = arith.constant -7.031250e-02 : f32
    %168 = vector.broadcast %cst_53 : f32 to vector<16x64xf32>
    %169 = arith.mulf %168, %23 : vector<16x64xf32>
    %170 = arith.addf %167, %169 : vector<16x64xf32>
    %cst_54 = arith.constant -7.031250e-02 : f32
    %171 = vector.broadcast %cst_54 : f32 to vector<16x64xf32>
    %172 = arith.mulf %171, %19 : vector<16x64xf32>
    %cst_55 = arith.constant 0.8671875 : f32
    %173 = vector.broadcast %cst_55 : f32 to vector<16x64xf32>
    %174 = arith.mulf %173, %21 : vector<16x64xf32>
    %175 = arith.addf %172, %174 : vector<16x64xf32>
    %cst_56 = arith.constant 0.2265625 : f32
    %176 = vector.broadcast %cst_56 : f32 to vector<16x64xf32>
    %177 = arith.mulf %176, %23 : vector<16x64xf32>
    %178 = arith.addf %175, %177 : vector<16x64xf32>
    %cst_57 = arith.constant -2.343750e-02 : f32
    %179 = vector.broadcast %cst_57 : f32 to vector<16x64xf32>
    %180 = arith.mulf %179, %25 : vector<16x64xf32>
    %181 = arith.addf %178, %180 : vector<16x64xf32>
    %cst_58 = arith.constant -2.343750e-02 : f32
    %182 = vector.broadcast %cst_58 : f32 to vector<16x64xf32>
    %183 = arith.mulf %182, %19 : vector<16x64xf32>
    %cst_59 = arith.constant 0.2265625 : f32
    %184 = vector.broadcast %cst_59 : f32 to vector<16x64xf32>
    %185 = arith.mulf %184, %21 : vector<16x64xf32>
    %186 = arith.addf %183, %185 : vector<16x64xf32>
    %cst_60 = arith.constant 0.8671875 : f32
    %187 = vector.broadcast %cst_60 : f32 to vector<16x64xf32>
    %188 = arith.mulf %187, %23 : vector<16x64xf32>
    %189 = arith.addf %186, %188 : vector<16x64xf32>
    %cst_61 = arith.constant -7.031250e-02 : f32
    %190 = vector.broadcast %cst_61 : f32 to vector<16x64xf32>
    %191 = arith.mulf %190, %25 : vector<16x64xf32>
    %192 = arith.addf %189, %191 : vector<16x64xf32>
    %cst_62 = arith.constant -7.031250e-02 : f32
    %193 = vector.broadcast %cst_62 : f32 to vector<16x64xf32>
    %194 = arith.mulf %193, %21 : vector<16x64xf32>
    %cst_63 = arith.constant 0.8671875 : f32
    %195 = vector.broadcast %cst_63 : f32 to vector<16x64xf32>
    %196 = arith.mulf %195, %23 : vector<16x64xf32>
    %197 = arith.addf %194, %196 : vector<16x64xf32>
    %cst_64 = arith.constant 0.2265625 : f32
    %198 = vector.broadcast %cst_64 : f32 to vector<16x64xf32>
    %199 = arith.mulf %198, %25 : vector<16x64xf32>
    %200 = arith.addf %197, %199 : vector<16x64xf32>
    %cst_65 = arith.constant -2.343750e-02 : f32
    %201 = vector.broadcast %cst_65 : f32 to vector<16x64xf32>
    %202 = arith.mulf %201, %27 : vector<16x64xf32>
    %203 = arith.addf %200, %202 : vector<16x64xf32>
    %cst_66 = arith.constant -2.343750e-02 : f32
    %204 = vector.broadcast %cst_66 : f32 to vector<16x64xf32>
    %205 = arith.mulf %204, %21 : vector<16x64xf32>
    %cst_67 = arith.constant 0.2265625 : f32
    %206 = vector.broadcast %cst_67 : f32 to vector<16x64xf32>
    %207 = arith.mulf %206, %23 : vector<16x64xf32>
    %208 = arith.addf %205, %207 : vector<16x64xf32>
    %cst_68 = arith.constant 0.8671875 : f32
    %209 = vector.broadcast %cst_68 : f32 to vector<16x64xf32>
    %210 = arith.mulf %209, %25 : vector<16x64xf32>
    %211 = arith.addf %208, %210 : vector<16x64xf32>
    %cst_69 = arith.constant -7.031250e-02 : f32
    %212 = vector.broadcast %cst_69 : f32 to vector<16x64xf32>
    %213 = arith.mulf %212, %27 : vector<16x64xf32>
    %214 = arith.addf %211, %213 : vector<16x64xf32>
    %cst_70 = arith.constant -7.031250e-02 : f32
    %215 = vector.broadcast %cst_70 : f32 to vector<16x64xf32>
    %216 = arith.mulf %215, %23 : vector<16x64xf32>
    %cst_71 = arith.constant 0.8671875 : f32
    %217 = vector.broadcast %cst_71 : f32 to vector<16x64xf32>
    %218 = arith.mulf %217, %25 : vector<16x64xf32>
    %219 = arith.addf %216, %218 : vector<16x64xf32>
    %cst_72 = arith.constant 0.2265625 : f32
    %220 = vector.broadcast %cst_72 : f32 to vector<16x64xf32>
    %221 = arith.mulf %220, %27 : vector<16x64xf32>
    %222 = arith.addf %219, %221 : vector<16x64xf32>
    %cst_73 = arith.constant -2.343750e-02 : f32
    %223 = vector.broadcast %cst_73 : f32 to vector<16x64xf32>
    %224 = arith.mulf %223, %29 : vector<16x64xf32>
    %225 = arith.addf %222, %224 : vector<16x64xf32>
    %cst_74 = arith.constant -2.343750e-02 : f32
    %226 = vector.broadcast %cst_74 : f32 to vector<16x64xf32>
    %227 = arith.mulf %226, %23 : vector<16x64xf32>
    %cst_75 = arith.constant 0.2265625 : f32
    %228 = vector.broadcast %cst_75 : f32 to vector<16x64xf32>
    %229 = arith.mulf %228, %25 : vector<16x64xf32>
    %230 = arith.addf %227, %229 : vector<16x64xf32>
    %cst_76 = arith.constant 0.8671875 : f32
    %231 = vector.broadcast %cst_76 : f32 to vector<16x64xf32>
    %232 = arith.mulf %231, %27 : vector<16x64xf32>
    %233 = arith.addf %230, %232 : vector<16x64xf32>
    %cst_77 = arith.constant -7.031250e-02 : f32
    %234 = vector.broadcast %cst_77 : f32 to vector<16x64xf32>
    %235 = arith.mulf %234, %29 : vector<16x64xf32>
    %236 = arith.addf %233, %235 : vector<16x64xf32>
    %cst_78 = arith.constant -7.031250e-02 : f32
    %237 = vector.broadcast %cst_78 : f32 to vector<16x64xf32>
    %238 = arith.mulf %237, %25 : vector<16x64xf32>
    %cst_79 = arith.constant 0.8671875 : f32
    %239 = vector.broadcast %cst_79 : f32 to vector<16x64xf32>
    %240 = arith.mulf %239, %27 : vector<16x64xf32>
    %241 = arith.addf %238, %240 : vector<16x64xf32>
    %cst_80 = arith.constant 0.2265625 : f32
    %242 = vector.broadcast %cst_80 : f32 to vector<16x64xf32>
    %243 = arith.mulf %242, %29 : vector<16x64xf32>
    %244 = arith.addf %241, %243 : vector<16x64xf32>
    %cst_81 = arith.constant -2.343750e-02 : f32
    %245 = vector.broadcast %cst_81 : f32 to vector<16x64xf32>
    %246 = arith.mulf %245, %31 : vector<16x64xf32>
    %247 = arith.addf %244, %246 : vector<16x64xf32>
    %cst_82 = arith.constant -2.343750e-02 : f32
    %248 = vector.broadcast %cst_82 : f32 to vector<16x64xf32>
    %249 = arith.mulf %248, %25 : vector<16x64xf32>
    %cst_83 = arith.constant 0.2265625 : f32
    %250 = vector.broadcast %cst_83 : f32 to vector<16x64xf32>
    %251 = arith.mulf %250, %27 : vector<16x64xf32>
    %252 = arith.addf %249, %251 : vector<16x64xf32>
    %cst_84 = arith.constant 0.8671875 : f32
    %253 = vector.broadcast %cst_84 : f32 to vector<16x64xf32>
    %254 = arith.mulf %253, %29 : vector<16x64xf32>
    %255 = arith.addf %252, %254 : vector<16x64xf32>
    %cst_85 = arith.constant -7.031250e-02 : f32
    %256 = vector.broadcast %cst_85 : f32 to vector<16x64xf32>
    %257 = arith.mulf %256, %31 : vector<16x64xf32>
    %258 = arith.addf %255, %257 : vector<16x64xf32>
    %cst_86 = arith.constant -7.031250e-02 : f32
    %259 = vector.broadcast %cst_86 : f32 to vector<16x64xf32>
    %260 = arith.mulf %259, %27 : vector<16x64xf32>
    %cst_87 = arith.constant 0.8671875 : f32
    %261 = vector.broadcast %cst_87 : f32 to vector<16x64xf32>
    %262 = arith.mulf %261, %29 : vector<16x64xf32>
    %263 = arith.addf %260, %262 : vector<16x64xf32>
    %cst_88 = arith.constant 0.2265625 : f32
    %264 = vector.broadcast %cst_88 : f32 to vector<16x64xf32>
    %265 = arith.mulf %264, %31 : vector<16x64xf32>
    %266 = arith.addf %263, %265 : vector<16x64xf32>
    %cst_89 = arith.constant -2.343750e-02 : f32
    %267 = vector.broadcast %cst_89 : f32 to vector<16x64xf32>
    %268 = arith.mulf %267, %33 : vector<16x64xf32>
    %269 = arith.addf %266, %268 : vector<16x64xf32>
    %cst_90 = arith.constant -2.343750e-02 : f32
    %270 = vector.broadcast %cst_90 : f32 to vector<16x64xf32>
    %271 = arith.mulf %270, %27 : vector<16x64xf32>
    %cst_91 = arith.constant 0.2265625 : f32
    %272 = vector.broadcast %cst_91 : f32 to vector<16x64xf32>
    %273 = arith.mulf %272, %29 : vector<16x64xf32>
    %274 = arith.addf %271, %273 : vector<16x64xf32>
    %cst_92 = arith.constant 0.8671875 : f32
    %275 = vector.broadcast %cst_92 : f32 to vector<16x64xf32>
    %276 = arith.mulf %275, %31 : vector<16x64xf32>
    %277 = arith.addf %274, %276 : vector<16x64xf32>
    %cst_93 = arith.constant -7.031250e-02 : f32
    %278 = vector.broadcast %cst_93 : f32 to vector<16x64xf32>
    %279 = arith.mulf %278, %33 : vector<16x64xf32>
    %280 = arith.addf %277, %279 : vector<16x64xf32>
    %cst_94 = arith.constant -7.031250e-02 : f32
    %281 = vector.broadcast %cst_94 : f32 to vector<16x64xf32>
    %282 = arith.mulf %281, %29 : vector<16x64xf32>
    %cst_95 = arith.constant 0.8671875 : f32
    %283 = vector.broadcast %cst_95 : f32 to vector<16x64xf32>
    %284 = arith.mulf %283, %31 : vector<16x64xf32>
    %285 = arith.addf %282, %284 : vector<16x64xf32>
    %cst_96 = arith.constant 0.2265625 : f32
    %286 = vector.broadcast %cst_96 : f32 to vector<16x64xf32>
    %287 = arith.mulf %286, %33 : vector<16x64xf32>
    %288 = arith.addf %285, %287 : vector<16x64xf32>
    %cst_97 = arith.constant -2.343750e-02 : f32
    %289 = vector.broadcast %cst_97 : f32 to vector<16x64xf32>
    %290 = arith.mulf %289, %35 : vector<16x64xf32>
    %291 = arith.addf %288, %290 : vector<16x64xf32>
    %cst_98 = arith.constant -2.343750e-02 : f32
    %292 = vector.broadcast %cst_98 : f32 to vector<16x64xf32>
    %293 = arith.mulf %292, %29 : vector<16x64xf32>
    %cst_99 = arith.constant 0.2265625 : f32
    %294 = vector.broadcast %cst_99 : f32 to vector<16x64xf32>
    %295 = arith.mulf %294, %31 : vector<16x64xf32>
    %296 = arith.addf %293, %295 : vector<16x64xf32>
    %cst_100 = arith.constant 0.8671875 : f32
    %297 = vector.broadcast %cst_100 : f32 to vector<16x64xf32>
    %298 = arith.mulf %297, %33 : vector<16x64xf32>
    %299 = arith.addf %296, %298 : vector<16x64xf32>
    %cst_101 = arith.constant -7.031250e-02 : f32
    %300 = vector.broadcast %cst_101 : f32 to vector<16x64xf32>
    %301 = arith.mulf %300, %35 : vector<16x64xf32>
    %302 = arith.addf %299, %301 : vector<16x64xf32>
    %cst_102 = arith.constant -7.031250e-02 : f32
    %303 = vector.broadcast %cst_102 : f32 to vector<16x64xf32>
    %304 = arith.mulf %303, %31 : vector<16x64xf32>
    %cst_103 = arith.constant 0.8671875 : f32
    %305 = vector.broadcast %cst_103 : f32 to vector<16x64xf32>
    %306 = arith.mulf %305, %33 : vector<16x64xf32>
    %307 = arith.addf %304, %306 : vector<16x64xf32>
    %cst_104 = arith.constant 0.2265625 : f32
    %308 = vector.broadcast %cst_104 : f32 to vector<16x64xf32>
    %309 = arith.mulf %308, %35 : vector<16x64xf32>
    %310 = arith.addf %307, %309 : vector<16x64xf32>
    %cst_105 = arith.constant -2.343750e-02 : f32
    %311 = vector.broadcast %cst_105 : f32 to vector<16x64xf32>
    %312 = arith.mulf %311, %37 : vector<16x64xf32>
    %313 = arith.addf %310, %312 : vector<16x64xf32>
    %cst_106 = arith.constant -2.343750e-02 : f32
    %314 = vector.broadcast %cst_106 : f32 to vector<16x64xf32>
    %315 = arith.mulf %314, %31 : vector<16x64xf32>
    %cst_107 = arith.constant 0.2265625 : f32
    %316 = vector.broadcast %cst_107 : f32 to vector<16x64xf32>
    %317 = arith.mulf %316, %33 : vector<16x64xf32>
    %318 = arith.addf %315, %317 : vector<16x64xf32>
    %cst_108 = arith.constant 0.8671875 : f32
    %319 = vector.broadcast %cst_108 : f32 to vector<16x64xf32>
    %320 = arith.mulf %319, %35 : vector<16x64xf32>
    %321 = arith.addf %318, %320 : vector<16x64xf32>
    %cst_109 = arith.constant -7.031250e-02 : f32
    %322 = vector.broadcast %cst_109 : f32 to vector<16x64xf32>
    %323 = arith.mulf %322, %37 : vector<16x64xf32>
    %324 = arith.addf %321, %323 : vector<16x64xf32>
    %cst_110 = arith.constant -7.031250e-02 : f32
    %325 = vector.broadcast %cst_110 : f32 to vector<16x64xf32>
    %326 = arith.mulf %325, %33 : vector<16x64xf32>
    %cst_111 = arith.constant 0.8671875 : f32
    %327 = vector.broadcast %cst_111 : f32 to vector<16x64xf32>
    %328 = arith.mulf %327, %35 : vector<16x64xf32>
    %329 = arith.addf %326, %328 : vector<16x64xf32>
    %cst_112 = arith.constant 0.2265625 : f32
    %330 = vector.broadcast %cst_112 : f32 to vector<16x64xf32>
    %331 = arith.mulf %330, %37 : vector<16x64xf32>
    %332 = arith.addf %329, %331 : vector<16x64xf32>
    %cst_113 = arith.constant -2.343750e-02 : f32
    %333 = vector.broadcast %cst_113 : f32 to vector<16x64xf32>
    %334 = arith.mulf %333, %39 : vector<16x64xf32>
    %335 = arith.addf %332, %334 : vector<16x64xf32>
    %cst_114 = arith.constant -2.343750e-02 : f32
    %336 = vector.broadcast %cst_114 : f32 to vector<16x64xf32>
    %337 = arith.mulf %336, %33 : vector<16x64xf32>
    %cst_115 = arith.constant 0.2265625 : f32
    %338 = vector.broadcast %cst_115 : f32 to vector<16x64xf32>
    %339 = arith.mulf %338, %35 : vector<16x64xf32>
    %340 = arith.addf %337, %339 : vector<16x64xf32>
    %cst_116 = arith.constant 0.8671875 : f32
    %341 = vector.broadcast %cst_116 : f32 to vector<16x64xf32>
    %342 = arith.mulf %341, %37 : vector<16x64xf32>
    %343 = arith.addf %340, %342 : vector<16x64xf32>
    %cst_117 = arith.constant -7.031250e-02 : f32
    %344 = vector.broadcast %cst_117 : f32 to vector<16x64xf32>
    %345 = arith.mulf %344, %39 : vector<16x64xf32>
    %346 = arith.addf %343, %345 : vector<16x64xf32>
    %cst_118 = arith.constant -0.068702288 : f32
    %347 = vector.broadcast %cst_118 : f32 to vector<16x64xf32>
    %348 = arith.mulf %347, %35 : vector<16x64xf32>
    %cst_119 = arith.constant 0.847328245 : f32
    %349 = vector.broadcast %cst_119 : f32 to vector<16x64xf32>
    %350 = arith.mulf %349, %37 : vector<16x64xf32>
    %351 = arith.addf %348, %350 : vector<16x64xf32>
    %cst_120 = arith.constant 0.22137405 : f32
    %352 = vector.broadcast %cst_120 : f32 to vector<16x64xf32>
    %353 = arith.mulf %352, %39 : vector<16x64xf32>
    %354 = arith.addf %351, %353 : vector<16x64xf32>
    %cst_121 = arith.constant -0.0218978096 : f32
    %355 = vector.broadcast %cst_121 : f32 to vector<16x64xf32>
    %356 = arith.mulf %355, %35 : vector<16x64xf32>
    %cst_122 = arith.constant 0.211678833 : f32
    %357 = vector.broadcast %cst_122 : f32 to vector<16x64xf32>
    %358 = arith.mulf %357, %37 : vector<16x64xf32>
    %359 = arith.addf %356, %358 : vector<16x64xf32>
    %cst_123 = arith.constant 0.810218989 : f32
    %360 = vector.broadcast %cst_123 : f32 to vector<16x64xf32>
    %361 = arith.mulf %360, %39 : vector<16x64xf32>
    %362 = arith.addf %359, %361 : vector<16x64xf32>
    %cst_124 = arith.constant -0.0882352963 : f32
    %363 = vector.broadcast %cst_124 : f32 to vector<16x64xf32>
    %364 = arith.mulf %363, %37 : vector<16x64xf32>
    %cst_125 = arith.constant 1.08823526 : f32
    %365 = vector.broadcast %cst_125 : f32 to vector<16x64xf32>
    %366 = arith.mulf %365, %39 : vector<16x64xf32>
    %367 = arith.addf %364, %366 : vector<16x64xf32>
    %368 = tpu.concatenate %44, %52, %60, %71, %82, %93, %104, %115, %126, %137, %148, %159, %170, %181, %192, %203 in 1 : vector<16x64xf32>, vector<16x64xf32>, vector<16x64xf32>, vector<16x64xf32>, vector<16x64xf32>, vector<16x64xf32>, vector<16x64xf32>, vector<16x64xf32>, vector<16x64xf32>, vector<16x64xf32>, vector<16x64xf32>, vector<16x64xf32>, vector<16x64xf32>, vector<16x64xf32>, vector<16x64xf32>, vector<16x64xf32> -> vector<16x1024xf32>
    %369 = tpu.concatenate %214, %225, %236, %247, %258, %269, %280, %291, %302, %313, %324, %335, %346, %354, %362, %367 in 1 : vector<16x64xf32>, vector<16x64xf32>, vector<16x64xf32>, vector<16x64xf32>, vector<16x64xf32>, vector<16x64xf32>, vector<16x64xf32>, vector<16x64xf32>, vector<16x64xf32>, vector<16x64xf32>, vector<16x64xf32>, vector<16x64xf32>, vector<16x64xf32>, vector<16x64xf32>, vector<16x64xf32>, vector<16x64xf32> -> vector<16x1024xf32>
    %370 = tpu.concatenate %368, %369 in 1 : vector<16x1024xf32>, vector<16x1024xf32> -> vector<16x2048xf32>
    %c0_126 = arith.constant 0 : index
    %c0_127 = arith.constant 0 : index
    %371 = vector.load %arg4[%c0_126, %c0_127] : memref<32x16xbf16, #tpu.memory_space<vmem>>, vector<32x16xbf16>
    %372 = arith.truncf %370 : vector<16x2048xf32> to vector<16x2048xbf16>
    %cst_128 = arith.constant dense<0.000000e+00> : vector<32x2048xf32>
    %373 = tpu.matmul %371, %372, %cst_128 {dimension_numbers = #tpu.dot_dimension_numbers<[1], [0], [0], [1], [0, 0, 1, 1], [], []>} : vector<32x16xbf16>, vector<16x2048xbf16>, vector<32x2048xf32> -> vector<32x2048xf32>
    %cst_129 = arith.constant 0.000000e+00 : f32
    %374 = vector.broadcast %cst_129 : f32 to vector<32x2048xf32>
    %375 = arith.cmpf oge, %373, %374 : vector<32x2048xf32>
    %cst_130 = arith.constant 0.00999999977 : f32
    %376 = vector.broadcast %cst_130 : f32 to vector<32x2048xf32>
    %377 = arith.mulf %376, %373 : vector<32x2048xf32>
    %378 = arith.select %375, %373, %377 : vector<32x2048xi1>, vector<32x2048xf32>
    %c0_131 = arith.constant 0 : index
    %c0_132 = arith.constant 0 : index
    %379 = vector.load %arg5[%c0_131, %c0_132] : memref<16x32xbf16, #tpu.memory_space<vmem>>, vector<16x32xbf16>
    %380 = arith.truncf %378 : vector<32x2048xf32> to vector<32x2048xbf16>
    %cst_133 = arith.constant dense<0.000000e+00> : vector<16x2048xf32>
    %381 = tpu.matmul %379, %380, %cst_133 {dimension_numbers = #tpu.dot_dimension_numbers<[1], [0], [0], [1], [0, 0, 1, 1], [], []>} : vector<16x32xbf16>, vector<32x2048xbf16>, vector<16x2048xf32> -> vector<16x2048xf32>
    %cst_134 = arith.constant 0.000000e+00 : f32
    %382 = vector.broadcast %cst_134 : f32 to vector<1x18x64xf32>
    %c0_135 = arith.constant 0 : index
    %c0_136 = arith.constant 0 : index
    %c0_137 = arith.constant 0 : index
    %383 = vector.load %arg9[%c0_135, %c0_136, %c0_137] : memref<18x18x64xf32, #tpu.memory_space<vmem>>, vector<1x18x64xf32>
    tpu.vector_store %arg9[%c0_135, %c0_136, %c0_137], %382 {strides = array<i32>} : memref<18x18x64xf32, #tpu.memory_space<vmem>>, vector<1x18x64xf32>,
    %cst_138 = arith.constant 0.000000e+00 : f32
    %384 = vector.broadcast %cst_138 : f32 to vector<1x18x64xf32>
    %c17 = arith.constant 17 : index
    %c0_139 = arith.constant 0 : index
    %c0_140 = arith.constant 0 : index
    %385 = vector.load %arg9[%c17, %c0_139, %c0_140] : memref<18x18x64xf32, #tpu.memory_space<vmem>>, vector<1x18x64xf32>
    tpu.vector_store %arg9[%c17, %c0_139, %c0_140], %384 {strides = array<i32>} : memref<18x18x64xf32, #tpu.memory_space<vmem>>, vector<1x18x64xf32>,
    %cst_141 = arith.constant 0.000000e+00 : f32
    %386 = vector.broadcast %cst_141 : f32 to vector<18x1x64xf32>
    %c0_142 = arith.constant 0 : index
    %c0_143 = arith.constant 0 : index
    %c0_144 = arith.constant 0 : index
    %387 = vector.load %arg9[%c0_142, %c0_143, %c0_144] : memref<18x18x64xf32, #tpu.memory_space<vmem>>, vector<18x1x64xf32>
    tpu.vector_store %arg9[%c0_142, %c0_143, %c0_144], %386 {strides = array<i32>} : memref<18x18x64xf32, #tpu.memory_space<vmem>>, vector<18x1x64xf32>,
    %cst_145 = arith.constant 0.000000e+00 : f32
    %388 = vector.broadcast %cst_145 : f32 to vector<18x1x64xf32>
    %c0_146 = arith.constant 0 : index
    %c17_147 = arith.constant 17 : index
    %c0_148 = arith.constant 0 : index
    %389 = vector.load %arg9[%c0_146, %c17_147, %c0_148] : memref<18x18x64xf32, #tpu.memory_space<vmem>>, vector<18x1x64xf32>
    tpu.vector_store %arg9[%c0_146, %c17_147, %c0_148], %388 {strides = array<i32>} : memref<18x18x64xf32, #tpu.memory_space<vmem>>, vector<18x1x64xf32>,
    %390 = vector.extract_strided_slice %381 {offsets = [0, 0], sizes = [16, 64], strides = [1, 1]} : vector<16x2048xf32> to vector<16x64xf32>
    %391 = vector.extract_strided_slice %381 {offsets = [0, 64], sizes = [16, 64], strides = [1, 1]} : vector<16x2048xf32> to vector<16x64xf32>
    %392 = vector.extract_strided_slice %381 {offsets = [0, 128], sizes = [16, 64], strides = [1, 1]} : vector<16x2048xf32> to vector<16x64xf32>
    %393 = vector.extract_strided_slice %381 {offsets = [0, 192], sizes = [16, 64], strides = [1, 1]} : vector<16x2048xf32> to vector<16x64xf32>
    %394 = vector.extract_strided_slice %381 {offsets = [0, 256], sizes = [16, 64], strides = [1, 1]} : vector<16x2048xf32> to vector<16x64xf32>
    %395 = vector.extract_strided_slice %381 {offsets = [0, 320], sizes = [16, 64], strides = [1, 1]} : vector<16x2048xf32> to vector<16x64xf32>
    %396 = vector.extract_strided_slice %381 {offsets = [0, 384], sizes = [16, 64], strides = [1, 1]} : vector<16x2048xf32> to vector<16x64xf32>
    %397 = vector.extract_strided_slice %381 {offsets = [0, 448], sizes = [16, 64], strides = [1, 1]} : vector<16x2048xf32> to vector<16x64xf32>
    %398 = vector.extract_strided_slice %381 {offsets = [0, 512], sizes = [16, 64], strides = [1, 1]} : vector<16x2048xf32> to vector<16x64xf32>
    %399 = vector.extract_strided_slice %381 {offsets = [0, 576], sizes = [16, 64], strides = [1, 1]} : vector<16x2048xf32> to vector<16x64xf32>
    %400 = vector.extract_strided_slice %381 {offsets = [0, 640], sizes = [16, 64], strides = [1, 1]} : vector<16x2048xf32> to vector<16x64xf32>
    %401 = vector.extract_strided_slice %381 {offsets = [0, 704], sizes = [16, 64], strides = [1, 1]} : vector<16x2048xf32> to vector<16x64xf32>
    %402 = vector.extract_strided_slice %381 {offsets = [0, 768], sizes = [16, 64], strides = [1, 1]} : vector<16x2048xf32> to vector<16x64xf32>
    %403 = vector.extract_strided_slice %381 {offsets = [0, 832], sizes = [16, 64], strides = [1, 1]} : vector<16x2048xf32> to vector<16x64xf32>
    %404 = vector.extract_strided_slice %381 {offsets = [0, 896], sizes = [16, 64], strides = [1, 1]} : vector<16x2048xf32> to vector<16x64xf32>
    %405 = vector.extract_strided_slice %381 {offsets = [0, 960], sizes = [16, 64], strides = [1, 1]} : vector<16x2048xf32> to vector<16x64xf32>
    %406 = vector.extract_strided_slice %381 {offsets = [0, 1024], sizes = [16, 64], strides = [1, 1]} : vector<16x2048xf32> to vector<16x64xf32>
    %407 = vector.extract_strided_slice %381 {offsets = [0, 1088], sizes = [16, 64], strides = [1, 1]} : vector<16x2048xf32> to vector<16x64xf32>
    %408 = vector.extract_strided_slice %381 {offsets = [0, 1152], sizes = [16, 64], strides = [1, 1]} : vector<16x2048xf32> to vector<16x64xf32>
    %409 = vector.extract_strided_slice %381 {offsets = [0, 1216], sizes = [16, 64], strides = [1, 1]} : vector<16x2048xf32> to vector<16x64xf32>
    %410 = vector.extract_strided_slice %381 {offsets = [0, 1280], sizes = [16, 64], strides = [1, 1]} : vector<16x2048xf32> to vector<16x64xf32>
    %411 = vector.extract_strided_slice %381 {offsets = [0, 1344], sizes = [16, 64], strides = [1, 1]} : vector<16x2048xf32> to vector<16x64xf32>
    %412 = vector.extract_strided_slice %381 {offsets = [0, 1408], sizes = [16, 64], strides = [1, 1]} : vector<16x2048xf32> to vector<16x64xf32>
    %413 = vector.extract_strided_slice %381 {offsets = [0, 1472], sizes = [16, 64], strides = [1, 1]} : vector<16x2048xf32> to vector<16x64xf32>
    %414 = vector.extract_strided_slice %381 {offsets = [0, 1536], sizes = [16, 64], strides = [1, 1]} : vector<16x2048xf32> to vector<16x64xf32>
    %415 = vector.extract_strided_slice %381 {offsets = [0, 1600], sizes = [16, 64], strides = [1, 1]} : vector<16x2048xf32> to vector<16x64xf32>
    %416 = vector.extract_strided_slice %381 {offsets = [0, 1664], sizes = [16, 64], strides = [1, 1]} : vector<16x2048xf32> to vector<16x64xf32>
    %417 = vector.extract_strided_slice %381 {offsets = [0, 1728], sizes = [16, 64], strides = [1, 1]} : vector<16x2048xf32> to vector<16x64xf32>
    %418 = vector.extract_strided_slice %381 {offsets = [0, 1792], sizes = [16, 64], strides = [1, 1]} : vector<16x2048xf32> to vector<16x64xf32>
    %419 = vector.extract_strided_slice %381 {offsets = [0, 1856], sizes = [16, 64], strides = [1, 1]} : vector<16x2048xf32> to vector<16x64xf32>
    %420 = vector.extract_strided_slice %381 {offsets = [0, 1920], sizes = [16, 64], strides = [1, 1]} : vector<16x2048xf32> to vector<16x64xf32>
    %421 = vector.extract_strided_slice %381 {offsets = [0, 1984], sizes = [16, 64], strides = [1, 1]} : vector<16x2048xf32> to vector<16x64xf32>
    %cst_149 = arith.constant 0.46443516 : f32
    %422 = vector.broadcast %cst_149 : f32 to vector<16x64xf32>
    %423 = arith.mulf %422, %390 : vector<16x64xf32>
    %cst_150 = arith.constant 0.46443516 : f32
    %424 = vector.broadcast %cst_150 : f32 to vector<16x64xf32>
    %425 = arith.mulf %424, %391 : vector<16x64xf32>
    %426 = arith.addf %423, %425 : vector<16x64xf32>
    %cst_151 = arith.constant 0.121338911 : f32
    %427 = vector.broadcast %cst_151 : f32 to vector<16x64xf32>
    %428 = arith.mulf %427, %392 : vector<16x64xf32>
    %429 = arith.addf %426, %428 : vector<16x64xf32>
    %cst_152 = arith.constant -0.0376569033 : f32
    %430 = vector.broadcast %cst_152 : f32 to vector<16x64xf32>
    %431 = arith.mulf %430, %393 : vector<16x64xf32>
    %432 = arith.addf %429, %431 : vector<16x64xf32>
    %cst_153 = arith.constant -0.0125523014 : f32
    %433 = vector.broadcast %cst_153 : f32 to vector<16x64xf32>
    %434 = arith.mulf %433, %394 : vector<16x64xf32>
    %435 = arith.addf %432, %434 : vector<16x64xf32>
    %436 = vector.shape_cast %435 : vector<16x64xf32> to vector<16x1x64xf32>
    %c1 = arith.constant 1 : index
    %c1_154 = arith.constant 1 : index
    %c0_155 = arith.constant 0 : index
    %437 = vector.load %arg9[%c1, %c1_154, %c0_155] : memref<18x18x64xf32, #tpu.memory_space<vmem>>, vector<16x1x64xf32>
    tpu.vector_store %arg9[%c1, %c1_154, %c0_155], %436 {strides = array<i32>} : memref<18x18x64xf32, #tpu.memory_space<vmem>>, vector<16x1x64xf32>,
    %cst_156 = arith.constant -0.0347490348 : f32
    %438 = vector.broadcast %cst_156 : f32 to vector<16x64xf32>
    %439 = arith.mulf %438, %390 : vector<16x64xf32>
    %cst_157 = arith.constant 0.111969113 : f32
    %440 = vector.broadcast %cst_157 : f32 to vector<16x64xf32>
    %441 = arith.mulf %440, %391 : vector<16x64xf32>
    %442 = arith.addf %439, %441 : vector<16x64xf32>
    %cst_158 = arith.constant 0.428571433 : f32
    %443 = vector.broadcast %cst_158 : f32 to vector<16x64xf32>
    %444 = arith.mulf %443, %392 : vector<16x64xf32>
    %445 = arith.addf %442, %444 : vector<16x64xf32>
    %cst_159 = arith.constant 0.428571433 : f32
    %446 = vector.broadcast %cst_159 : f32 to vector<16x64xf32>
    %447 = arith.mulf %446, %393 : vector<16x64xf32>
    %448 = arith.addf %445, %447 : vector<16x64xf32>
    %cst_160 = arith.constant 0.111969113 : f32
    %449 = vector.broadcast %cst_160 : f32 to vector<16x64xf32>
    %450 = arith.mulf %449, %394 : vector<16x64xf32>
    %451 = arith.addf %448, %450 : vector<16x64xf32>
    %cst_161 = arith.constant -0.0347490348 : f32
    %452 = vector.broadcast %cst_161 : f32 to vector<16x64xf32>
    %453 = arith.mulf %452, %395 : vector<16x64xf32>
    %454 = arith.addf %451, %453 : vector<16x64xf32>
    %cst_162 = arith.constant -0.0115830116 : f32
    %455 = vector.broadcast %cst_162 : f32 to vector<16x64xf32>
    %456 = arith.mulf %455, %396 : vector<16x64xf32>
    %457 = arith.addf %454, %456 : vector<16x64xf32>
    %458 = vector.shape_cast %457 : vector<16x64xf32> to vector<16x1x64xf32>
    %c1_163 = arith.constant 1 : index
    %c2 = arith.constant 2 : index
    %c0_164 = arith.constant 0 : index
    %459 = vector.load %arg9[%c1_163, %c2, %c0_164] : memref<18x18x64xf32, #tpu.memory_space<vmem>>, vector<16x1x64xf32>
    tpu.vector_store %arg9[%c1_163, %c2, %c0_164], %458 {strides = array<i32>} : memref<18x18x64xf32, #tpu.memory_space<vmem>>, vector<16x1x64xf32>,
    %cst_165 = arith.constant -0.01171875 : f32
    %460 = vector.broadcast %cst_165 : f32 to vector<16x64xf32>
    %461 = arith.mulf %460, %391 : vector<16x64xf32>
    %cst_166 = arith.constant -0.03515625 : f32
    %462 = vector.broadcast %cst_166 : f32 to vector<16x64xf32>
    %463 = arith.mulf %462, %392 : vector<16x64xf32>
    %464 = arith.addf %461, %463 : vector<16x64xf32>
    %cst_167 = arith.constant 0.11328125 : f32
    %465 = vector.broadcast %cst_167 : f32 to vector<16x64xf32>
    %466 = arith.mulf %465, %393 : vector<16x64xf32>
    %467 = arith.addf %464, %466 : vector<16x64xf32>
    %cst_168 = arith.constant 0.43359375 : f32
    %468 = vector.broadcast %cst_168 : f32 to vector<16x64xf32>
    %469 = arith.mulf %468, %394 : vector<16x64xf32>
    %470 = arith.addf %467, %469 : vector<16x64xf32>
    %cst_169 = arith.constant 0.43359375 : f32
    %471 = vector.broadcast %cst_169 : f32 to vector<16x64xf32>
    %472 = arith.mulf %471, %395 : vector<16x64xf32>
    %473 = arith.addf %470, %472 : vector<16x64xf32>
    %cst_170 = arith.constant 0.11328125 : f32
    %474 = vector.broadcast %cst_170 : f32 to vector<16x64xf32>
    %475 = arith.mulf %474, %396 : vector<16x64xf32>
    %476 = arith.addf %473, %475 : vector<16x64xf32>
    %cst_171 = arith.constant -0.03515625 : f32
    %477 = vector.broadcast %cst_171 : f32 to vector<16x64xf32>
    %478 = arith.mulf %477, %397 : vector<16x64xf32>
    %479 = arith.addf %476, %478 : vector<16x64xf32>
    %cst_172 = arith.constant -0.01171875 : f32
    %480 = vector.broadcast %cst_172 : f32 to vector<16x64xf32>
    %481 = arith.mulf %480, %398 : vector<16x64xf32>
    %482 = arith.addf %479, %481 : vector<16x64xf32>
    %483 = vector.shape_cast %482 : vector<16x64xf32> to vector<16x1x64xf32>
    %c1_173 = arith.constant 1 : index
    %c3 = arith.constant 3 : index
    %c0_174 = arith.constant 0 : index
    %484 = vector.load %arg9[%c1_173, %c3, %c0_174] : memref<18x18x64xf32, #tpu.memory_space<vmem>>, vector<16x1x64xf32>
    tpu.vector_store %arg9[%c1_173, %c3, %c0_174], %483 {strides = array<i32>} : memref<18x18x64xf32, #tpu.memory_space<vmem>>, vector<16x1x64xf32>,
    %cst_175 = arith.constant -0.01171875 : f32
    %485 = vector.broadcast %cst_175 : f32 to vector<16x64xf32>
    %486 = arith.mulf %485, %393 : vector<16x64xf32>
    %cst_176 = arith.constant -0.03515625 : f32
    %487 = vector.broadcast %cst_176 : f32 to vector<16x64xf32>
    %488 = arith.mulf %487, %394 : vector<16x64xf32>
    %489 = arith.addf %486, %488 : vector<16x64xf32>
    %cst_177 = arith.constant 0.11328125 : f32
    %490 = vector.broadcast %cst_177 : f32 to vector<16x64xf32>
    %491 = arith.mulf %490, %395 : vector<16x64xf32>
    %492 = arith.addf %489, %491 : vector<16x64xf32>
    %cst_178 = arith.constant 0.43359375 : f32
    %493 = vector.broadcast %cst_178 : f32 to vector<16x64xf32>
    %494 = arith.mulf %493, %396 : vector<16x64xf32>
    %495 = arith.addf %492, %494 : vector<16x64xf32>
    %cst_179 = arith.constant 0.43359375 : f32
    %496 = vector.broadcast %cst_179 : f32 to vector<16x64xf32>
    %497 = arith.mulf %496, %397 : vector<16x64xf32>
    %498 = arith.addf %495, %497 : vector<16x64xf32>
    %cst_180 = arith.constant 0.11328125 : f32
    %499 = vector.broadcast %cst_180 : f32 to vector<16x64xf32>
    %500 = arith.mulf %499, %398 : vector<16x64xf32>
    %501 = arith.addf %498, %500 : vector<16x64xf32>
    %cst_181 = arith.constant -0.03515625 : f32
    %502 = vector.broadcast %cst_181 : f32 to vector<16x64xf32>
    %503 = arith.mulf %502, %399 : vector<16x64xf32>
    %504 = arith.addf %501, %503 : vector<16x64xf32>
    %cst_182 = arith.constant -0.01171875 : f32
    %505 = vector.broadcast %cst_182 : f32 to vector<16x64xf32>
    %506 = arith.mulf %505, %400 : vector<16x64xf32>
    %507 = arith.addf %504, %506 : vector<16x64xf32>
    %508 = vector.shape_cast %507 : vector<16x64xf32> to vector<16x1x64xf32>
    %c1_183 = arith.constant 1 : index
    %c4 = arith.constant 4 : index
    %c0_184 = arith.constant 0 : index
    %509 = vector.load %arg9[%c1_183, %c4, %c0_184] : memref<18x18x64xf32, #tpu.memory_space<vmem>>, vector<16x1x64xf32>
    tpu.vector_store %arg9[%c1_183, %c4, %c0_184], %508 {strides = array<i32>} : memref<18x18x64xf32, #tpu.memory_space<vmem>>, vector<16x1x64xf32>,
    %cst_185 = arith.constant -0.01171875 : f32
    %510 = vector.broadcast %cst_185 : f32 to vector<16x64xf32>
    %511 = arith.mulf %510, %395 : vector<16x64xf32>
    %cst_186 = arith.constant -0.03515625 : f32
    %512 = vector.broadcast %cst_186 : f32 to vector<16x64xf32>
    %513 = arith.mulf %512, %396 : vector<16x64xf32>
    %514 = arith.addf %511, %513 : vector<16x64xf32>
    %cst_187 = arith.constant 0.11328125 : f32
    %515 = vector.broadcast %cst_187 : f32 to vector<16x64xf32>
    %516 = arith.mulf %515, %397 : vector<16x64xf32>
    %517 = arith.addf %514, %516 : vector<16x64xf32>
    %cst_188 = arith.constant 0.43359375 : f32
    %518 = vector.broadcast %cst_188 : f32 to vector<16x64xf32>
    %519 = arith.mulf %518, %398 : vector<16x64xf32>
    %520 = arith.addf %517, %519 : vector<16x64xf32>
    %cst_189 = arith.constant 0.43359375 : f32
    %521 = vector.broadcast %cst_189 : f32 to vector<16x64xf32>
    %522 = arith.mulf %521, %399 : vector<16x64xf32>
    %523 = arith.addf %520, %522 : vector<16x64xf32>
    %cst_190 = arith.constant 0.11328125 : f32
    %524 = vector.broadcast %cst_190 : f32 to vector<16x64xf32>
    %525 = arith.mulf %524, %400 : vector<16x64xf32>
    %526 = arith.addf %523, %525 : vector<16x64xf32>
    %cst_191 = arith.constant -0.03515625 : f32
    %527 = vector.broadcast %cst_191 : f32 to vector<16x64xf32>
    %528 = arith.mulf %527, %401 : vector<16x64xf32>
    %529 = arith.addf %526, %528 : vector<16x64xf32>
    %cst_192 = arith.constant -0.01171875 : f32
    %530 = vector.broadcast %cst_192 : f32 to vector<16x64xf32>
    %531 = arith.mulf %530, %402 : vector<16x64xf32>
    %532 = arith.addf %529, %531 : vector<16x64xf32>
    %533 = vector.shape_cast %532 : vector<16x64xf32> to vector<16x1x64xf32>
    %c1_193 = arith.constant 1 : index
    %c5 = arith.constant 5 : index
    %c0_194 = arith.constant 0 : index
    %534 = vector.load %arg9[%c1_193, %c5, %c0_194] : memref<18x18x64xf32, #tpu.memory_space<vmem>>, vector<16x1x64xf32>
    tpu.vector_store %arg9[%c1_193, %c5, %c0_194], %533 {strides = array<i32>} : memref<18x18x64xf32, #tpu.memory_space<vmem>>, vector<16x1x64xf32>,
    %cst_195 = arith.constant -0.01171875 : f32
    %535 = vector.broadcast %cst_195 : f32 to vector<16x64xf32>
    %536 = arith.mulf %535, %397 : vector<16x64xf32>
    %cst_196 = arith.constant -0.03515625 : f32
    %537 = vector.broadcast %cst_196 : f32 to vector<16x64xf32>
    %538 = arith.mulf %537, %398 : vector<16x64xf32>
    %539 = arith.addf %536, %538 : vector<16x64xf32>
    %cst_197 = arith.constant 0.11328125 : f32
    %540 = vector.broadcast %cst_197 : f32 to vector<16x64xf32>
    %541 = arith.mulf %540, %399 : vector<16x64xf32>
    %542 = arith.addf %539, %541 : vector<16x64xf32>
    %cst_198 = arith.constant 0.43359375 : f32
    %543 = vector.broadcast %cst_198 : f32 to vector<16x64xf32>
    %544 = arith.mulf %543, %400 : vector<16x64xf32>
    %545 = arith.addf %542, %544 : vector<16x64xf32>
    %cst_199 = arith.constant 0.43359375 : f32
    %546 = vector.broadcast %cst_199 : f32 to vector<16x64xf32>
    %547 = arith.mulf %546, %401 : vector<16x64xf32>
    %548 = arith.addf %545, %547 : vector<16x64xf32>
    %cst_200 = arith.constant 0.11328125 : f32
    %549 = vector.broadcast %cst_200 : f32 to vector<16x64xf32>
    %550 = arith.mulf %549, %402 : vector<16x64xf32>
    %551 = arith.addf %548, %550 : vector<16x64xf32>
    %cst_201 = arith.constant -0.03515625 : f32
    %552 = vector.broadcast %cst_201 : f32 to vector<16x64xf32>
    %553 = arith.mulf %552, %403 : vector<16x64xf32>
    %554 = arith.addf %551, %553 : vector<16x64xf32>
    %cst_202 = arith.constant -0.01171875 : f32
    %555 = vector.broadcast %cst_202 : f32 to vector<16x64xf32>
    %556 = arith.mulf %555, %404 : vector<16x64xf32>
    %557 = arith.addf %554, %556 : vector<16x64xf32>
    %558 = vector.shape_cast %557 : vector<16x64xf32> to vector<16x1x64xf32>
    %c1_203 = arith.constant 1 : index
    %c6 = arith.constant 6 : index
    %c0_204 = arith.constant 0 : index
    %559 = vector.load %arg9[%c1_203, %c6, %c0_204] : memref<18x18x64xf32, #tpu.memory_space<vmem>>, vector<16x1x64xf32>
    tpu.vector_store %arg9[%c1_203, %c6, %c0_204], %558 {strides = array<i32>} : memref<18x18x64xf32, #tpu.memory_space<vmem>>, vector<16x1x64xf32>,
    %cst_205 = arith.constant -0.01171875 : f32
    %560 = vector.broadcast %cst_205 : f32 to vector<16x64xf32>
    %561 = arith.mulf %560, %399 : vector<16x64xf32>
    %cst_206 = arith.constant -0.03515625 : f32
    %562 = vector.broadcast %cst_206 : f32 to vector<16x64xf32>
    %563 = arith.mulf %562, %400 : vector<16x64xf32>
    %564 = arith.addf %561, %563 : vector<16x64xf32>
    %cst_207 = arith.constant 0.11328125 : f32
    %565 = vector.broadcast %cst_207 : f32 to vector<16x64xf32>
    %566 = arith.mulf %565, %401 : vector<16x64xf32>
    %567 = arith.addf %564, %566 : vector<16x64xf32>
    %cst_208 = arith.constant 0.43359375 : f32
    %568 = vector.broadcast %cst_208 : f32 to vector<16x64xf32>
    %569 = arith.mulf %568, %402 : vector<16x64xf32>
    %570 = arith.addf %567, %569 : vector<16x64xf32>
    %cst_209 = arith.constant 0.43359375 : f32
    %571 = vector.broadcast %cst_209 : f32 to vector<16x64xf32>
    %572 = arith.mulf %571, %403 : vector<16x64xf32>
    %573 = arith.addf %570, %572 : vector<16x64xf32>
    %cst_210 = arith.constant 0.11328125 : f32
    %574 = vector.broadcast %cst_210 : f32 to vector<16x64xf32>
    %575 = arith.mulf %574, %404 : vector<16x64xf32>
    %576 = arith.addf %573, %575 : vector<16x64xf32>
    %cst_211 = arith.constant -0.03515625 : f32
    %577 = vector.broadcast %cst_211 : f32 to vector<16x64xf32>
    %578 = arith.mulf %577, %405 : vector<16x64xf32>
    %579 = arith.addf %576, %578 : vector<16x64xf32>
    %cst_212 = arith.constant -0.01171875 : f32
    %580 = vector.broadcast %cst_212 : f32 to vector<16x64xf32>
    %581 = arith.mulf %580, %406 : vector<16x64xf32>
    %582 = arith.addf %579, %581 : vector<16x64xf32>
    %583 = vector.shape_cast %582 : vector<16x64xf32> to vector<16x1x64xf32>
    %c1_213 = arith.constant 1 : index
    %c7 = arith.constant 7 : index
    %c0_214 = arith.constant 0 : index
    %584 = vector.load %arg9[%c1_213, %c7, %c0_214] : memref<18x18x64xf32, #tpu.memory_space<vmem>>, vector<16x1x64xf32>
    tpu.vector_store %arg9[%c1_213, %c7, %c0_214], %583 {strides = array<i32>} : memref<18x18x64xf32, #tpu.memory_space<vmem>>, vector<16x1x64xf32>,
    %cst_215 = arith.constant -0.01171875 : f32
    %585 = vector.broadcast %cst_215 : f32 to vector<16x64xf32>
    %586 = arith.mulf %585, %401 : vector<16x64xf32>
    %cst_216 = arith.constant -0.03515625 : f32
    %587 = vector.broadcast %cst_216 : f32 to vector<16x64xf32>
    %588 = arith.mulf %587, %402 : vector<16x64xf32>
    %589 = arith.addf %586, %588 : vector<16x64xf32>
    %cst_217 = arith.constant 0.11328125 : f32
    %590 = vector.broadcast %cst_217 : f32 to vector<16x64xf32>
    %591 = arith.mulf %590, %403 : vector<16x64xf32>
    %592 = arith.addf %589, %591 : vector<16x64xf32>
    %cst_218 = arith.constant 0.43359375 : f32
    %593 = vector.broadcast %cst_218 : f32 to vector<16x64xf32>
    %594 = arith.mulf %593, %404 : vector<16x64xf32>
    %595 = arith.addf %592, %594 : vector<16x64xf32>
    %cst_219 = arith.constant 0.43359375 : f32
    %596 = vector.broadcast %cst_219 : f32 to vector<16x64xf32>
    %597 = arith.mulf %596, %405 : vector<16x64xf32>
    %598 = arith.addf %595, %597 : vector<16x64xf32>
    %cst_220 = arith.constant 0.11328125 : f32
    %599 = vector.broadcast %cst_220 : f32 to vector<16x64xf32>
    %600 = arith.mulf %599, %406 : vector<16x64xf32>
    %601 = arith.addf %598, %600 : vector<16x64xf32>
    %cst_221 = arith.constant -0.03515625 : f32
    %602 = vector.broadcast %cst_221 : f32 to vector<16x64xf32>
    %603 = arith.mulf %602, %407 : vector<16x64xf32>
    %604 = arith.addf %601, %603 : vector<16x64xf32>
    %cst_222 = arith.constant -0.01171875 : f32
    %605 = vector.broadcast %cst_222 : f32 to vector<16x64xf32>
    %606 = arith.mulf %605, %408 : vector<16x64xf32>
    %607 = arith.addf %604, %606 : vector<16x64xf32>
    %608 = vector.shape_cast %607 : vector<16x64xf32> to vector<16x1x64xf32>
    %c1_223 = arith.constant 1 : index
    %c8 = arith.constant 8 : index
    %c0_224 = arith.constant 0 : index
    %609 = vector.load %arg9[%c1_223, %c8, %c0_224] : memref<18x18x64xf32, #tpu.memory_space<vmem>>, vector<16x1x64xf32>
    tpu.vector_store %arg9[%c1_223, %c8, %c0_224], %608 {strides = array<i32>} : memref<18x18x64xf32, #tpu.memory_space<vmem>>, vector<16x1x64xf32>,
    %cst_225 = arith.constant -0.01171875 : f32
    %610 = vector.broadcast %cst_225 : f32 to vector<16x64xf32>
    %611 = arith.mulf %610, %403 : vector<16x64xf32>
    %cst_226 = arith.constant -0.03515625 : f32
    %612 = vector.broadcast %cst_226 : f32 to vector<16x64xf32>
    %613 = arith.mulf %612, %404 : vector<16x64xf32>
    %614 = arith.addf %611, %613 : vector<16x64xf32>
    %cst_227 = arith.constant 0.11328125 : f32
    %615 = vector.broadcast %cst_227 : f32 to vector<16x64xf32>
    %616 = arith.mulf %615, %405 : vector<16x64xf32>
    %617 = arith.addf %614, %616 : vector<16x64xf32>
    %cst_228 = arith.constant 0.43359375 : f32
    %618 = vector.broadcast %cst_228 : f32 to vector<16x64xf32>
    %619 = arith.mulf %618, %406 : vector<16x64xf32>
    %620 = arith.addf %617, %619 : vector<16x64xf32>
    %cst_229 = arith.constant 0.43359375 : f32
    %621 = vector.broadcast %cst_229 : f32 to vector<16x64xf32>
    %622 = arith.mulf %621, %407 : vector<16x64xf32>
    %623 = arith.addf %620, %622 : vector<16x64xf32>
    %cst_230 = arith.constant 0.11328125 : f32
    %624 = vector.broadcast %cst_230 : f32 to vector<16x64xf32>
    %625 = arith.mulf %624, %408 : vector<16x64xf32>
    %626 = arith.addf %623, %625 : vector<16x64xf32>
    %cst_231 = arith.constant -0.03515625 : f32
    %627 = vector.broadcast %cst_231 : f32 to vector<16x64xf32>
    %628 = arith.mulf %627, %409 : vector<16x64xf32>
    %629 = arith.addf %626, %628 : vector<16x64xf32>
    %cst_232 = arith.constant -0.01171875 : f32
    %630 = vector.broadcast %cst_232 : f32 to vector<16x64xf32>
    %631 = arith.mulf %630, %410 : vector<16x64xf32>
    %632 = arith.addf %629, %631 : vector<16x64xf32>
    %633 = vector.shape_cast %632 : vector<16x64xf32> to vector<16x1x64xf32>
    %c1_233 = arith.constant 1 : index
    %c9 = arith.constant 9 : index
    %c0_234 = arith.constant 0 : index
    %634 = vector.load %arg9[%c1_233, %c9, %c0_234] : memref<18x18x64xf32, #tpu.memory_space<vmem>>, vector<16x1x64xf32>
    tpu.vector_store %arg9[%c1_233, %c9, %c0_234], %633 {strides = array<i32>} : memref<18x18x64xf32, #tpu.memory_space<vmem>>, vector<16x1x64xf32>,
    %cst_235 = arith.constant -0.01171875 : f32
    %635 = vector.broadcast %cst_235 : f32 to vector<16x64xf32>
    %636 = arith.mulf %635, %405 : vector<16x64xf32>
    %cst_236 = arith.constant -0.03515625 : f32
    %637 = vector.broadcast %cst_236 : f32 to vector<16x64xf32>
    %638 = arith.mulf %637, %406 : vector<16x64xf32>
    %639 = arith.addf %636, %638 : vector<16x64xf32>
    %cst_237 = arith.constant 0.11328125 : f32
    %640 = vector.broadcast %cst_237 : f32 to vector<16x64xf32>
    %641 = arith.mulf %640, %407 : vector<16x64xf32>
    %642 = arith.addf %639, %641 : vector<16x64xf32>
    %cst_238 = arith.constant 0.43359375 : f32
    %643 = vector.broadcast %cst_238 : f32 to vector<16x64xf32>
    %644 = arith.mulf %643, %408 : vector<16x64xf32>
    %645 = arith.addf %642, %644 : vector<16x64xf32>
    %cst_239 = arith.constant 0.43359375 : f32
    %646 = vector.broadcast %cst_239 : f32 to vector<16x64xf32>
    %647 = arith.mulf %646, %409 : vector<16x64xf32>
    %648 = arith.addf %645, %647 : vector<16x64xf32>
    %cst_240 = arith.constant 0.11328125 : f32
    %649 = vector.broadcast %cst_240 : f32 to vector<16x64xf32>
    %650 = arith.mulf %649, %410 : vector<16x64xf32>
    %651 = arith.addf %648, %650 : vector<16x64xf32>
    %cst_241 = arith.constant -0.03515625 : f32
    %652 = vector.broadcast %cst_241 : f32 to vector<16x64xf32>
    %653 = arith.mulf %652, %411 : vector<16x64xf32>
    %654 = arith.addf %651, %653 : vector<16x64xf32>
    %cst_242 = arith.constant -0.01171875 : f32
    %655 = vector.broadcast %cst_242 : f32 to vector<16x64xf32>
    %656 = arith.mulf %655, %412 : vector<16x64xf32>
    %657 = arith.addf %654, %656 : vector<16x64xf32>
    %658 = vector.shape_cast %657 : vector<16x64xf32> to vector<16x1x64xf32>
    %c1_243 = arith.constant 1 : index
    %c10 = arith.constant 10 : index
    %c0_244 = arith.constant 0 : index
    %659 = vector.load %arg9[%c1_243, %c10, %c0_244] : memref<18x18x64xf32, #tpu.memory_space<vmem>>, vector<16x1x64xf32>
    tpu.vector_store %arg9[%c1_243, %c10, %c0_244], %658 {strides = array<i32>} : memref<18x18x64xf32, #tpu.memory_space<vmem>>, vector<16x1x64xf32>,
    %cst_245 = arith.constant -0.01171875 : f32
    %660 = vector.broadcast %cst_245 : f32 to vector<16x64xf32>
    %661 = arith.mulf %660, %407 : vector<16x64xf32>
    %cst_246 = arith.constant -0.03515625 : f32
    %662 = vector.broadcast %cst_246 : f32 to vector<16x64xf32>
    %663 = arith.mulf %662, %408 : vector<16x64xf32>
    %664 = arith.addf %661, %663 : vector<16x64xf32>
    %cst_247 = arith.constant 0.11328125 : f32
    %665 = vector.broadcast %cst_247 : f32 to vector<16x64xf32>
    %666 = arith.mulf %665, %409 : vector<16x64xf32>
    %667 = arith.addf %664, %666 : vector<16x64xf32>
    %cst_248 = arith.constant 0.43359375 : f32
    %668 = vector.broadcast %cst_248 : f32 to vector<16x64xf32>
    %669 = arith.mulf %668, %410 : vector<16x64xf32>
    %670 = arith.addf %667, %669 : vector<16x64xf32>
    %cst_249 = arith.constant 0.43359375 : f32
    %671 = vector.broadcast %cst_249 : f32 to vector<16x64xf32>
    %672 = arith.mulf %671, %411 : vector<16x64xf32>
    %673 = arith.addf %670, %672 : vector<16x64xf32>
    %cst_250 = arith.constant 0.11328125 : f32
    %674 = vector.broadcast %cst_250 : f32 to vector<16x64xf32>
    %675 = arith.mulf %674, %412 : vector<16x64xf32>
    %676 = arith.addf %673, %675 : vector<16x64xf32>
    %cst_251 = arith.constant -0.03515625 : f32
    %677 = vector.broadcast %cst_251 : f32 to vector<16x64xf32>
    %678 = arith.mulf %677, %413 : vector<16x64xf32>
    %679 = arith.addf %676, %678 : vector<16x64xf32>
    %cst_252 = arith.constant -0.01171875 : f32
    %680 = vector.broadcast %cst_252 : f32 to vector<16x64xf32>
    %681 = arith.mulf %680, %414 : vector<16x64xf32>
    %682 = arith.addf %679, %681 : vector<16x64xf32>
    %683 = vector.shape_cast %682 : vector<16x64xf32> to vector<16x1x64xf32>
    %c1_253 = arith.constant 1 : index
    %c11 = arith.constant 11 : index
    %c0_254 = arith.constant 0 : index
    %684 = vector.load %arg9[%c1_253, %c11, %c0_254] : memref<18x18x64xf32, #tpu.memory_space<vmem>>, vector<16x1x64xf32>
    tpu.vector_store %arg9[%c1_253, %c11, %c0_254], %683 {strides = array<i32>} : memref<18x18x64xf32, #tpu.memory_space<vmem>>, vector<16x1x64xf32>,
    %cst_255 = arith.constant -0.01171875 : f32
    %685 = vector.broadcast %cst_255 : f32 to vector<16x64xf32>
    %686 = arith.mulf %685, %409 : vector<16x64xf32>
    %cst_256 = arith.constant -0.03515625 : f32
    %687 = vector.broadcast %cst_256 : f32 to vector<16x64xf32>
    %688 = arith.mulf %687, %410 : vector<16x64xf32>
    %689 = arith.addf %686, %688 : vector<16x64xf32>
    %cst_257 = arith.constant 0.11328125 : f32
    %690 = vector.broadcast %cst_257 : f32 to vector<16x64xf32>
    %691 = arith.mulf %690, %411 : vector<16x64xf32>
    %692 = arith.addf %689, %691 : vector<16x64xf32>
    %cst_258 = arith.constant 0.43359375 : f32
    %693 = vector.broadcast %cst_258 : f32 to vector<16x64xf32>
    %694 = arith.mulf %693, %412 : vector<16x64xf32>
    %695 = arith.addf %692, %694 : vector<16x64xf32>
    %cst_259 = arith.constant 0.43359375 : f32
    %696 = vector.broadcast %cst_259 : f32 to vector<16x64xf32>
    %697 = arith.mulf %696, %413 : vector<16x64xf32>
    %698 = arith.addf %695, %697 : vector<16x64xf32>
    %cst_260 = arith.constant 0.11328125 : f32
    %699 = vector.broadcast %cst_260 : f32 to vector<16x64xf32>
    %700 = arith.mulf %699, %414 : vector<16x64xf32>
    %701 = arith.addf %698, %700 : vector<16x64xf32>
    %cst_261 = arith.constant -0.03515625 : f32
    %702 = vector.broadcast %cst_261 : f32 to vector<16x64xf32>
    %703 = arith.mulf %702, %415 : vector<16x64xf32>
    %704 = arith.addf %701, %703 : vector<16x64xf32>
    %cst_262 = arith.constant -0.01171875 : f32
    %705 = vector.broadcast %cst_262 : f32 to vector<16x64xf32>
    %706 = arith.mulf %705, %416 : vector<16x64xf32>
    %707 = arith.addf %704, %706 : vector<16x64xf32>
    %708 = vector.shape_cast %707 : vector<16x64xf32> to vector<16x1x64xf32>
    %c1_263 = arith.constant 1 : index
    %c12 = arith.constant 12 : index
    %c0_264 = arith.constant 0 : index
    %709 = vector.load %arg9[%c1_263, %c12, %c0_264] : memref<18x18x64xf32, #tpu.memory_space<vmem>>, vector<16x1x64xf32>
    tpu.vector_store %arg9[%c1_263, %c12, %c0_264], %708 {strides = array<i32>} : memref<18x18x64xf32, #tpu.memory_space<vmem>>, vector<16x1x64xf32>,
    %cst_265 = arith.constant -0.01171875 : f32
    %710 = vector.broadcast %cst_265 : f32 to vector<16x64xf32>
    %711 = arith.mulf %710, %411 : vector<16x64xf32>
    %cst_266 = arith.constant -0.03515625 : f32
    %712 = vector.broadcast %cst_266 : f32 to vector<16x64xf32>
    %713 = arith.mulf %712, %412 : vector<16x64xf32>
    %714 = arith.addf %711, %713 : vector<16x64xf32>
    %cst_267 = arith.constant 0.11328125 : f32
    %715 = vector.broadcast %cst_267 : f32 to vector<16x64xf32>
    %716 = arith.mulf %715, %413 : vector<16x64xf32>
    %717 = arith.addf %714, %716 : vector<16x64xf32>
    %cst_268 = arith.constant 0.43359375 : f32
    %718 = vector.broadcast %cst_268 : f32 to vector<16x64xf32>
    %719 = arith.mulf %718, %414 : vector<16x64xf32>
    %720 = arith.addf %717, %719 : vector<16x64xf32>
    %cst_269 = arith.constant 0.43359375 : f32
    %721 = vector.broadcast %cst_269 : f32 to vector<16x64xf32>
    %722 = arith.mulf %721, %415 : vector<16x64xf32>
    %723 = arith.addf %720, %722 : vector<16x64xf32>
    %cst_270 = arith.constant 0.11328125 : f32
    %724 = vector.broadcast %cst_270 : f32 to vector<16x64xf32>
    %725 = arith.mulf %724, %416 : vector<16x64xf32>
    %726 = arith.addf %723, %725 : vector<16x64xf32>
    %cst_271 = arith.constant -0.03515625 : f32
    %727 = vector.broadcast %cst_271 : f32 to vector<16x64xf32>
    %728 = arith.mulf %727, %417 : vector<16x64xf32>
    %729 = arith.addf %726, %728 : vector<16x64xf32>
    %cst_272 = arith.constant -0.01171875 : f32
    %730 = vector.broadcast %cst_272 : f32 to vector<16x64xf32>
    %731 = arith.mulf %730, %418 : vector<16x64xf32>
    %732 = arith.addf %729, %731 : vector<16x64xf32>
    %733 = vector.shape_cast %732 : vector<16x64xf32> to vector<16x1x64xf32>
    %c1_273 = arith.constant 1 : index
    %c13 = arith.constant 13 : index
    %c0_274 = arith.constant 0 : index
    %734 = vector.load %arg9[%c1_273, %c13, %c0_274] : memref<18x18x64xf32, #tpu.memory_space<vmem>>, vector<16x1x64xf32>
    tpu.vector_store %arg9[%c1_273, %c13, %c0_274], %733 {strides = array<i32>} : memref<18x18x64xf32, #tpu.memory_space<vmem>>, vector<16x1x64xf32>,
    %cst_275 = arith.constant -0.01171875 : f32
    %735 = vector.broadcast %cst_275 : f32 to vector<16x64xf32>
    %736 = arith.mulf %735, %413 : vector<16x64xf32>
    %cst_276 = arith.constant -0.03515625 : f32
    %737 = vector.broadcast %cst_276 : f32 to vector<16x64xf32>
    %738 = arith.mulf %737, %414 : vector<16x64xf32>
    %739 = arith.addf %736, %738 : vector<16x64xf32>
    %cst_277 = arith.constant 0.11328125 : f32
    %740 = vector.broadcast %cst_277 : f32 to vector<16x64xf32>
    %741 = arith.mulf %740, %415 : vector<16x64xf32>
    %742 = arith.addf %739, %741 : vector<16x64xf32>
    %cst_278 = arith.constant 0.43359375 : f32
    %743 = vector.broadcast %cst_278 : f32 to vector<16x64xf32>
    %744 = arith.mulf %743, %416 : vector<16x64xf32>
    %745 = arith.addf %742, %744 : vector<16x64xf32>
    %cst_279 = arith.constant 0.43359375 : f32
    %746 = vector.broadcast %cst_279 : f32 to vector<16x64xf32>
    %747 = arith.mulf %746, %417 : vector<16x64xf32>
    %748 = arith.addf %745, %747 : vector<16x64xf32>
    %cst_280 = arith.constant 0.11328125 : f32
    %749 = vector.broadcast %cst_280 : f32 to vector<16x64xf32>
    %750 = arith.mulf %749, %418 : vector<16x64xf32>
    %751 = arith.addf %748, %750 : vector<16x64xf32>
    %cst_281 = arith.constant -0.03515625 : f32
    %752 = vector.broadcast %cst_281 : f32 to vector<16x64xf32>
    %753 = arith.mulf %752, %419 : vector<16x64xf32>
    %754 = arith.addf %751, %753 : vector<16x64xf32>
    %cst_282 = arith.constant -0.01171875 : f32
    %755 = vector.broadcast %cst_282 : f32 to vector<16x64xf32>
    %756 = arith.mulf %755, %420 : vector<16x64xf32>
    %757 = arith.addf %754, %756 : vector<16x64xf32>
    %758 = vector.shape_cast %757 : vector<16x64xf32> to vector<16x1x64xf32>
    %c1_283 = arith.constant 1 : index
    %c14 = arith.constant 14 : index
    %c0_284 = arith.constant 0 : index
    %759 = vector.load %arg9[%c1_283, %c14, %c0_284] : memref<18x18x64xf32, #tpu.memory_space<vmem>>, vector<16x1x64xf32>
    tpu.vector_store %arg9[%c1_283, %c14, %c0_284], %758 {strides = array<i32>} : memref<18x18x64xf32, #tpu.memory_space<vmem>>, vector<16x1x64xf32>,
    %cst_285 = arith.constant -0.0115830116 : f32
    %760 = vector.broadcast %cst_285 : f32 to vector<16x64xf32>
    %761 = arith.mulf %760, %415 : vector<16x64xf32>
    %cst_286 = arith.constant -0.0347490348 : f32
    %762 = vector.broadcast %cst_286 : f32 to vector<16x64xf32>
    %763 = arith.mulf %762, %416 : vector<16x64xf32>
    %764 = arith.addf %761, %763 : vector<16x64xf32>
    %cst_287 = arith.constant 0.111969113 : f32
    %765 = vector.broadcast %cst_287 : f32 to vector<16x64xf32>
    %766 = arith.mulf %765, %417 : vector<16x64xf32>
    %767 = arith.addf %764, %766 : vector<16x64xf32>
    %cst_288 = arith.constant 0.428571433 : f32
    %768 = vector.broadcast %cst_288 : f32 to vector<16x64xf32>
    %769 = arith.mulf %768, %418 : vector<16x64xf32>
    %770 = arith.addf %767, %769 : vector<16x64xf32>
    %cst_289 = arith.constant 0.428571433 : f32
    %771 = vector.broadcast %cst_289 : f32 to vector<16x64xf32>
    %772 = arith.mulf %771, %419 : vector<16x64xf32>
    %773 = arith.addf %770, %772 : vector<16x64xf32>
    %cst_290 = arith.constant 0.111969113 : f32
    %774 = vector.broadcast %cst_290 : f32 to vector<16x64xf32>
    %775 = arith.mulf %774, %420 : vector<16x64xf32>
    %776 = arith.addf %773, %775 : vector<16x64xf32>
    %cst_291 = arith.constant -0.0347490348 : f32
    %777 = vector.broadcast %cst_291 : f32 to vector<16x64xf32>
    %778 = arith.mulf %777, %421 : vector<16x64xf32>
    %779 = arith.addf %776, %778 : vector<16x64xf32>
    %780 = vector.shape_cast %779 : vector<16x64xf32> to vector<16x1x64xf32>
    %c1_292 = arith.constant 1 : index
    %c15 = arith.constant 15 : index
    %c0_293 = arith.constant 0 : index
    %781 = vector.load %arg9[%c1_292, %c15, %c0_293] : memref<18x18x64xf32, #tpu.memory_space<vmem>>, vector<16x1x64xf32>
    tpu.vector_store %arg9[%c1_292, %c15, %c0_293], %780 {strides = array<i32>} : memref<18x18x64xf32, #tpu.memory_space<vmem>>, vector<16x1x64xf32>,
    %cst_294 = arith.constant -0.0125523014 : f32
    %782 = vector.broadcast %cst_294 : f32 to vector<16x64xf32>
    %783 = arith.mulf %782, %417 : vector<16x64xf32>
    %cst_295 = arith.constant -0.0376569033 : f32
    %784 = vector.broadcast %cst_295 : f32 to vector<16x64xf32>
    %785 = arith.mulf %784, %418 : vector<16x64xf32>
    %786 = arith.addf %783, %785 : vector<16x64xf32>
    %cst_296 = arith.constant 0.121338911 : f32
    %787 = vector.broadcast %cst_296 : f32 to vector<16x64xf32>
    %788 = arith.mulf %787, %419 : vector<16x64xf32>
    %789 = arith.addf %786, %788 : vector<16x64xf32>
    %cst_297 = arith.constant 0.46443516 : f32
    %790 = vector.broadcast %cst_297 : f32 to vector<16x64xf32>
    %791 = arith.mulf %790, %420 : vector<16x64xf32>
    %792 = arith.addf %789, %791 : vector<16x64xf32>
    %cst_298 = arith.constant 0.46443516 : f32
    %793 = vector.broadcast %cst_298 : f32 to vector<16x64xf32>
    %794 = arith.mulf %793, %421 : vector<16x64xf32>
    %795 = arith.addf %792, %794 : vector<16x64xf32>
    %796 = vector.shape_cast %795 : vector<16x64xf32> to vector<16x1x64xf32>
    %c1_299 = arith.constant 1 : index
    %c16 = arith.constant 16 : index
    %c0_300 = arith.constant 0 : index
    %797 = vector.load %arg9[%c1_299, %c16, %c0_300] : memref<18x18x64xf32, #tpu.memory_space<vmem>>, vector<16x1x64xf32>
    tpu.vector_store %arg9[%c1_299, %c16, %c0_300], %796 {strides = array<i32>} : memref<18x18x64xf32, #tpu.memory_space<vmem>>, vector<16x1x64xf32>,
    %c0_301 = arith.constant 0 : index
    %c0_302 = arith.constant 0 : index
    %c0_303 = arith.constant 0 : index
    %798 = vector.load %arg9[%c0_301, %c0_302, %c0_303] : memref<18x18x64xf32, #tpu.memory_space<vmem>>, vector<16x16x64xf32>
    %799 = vector.shape_cast %798 : vector<16x16x64xf32> to vector<256x64xf32>
    %c0_304 = arith.constant 0 : index
    %c1_305 = arith.constant 1 : index
    %c0_306 = arith.constant 0 : index
    %800 = vector.load %arg9[%c0_304, %c1_305, %c0_306] : memref<18x18x64xf32, #tpu.memory_space<vmem>>, vector<16x16x64xf32>
    %801 = vector.shape_cast %800 : vector<16x16x64xf32> to vector<256x64xf32>
    %c0_307 = arith.constant 0 : index
    %c2_308 = arith.constant 2 : index
    %c0_309 = arith.constant 0 : index
    %802 = vector.load %arg9[%c0_307, %c2_308, %c0_309] : memref<18x18x64xf32, #tpu.memory_space<vmem>>, vector<16x16x64xf32>
    %803 = vector.shape_cast %802 : vector<16x16x64xf32> to vector<256x64xf32>
    %c1_310 = arith.constant 1 : index
    %c0_311 = arith.constant 0 : index
    %c0_312 = arith.constant 0 : index
    %804 = vector.load %arg9[%c1_310, %c0_311, %c0_312] : memref<18x18x64xf32, #tpu.memory_space<vmem>>, vector<16x16x64xf32>
    %805 = vector.shape_cast %804 : vector<16x16x64xf32> to vector<256x64xf32>
    %c1_313 = arith.constant 1 : index
    %c1_314 = arith.constant 1 : index
    %c0_315 = arith.constant 0 : index
    %806 = vector.load %arg9[%c1_313, %c1_314, %c0_315] : memref<18x18x64xf32, #tpu.memory_space<vmem>>, vector<16x16x64xf32>
    %807 = vector.shape_cast %806 : vector<16x16x64xf32> to vector<256x64xf32>
    %c1_316 = arith.constant 1 : index
    %c2_317 = arith.constant 2 : index
    %c0_318 = arith.constant 0 : index
    %808 = vector.load %arg9[%c1_316, %c2_317, %c0_318] : memref<18x18x64xf32, #tpu.memory_space<vmem>>, vector<16x16x64xf32>
    %809 = vector.shape_cast %808 : vector<16x16x64xf32> to vector<256x64xf32>
    %c2_319 = arith.constant 2 : index
    %c0_320 = arith.constant 0 : index
    %c0_321 = arith.constant 0 : index
    %810 = vector.load %arg9[%c2_319, %c0_320, %c0_321] : memref<18x18x64xf32, #tpu.memory_space<vmem>>, vector<16x16x64xf32>
    %811 = vector.shape_cast %810 : vector<16x16x64xf32> to vector<256x64xf32>
    %c2_322 = arith.constant 2 : index
    %c1_323 = arith.constant 1 : index
    %c0_324 = arith.constant 0 : index
    %812 = vector.load %arg9[%c2_322, %c1_323, %c0_324] : memref<18x18x64xf32, #tpu.memory_space<vmem>>, vector<16x16x64xf32>
    %813 = vector.shape_cast %812 : vector<16x16x64xf32> to vector<256x64xf32>
    %c2_325 = arith.constant 2 : index
    %c2_326 = arith.constant 2 : index
    %c0_327 = arith.constant 0 : index
    %814 = vector.load %arg9[%c2_325, %c2_326, %c0_327] : memref<18x18x64xf32, #tpu.memory_space<vmem>>, vector<16x16x64xf32>
    %815 = vector.shape_cast %814 : vector<16x16x64xf32> to vector<256x64xf32>
    %816 = tpu.concatenate %799, %801, %803, %805, %807, %809, %811, %813, %815 in 1 : vector<256x64xf32>, vector<256x64xf32>, vector<256x64xf32>, vector<256x64xf32>, vector<256x64xf32>, vector<256x64xf32>, vector<256x64xf32>, vector<256x64xf32>, vector<256x64xf32> -> vector<256x576xf32>
    %817 = arith.truncf %816 : vector<256x576xf32> to vector<256x576xbf16>
    %c0_328 = arith.constant 0 : index
    %c0_329 = arith.constant 0 : index
    %818 = vector.load %arg6[%c0_328, %c0_329] : memref<576x4xbf16, #tpu.memory_space<vmem>>, vector<576x4xbf16>
    %cst_330 = arith.constant dense<0.000000e+00> : vector<256x4xf32>
    %819 = tpu.matmul %817, %818, %cst_330 {dimension_numbers = #tpu.dot_dimension_numbers<[1], [0], [0], [1], [0, 0, 1, 1], [], []>} : vector<256x576xbf16>, vector<576x4xbf16>, vector<256x4xf32> -> vector<256x4xf32>
    %c0_331 = arith.constant 0 : index
    %c0_332 = arith.constant 0 : index
    %820 = vector.load %arg7[%c0_331, %c0_332] : memref<1x4xf32, #tpu.memory_space<vmem>>, vector<1x4xf32>
    %821 = vector.broadcast %820 : vector<1x4xf32> to vector<256x4xf32>
    %822 = arith.addf %819, %821 : vector<256x4xf32>
    %823 = vector.shape_cast %822 : vector<256x4xf32> to vector<1x256x4xf32>
    %c0_333 = arith.constant 0 : index
    %c0_334 = arith.constant 0 : index
    %c0_335 = arith.constant 0 : index
    %824 = vector.load %arg8[%c0_333, %c0_334, %c0_335] : memref<1x256x4xf32, #tpu.memory_space<vmem>>, vector<1x256x4xf32>
    tpu.vector_store %arg8[%c0_333, %c0_334, %c0_335], %823 {strides = array<i32>} : memref<1x256x4xf32, #tpu.memory_space<vmem>>, vector<1x256x4xf32>,
    return
  }
  func.func @transform_0(%arg0: i32) -> (i32, i32, i32) {
    %c0_i32 = arith.constant 0 : i32
    %c0_i32_0 = arith.constant 0 : i32
    %c0_i32_1 = arith.constant 0 : i32
    return %arg0, %c0_i32, %c0_i32_0 : i32, i32, i32
  }
  func.func @transform_1(%arg0: i32) -> (i32, i32) {
    %c0_i32 = arith.constant 0 : i32
    %c0_i32_0 = arith.constant 0 : i32
    %c0_i32_1 = arith.constant 0 : i32
    return %c0_i32, %c0_i32_0 : i32, i32
  }
  func.func @transform_2(%arg0: i32) -> (i32, i32) {
    %c0_i32 = arith.constant 0 : i32
    %c0_i32_0 = arith.constant 0 : i32
    %c0_i32_1 = arith.constant 0 : i32
    return %c0_i32, %c0_i32_0 : i32, i32
  }
  func.func @transform_3(%arg0: i32) -> (i32, i32) {
    %c0_i32 = arith.constant 0 : i32
    %c0_i32_0 = arith.constant 0 : i32
    %c0_i32_1 = arith.constant 0 : i32
    return %c0_i32, %c0_i32_0 : i32, i32
  }
  func.func @transform_4(%arg0: i32) -> (i32, i32) {
    %c0_i32 = arith.constant 0 : i32
    %c0_i32_0 = arith.constant 0 : i32
    %c0_i32_1 = arith.constant 0 : i32
    return %c0_i32, %c0_i32_0 : i32, i32
  }
  func.func @transform_5(%arg0: i32) -> (i32, i32) {
    %c0_i32 = arith.constant 0 : i32
    %c0_i32_0 = arith.constant 0 : i32
    %c0_i32_1 = arith.constant 0 : i32
    return %c0_i32, %c0_i32_0 : i32, i32
  }
  func.func @transform_6(%arg0: i32) -> (i32, i32) {
    %c0_i32 = arith.constant 0 : i32
    %c0_i32_0 = arith.constant 0 : i32
    %c0_i32_1 = arith.constant 0 : i32
    return %c0_i32, %c0_i32_0 : i32, i32
  }
  func.func @transform_7(%arg0: i32) -> (i32, i32, i32) {
    %c0_i32 = arith.constant 0 : i32
    %c0_i32_0 = arith.constant 0 : i32
    %c0_i32_1 = arith.constant 0 : i32
    return %arg0, %c0_i32, %c0_i32_0 : i32, i32, i32
  }
}

</mosaic_0001>

<llo_original>
// kernel: tpu_custom_call.1
$region0: #{tpu_custom_call.1}
  #allocation0 [shape = 'u32[]', space=smem, size = 0x4, offset = 0x4, fixed_abs, tag = 'smem constant byte address 0x4 - core index']
  #allocation1 [shape = 'u32[144,128]{1,0:T(1,128)}', space=vmem, size = 0x12000, scoped, tag = 'internal scratch']
  #allocation2 [shape = 'f32[18,18,64]{2,1,0:T(8,128)}', space=vmem, size = 0x36000, scoped, tag = 'scratch operand']
  %s0 = inlined_call_operand.vmem [shape: bf16[2,256,36], index: 0, kind: input, shape index: {}]
  %s1 = inlined_call_operand.vmem [shape: bf16[36,64], index: 1, kind: input, shape index: {}]
  %s2 = inlined_call_operand.vmem [shape: f32[1,64], index: 2, kind: input, shape index: {}]
  %s3 = inlined_call_operand.vmem [shape: bf16[32,16], index: 3, kind: input, shape index: {}]
  %s4 = inlined_call_operand.vmem [shape: bf16[16,32], index: 4, kind: input, shape index: {}]
  %s5 = inlined_call_operand.vmem [shape: bf16[576,4], index: 5, kind: input, shape index: {}]
  %s6 = inlined_call_operand.vmem [shape: f32[1,4], index: 6, kind: input, shape index: {}]
  %s7 = inlined_call_operand.vmem [shape: f32[2,256,4], index: 7, kind: output, shape index: {}]
  %s8 = sld [smem:[#allocation0]]
  $region61: #{tpu_custom_call.1} parent=0
    _
  %s10 = ssub.s32 1, %s8
  %s11 = scalar_select 0, %s10, %s8
  loop: start=0, step=1, limit=4
  $region2: #{tpu_custom_call.1} parent=0 // loop_pre_header
    _
  $region3: #{tpu_custom_call.1} parent=0 // loop_header
    %s13 = sphi 0, %s17
    %p14 = scmp.ge.s32.totalorder %s13, 4
    %s23 = sphi 0, %s25
    %s26 = sphi 0, %s23
    %s27 = sphi 0, %s26
    %s43 = sphi 0, %s27
    %s47 = sphi 0, %s47
    %s49 = sphi 0, %s47
    %s50 = sphi 0, %s49
    %s64 = sphi 0, %s50
    %s68 = sphi 0, %s68
    %s70 = sphi 0, %s68
    %s71 = sphi 0, %s70
    %s85 = sphi 0, %s71
    %s89 = sphi 0, %s89
    %s91 = sphi 0, %s89
    %s92 = sphi 0, %s91
    %s106 = sphi 0, %s92
    %s110 = sphi 0, %s110
    %s112 = sphi 0, %s110
    %s113 = sphi 0, %s112
    %s127 = sphi 0, %s113
    %s131 = sphi 0, %s131
    %s133 = sphi 0, %s131
    %s134 = sphi 0, %s133
    %s148 = sphi 0, %s134
    %s152 = sphi 0, %s152
    %s154 = sphi 0, %s152
    %s155 = sphi 0, %s154
    %s169 = sphi 0, %s155
    %s175 = sphi 0, %s177
    %s178 = sphi 0, %s175
    %s179 = sphi 0, %s178
    %s195 = sphi 0, %s179
  $region4: #{tpu_custom_call.1} parent=0 // loop_header_branch
    %16 = sbr.rel (%p14) target = $region8
  $region5: #{tpu_custom_call.1} parent=0 // loop_body
    %s18 = ssub.s32 %s13, 1
    %s19 = ssub.s32 %s13, 2
    %s20 = sadd.s32 %s13, 1
    %s21 = ssub.s32 %s13, %s20
    %p22 = scmp.eq.s32.totalorder %s21, 0
    %s24 = sadd.s32 %s23, 1
    %s25 = scalar_select %p22, %s23, %s24
    %p28 = pneg %p22
    %p29 = scmp.eq.s32.totalorder %s13, 1
    %p30 = por %p28, %p29
    %p31 = scmp.ne.s32.totalorder %s23, %s26
    %p32 = scmp.eq.s32.totalorder %s13, 0
    %p33 = por %p31, %p32
    %p34 = scmp.ne.s32.totalorder %s23, %s26
    %p35 = scmp.eq.s32.totalorder %s18, 1
    %p36 = por %p34, %p35
    %p37 = scmp.ne.s32.totalorder %s26, %s27
    %p38 = scmp.eq.s32.totalorder %s18, 0
    %p39 = por %p37, %p38
    %p40 = scmp.ne.s32.totalorder %s26, %s27
    %p41 = scmp.eq.s32.totalorder %s19, 1
    %p42 = por %p40, %p41
    %p44 = scmp.ne.s32.totalorder %s27, %s43
    %p45 = scmp.eq.s32.totalorder %s19, 0
    %p46 = por %p44, %p45
    %s48 = sadd.s32 %s47, 1
    %p51 = scmp.eq.s32.totalorder %s13, 1
    %p52 = scmp.ne.s32.totalorder %s47, %s49
    %p53 = scmp.eq.s32.totalorder %s13, 0
    %p54 = por %p52, %p53
    %p55 = scmp.ne.s32.totalorder %s47, %s49
    %p56 = scmp.eq.s32.totalorder %s18, 1
    %p57 = por %p55, %p56
    %p58 = scmp.ne.s32.totalorder %s49, %s50
    %p59 = scmp.eq.s32.totalorder %s18, 0
    %p60 = por %p58, %p59
    %p61 = scmp.ne.s32.totalorder %s49, %s50
    %p62 = scmp.eq.s32.totalorder %s19, 1
    %p63 = por %p61, %p62
    %p65 = scmp.ne.s32.totalorder %s50, %s64
    %p66 = scmp.eq.s32.totalorder %s19, 0
    %p67 = por %p65, %p66
    %s69 = sadd.s32 %s68, 1
    %p72 = scmp.eq.s32.totalorder %s13, 1
    %p73 = scmp.ne.s32.totalorder %s68, %s70
    %p74 = scmp.eq.s32.totalorder %s13, 0
    %p75 = por %p73, %p74
    %p76 = scmp.ne.s32.totalorder %s68, %s70
    %p77 = scmp.eq.s32.totalorder %s18, 1
    %p78 = por %p76, %p77
    %p79 = scmp.ne.s32.totalorder %s70, %s71
    %p80 = scmp.eq.s32.totalorder %s18, 0
    %p81 = por %p79, %p80
    %p82 = scmp.ne.s32.totalorder %s70, %s71
    %p83 = scmp.eq.s32.totalorder %s19, 1
    %p84 = por %p82, %p83
    %p86 = scmp.ne.s32.totalorder %s71, %s85
    %p87 = scmp.eq.s32.totalorder %s19, 0
    %p88 = por %p86, %p87
    %s90 = sadd.s32 %s89, 1
    %p93 = scmp.eq.s32.totalorder %s13, 1
    %p94 = scmp.ne.s32.totalorder %s89, %s91
    %p95 = scmp.eq.s32.totalorder %s13, 0
    %p96 = por %p94, %p95
    %p97 = scmp.ne.s32.totalorder %s89, %s91
    %p98 = scmp.eq.s32.totalorder %s18, 1
    %p99 = por %p97, %p98
    %p100 = scmp.ne.s32.totalorder %s91, %s92
    %p101 = scmp.eq.s32.totalorder %s18, 0
    %p102 = por %p100, %p101
    %p103 = scmp.ne.s32.totalorder %s91, %s92
    %p104 = scmp.eq.s32.totalorder %s19, 1
    %p105 = por %p103, %p104
    %p107 = scmp.ne.s32.totalorder %s92, %s106
    %p108 = scmp.eq.s32.totalorder %s19, 0
    %p109 = por %p107, %p108
    %s111 = sadd.s32 %s110, 1
    %p114 = scmp.eq.s32.totalorder %s13, 1
    %p115 = scmp.ne.s32.totalorder %s110, %s112
    %p116 = scmp.eq.s32.totalorder %s13, 0
    %p117 = por %p115, %p116
    %p118 = scmp.ne.s32.totalorder %s110, %s112
    %p119 = scmp.eq.s32.totalorder %s18, 1
    %p120 = por %p118, %p119
    %p121 = scmp.ne.s32.totalorder %s112, %s113
    %p122 = scmp.eq.s32.totalorder %s18, 0
    %p123 = por %p121, %p122
    %p124 = scmp.ne.s32.totalorder %s112, %s113
    %p125 = scmp.eq.s32.totalorder %s19, 1
    %p126 = por %p124, %p125
    %p128 = scmp.ne.s32.totalorder %s113, %s127
    %p129 = scmp.eq.s32.totalorder %s19, 0
    %p130 = por %p128, %p129
    %s132 = sadd.s32 %s131, 1
    %p135 = scmp.eq.s32.totalorder %s13, 1
    %p136 = scmp.ne.s32.totalorder %s131, %s133
    %p137 = scmp.eq.s32.totalorder %s13, 0
    %p138 = por %p136, %p137
    %p139 = scmp.ne.s32.totalorder %s131, %s133
    %p140 = scmp.eq.s32.totalorder %s18, 1
    %p141 = por %p139, %p140
    %p142 = scmp.ne.s32.totalorder %s133, %s134
    %p143 = scmp.eq.s32.totalorder %s18, 0
    %p144 = por %p142, %p143
    %p145 = scmp.ne.s32.totalorder %s133, %s134
    %p146 = scmp.eq.s32.totalorder %s19, 1
    %p147 = por %p145, %p146
    %p149 = scmp.ne.s32.totalorder %s134, %s148
    %p150 = scmp.eq.s32.totalorder %s19, 0
    %p151 = por %p149, %p150
    %s153 = sadd.s32 %s152, 1
    %p156 = scmp.eq.s32.totalorder %s13, 1
    %p157 = scmp.ne.s32.totalorder %s152, %s154
    %p158 = scmp.eq.s32.totalorder %s13, 0
    %p159 = por %p157, %p158
    %p160 = scmp.ne.s32.totalorder %s152, %s154
    %p161 = scmp.eq.s32.totalorder %s18, 1
    %p162 = por %p160, %p161
    %p163 = scmp.ne.s32.totalorder %s154, %s155
    %p164 = scmp.eq.s32.totalorder %s18, 0
    %p165 = por %p163, %p164
    %p166 = scmp.ne.s32.totalorder %s154, %s155
    %p167 = scmp.eq.s32.totalorder %s19, 1
    %p168 = por %p166, %p167
    %p170 = scmp.ne.s32.totalorder %s155, %s169
    %p171 = scmp.eq.s32.totalorder %s19, 0
    %p172 = por %p170, %p171
    %s173 = ssub.s32 %s13, %s20
    %p174 = scmp.eq.s32.totalorder %s173, 0
    %s176 = sadd.s32 %s175, 1
    %s177 = scalar_select %p174, %s175, %s176
    %p180 = pneg %p174
    %p181 = scmp.eq.s32.totalorder %s13, 1
    %p182 = por %p180, %p181
    %p183 = scmp.ne.s32.totalorder %s175, %s178
    %p184 = scmp.eq.s32.totalorder %s13, 0
    %p185 = por %p183, %p184
    %p186 = scmp.ne.s32.totalorder %s175, %s178
    %p187 = scmp.eq.s32.totalorder %s18, 1
    %p188 = por %p186, %p187
    %p189 = scmp.ne.s32.totalorder %s178, %s179
    %p190 = scmp.eq.s32.totalorder %s18, 0
    %p191 = por %p189, %p190
    %p192 = scmp.ne.s32.totalorder %s178, %s179
    %p193 = scmp.eq.s32.totalorder %s19, 1
    %p194 = por %p192, %p193
    %p196 = scmp.ne.s32.totalorder %s179, %s195
    %p197 = scmp.eq.s32.totalorder %s19, 0
    %p198 = por %p196, %p197
    %p199 = scmp.le.s32.totalorder 1, %s13
    %p200 = scmp.lt.s32.totalorder %s13, 3
    %p201 = pnand %p199, %p200
    %p202 = pneg %p201
    // Predicated region
    $region9: #{tpu_custom_call.1} parent=5 // pred_check
      _
    $region10: #{tpu_custom_call.1} parent=5 // pred_check_branch
      %204 = sbr.rel (%p201) target = $region12
    $region11: #{tpu_custom_call.1} parent=5 // pred_region
      %s205 = ssub.s32 %s13, 1
      // Predicated region
      $region13: #{tpu_custom_call.1} parent=11 // pred_check
        %p206 = pneg %p60
      $region14: #{tpu_custom_call.1} parent=11 // pred_check_branch
        %208 = sbr.rel (%p206) target = $region16
      $region15: #{tpu_custom_call.1} parent=11 // pred_region
        _
      $region16: #{tpu_custom_call.1} parent=11 // pred_fallthru
        _
      // Predicated region
      $region17: #{tpu_custom_call.1} parent=11 // pred_check
        %p209 = pneg %p81
      $region18: #{tpu_custom_call.1} parent=11 // pred_check_branch
        %211 = sbr.rel (%p209) target = $region20
      $region19: #{tpu_custom_call.1} parent=11 // pred_region
        _
      $region20: #{tpu_custom_call.1} parent=11 // pred_fallthru
        _
      // Predicated region
      $region21: #{tpu_custom_call.1} parent=11 // pred_check
        %p212 = pneg %p102
      $region22: #{tpu_custom_call.1} parent=11 // pred_check_branch
        %214 = sbr.rel (%p212) target = $region24
      $region23: #{tpu_custom_call.1} parent=11 // pred_region
        _
      $region24: #{tpu_custom_call.1} parent=11 // pred_fallthru
        _
      // Predicated region
      $region25: #{tpu_custom_call.1} parent=11 // pred_check
        %p215 = pneg %p123
      $region26: #{tpu_custom_call.1} parent=11 // pred_check_branch
        %217 = sbr.rel (%p215) target = $region28
      $region27: #{tpu_custom_call.1} parent=11 // pred_region
        _
      $region28: #{tpu_custom_call.1} parent=11 // pred_fallthru
        _
      // Predicated region
      $region29: #{tpu_custom_call.1} parent=11 // pred_check
        %p218 = pneg %p144
      $region30: #{tpu_custom_call.1} parent=11 // pred_check_branch
        %220 = sbr.rel (%p218) target = $region32
      $region31: #{tpu_custom_call.1} parent=11 // pred_region
        _
      $region32: #{tpu_custom_call.1} parent=11 // pred_fallthru
        _
      // Predicated region
      $region33: #{tpu_custom_call.1} parent=11 // pred_check
        %p221 = pneg %p165
      $region34: #{tpu_custom_call.1} parent=11 // pred_check_branch
        %223 = sbr.rel (%p221) target = $region36
      $region35: #{tpu_custom_call.1} parent=11 // pred_region
        _
      $region36: #{tpu_custom_call.1} parent=11 // pred_fallthru
        _
    $region12: #{tpu_custom_call.1} parent=5 // pred_fallthru
      _
    %p224 = scmp.lt.s32.totalorder %s13, 2
    // Predicated region
    $region37: #{tpu_custom_call.1} parent=5 // pred_check
      %p225 = pneg %p224
    $region38: #{tpu_custom_call.1} parent=5 // pred_check_branch
      %227 = sbr.rel (%p225) target = $region40
    $region39: #{tpu_custom_call.1} parent=5 // pred_region
      // Predicated region
      $region41: #{tpu_custom_call.1} parent=39 // pred_check
        %p228 = pneg %p33
      $region42: #{tpu_custom_call.1} parent=39 // pred_check_branch
        %230 = sbr.rel (%p228) target = $region44
      $region43: #{tpu_custom_call.1} parent=39 // pred_region
        %p231 = scmp.lt.s32.totalorder %s13, 1
        %s232 = scalar_select %p231, %s13, 1
        %s233 = smul.addr %s232, 32
        %s234 = smul.addr %s233, 4
        %s235 = scalar_lea.vmem %s0, %s234
      $region44: #{tpu_custom_call.1} parent=39 // pred_fallthru
        _
    $region40: #{tpu_custom_call.1} parent=5 // pred_fallthru
      _
    %p236 = scmp.le.s32.totalorder 1, %s13
    %p237 = scmp.lt.s32.totalorder %s13, 3
    %p238 = pnand %p236, %p237
    %p239 = pneg %p238
    // Predicated region
    $region45: #{tpu_custom_call.1} parent=5 // pred_check
      _
    $region46: #{tpu_custom_call.1} parent=5 // pred_check_branch
      %241 = sbr.rel (%p238) target = $region48
    $region47: #{tpu_custom_call.1} parent=5 // pred_region
      %s242 = ssub.s32 %s13, 1
      %p243 = scmp.lt.s32.totalorder %s18, 1
      %s244 = scalar_select %p243, %s18, 1
      %s245 = smul.addr %s244, 32
      %s246 = smul.addr %s245, 4
      %s247 = scalar_lea.vmem %s0, %s246
      %p248 = pneg %p39
      %p249 = pneg %p36
      %p250 = pneg %p60
      %p251 = pneg %p57
      %p252 = pneg %p81
      %p253 = pneg %p78
      %p254 = pneg %p102
      %p255 = pneg %p99
      %p256 = pneg %p123
      %p257 = pneg %p120
      %p258 = pneg %p144
      %p259 = pneg %p141
      %p260 = pneg %p165
      %p261 = pneg %p162
      %p262 = pneg %p191
      %p263 = pneg %p188
      %p264 = scmp.lt.s32.totalorder %s18, 1
      %s265 = scalar_select %p264, %s18, 1
      %s266 = smul.addr %s265, 32
      %s267 = smul.addr %s266, 8
      %s268 = scalar_lea.vmem %s7, %s267
      %p269 = scmp.lt.s32.totalorder %s18, 1
      %s270 = scalar_select %p269, %s18, 1
      %s271 = smul.addr %s270, 32
      %s272 = smul.addr %s271, 4
      %s273 = scalar_lea.vmem %s0, %s272
      %p274 = scmp.lt.s32.totalorder %s18, 1
      %s275 = scalar_select %p274, %s18, 1
      %s276 = smul.addr %s275, 32
      %s277 = smul.addr %s276, 8
      %s278 = scalar_lea.vmem %s7, %s277
      %v280 = vld [vmem:[%s273] sm:$0xf]
      %v281 = vld [vmem:[%s273 + $0x4] sm:$0xf]
      %v282 = vld [vmem:[%s273 + $0x8] sm:$0xf]
      %v283 = vld [vmem:[%s273 + $0xc] sm:$0xf]
      %v284 = vld [vmem:[%s273 + $0x10] sm:$0xf]
      %v285 = vld [vmem:[%s273 + $0x14] sm:$0xf]
      %v286 = vld [vmem:[%s273 + $0x18] sm:$0xf]
      %v287 = vld [vmem:[%s273 + $0x1c] sm:$0xf]
      %v288 = vld [vmem:[%s273 + $0x20] sm:$0xf]
      %v289 = vld [vmem:[%s273 + $0x24] sm:$0xf]
      %v290 = vld [vmem:[%s273 + $0x28] sm:$0xf]
      %v291 = vld [vmem:[%s273 + $0x2c] sm:$0xf]
      %v292 = vld [vmem:[%s273 + $0x30] sm:$0xf]
      %v293 = vld [vmem:[%s273 + $0x34] sm:$0xf]
      %v294 = vld [vmem:[%s273 + $0x38] sm:$0xf]
      %v295 = vld [vmem:[%s273 + $0x3c] sm:$0xf]
      %v296 = vld [vmem:[%s273 + $0x40] sm:$0xf]
      %v297 = vld [vmem:[%s273 + $0x44] sm:$0xf]
      %v298 = vld [vmem:[%s273 + $0x48] sm:$0xf]
      %v299 = vld [vmem:[%s273 + $0x4c] sm:$0xf]
      %v300 = vld [vmem:[%s273 + $0x50] sm:$0xf]
      %v301 = vld [vmem:[%s273 + $0x54] sm:$0xf]
      %v302 = vld [vmem:[%s273 + $0x58] sm:$0xf]
      %v303 = vld [vmem:[%s273 + $0x5c] sm:$0xf]
      %v304 = vld [vmem:[%s273 + $0x60] sm:$0xf]
      %v305 = vld [vmem:[%s273 + $0x64] sm:$0xf]
      %v306 = vld [vmem:[%s273 + $0x68] sm:$0xf]
      %v307 = vld [vmem:[%s273 + $0x6c] sm:$0xf]
      %v308 = vld [vmem:[%s273 + $0x70] sm:$0xf]
      %v309 = vld [vmem:[%s273 + $0x74] sm:$0xf]
      %v310 = vld [vmem:[%s273 + $0x78] sm:$0xf]
      %v311 = vld [vmem:[%s273 + $0x7c] sm:$0xf]
      %v312 = vld [vmem:[%s1] sm:$0xf]
      %v313 = vld [vmem:[%s1 + $0x4] sm:$0xf]
      %v314 = vld [vmem:[%s1 + $0x8] sm:$0xf]
      %v315 = vld [vmem:[%s1 + $0xc] sm:$0xf]
      %v316 = vld [vmem:[%s1 + $0x10] sm:$0x3]
      %v317 = vld [vmem:[%s2] sm:$0x1]
      %v319 = vlaneseq
      %v320 = vshrl.u32 %v319, 7
      %v321 = vsub.s32 0, %v320
      %v322 = vrot.slane %v317, %v321
      %v356 = vunpack.c.l.b16 %v280
      %v357 = vunpack.c.l.b16 %v281
      %v358 = vunpack.c.l.b16 %v282
      %v359 = vunpack.c.l.b16 %v283
      %v360 = vunpack.c.l.b16 %v284
      %v361 = vunpack.c.l.b16 %v285
      %v362 = vunpack.c.l.b16 %v286
      %v363 = vunpack.c.l.b16 %v287
      %v364 = vunpack.c.l.b16 %v288
      %v365 = vunpack.c.l.b16 %v289
      %v366 = vunpack.c.l.b16 %v290
      %v367 = vunpack.c.l.b16 %v291
      %v368 = vunpack.c.l.b16 %v292
      %v369 = vunpack.c.l.b16 %v293
      %v370 = vunpack.c.l.b16 %v294
      %v371 = vunpack.c.l.b16 %v295
      %v372 = vunpack.c.l.b16 %v296
      %v373 = vunpack.c.l.b16 %v297
      %v374 = vunpack.c.l.b16 %v298
      %v375 = vunpack.c.l.b16 %v299
      %v376 = vunpack.c.l.b16 %v300
      %v377 = vunpack.c.l.b16 %v301
      %v378 = vunpack.c.l.b16 %v302
      %v379 = vunpack.c.l.b16 %v303
      %v380 = vunpack.c.l.b16 %v304
      %v381 = vunpack.c.l.b16 %v305
      %v382 = vunpack.c.l.b16 %v306
      %v383 = vunpack.c.l.b16 %v307
      %v384 = vunpack.c.l.b16 %v308
      %v385 = vunpack.c.l.b16 %v309
      %v386 = vunpack.c.l.b16 %v310
      %v387 = vunpack.c.l.b16 %v311
      %v388 = vpack.c.b16 %v357, %v356
      %v389 = vpack.c.b16 %v359, %v358
      %v390 = vpack.c.b16 %v361, %v360
      %v391 = vpack.c.b16 %v363, %v362
      %v392 = vpack.c.b16 %v365, %v364
      %v393 = vpack.c.b16 %v367, %v366
      %v394 = vpack.c.b16 %v369, %v368
      %v395 = vpack.c.b16 %v371, %v370
      %v396 = vpack.c.b16 %v373, %v372
      %v397 = vpack.c.b16 %v375, %v374
      %v398 = vpack.c.b16 %v377, %v376
      %v399 = vpack.c.b16 %v379, %v378
      %v400 = vpack.c.b16 %v381, %v380
      %v401 = vpack.c.b16 %v383, %v382
      %v402 = vpack.c.b16 %v385, %v384
      %v403 = vpack.c.b16 %v387, %v386
      %v409 = vunpack.c.l.b16 %v312
      %v410 = vunpack.c.l.b16 %v313
      %v411 = vunpack.c.l.b16 %v314
      %v412 = vunpack.c.l.b16 %v315
      %v413 = vunpack.c.l.b16 %v316
      %v414 = vpack.c.b16 %v410, %v409
      %v415 = vpack.c.b16 %v412, %v411
      %v416 = vpack.c.b16 %v413, %v413
      %vm419 = vcmask 293888
      %v421 = vsel %vm419, %v388, 0
      %v424 = vsel %vm419, %v389, 0
      %v427 = vsel %vm419, %v390, 0
      %v430 = vsel %vm419, %v391, 0
      %v433 = vsel %vm419, %v392, 0
      %v436 = vsel %vm419, %v393, 0
      %v439 = vsel %vm419, %v394, 0
      %v442 = vsel %vm419, %v395, 0
      %v445 = vsel %vm419, %v396, 0
      %v448 = vsel %vm419, %v397, 0
      %v451 = vsel %vm419, %v398, 0
      %v454 = vsel %vm419, %v399, 0
      %v457 = vsel %vm419, %v400, 0
      %v460 = vsel %vm419, %v401, 0
      %v463 = vsel %vm419, %v402, 0
      %v466 = vsel %vm419, %v403, 0
      %vm468 = vcmask 1041408
      %v470 = vsel %vm468, %v416, 0
      %472 = vmatprep.subr.bf16.mxu0 0
      %473 = vmatpush1.bf16.msra.mxu0 %v414
      %474 = vmatprep.subr.bf16.mxu0 0
      %475 = vmatpush1.bf16.msra.mxu0 %v415
      %476 = vmatprep.subr.bf16.mxu0 0
      %477 = vmatpush1.bf16.msra.mxu0 %v470
      %478 = vmatprep.subr.bf16.mxu0 0
      %479 = vmatpush1.bf16.msra.mxu0 0
      %480 = vmatprep.subr.bf16.mxu0 0
      %481 = vmatpush1.bf16.msra.mxu0 0
      %482 = vmatprep.subr.bf16.mxu0 0
      %483 = vmatpush1.bf16.msra.mxu0 0
      %484 = vmatprep.subr.bf16.mxu0 0
      %485 = vmatpush1.bf16.msra.mxu0 0
      %486 = vmatprep.subr.bf16.mxu0 0
      %487 = vmatpush1.bf16.msra.mxu0 0
      %488 = vmatprep.subr.bf16.mxu0 0
      %489 = vmatpush1.bf16.msra.mxu0 0
      %490 = vmatprep.subr.bf16.mxu0 0
      %491 = vmatpush1.bf16.msra.mxu0 0
      %492 = vmatprep.subr.bf16.mxu0 0
      %493 = vmatpush1.bf16.msra.mxu0 0
      %494 = vmatprep.subr.bf16.mxu0 0
      %495 = vmatpush1.bf16.msra.mxu0 0
      %496 = vmatprep.subr.bf16.mxu0 0
      %497 = vmatpush1.bf16.msra.mxu0 0
      %498 = vmatprep.subr.bf16.mxu0 0
      %499 = vmatpush1.bf16.msra.mxu0 0
      %500 = vmatprep.subr.bf16.mxu0 0
      %501 = vmatpush1.bf16.msra.mxu0 0
      %502 = vmatprep.subr.bf16.mxu0 0
      %503 = vmatpush1.bf16.msra.mxu0 0
      %504 = vmatprep.mubr.bf16.mxu0 0
      %505 = vmatmul.mubr.bf16.gmra.mrb[0].mxu0 %v421
      %v506 = vpop.f32.mrb[0].mxu0
      %v507 = vadd.f32 %v322, %v506
      %v508 = vpop.f32.mrb[0].mxu0
      %v509 = vpop.f32.mrb[0].mxu0
      %v510 = vadd.f32 %v322, %v509
      %v511 = vpop.f32.mrb[0].mxu0
      %512 = vmatprep.mubr.bf16.mxu0 0
      %513 = vmatmul.mubr.bf16.gmra.mrb[0].mxu0 %v424
      %v514 = vpop.f32.mrb[0].mxu0
      %v515 = vadd.f32 %v322, %v514
      %v516 = vpop.f32.mrb[0].mxu0
      %v517 = vpop.f32.mrb[0].mxu0
      %v518 = vadd.f32 %v322, %v517
      %v519 = vpop.f32.mrb[0].mxu0
      %520 = vmatprep.mubr.bf16.mxu0 0
      %521 = vmatmul.mubr.bf16.gmra.mrb[0].mxu0 %v427
      %v522 = vpop.f32.mrb[0].mxu0
      %v523 = vadd.f32 %v322, %v522
      %v524 = vpop.f32.mrb[0].mxu0
      %v525 = vpop.f32.mrb[0].mxu0
      %v526 = vadd.f32 %v322, %v525
      %v527 = vpop.f32.mrb[0].mxu0
      %528 = vmatprep.mubr.bf16.mxu0 0
      %529 = vmatmul.mubr.bf16.gmra.mrb[0].mxu0 %v430
      %v530 = vpop.f32.mrb[0].mxu0
      %v531 = vadd.f32 %v322, %v530
      %v532 = vpop.f32.mrb[0].mxu0
      %v533 = vpop.f32.mrb[0].mxu0
      %v534 = vadd.f32 %v322, %v533
      %v535 = vpop.f32.mrb[0].mxu0
      %536 = vmatprep.mubr.bf16.mxu0 0
      %537 = vmatmul.mubr.bf16.gmra.mrb[0].mxu0 %v433
      %v538 = vpop.f32.mrb[0].mxu0
      %v539 = vadd.f32 %v322, %v538
      %v540 = vpop.f32.mrb[0].mxu0
      %v541 = vpop.f32.mrb[0].mxu0
      %v542 = vadd.f32 %v322, %v541
      %v543 = vpop.f32.mrb[0].mxu0
      %544 = vmatprep.mubr.bf16.mxu0 0
      %545 = vmatmul.mubr.bf16.gmra.mrb[0].mxu0 %v436
      %v546 = vpop.f32.mrb[0].mxu0
      %v547 = vadd.f32 %v322, %v546
      %v548 = vpop.f32.mrb[0].mxu0
      %v549 = vpop.f32.mrb[0].mxu0
      %v550 = vadd.f32 %v322, %v549
      %v551 = vpop.f32.mrb[0].mxu0
      %552 = vmatprep.mubr.bf16.mxu0 0
      %553 = vmatmul.mubr.bf16.gmra.mrb[0].mxu0 %v439
      %v554 = vpop.f32.mrb[0].mxu0
      %v555 = vadd.f32 %v322, %v554
      %v556 = vpop.f32.mrb[0].mxu0
      %v557 = vpop.f32.mrb[0].mxu0
      %v558 = vadd.f32 %v322, %v557
      %v559 = vpop.f32.mrb[0].mxu0
      %560 = vmatprep.mubr.bf16.mxu0 0
      %561 = vmatmul.mubr.bf16.gmra.mrb[0].mxu0 %v442
      %v562 = vpop.f32.mrb[0].mxu0
      %v563 = vadd.f32 %v322, %v562
      %v564 = vpop.f32.mrb[0].mxu0
      %v565 = vpop.f32.mrb[0].mxu0
      %v566 = vadd.f32 %v322, %v565
      %v567 = vpop.f32.mrb[0].mxu0
      %568 = vmatprep.mubr.bf16.mxu0 0
      %569 = vmatmul.mubr.bf16.gmra.mrb[0].mxu0 %v445
      %v570 = vpop.f32.mrb[0].mxu0
      %v571 = vadd.f32 %v322, %v570
      %v572 = vpop.f32.mrb[0].mxu0
      %v573 = vpop.f32.mrb[0].mxu0
      %v574 = vadd.f32 %v322, %v573
      %v575 = vpop.f32.mrb[0].mxu0
      %576 = vmatprep.mubr.bf16.mxu0 0
      %577 = vmatmul.mubr.bf16.gmra.mrb[0].mxu0 %v448
      %v578 = vpop.f32.mrb[0].mxu0
      %v579 = vadd.f32 %v322, %v578
      %v580 = vpop.f32.mrb[0].mxu0
      %v581 = vpop.f32.mrb[0].mxu0
      %v582 = vadd.f32 %v322, %v581
      %v583 = vpop.f32.mrb[0].mxu0
      %584 = vmatprep.mubr.bf16.mxu0 0
      %585 = vmatmul.mubr.bf16.gmra.mrb[0].mxu0 %v451
      %v586 = vpop.f32.mrb[0].mxu0
      %v587 = vadd.f32 %v322, %v586
      %v588 = vpop.f32.mrb[0].mxu0
      %v589 = vpop.f32.mrb[0].mxu0
      %v590 = vadd.f32 %v322, %v589
      %v591 = vpop.f32.mrb[0].mxu0
      %592 = vmatprep.mubr.bf16.mxu0 0
      %593 = vmatmul.mubr.bf16.gmra.mrb[0].mxu0 %v454
      %v594 = vpop.f32.mrb[0].mxu0
      %v595 = vadd.f32 %v322, %v594
      %v596 = vpop.f32.mrb[0].mxu0
      %v597 = vpop.f32.mrb[0].mxu0
      %v598 = vadd.f32 %v322, %v597
      %v599 = vpop.f32.mrb[0].mxu0
      %600 = vmatprep.mubr.bf16.mxu0 0
      %601 = vmatmul.mubr.bf16.gmra.mrb[0].mxu0 %v457
      %v602 = vpop.f32.mrb[0].mxu0
      %v603 = vadd.f32 %v322, %v602
      %v604 = vpop.f32.mrb[0].mxu0
      %v605 = vpop.f32.mrb[0].mxu0
      %v606 = vadd.f32 %v322, %v605
      %v607 = vpop.f32.mrb[0].mxu0
      %608 = vmatprep.mubr.bf16.mxu0 0
      %609 = vmatmul.mubr.bf16.gmra.mrb[0].mxu0 %v460
      %v610 = vpop.f32.mrb[0].mxu0
      %v611 = vadd.f32 %v322, %v610
      %v612 = vpop.f32.mrb[0].mxu0
      %v613 = vpop.f32.mrb[0].mxu0
      %v614 = vadd.f32 %v322, %v613
      %v615 = vpop.f32.mrb[0].mxu0
      %616 = vmatprep.mubr.bf16.mxu0 0
      %617 = vmatmul.mubr.bf16.gmra.mrb[0].mxu0 %v463
      %v618 = vpop.f32.mrb[0].mxu0
      %v619 = vadd.f32 %v322, %v618
      %v620 = vpop.f32.mrb[0].mxu0
      %v621 = vpop.f32.mrb[0].mxu0
      %v622 = vadd.f32 %v322, %v621
      %v623 = vpop.f32.mrb[0].mxu0
      %624 = vmatprep.mubr.bf16.mxu0 0
      %625 = vmatmul.mubr.bf16.gmra.mrb[0].mxu0 %v466
      %v626 = vpop.f32.mrb[0].mxu0
      %v627 = vadd.f32 %v322, %v626
      %v628 = vpop.f32.mrb[0].mxu0
      %v629 = vpop.f32.mrb[0].mxu0
      %v630 = vadd.f32 %v322, %v629
      %v631 = vpop.f32.mrb[0].mxu0
      %632 = vdwg.mxu0
      %v633 = vmul.f32 %v507, 1.0882353
      %v634 = vmul.f32 %v515, 1.0882353
      %v635 = vmul.f32 %v523, 1.0882353
      %v636 = vmul.f32 %v531, 1.0882353
      %v637 = vmul.f32 %v539, 1.0882353
      %v638 = vmul.f32 %v547, 1.0882353
      %v639 = vmul.f32 %v555, 1.0882353
      %v640 = vmul.f32 %v563, 1.0882353
      %v641 = vmul.f32 %v571, 1.0882353
      %v642 = vmul.f32 %v579, 1.0882353
      %v643 = vmul.f32 %v587, 1.0882353
      %v644 = vmul.f32 %v595, 1.0882353
      %v645 = vmul.f32 %v603, 1.0882353
      %v646 = vmul.f32 %v611, 1.0882353
      %v647 = vmul.f32 %v619, 1.0882353
      %v648 = vmul.f32 %v627, 1.0882353
      %v649 = vmul.f32 %v507, -0.0882353
      %v650 = vmul.f32 %v515, -0.0882353
      %v651 = vmul.f32 %v523, -0.0882353
      %v652 = vmul.f32 %v531, -0.0882353
      %v653 = vmul.f32 %v539, -0.0882353
      %v654 = vmul.f32 %v547, -0.0882353
      %v655 = vmul.f32 %v555, -0.0882353
      %v656 = vmul.f32 %v563, -0.0882353
      %v657 = vmul.f32 %v571, -0.0882353
      %v658 = vmul.f32 %v579, -0.0882353
      %v659 = vmul.f32 %v587, -0.0882353
      %v660 = vmul.f32 %v595, -0.0882353
      %v661 = vmul.f32 %v603, -0.0882353
      %v662 = vmul.f32 %v611, -0.0882353
      %v663 = vmul.f32 %v619, -0.0882353
      %v664 = vmul.f32 %v627, -0.0882353
      %v681 = vrot.slane %v649, 1
      %v682 = vrot.slane %v650, 1
      %v683 = vrot.slane %v651, 1
      %v684 = vrot.slane %v652, 1
      %v685 = vrot.slane %v653, 1
      %v686 = vrot.slane %v654, 1
      %v687 = vrot.slane %v655, 1
      %v688 = vrot.slane %v656, 1
      %v689 = vrot.slane %v657, 1
      %v690 = vrot.slane %v658, 1
      %v691 = vrot.slane %v659, 1
      %v692 = vrot.slane %v660, 1
      %v693 = vrot.slane %v661, 1
      %v694 = vrot.slane %v662, 1
      %v695 = vrot.slane %v663, 1
      %v696 = vrot.slane %v664, 1
      %v713 = vadd.f32 %v633, %v681
      %v714 = vadd.f32 %v634, %v682
      %v715 = vadd.f32 %v635, %v683
      %v716 = vadd.f32 %v636, %v684
      %v717 = vadd.f32 %v637, %v685
      %v718 = vadd.f32 %v638, %v686
      %v719 = vadd.f32 %v639, %v687
      %v720 = vadd.f32 %v640, %v688
      %v721 = vadd.f32 %v641, %v689
      %v722 = vadd.f32 %v642, %v690
      %v723 = vadd.f32 %v643, %v691
      %v724 = vadd.f32 %v644, %v692
      %v725 = vadd.f32 %v645, %v693
      %v726 = vadd.f32 %v646, %v694
      %v727 = vadd.f32 %v647, %v695
      %v728 = vadd.f32 %v648, %v696
      %v729 = vmul.f32 %v507, 0.810219
      %v730 = vmul.f32 %v515, 0.810219
      %v731 = vmul.f32 %v523, 0.810219
      %v732 = vmul.f32 %v531, 0.810219
      %v733 = vmul.f32 %v539, 0.810219
      %v734 = vmul.f32 %v547, 0.810219
      %v735 = vmul.f32 %v555, 0.810219
      %v736 = vmul.f32 %v563, 0.810219
      %v737 = vmul.f32 %v571, 0.810219
      %v738 = vmul.f32 %v579, 0.810219
      %v739 = vmul.f32 %v587, 0.810219
      %v740 = vmul.f32 %v595, 0.810219
      %v741 = vmul.f32 %v603, 0.810219
      %v742 = vmul.f32 %v611, 0.810219
      %v743 = vmul.f32 %v619, 0.810219
      %v744 = vmul.f32 %v627, 0.810219
      %v745 = vmul.f32 %v507, 0.21167883
      %v746 = vmul.f32 %v515, 0.21167883
      %v747 = vmul.f32 %v523, 0.21167883
      %v748 = vmul.f32 %v531, 0.21167883
      %v749 = vmul.f32 %v539, 0.21167883
      %v750 = vmul.f32 %v547, 0.21167883
      %v751 = vmul.f32 %v555, 0.21167883
      %v752 = vmul.f32 %v563, 0.21167883
      %v753 = vmul.f32 %v571, 0.21167883
      %v754 = vmul.f32 %v579, 0.21167883
      %v755 = vmul.f32 %v587, 0.21167883
      %v756 = vmul.f32 %v595, 0.21167883
      %v757 = vmul.f32 %v603, 0.21167883
      %v758 = vmul.f32 %v611, 0.21167883
      %v759 = vmul.f32 %v619, 0.21167883
      %v760 = vmul.f32 %v627, 0.21167883
      %v777 = vrot.slane %v745, 1
      %v778 = vrot.slane %v746, 1
      %v779 = vrot.slane %v747, 1
      %v780 = vrot.slane %v748, 1
      %v781 = vrot.slane %v749, 1
      %v782 = vrot.slane %v750, 1
      %v783 = vrot.slane %v751, 1
      %v784 = vrot.slane %v752, 1
      %v785 = vrot.slane %v753, 1
      %v786 = vrot.slane %v754, 1
      %v787 = vrot.slane %v755, 1
      %v788 = vrot.slane %v756, 1
      %v789 = vrot.slane %v757, 1
      %v790 = vrot.slane %v758, 1
      %v791 = vrot.slane %v759, 1
      %v792 = vrot.slane %v760, 1
      %v809 = vadd.f32 %v729, %v777
      %v810 = vadd.f32 %v730, %v778
      %v811 = vadd.f32 %v731, %v779
      %v812 = vadd.f32 %v732, %v780
      %v813 = vadd.f32 %v733, %v781
      %v814 = vadd.f32 %v734, %v782
      %v815 = vadd.f32 %v735, %v783
      %v816 = vadd.f32 %v736, %v784
      %v817 = vadd.f32 %v737, %v785
      %v818 = vadd.f32 %v738, %v786
      %v819 = vadd.f32 %v739, %v787
      %v820 = vadd.f32 %v740, %v788
      %v821 = vadd.f32 %v741, %v789
      %v822 = vadd.f32 %v742, %v790
      %v823 = vadd.f32 %v743, %v791
      %v824 = vadd.f32 %v744, %v792
      %v825 = vmul.f32 %v507, -0.02189781
      %v826 = vmul.f32 %v515, -0.02189781
      %v827 = vmul.f32 %v523, -0.02189781
      %v828 = vmul.f32 %v531, -0.02189781
      %v829 = vmul.f32 %v539, -0.02189781
      %v830 = vmul.f32 %v547, -0.02189781
      %v831 = vmul.f32 %v555, -0.02189781
      %v832 = vmul.f32 %v563, -0.02189781
      %v833 = vmul.f32 %v571, -0.02189781
      %v834 = vmul.f32 %v579, -0.02189781
      %v835 = vmul.f32 %v587, -0.02189781
      %v836 = vmul.f32 %v595, -0.02189781
      %v837 = vmul.f32 %v603, -0.02189781
      %v838 = vmul.f32 %v611, -0.02189781
      %v839 = vmul.f32 %v619, -0.02189781
      %v840 = vmul.f32 %v627, -0.02189781
      %v857 = vrot.slane %v825, 2
      %v858 = vrot.slane %v826, 2
      %v859 = vrot.slane %v827, 2
      %v860 = vrot.slane %v828, 2
      %v861 = vrot.slane %v829, 2
      %v862 = vrot.slane %v830, 2
      %v863 = vrot.slane %v831, 2
      %v864 = vrot.slane %v832, 2
      %v865 = vrot.slane %v833, 2
      %v866 = vrot.slane %v834, 2
      %v867 = vrot.slane %v835, 2
      %v868 = vrot.slane %v836, 2
      %v869 = vrot.slane %v837, 2
      %v870 = vrot.slane %v838, 2
      %v871 = vrot.slane %v839, 2
      %v872 = vrot.slane %v840, 2
      %v889 = vadd.f32 %v809, %v857
      %v890 = vadd.f32 %v810, %v858
      %v891 = vadd.f32 %v811, %v859
      %v892 = vadd.f32 %v812, %v860
      %v893 = vadd.f32 %v813, %v861
      %v894 = vadd.f32 %v814, %v862
      %v895 = vadd.f32 %v815, %v863
      %v896 = vadd.f32 %v816, %v864
      %v897 = vadd.f32 %v817, %v865
      %v898 = vadd.f32 %v818, %v866
      %v899 = vadd.f32 %v819, %v867
      %v900 = vadd.f32 %v820, %v868
      %v901 = vadd.f32 %v821, %v869
      %v902 = vadd.f32 %v822, %v870
      %v903 = vadd.f32 %v823, %v871
      %v904 = vadd.f32 %v824, %v872
      %v905 = vmul.f32 %v507, 0.22137405
      %v906 = vmul.f32 %v515, 0.22137405
      %v907 = vmul.f32 %v523, 0.22137405
      %v908 = vmul.f32 %v531, 0.22137405
      %v909 = vmul.f32 %v539, 0.22137405
      %v910 = vmul.f32 %v547, 0.22137405
      %v911 = vmul.f32 %v555, 0.22137405
      %v912 = vmul.f32 %v563, 0.22137405
      %v913 = vmul.f32 %v571, 0.22137405
      %v914 = vmul.f32 %v579, 0.22137405
      %v915 = vmul.f32 %v587, 0.22137405
      %v916 = vmul.f32 %v595, 0.22137405
      %v917 = vmul.f32 %v603, 0.22137405
      %v918 = vmul.f32 %v611, 0.22137405
      %v919 = vmul.f32 %v619, 0.22137405
      %v920 = vmul.f32 %v627, 0.22137405
      %v921 = vmul.f32 %v507, 0.84732825
      %v922 = vmul.f32 %v515, 0.84732825
      %v923 = vmul.f32 %v523, 0.84732825
      %v924 = vmul.f32 %v531, 0.84732825
      %v925 = vmul.f32 %v539, 0.84732825
      %v926 = vmul.f32 %v547, 0.84732825
      %v927 = vmul.f32 %v555, 0.84732825
      %v928 = vmul.f32 %v563, 0.84732825
      %v929 = vmul.f32 %v571, 0.84732825
      %v930 = vmul.f32 %v579, 0.84732825
      %v931 = vmul.f32 %v587, 0.84732825
      %v932 = vmul.f32 %v595, 0.84732825
      %v933 = vmul.f32 %v603, 0.84732825
      %v934 = vmul.f32 %v611, 0.84732825
      %v935 = vmul.f32 %v619, 0.84732825
      %v936 = vmul.f32 %v627, 0.84732825
      %v953 = vrot.slane %v921, 1
      %v954 = vrot.slane %v922, 1
      %v955 = vrot.slane %v923, 1
      %v956 = vrot.slane %v924, 1
      %v957 = vrot.slane %v925, 1
      %v958 = vrot.slane %v926, 1
      %v959 = vrot.slane %v927, 1
      %v960 = vrot.slane %v928, 1
      %v961 = vrot.slane %v929, 1
      %v962 = vrot.slane %v930, 1
      %v963 = vrot.slane %v931, 1
      %v964 = vrot.slane %v932, 1
      %v965 = vrot.slane %v933, 1
      %v966 = vrot.slane %v934, 1
      %v967 = vrot.slane %v935, 1
      %v968 = vrot.slane %v936, 1
      %v985 = vadd.f32 %v905, %v953
      %v986 = vadd.f32 %v906, %v954
      %v987 = vadd.f32 %v907, %v955
      %v988 = vadd.f32 %v908, %v956
      %v989 = vadd.f32 %v909, %v957
      %v990 = vadd.f32 %v910, %v958
      %v991 = vadd.f32 %v911, %v959
      %v992 = vadd.f32 %v912, %v960
      %v993 = vadd.f32 %v913, %v961
      %v994 = vadd.f32 %v914, %v962
      %v995 = vadd.f32 %v915, %v963
      %v996 = vadd.f32 %v916, %v964
      %v997 = vadd.f32 %v917, %v965
      %v998 = vadd.f32 %v918, %v966
      %v999 = vadd.f32 %v919, %v967
      %v1000 = vadd.f32 %v920, %v968
      %v1001 = vmul.f32 %v507, -0.06870229
      %v1002 = vmul.f32 %v515, -0.06870229
      %v1003 = vmul.f32 %v523, -0.06870229
      %v1004 = vmul.f32 %v531, -0.06870229
      %v1005 = vmul.f32 %v539, -0.06870229
      %v1006 = vmul.f32 %v547, -0.06870229
      %v1007 = vmul.f32 %v555, -0.06870229
      %v1008 = vmul.f32 %v563, -0.06870229
      %v1009 = vmul.f32 %v571, -0.06870229
      %v1010 = vmul.f32 %v579, -0.06870229
      %v1011 = vmul.f32 %v587, -0.06870229
      %v1012 = vmul.f32 %v595, -0.06870229
      %v1013 = vmul.f32 %v603, -0.06870229
      %v1014 = vmul.f32 %v611, -0.06870229
      %v1015 = vmul.f32 %v619, -0.06870229
      %v1016 = vmul.f32 %v627, -0.06870229
      %v1033 = vrot.slane %v1001, 2
      %v1034 = vrot.slane %v1002, 2
      %v1035 = vrot.slane %v1003, 2
      %v1036 = vrot.slane %v1004, 2
      %v1037 = vrot.slane %v1005, 2
      %v1038 = vrot.slane %v1006, 2
      %v1039 = vrot.slane %v1007, 2
      %v1040 = vrot.slane %v1008, 2
      %v1041 = vrot.slane %v1009, 2
      %v1042 = vrot.slane %v1010, 2
      %v1043 = vrot.slane %v1011, 2
      %v1044 = vrot.slane %v1012, 2
      %v1045 = vrot.slane %v1013, 2
      %v1046 = vrot.slane %v1014, 2
      %v1047 = vrot.slane %v1015, 2
      %v1048 = vrot.slane %v1016, 2
      %v1065 = vadd.f32 %v985, %v1033
      %v1066 = vadd.f32 %v986, %v1034
      %v1067 = vadd.f32 %v987, %v1035
      %v1068 = vadd.f32 %v988, %v1036
      %v1069 = vadd.f32 %v989, %v1037
      %v1070 = vadd.f32 %v990, %v1038
      %v1071 = vadd.f32 %v991, %v1039
      %v1072 = vadd.f32 %v992, %v1040
      %v1073 = vadd.f32 %v993, %v1041
      %v1074 = vadd.f32 %v994, %v1042
      %v1075 = vadd.f32 %v995, %v1043
      %v1076 = vadd.f32 %v996, %v1044
      %v1077 = vadd.f32 %v997, %v1045
      %v1078 = vadd.f32 %v998, %v1046
      %v1079 = vadd.f32 %v999, %v1047
      %v1080 = vadd.f32 %v1000, %v1048
      %v1081 = vmul.f32 %v507, -0.0703125
      %v1082 = vmul.f32 %v515, -0.0703125
      %v1083 = vmul.f32 %v523, -0.0703125
      %v1084 = vmul.f32 %v531, -0.0703125
      %v1085 = vmul.f32 %v539, -0.0703125
      %v1086 = vmul.f32 %v547, -0.0703125
      %v1087 = vmul.f32 %v555, -0.0703125
      %v1088 = vmul.f32 %v563, -0.0703125
      %v1089 = vmul.f32 %v571, -0.0703125
      %v1090 = vmul.f32 %v579, -0.0703125
      %v1091 = vmul.f32 %v587, -0.0703125
      %v1092 = vmul.f32 %v595, -0.0703125
      %v1093 = vmul.f32 %v603, -0.0703125
      %v1094 = vmul.f32 %v611, -0.0703125
      %v1095 = vmul.f32 %v619, -0.0703125
      %v1096 = vmul.f32 %v627, -0.0703125
      %v1097 = vmul.f32 %v507, 0.8671875
      %v1098 = vmul.f32 %v515, 0.8671875
      %v1099 = vmul.f32 %v523, 0.8671875
      %v1100 = vmul.f32 %v531, 0.8671875
      %v1101 = vmul.f32 %v539, 0.8671875
      %v1102 = vmul.f32 %v547, 0.8671875
      %v1103 = vmul.f32 %v555, 0.8671875
      %v1104 = vmul.f32 %v563, 0.8671875
      %v1105 = vmul.f32 %v571, 0.8671875
      %v1106 = vmul.f32 %v579, 0.8671875
      %v1107 = vmul.f32 %v587, 0.8671875
      %v1108 = vmul.f32 %v595, 0.8671875
      %v1109 = vmul.f32 %v603, 0.8671875
      %v1110 = vmul.f32 %v611, 0.8671875
      %v1111 = vmul.f32 %v619, 0.8671875
      %v1112 = vmul.f32 %v627, 0.8671875
      %v1129 = vrot.slane %v1097, 1
      %v1130 = vrot.slane %v1098, 1
      %v1131 = vrot.slane %v1099, 1
      %v1132 = vrot.slane %v1100, 1
      %v1133 = vrot.slane %v1101, 1
      %v1134 = vrot.slane %v1102, 1
      %v1135 = vrot.slane %v1103, 1
      %v1136 = vrot.slane %v1104, 1
      %v1137 = vrot.slane %v1105, 1
      %v1138 = vrot.slane %v1106, 1
      %v1139 = vrot.slane %v1107, 1
      %v1140 = vrot.slane %v1108, 1
      %v1141 = vrot.slane %v1109, 1
      %v1142 = vrot.slane %v1110, 1
      %v1143 = vrot.slane %v1111, 1
      %v1144 = vrot.slane %v1112, 1
      %v1161 = vadd.f32 %v1081, %v1129
      %v1162 = vadd.f32 %v1082, %v1130
      %v1163 = vadd.f32 %v1083, %v1131
      %v1164 = vadd.f32 %v1084, %v1132
      %v1165 = vadd.f32 %v1085, %v1133
      %v1166 = vadd.f32 %v1086, %v1134
      %v1167 = vadd.f32 %v1087, %v1135
      %v1168 = vadd.f32 %v1088, %v1136
      %v1169 = vadd.f32 %v1089, %v1137
      %v1170 = vadd.f32 %v1090, %v1138
      %v1171 = vadd.f32 %v1091, %v1139
      %v1172 = vadd.f32 %v1092, %v1140
      %v1173 = vadd.f32 %v1093, %v1141
      %v1174 = vadd.f32 %v1094, %v1142
      %v1175 = vadd.f32 %v1095, %v1143
      %v1176 = vadd.f32 %v1096, %v1144
      %v1177 = vmul.f32 %v507, 0.2265625
      %v1178 = vmul.f32 %v515, 0.2265625
      %v1179 = vmul.f32 %v523, 0.2265625
      %v1180 = vmul.f32 %v531, 0.2265625
      %v1181 = vmul.f32 %v539, 0.2265625
      %v1182 = vmul.f32 %v547, 0.2265625
      %v1183 = vmul.f32 %v555, 0.2265625
      %v1184 = vmul.f32 %v563, 0.2265625
      %v1185 = vmul.f32 %v571, 0.2265625
      %v1186 = vmul.f32 %v579, 0.2265625
      %v1187 = vmul.f32 %v587, 0.2265625
      %v1188 = vmul.f32 %v595, 0.2265625
      %v1189 = vmul.f32 %v603, 0.2265625
      %v1190 = vmul.f32 %v611, 0.2265625
      %v1191 = vmul.f32 %v619, 0.2265625
      %v1192 = vmul.f32 %v627, 0.2265625
      %v1209 = vrot.slane %v1177, 2
      %v1210 = vrot.slane %v1178, 2
      %v1211 = vrot.slane %v1179, 2
      %v1212 = vrot.slane %v1180, 2
      %v1213 = vrot.slane %v1181, 2
      %v1214 = vrot.slane %v1182, 2
      %v1215 = vrot.slane %v1183, 2
      %v1216 = vrot.slane %v1184, 2
      %v1217 = vrot.slane %v1185, 2
      %v1218 = vrot.slane %v1186, 2
      %v1219 = vrot.slane %v1187, 2
      %v1220 = vrot.slane %v1188, 2
      %v1221 = vrot.slane %v1189, 2
      %v1222 = vrot.slane %v1190, 2
      %v1223 = vrot.slane %v1191, 2
      %v1224 = vrot.slane %v1192, 2
      %v1241 = vadd.f32 %v1161, %v1209
      %v1242 = vadd.f32 %v1162, %v1210
      %v1243 = vadd.f32 %v1163, %v1211
      %v1244 = vadd.f32 %v1164, %v1212
      %v1245 = vadd.f32 %v1165, %v1213
      %v1246 = vadd.f32 %v1166, %v1214
      %v1247 = vadd.f32 %v1167, %v1215
      %v1248 = vadd.f32 %v1168, %v1216
      %v1249 = vadd.f32 %v1169, %v1217
      %v1250 = vadd.f32 %v1170, %v1218
      %v1251 = vadd.f32 %v1171, %v1219
      %v1252 = vadd.f32 %v1172, %v1220
      %v1253 = vadd.f32 %v1173, %v1221
      %v1254 = vadd.f32 %v1174, %v1222
      %v1255 = vadd.f32 %v1175, %v1223
      %v1256 = vadd.f32 %v1176, %v1224
      %v1257 = vmul.f32 %v507, -0.0234375
      %v1258 = vmul.f32 %v515, -0.0234375
      %v1259 = vmul.f32 %v523, -0.0234375
      %v1260 = vmul.f32 %v531, -0.0234375
      %v1261 = vmul.f32 %v539, -0.0234375
      %v1262 = vmul.f32 %v547, -0.0234375
      %v1263 = vmul.f32 %v555, -0.0234375
      %v1264 = vmul.f32 %v563, -0.0234375
      %v1265 = vmul.f32 %v571, -0.0234375
      %v1266 = vmul.f32 %v579, -0.0234375
      %v1267 = vmul.f32 %v587, -0.0234375
      %v1268 = vmul.f32 %v595, -0.0234375
      %v1269 = vmul.f32 %v603, -0.0234375
      %v1270 = vmul.f32 %v611, -0.0234375
      %v1271 = vmul.f32 %v619, -0.0234375
      %v1272 = vmul.f32 %v627, -0.0234375
      %v1289 = vrot.slane %v1257, 3
      %v1290 = vrot.slane %v1258, 3
      %v1291 = vrot.slane %v1259, 3
      %v1292 = vrot.slane %v1260, 3
      %v1293 = vrot.slane %v1261, 3
      %v1294 = vrot.slane %v1262, 3
      %v1295 = vrot.slane %v1263, 3
      %v1296 = vrot.slane %v1264, 3
      %v1297 = vrot.slane %v1265, 3
      %v1298 = vrot.slane %v1266, 3
      %v1299 = vrot.slane %v1267, 3
      %v1300 = vrot.slane %v1268, 3
      %v1301 = vrot.slane %v1269, 3
      %v1302 = vrot.slane %v1270, 3
      %v1303 = vrot.slane %v1271, 3
      %v1304 = vrot.slane %v1272, 3
      %v1321 = vadd.f32 %v1241, %v1289
      %v1322 = vadd.f32 %v1242, %v1290
      %v1323 = vadd.f32 %v1243, %v1291
      %v1324 = vadd.f32 %v1244, %v1292
      %v1325 = vadd.f32 %v1245, %v1293
      %v1326 = vadd.f32 %v1246, %v1294
      %v1327 = vadd.f32 %v1247, %v1295
      %v1328 = vadd.f32 %v1248, %v1296
      %v1329 = vadd.f32 %v1249, %v1297
      %v1330 = vadd.f32 %v1250, %v1298
      %v1331 = vadd.f32 %v1251, %v1299
      %v1332 = vadd.f32 %v1252, %v1300
      %v1333 = vadd.f32 %v1253, %v1301
      %v1334 = vadd.f32 %v1254, %v1302
      %v1335 = vadd.f32 %v1255, %v1303
      %v1336 = vadd.f32 %v1256, %v1304
      %v1337 = vrot.slane %v1177, 1
      %v1338 = vrot.slane %v1178, 1
      %v1339 = vrot.slane %v1179, 1
      %v1340 = vrot.slane %v1180, 1
      %v1341 = vrot.slane %v1181, 1
      %v1342 = vrot.slane %v1182, 1
      %v1343 = vrot.slane %v1183, 1
      %v1344 = vrot.slane %v1184, 1
      %v1345 = vrot.slane %v1185, 1
      %v1346 = vrot.slane %v1186, 1
      %v1347 = vrot.slane %v1187, 1
      %v1348 = vrot.slane %v1188, 1
      %v1349 = vrot.slane %v1189, 1
      %v1350 = vrot.slane %v1190, 1
      %v1351 = vrot.slane %v1191, 1
      %v1352 = vrot.slane %v1192, 1
      %v1369 = vadd.f32 %v1257, %v1337
      %v1370 = vadd.f32 %v1258, %v1338
      %v1371 = vadd.f32 %v1259, %v1339
      %v1372 = vadd.f32 %v1260, %v1340
      %v1373 = vadd.f32 %v1261, %v1341
      %v1374 = vadd.f32 %v1262, %v1342
      %v1375 = vadd.f32 %v1263, %v1343
      %v1376 = vadd.f32 %v1264, %v1344
      %v1377 = vadd.f32 %v1265, %v1345
      %v1378 = vadd.f32 %v1266, %v1346
      %v1379 = vadd.f32 %v1267, %v1347
      %v1380 = vadd.f32 %v1268, %v1348
      %v1381 = vadd.f32 %v1269, %v1349
      %v1382 = vadd.f32 %v1270, %v1350
      %v1383 = vadd.f32 %v1271, %v1351
      %v1384 = vadd.f32 %v1272, %v1352
      %v1385 = vrot.slane %v1097, 2
      %v1386 = vrot.slane %v1098, 2
      %v1387 = vrot.slane %v1099, 2
      %v1388 = vrot.slane %v1100, 2
      %v1389 = vrot.slane %v1101, 2
      %v1390 = vrot.slane %v1102, 2
      %v1391 = vrot.slane %v1103, 2
      %v1392 = vrot.slane %v1104, 2
      %v1393 = vrot.slane %v1105, 2
      %v1394 = vrot.slane %v1106, 2
      %v1395 = vrot.slane %v1107, 2
      %v1396 = vrot.slane %v1108, 2
      %v1397 = vrot.slane %v1109, 2
      %v1398 = vrot.slane %v1110, 2
      %v1399 = vrot.slane %v1111, 2
      %v1400 = vrot.slane %v1112, 2
      %v1417 = vadd.f32 %v1369, %v1385
      %v1418 = vadd.f32 %v1370, %v1386
      %v1419 = vadd.f32 %v1371, %v1387
      %v1420 = vadd.f32 %v1372, %v1388
      %v1421 = vadd.f32 %v1373, %v1389
      %v1422 = vadd.f32 %v1374, %v1390
      %v1423 = vadd.f32 %v1375, %v1391
      %v1424 = vadd.f32 %v1376, %v1392
      %v1425 = vadd.f32 %v1377, %v1393
      %v1426 = vadd.f32 %v1378, %v1394
      %v1427 = vadd.f32 %v1379, %v1395
      %v1428 = vadd.f32 %v1380, %v1396
      %v1429 = vadd.f32 %v1381, %v1397
      %v1430 = vadd.f32 %v1382, %v1398
      %v1431 = vadd.f32 %v1383, %v1399
      %v1432 = vadd.f32 %v1384, %v1400
      %v1449 = vrot.slane %v1081, 3
      %v1450 = vrot.slane %v1082, 3
      %v1451 = vrot.slane %v1083, 3
      %v1452 = vrot.slane %v1084, 3
      %v1453 = vrot.slane %v1085, 3
      %v1454 = vrot.slane %v1086, 3
      %v1455 = vrot.slane %v1087, 3
      %v1456 = vrot.slane %v1088, 3
      %v1457 = vrot.slane %v1089, 3
      %v1458 = vrot.slane %v1090, 3
      %v1459 = vrot.slane %v1091, 3
      %v1460 = vrot.slane %v1092, 3
      %v1461 = vrot.slane %v1093, 3
      %v1462 = vrot.slane %v1094, 3
      %v1463 = vrot.slane %v1095, 3
      %v1464 = vrot.slane %v1096, 3
      %v1481 = vadd.f32 %v1417, %v1449
      %v1482 = vadd.f32 %v1418, %v1450
      %v1483 = vadd.f32 %v1419, %v1451
      %v1484 = vadd.f32 %v1420, %v1452
      %v1485 = vadd.f32 %v1421, %v1453
      %v1486 = vadd.f32 %v1422, %v1454
      %v1487 = vadd.f32 %v1423, %v1455
      %v1488 = vadd.f32 %v1424, %v1456
      %v1489 = vadd.f32 %v1425, %v1457
      %v1490 = vadd.f32 %v1426, %v1458
      %v1491 = vadd.f32 %v1427, %v1459
      %v1492 = vadd.f32 %v1428, %v1460
      %v1493 = vadd.f32 %v1429, %v1461
      %v1494 = vadd.f32 %v1430, %v1462
      %v1495 = vadd.f32 %v1431, %v1463
      %v1496 = vadd.f32 %v1432, %v1464
      %v1497 = vmul.f32 %v510, -0.0234375
      %v1498 = vmul.f32 %v518, -0.0234375
      %v1499 = vmul.f32 %v526, -0.0234375
      %v1500 = vmul.f32 %v534, -0.0234375
      %v1501 = vmul.f32 %v542, -0.0234375
      %v1502 = vmul.f32 %v550, -0.0234375
      %v1503 = vmul.f32 %v558, -0.0234375
      %v1504 = vmul.f32 %v566, -0.0234375
      %v1505 = vmul.f32 %v574, -0.0234375
      %v1506 = vmul.f32 %v582, -0.0234375
      %v1507 = vmul.f32 %v590, -0.0234375
      %v1508 = vmul.f32 %v598, -0.0234375
      %v1509 = vmul.f32 %v606, -0.0234375
      %v1510 = vmul.f32 %v614, -0.0234375
      %v1511 = vmul.f32 %v622, -0.0234375
      %v1512 = vmul.f32 %v630, -0.0234375
      %v1529 = vrot.slane %v1497, 3
      %v1530 = vrot.slane %v1498, 3
      %v1531 = vrot.slane %v1499, 3
      %v1532 = vrot.slane %v1500, 3
      %v1533 = vrot.slane %v1501, 3
      %v1534 = vrot.slane %v1502, 3
      %v1535 = vrot.slane %v1503, 3
      %v1536 = vrot.slane %v1504, 3
      %v1537 = vrot.slane %v1505, 3
      %v1538 = vrot.slane %v1506, 3
      %v1539 = vrot.slane %v1507, 3
      %v1540 = vrot.slane %v1508, 3
      %v1541 = vrot.slane %v1509, 3
      %v1542 = vrot.slane %v1510, 3
      %v1543 = vrot.slane %v1511, 3
      %v1544 = vrot.slane %v1512, 3
      %v1561 = vadd.f32 %v1241, %v1529
      %v1562 = vadd.f32 %v1242, %v1530
      %v1563 = vadd.f32 %v1243, %v1531
      %v1564 = vadd.f32 %v1244, %v1532
      %v1565 = vadd.f32 %v1245, %v1533
      %v1566 = vadd.f32 %v1246, %v1534
      %v1567 = vadd.f32 %v1247, %v1535
      %v1568 = vadd.f32 %v1248, %v1536
      %v1569 = vadd.f32 %v1249, %v1537
      %v1570 = vadd.f32 %v1250, %v1538
      %v1571 = vadd.f32 %v1251, %v1539
      %v1572 = vadd.f32 %v1252, %v1540
      %v1573 = vadd.f32 %v1253, %v1541
      %v1574 = vadd.f32 %v1254, %v1542
      %v1575 = vadd.f32 %v1255, %v1543
      %v1576 = vadd.f32 %v1256, %v1544
      %v1577 = vmul.f32 %v510, -0.0703125
      %v1578 = vmul.f32 %v518, -0.0703125
      %v1579 = vmul.f32 %v526, -0.0703125
      %v1580 = vmul.f32 %v534, -0.0703125
      %v1581 = vmul.f32 %v542, -0.0703125
      %v1582 = vmul.f32 %v550, -0.0703125
      %v1583 = vmul.f32 %v558, -0.0703125
      %v1584 = vmul.f32 %v566, -0.0703125
      %v1585 = vmul.f32 %v574, -0.0703125
      %v1586 = vmul.f32 %v582, -0.0703125
      %v1587 = vmul.f32 %v590, -0.0703125
      %v1588 = vmul.f32 %v598, -0.0703125
      %v1589 = vmul.f32 %v606, -0.0703125
      %v1590 = vmul.f32 %v614, -0.0703125
      %v1591 = vmul.f32 %v622, -0.0703125
      %v1592 = vmul.f32 %v630, -0.0703125
      %v1609 = vrot.slane %v1577, 3
      %v1610 = vrot.slane %v1578, 3
      %v1611 = vrot.slane %v1579, 3
      %v1612 = vrot.slane %v1580, 3
      %v1613 = vrot.slane %v1581, 3
      %v1614 = vrot.slane %v1582, 3
      %v1615 = vrot.slane %v1583, 3
      %v1616 = vrot.slane %v1584, 3
      %v1617 = vrot.slane %v1585, 3
      %v1618 = vrot.slane %v1586, 3
      %v1619 = vrot.slane %v1587, 3
      %v1620 = vrot.slane %v1588, 3
      %v1621 = vrot.slane %v1589, 3
      %v1622 = vrot.slane %v1590, 3
      %v1623 = vrot.slane %v1591, 3
      %v1624 = vrot.slane %v1592, 3
      %v1641 = vadd.f32 %v1417, %v1609
      %v1642 = vadd.f32 %v1418, %v1610
      %v1643 = vadd.f32 %v1419, %v1611
      %v1644 = vadd.f32 %v1420, %v1612
      %v1645 = vadd.f32 %v1421, %v1613
      %v1646 = vadd.f32 %v1422, %v1614
      %v1647 = vadd.f32 %v1423, %v1615
      %v1648 = vadd.f32 %v1424, %v1616
      %v1649 = vadd.f32 %v1425, %v1617
      %v1650 = vadd.f32 %v1426, %v1618
      %v1651 = vadd.f32 %v1427, %v1619
      %v1652 = vadd.f32 %v1428, %v1620
      %v1653 = vadd.f32 %v1429, %v1621
      %v1654 = vadd.f32 %v1430, %v1622
      %v1655 = vadd.f32 %v1431, %v1623
      %v1656 = vadd.f32 %v1432, %v1624
      %v1657 = vmul.f32 %v510, 0.2265625
      %v1658 = vmul.f32 %v518, 0.2265625
      %v1659 = vmul.f32 %v526, 0.2265625
      %v1660 = vmul.f32 %v534, 0.2265625
      %v1661 = vmul.f32 %v542, 0.2265625
      %v1662 = vmul.f32 %v550, 0.2265625
      %v1663 = vmul.f32 %v558, 0.2265625
      %v1664 = vmul.f32 %v566, 0.2265625
      %v1665 = vmul.f32 %v574, 0.2265625
      %v1666 = vmul.f32 %v582, 0.2265625
      %v1667 = vmul.f32 %v590, 0.2265625
      %v1668 = vmul.f32 %v598, 0.2265625
      %v1669 = vmul.f32 %v606, 0.2265625
      %v1670 = vmul.f32 %v614, 0.2265625
      %v1671 = vmul.f32 %v622, 0.2265625
      %v1672 = vmul.f32 %v630, 0.2265625
      %v1689 = vrot.slane %v1657, 2
      %v1690 = vrot.slane %v1658, 2
      %v1691 = vrot.slane %v1659, 2
      %v1692 = vrot.slane %v1660, 2
      %v1693 = vrot.slane %v1661, 2
      %v1694 = vrot.slane %v1662, 2
      %v1695 = vrot.slane %v1663, 2
      %v1696 = vrot.slane %v1664, 2
      %v1697 = vrot.slane %v1665, 2
      %v1698 = vrot.slane %v1666, 2
      %v1699 = vrot.slane %v1667, 2
      %v1700 = vrot.slane %v1668, 2
      %v1701 = vrot.slane %v1669, 2
      %v1702 = vrot.slane %v1670, 2
      %v1703 = vrot.slane %v1671, 2
      %v1704 = vrot.slane %v1672, 2
      %v1721 = vadd.f32 %v1161, %v1689
      %v1722 = vadd.f32 %v1162, %v1690
      %v1723 = vadd.f32 %v1163, %v1691
      %v1724 = vadd.f32 %v1164, %v1692
      %v1725 = vadd.f32 %v1165, %v1693
      %v1726 = vadd.f32 %v1166, %v1694
      %v1727 = vadd.f32 %v1167, %v1695
      %v1728 = vadd.f32 %v1168, %v1696
      %v1729 = vadd.f32 %v1169, %v1697
      %v1730 = vadd.f32 %v1170, %v1698
      %v1731 = vadd.f32 %v1171, %v1699
      %v1732 = vadd.f32 %v1172, %v1700
      %v1733 = vadd.f32 %v1173, %v1701
      %v1734 = vadd.f32 %v1174, %v1702
      %v1735 = vadd.f32 %v1175, %v1703
      %v1736 = vadd.f32 %v1176, %v1704
      %v1737 = vadd.f32 %v1721, %v1529
      %v1738 = vadd.f32 %v1722, %v1530
      %v1739 = vadd.f32 %v1723, %v1531
      %v1740 = vadd.f32 %v1724, %v1532
      %v1741 = vadd.f32 %v1725, %v1533
      %v1742 = vadd.f32 %v1726, %v1534
      %v1743 = vadd.f32 %v1727, %v1535
      %v1744 = vadd.f32 %v1728, %v1536
      %v1745 = vadd.f32 %v1729, %v1537
      %v1746 = vadd.f32 %v1730, %v1538
      %v1747 = vadd.f32 %v1731, %v1539
      %v1748 = vadd.f32 %v1732, %v1540
      %v1749 = vadd.f32 %v1733, %v1541
      %v1750 = vadd.f32 %v1734, %v1542
      %v1751 = vadd.f32 %v1735, %v1543
      %v1752 = vadd.f32 %v1736, %v1544
      %v1753 = vmul.f32 %v510, 0.8671875
      %v1754 = vmul.f32 %v518, 0.8671875
      %v1755 = vmul.f32 %v526, 0.8671875
      %v1756 = vmul.f32 %v534, 0.8671875
      %v1757 = vmul.f32 %v542, 0.8671875
      %v1758 = vmul.f32 %v550, 0.8671875
      %v1759 = vmul.f32 %v558, 0.8671875
      %v1760 = vmul.f32 %v566, 0.8671875
      %v1761 = vmul.f32 %v574, 0.8671875
      %v1762 = vmul.f32 %v582, 0.8671875
      %v1763 = vmul.f32 %v590, 0.8671875
      %v1764 = vmul.f32 %v598, 0.8671875
      %v1765 = vmul.f32 %v606, 0.8671875
      %v1766 = vmul.f32 %v614, 0.8671875
      %v1767 = vmul.f32 %v622, 0.8671875
      %v1768 = vmul.f32 %v630, 0.8671875
      %v1785 = vrot.slane %v1753, 2
      %v1786 = vrot.slane %v1754, 2
      %v1787 = vrot.slane %v1755, 2
      %v1788 = vrot.slane %v1756, 2
      %v1789 = vrot.slane %v1757, 2
      %v1790 = vrot.slane %v1758, 2
      %v1791 = vrot.slane %v1759, 2
      %v1792 = vrot.slane %v1760, 2
      %v1793 = vrot.slane %v1761, 2
      %v1794 = vrot.slane %v1762, 2
      %v1795 = vrot.slane %v1763, 2
      %v1796 = vrot.slane %v1764, 2
      %v1797 = vrot.slane %v1765, 2
      %v1798 = vrot.slane %v1766, 2
      %v1799 = vrot.slane %v1767, 2
      %v1800 = vrot.slane %v1768, 2
      %v1817 = vadd.f32 %v1369, %v1785
      %v1818 = vadd.f32 %v1370, %v1786
      %v1819 = vadd.f32 %v1371, %v1787
      %v1820 = vadd.f32 %v1372, %v1788
      %v1821 = vadd.f32 %v1373, %v1789
      %v1822 = vadd.f32 %v1374, %v1790
      %v1823 = vadd.f32 %v1375, %v1791
      %v1824 = vadd.f32 %v1376, %v1792
      %v1825 = vadd.f32 %v1377, %v1793
      %v1826 = vadd.f32 %v1378, %v1794
      %v1827 = vadd.f32 %v1379, %v1795
      %v1828 = vadd.f32 %v1380, %v1796
      %v1829 = vadd.f32 %v1381, %v1797
      %v1830 = vadd.f32 %v1382, %v1798
      %v1831 = vadd.f32 %v1383, %v1799
      %v1832 = vadd.f32 %v1384, %v1800
      %v1833 = vadd.f32 %v1817, %v1609
      %v1834 = vadd.f32 %v1818, %v1610
      %v1835 = vadd.f32 %v1819, %v1611
      %v1836 = vadd.f32 %v1820, %v1612
      %v1837 = vadd.f32 %v1821, %v1613
      %v1838 = vadd.f32 %v1822, %v1614
      %v1839 = vadd.f32 %v1823, %v1615
      %v1840 = vadd.f32 %v1824, %v1616
      %v1841 = vadd.f32 %v1825, %v1617
      %v1842 = vadd.f32 %v1826, %v1618
      %v1843 = vadd.f32 %v1827, %v1619
      %v1844 = vadd.f32 %v1828, %v1620
      %v1845 = vadd.f32 %v1829, %v1621
      %v1846 = vadd.f32 %v1830, %v1622
      %v1847 = vadd.f32 %v1831, %v1623
      %v1848 = vadd.f32 %v1832, %v1624
      %v1849 = vrot.slane %v1753, 1
      %v1850 = vrot.slane %v1754, 1
      %v1851 = vrot.slane %v1755, 1
      %v1852 = vrot.slane %v1756, 1
      %v1853 = vrot.slane %v1757, 1
      %v1854 = vrot.slane %v1758, 1
      %v1855 = vrot.slane %v1759, 1
      %v1856 = vrot.slane %v1760, 1
      %v1857 = vrot.slane %v1761, 1
      %v1858 = vrot.slane %v1762, 1
      %v1859 = vrot.slane %v1763, 1
      %v1860 = vrot.slane %v1764, 1
      %v1861 = vrot.slane %v1765, 1
      %v1862 = vrot.slane %v1766, 1
      %v1863 = vrot.slane %v1767, 1
      %v1864 = vrot.slane %v1768, 1
      %v1881 = vadd.f32 %v1081, %v1849
      %v1882 = vadd.f32 %v1082, %v1850
      %v1883 = vadd.f32 %v1083, %v1851
      %v1884 = vadd.f32 %v1084, %v1852
      %v1885 = vadd.f32 %v1085, %v1853
      %v1886 = vadd.f32 %v1086, %v1854
      %v1887 = vadd.f32 %v1087, %v1855
      %v1888 = vadd.f32 %v1088, %v1856
      %v1889 = vadd.f32 %v1089, %v1857
      %v1890 = vadd.f32 %v1090, %v1858
      %v1891 = vadd.f32 %v1091, %v1859
      %v1892 = vadd.f32 %v1092, %v1860
      %v1893 = vadd.f32 %v1093, %v1861
      %v1894 = vadd.f32 %v1094, %v1862
      %v1895 = vadd.f32 %v1095, %v1863
      %v1896 = vadd.f32 %v1096, %v1864
      %v1897 = vadd.f32 %v1881, %v1689
      %v1898 = vadd.f32 %v1882, %v1690
      %v1899 = vadd.f32 %v1883, %v1691
      %v1900 = vadd.f32 %v1884, %v1692
      %v1901 = vadd.f32 %v1885, %v1693
      %v1902 = vadd.f32 %v1886, %v1694
      %v1903 = vadd.f32 %v1887, %v1695
      %v1904 = vadd.f32 %v1888, %v1696
      %v1905 = vadd.f32 %v1889, %v1697
      %v1906 = vadd.f32 %v1890, %v1698
      %v1907 = vadd.f32 %v1891, %v1699
      %v1908 = vadd.f32 %v1892, %v1700
      %v1909 = vadd.f32 %v1893, %v1701
      %v1910 = vadd.f32 %v1894, %v1702
      %v1911 = vadd.f32 %v1895, %v1703
      %v1912 = vadd.f32 %v1896, %v1704
      %v1913 = vadd.f32 %v1897, %v1529
      %v1914 = vadd.f32 %v1898, %v1530
      %v1915 = vadd.f32 %v1899, %v1531
      %v1916 = vadd.f32 %v1900, %v1532
      %v1917 = vadd.f32 %v1901, %v1533
      %v1918 = vadd.f32 %v1902, %v1534
      %v1919 = vadd.f32 %v1903, %v1535
      %v1920 = vadd.f32 %v1904, %v1536
      %v1921 = vadd.f32 %v1905, %v1537
      %v1922 = vadd.f32 %v1906, %v1538
      %v1923 = vadd.f32 %v1907, %v1539
      %v1924 = vadd.f32 %v1908, %v1540
      %v1925 = vadd.f32 %v1909, %v1541
      %v1926 = vadd.f32 %v1910, %v1542
      %v1927 = vadd.f32 %v1911, %v1543
      %v1928 = vadd.f32 %v1912, %v1544
      %v1929 = vrot.slane %v1657, 1
      %v1930 = vrot.slane %v1658, 1
      %v1931 = vrot.slane %v1659, 1
      %v1932 = vrot.slane %v1660, 1
      %v1933 = vrot.slane %v1661, 1
      %v1934 = vrot.slane %v1662, 1
      %v1935 = vrot.slane %v1663, 1
      %v1936 = vrot.slane %v1664, 1
      %v1937 = vrot.slane %v1665, 1
      %v1938 = vrot.slane %v1666, 1
      %v1939 = vrot.slane %v1667, 1
      %v1940 = vrot.slane %v1668, 1
      %v1941 = vrot.slane %v1669, 1
      %v1942 = vrot.slane %v1670, 1
      %v1943 = vrot.slane %v1671, 1
      %v1944 = vrot.slane %v1672, 1
      %v1961 = vadd.f32 %v1257, %v1929
      %v1962 = vadd.f32 %v1258, %v1930
      %v1963 = vadd.f32 %v1259, %v1931
      %v1964 = vadd.f32 %v1260, %v1932
      %v1965 = vadd.f32 %v1261, %v1933
      %v1966 = vadd.f32 %v1262, %v1934
      %v1967 = vadd.f32 %v1263, %v1935
      %v1968 = vadd.f32 %v1264, %v1936
      %v1969 = vadd.f32 %v1265, %v1937
      %v1970 = vadd.f32 %v1266, %v1938
      %v1971 = vadd.f32 %v1267, %v1939
      %v1972 = vadd.f32 %v1268, %v1940
      %v1973 = vadd.f32 %v1269, %v1941
      %v1974 = vadd.f32 %v1270, %v1942
      %v1975 = vadd.f32 %v1271, %v1943
      %v1976 = vadd.f32 %v1272, %v1944
      %v1977 = vadd.f32 %v1961, %v1785
      %v1978 = vadd.f32 %v1962, %v1786
      %v1979 = vadd.f32 %v1963, %v1787
      %v1980 = vadd.f32 %v1964, %v1788
      %v1981 = vadd.f32 %v1965, %v1789
      %v1982 = vadd.f32 %v1966, %v1790
      %v1983 = vadd.f32 %v1967, %v1791
      %v1984 = vadd.f32 %v1968, %v1792
      %v1985 = vadd.f32 %v1969, %v1793
      %v1986 = vadd.f32 %v1970, %v1794
      %v1987 = vadd.f32 %v1971, %v1795
      %v1988 = vadd.f32 %v1972, %v1796
      %v1989 = vadd.f32 %v1973, %v1797
      %v1990 = vadd.f32 %v1974, %v1798
      %v1991 = vadd.f32 %v1975, %v1799
      %v1992 = vadd.f32 %v1976, %v1800
      %v1993 = vadd.f32 %v1977, %v1609
      %v1994 = vadd.f32 %v1978, %v1610
      %v1995 = vadd.f32 %v1979, %v1611
      %v1996 = vadd.f32 %v1980, %v1612
      %v1997 = vadd.f32 %v1981, %v1613
      %v1998 = vadd.f32 %v1982, %v1614
      %v1999 = vadd.f32 %v1983, %v1615
      %v2000 = vadd.f32 %v1984, %v1616
      %v2001 = vadd.f32 %v1985, %v1617
      %v2002 = vadd.f32 %v1986, %v1618
      %v2003 = vadd.f32 %v1987, %v1619
      %v2004 = vadd.f32 %v1988, %v1620
      %v2005 = vadd.f32 %v1989, %v1621
      %v2006 = vadd.f32 %v1990, %v1622
      %v2007 = vadd.f32 %v1991, %v1623
      %v2008 = vadd.f32 %v1992, %v1624
      %v2009 = vadd.f32 %v1577, %v1849
      %v2010 = vadd.f32 %v1578, %v1850
      %v2011 = vadd.f32 %v1579, %v1851
      %v2012 = vadd.f32 %v1580, %v1852
      %v2013 = vadd.f32 %v1581, %v1853
      %v2014 = vadd.f32 %v1582, %v1854
      %v2015 = vadd.f32 %v1583, %v1855
      %v2016 = vadd.f32 %v1584, %v1856
      %v2017 = vadd.f32 %v1585, %v1857
      %v2018 = vadd.f32 %v1586, %v1858
      %v2019 = vadd.f32 %v1587, %v1859
      %v2020 = vadd.f32 %v1588, %v1860
      %v2021 = vadd.f32 %v1589, %v1861
      %v2022 = vadd.f32 %v1590, %v1862
      %v2023 = vadd.f32 %v1591, %v1863
      %v2024 = vadd.f32 %v1592, %v1864
      %v2025 = vadd.f32 %v2009, %v1689
      %v2026 = vadd.f32 %v2010, %v1690
      %v2027 = vadd.f32 %v2011, %v1691
      %v2028 = vadd.f32 %v2012, %v1692
      %v2029 = vadd.f32 %v2013, %v1693
      %v2030 = vadd.f32 %v2014, %v1694
      %v2031 = vadd.f32 %v2015, %v1695
      %v2032 = vadd.f32 %v2016, %v1696
      %v2033 = vadd.f32 %v2017, %v1697
      %v2034 = vadd.f32 %v2018, %v1698
      %v2035 = vadd.f32 %v2019, %v1699
      %v2036 = vadd.f32 %v2020, %v1700
      %v2037 = vadd.f32 %v2021, %v1701
      %v2038 = vadd.f32 %v2022, %v1702
      %v2039 = vadd.f32 %v2023, %v1703
      %v2040 = vadd.f32 %v2024, %v1704
      %v2041 = vadd.f32 %v2025, %v1529
      %v2042 = vadd.f32 %v2026, %v1530
      %v2043 = vadd.f32 %v2027, %v1531
      %v2044 = vadd.f32 %v2028, %v1532
      %v2045 = vadd.f32 %v2029, %v1533
      %v2046 = vadd.f32 %v2030, %v1534
      %v2047 = vadd.f32 %v2031, %v1535
      %v2048 = vadd.f32 %v2032, %v1536
      %v2049 = vadd.f32 %v2033, %v1537
      %v2050 = vadd.f32 %v2034, %v1538
      %v2051 = vadd.f32 %v2035, %v1539
      %v2052 = vadd.f32 %v2036, %v1540
      %v2053 = vadd.f32 %v2037, %v1541
      %v2054 = vadd.f32 %v2038, %v1542
      %v2055 = vadd.f32 %v2039, %v1543
      %v2056 = vadd.f32 %v2040, %v1544
      %v2057 = vadd.f32 %v1497, %v1929
      %v2058 = vadd.f32 %v1498, %v1930
      %v2059 = vadd.f32 %v1499, %v1931
      %v2060 = vadd.f32 %v1500, %v1932
      %v2061 = vadd.f32 %v1501, %v1933
      %v2062 = vadd.f32 %v1502, %v1934
      %v2063 = vadd.f32 %v1503, %v1935
      %v2064 = vadd.f32 %v1504, %v1936
      %v2065 = vadd.f32 %v1505, %v1937
      %v2066 = vadd.f32 %v1506, %v1938
      %v2067 = vadd.f32 %v1507, %v1939
      %v2068 = vadd.f32 %v1508, %v1940
      %v2069 = vadd.f32 %v1509, %v1941
      %v2070 = vadd.f32 %v1510, %v1942
      %v2071 = vadd.f32 %v1511, %v1943
      %v2072 = vadd.f32 %v1512, %v1944
      %v2073 = vadd.f32 %v2057, %v1785
      %v2074 = vadd.f32 %v2058, %v1786
      %v2075 = vadd.f32 %v2059, %v1787
      %v2076 = vadd.f32 %v2060, %v1788
      %v2077 = vadd.f32 %v2061, %v1789
      %v2078 = vadd.f32 %v2062, %v1790
      %v2079 = vadd.f32 %v2063, %v1791
      %v2080 = vadd.f32 %v2064, %v1792
      %v2081 = vadd.f32 %v2065, %v1793
      %v2082 = vadd.f32 %v2066, %v1794
      %v2083 = vadd.f32 %v2067, %v1795
      %v2084 = vadd.f32 %v2068, %v1796
      %v2085 = vadd.f32 %v2069, %v1797
      %v2086 = vadd.f32 %v2070, %v1798
      %v2087 = vadd.f32 %v2071, %v1799
      %v2088 = vadd.f32 %v2072, %v1800
      %v2089 = vadd.f32 %v2073, %v1609
      %v2090 = vadd.f32 %v2074, %v1610
      %v2091 = vadd.f32 %v2075, %v1611
      %v2092 = vadd.f32 %v2076, %v1612
      %v2093 = vadd.f32 %v2077, %v1613
      %v2094 = vadd.f32 %v2078, %v1614
      %v2095 = vadd.f32 %v2079, %v1615
      %v2096 = vadd.f32 %v2080, %v1616
      %v2097 = vadd.f32 %v2081, %v1617
      %v2098 = vadd.f32 %v2082, %v1618
      %v2099 = vadd.f32 %v2083, %v1619
      %v2100 = vadd.f32 %v2084, %v1620
      %v2101 = vadd.f32 %v2085, %v1621
      %v2102 = vadd.f32 %v2086, %v1622
      %v2103 = vadd.f32 %v2087, %v1623
      %v2104 = vadd.f32 %v2088, %v1624
      %v2105 = vmul.f32 %v510, -0.06870229
      %v2106 = vmul.f32 %v518, -0.06870229
      %v2107 = vmul.f32 %v526, -0.06870229
      %v2108 = vmul.f32 %v534, -0.06870229
      %v2109 = vmul.f32 %v542, -0.06870229
      %v2110 = vmul.f32 %v550, -0.06870229
      %v2111 = vmul.f32 %v558, -0.06870229
      %v2112 = vmul.f32 %v566, -0.06870229
      %v2113 = vmul.f32 %v574, -0.06870229
      %v2114 = vmul.f32 %v582, -0.06870229
      %v2115 = vmul.f32 %v590, -0.06870229
      %v2116 = vmul.f32 %v598, -0.06870229
      %v2117 = vmul.f32 %v606, -0.06870229
      %v2118 = vmul.f32 %v614, -0.06870229
      %v2119 = vmul.f32 %v622, -0.06870229
      %v2120 = vmul.f32 %v630, -0.06870229
      %v2121 = vmul.f32 %v510, 0.84732825
      %v2122 = vmul.f32 %v518, 0.84732825
      %v2123 = vmul.f32 %v526, 0.84732825
      %v2124 = vmul.f32 %v534, 0.84732825
      %v2125 = vmul.f32 %v542, 0.84732825
      %v2126 = vmul.f32 %v550, 0.84732825
      %v2127 = vmul.f32 %v558, 0.84732825
      %v2128 = vmul.f32 %v566, 0.84732825
      %v2129 = vmul.f32 %v574, 0.84732825
      %v2130 = vmul.f32 %v582, 0.84732825
      %v2131 = vmul.f32 %v590, 0.84732825
      %v2132 = vmul.f32 %v598, 0.84732825
      %v2133 = vmul.f32 %v606, 0.84732825
      %v2134 = vmul.f32 %v614, 0.84732825
      %v2135 = vmul.f32 %v622, 0.84732825
      %v2136 = vmul.f32 %v630, 0.84732825
      %v2153 = vrot.slane %v2121, 1
      %v2154 = vrot.slane %v2122, 1
      %v2155 = vrot.slane %v2123, 1
      %v2156 = vrot.slane %v2124, 1
      %v2157 = vrot.slane %v2125, 1
      %v2158 = vrot.slane %v2126, 1
      %v2159 = vrot.slane %v2127, 1
      %v2160 = vrot.slane %v2128, 1
      %v2161 = vrot.slane %v2129, 1
      %v2162 = vrot.slane %v2130, 1
      %v2163 = vrot.slane %v2131, 1
      %v2164 = vrot.slane %v2132, 1
      %v2165 = vrot.slane %v2133, 1
      %v2166 = vrot.slane %v2134, 1
      %v2167 = vrot.slane %v2135, 1
      %v2168 = vrot.slane %v2136, 1
      %v2185 = vadd.f32 %v2105, %v2153
      %v2186 = vadd.f32 %v2106, %v2154
      %v2187 = vadd.f32 %v2107, %v2155
      %v2188 = vadd.f32 %v2108, %v2156
      %v2189 = vadd.f32 %v2109, %v2157
      %v2190 = vadd.f32 %v2110, %v2158
      %v2191 = vadd.f32 %v2111, %v2159
      %v2192 = vadd.f32 %v2112, %v2160
      %v2193 = vadd.f32 %v2113, %v2161
      %v2194 = vadd.f32 %v2114, %v2162
      %v2195 = vadd.f32 %v2115, %v2163
      %v2196 = vadd.f32 %v2116, %v2164
      %v2197 = vadd.f32 %v2117, %v2165
      %v2198 = vadd.f32 %v2118, %v2166
      %v2199 = vadd.f32 %v2119, %v2167
      %v2200 = vadd.f32 %v2120, %v2168
      %v2201 = vmul.f32 %v510, 0.22137405
      %v2202 = vmul.f32 %v518, 0.22137405
      %v2203 = vmul.f32 %v526, 0.22137405
      %v2204 = vmul.f32 %v534, 0.22137405
      %v2205 = vmul.f32 %v542, 0.22137405
      %v2206 = vmul.f32 %v550, 0.22137405
      %v2207 = vmul.f32 %v558, 0.22137405
      %v2208 = vmul.f32 %v566, 0.22137405
      %v2209 = vmul.f32 %v574, 0.22137405
      %v2210 = vmul.f32 %v582, 0.22137405
      %v2211 = vmul.f32 %v590, 0.22137405
      %v2212 = vmul.f32 %v598, 0.22137405
      %v2213 = vmul.f32 %v606, 0.22137405
      %v2214 = vmul.f32 %v614, 0.22137405
      %v2215 = vmul.f32 %v622, 0.22137405
      %v2216 = vmul.f32 %v630, 0.22137405
      %v2233 = vrot.slane %v2201, 2
      %v2234 = vrot.slane %v2202, 2
      %v2235 = vrot.slane %v2203, 2
      %v2236 = vrot.slane %v2204, 2
      %v2237 = vrot.slane %v2205, 2
      %v2238 = vrot.slane %v2206, 2
      %v2239 = vrot.slane %v2207, 2
      %v2240 = vrot.slane %v2208, 2
      %v2241 = vrot.slane %v2209, 2
      %v2242 = vrot.slane %v2210, 2
      %v2243 = vrot.slane %v2211, 2
      %v2244 = vrot.slane %v2212, 2
      %v2245 = vrot.slane %v2213, 2
      %v2246 = vrot.slane %v2214, 2
      %v2247 = vrot.slane %v2215, 2
      %v2248 = vrot.slane %v2216, 2
      %v2265 = vadd.f32 %v2185, %v2233
      %v2266 = vadd.f32 %v2186, %v2234
      %v2267 = vadd.f32 %v2187, %v2235
      %v2268 = vadd.f32 %v2188, %v2236
      %v2269 = vadd.f32 %v2189, %v2237
      %v2270 = vadd.f32 %v2190, %v2238
      %v2271 = vadd.f32 %v2191, %v2239
      %v2272 = vadd.f32 %v2192, %v2240
      %v2273 = vadd.f32 %v2193, %v2241
      %v2274 = vadd.f32 %v2194, %v2242
      %v2275 = vadd.f32 %v2195, %v2243
      %v2276 = vadd.f32 %v2196, %v2244
      %v2277 = vadd.f32 %v2197, %v2245
      %v2278 = vadd.f32 %v2198, %v2246
      %v2279 = vadd.f32 %v2199, %v2247
      %v2280 = vadd.f32 %v2200, %v2248
      %v2281 = vmul.f32 %v510, -0.02189781
      %v2282 = vmul.f32 %v518, -0.02189781
      %v2283 = vmul.f32 %v526, -0.02189781
      %v2284 = vmul.f32 %v534, -0.02189781
      %v2285 = vmul.f32 %v542, -0.02189781
      %v2286 = vmul.f32 %v550, -0.02189781
      %v2287 = vmul.f32 %v558, -0.02189781
      %v2288 = vmul.f32 %v566, -0.02189781
      %v2289 = vmul.f32 %v574, -0.02189781
      %v2290 = vmul.f32 %v582, -0.02189781
      %v2291 = vmul.f32 %v590, -0.02189781
      %v2292 = vmul.f32 %v598, -0.02189781
      %v2293 = vmul.f32 %v606, -0.02189781
      %v2294 = vmul.f32 %v614, -0.02189781
      %v2295 = vmul.f32 %v622, -0.02189781
      %v2296 = vmul.f32 %v630, -0.02189781
      %v2297 = vmul.f32 %v510, 0.21167883
      %v2298 = vmul.f32 %v518, 0.21167883
      %v2299 = vmul.f32 %v526, 0.21167883
      %v2300 = vmul.f32 %v534, 0.21167883
      %v2301 = vmul.f32 %v542, 0.21167883
      %v2302 = vmul.f32 %v550, 0.21167883
      %v2303 = vmul.f32 %v558, 0.21167883
      %v2304 = vmul.f32 %v566, 0.21167883
      %v2305 = vmul.f32 %v574, 0.21167883
      %v2306 = vmul.f32 %v582, 0.21167883
      %v2307 = vmul.f32 %v590, 0.21167883
      %v2308 = vmul.f32 %v598, 0.21167883
      %v2309 = vmul.f32 %v606, 0.21167883
      %v2310 = vmul.f32 %v614, 0.21167883
      %v2311 = vmul.f32 %v622, 0.21167883
      %v2312 = vmul.f32 %v630, 0.21167883
      %v2329 = vrot.slane %v2297, 1
      %v2330 = vrot.slane %v2298, 1
      %v2331 = vrot.slane %v2299, 1
      %v2332 = vrot.slane %v2300, 1
      %v2333 = vrot.slane %v2301, 1
      %v2334 = vrot.slane %v2302, 1
      %v2335 = vrot.slane %v2303, 1
      %v2336 = vrot.slane %v2304, 1
      %v2337 = vrot.slane %v2305, 1
      %v2338 = vrot.slane %v2306, 1
      %v2339 = vrot.slane %v2307, 1
      %v2340 = vrot.slane %v2308, 1
      %v2341 = vrot.slane %v2309, 1
      %v2342 = vrot.slane %v2310, 1
      %v2343 = vrot.slane %v2311, 1
      %v2344 = vrot.slane %v2312, 1
      %v2361 = vadd.f32 %v2281, %v2329
      %v2362 = vadd.f32 %v2282, %v2330
      %v2363 = vadd.f32 %v2283, %v2331
      %v2364 = vadd.f32 %v2284, %v2332
      %v2365 = vadd.f32 %v2285, %v2333
      %v2366 = vadd.f32 %v2286, %v2334
      %v2367 = vadd.f32 %v2287, %v2335
      %v2368 = vadd.f32 %v2288, %v2336
      %v2369 = vadd.f32 %v2289, %v2337
      %v2370 = vadd.f32 %v2290, %v2338
      %v2371 = vadd.f32 %v2291, %v2339
      %v2372 = vadd.f32 %v2292, %v2340
      %v2373 = vadd.f32 %v2293, %v2341
      %v2374 = vadd.f32 %v2294, %v2342
      %v2375 = vadd.f32 %v2295, %v2343
      %v2376 = vadd.f32 %v2296, %v2344
      %v2377 = vmul.f32 %v510, 0.810219
      %v2378 = vmul.f32 %v518, 0.810219
      %v2379 = vmul.f32 %v526, 0.810219
      %v2380 = vmul.f32 %v534, 0.810219
      %v2381 = vmul.f32 %v542, 0.810219
      %v2382 = vmul.f32 %v550, 0.810219
      %v2383 = vmul.f32 %v558, 0.810219
      %v2384 = vmul.f32 %v566, 0.810219
      %v2385 = vmul.f32 %v574, 0.810219
      %v2386 = vmul.f32 %v582, 0.810219
      %v2387 = vmul.f32 %v590, 0.810219
      %v2388 = vmul.f32 %v598, 0.810219
      %v2389 = vmul.f32 %v606, 0.810219
      %v2390 = vmul.f32 %v614, 0.810219
      %v2391 = vmul.f32 %v622, 0.810219
      %v2392 = vmul.f32 %v630, 0.810219
      %v2409 = vrot.slane %v2377, 2
      %v2410 = vrot.slane %v2378, 2
      %v2411 = vrot.slane %v2379, 2
      %v2412 = vrot.slane %v2380, 2
      %v2413 = vrot.slane %v2381, 2
      %v2414 = vrot.slane %v2382, 2
      %v2415 = vrot.slane %v2383, 2
      %v2416 = vrot.slane %v2384, 2
      %v2417 = vrot.slane %v2385, 2
      %v2418 = vrot.slane %v2386, 2
      %v2419 = vrot.slane %v2387, 2
      %v2420 = vrot.slane %v2388, 2
      %v2421 = vrot.slane %v2389, 2
      %v2422 = vrot.slane %v2390, 2
      %v2423 = vrot.slane %v2391, 2
      %v2424 = vrot.slane %v2392, 2
      %v2441 = vadd.f32 %v2361, %v2409
      %v2442 = vadd.f32 %v2362, %v2410
      %v2443 = vadd.f32 %v2363, %v2411
      %v2444 = vadd.f32 %v2364, %v2412
      %v2445 = vadd.f32 %v2365, %v2413
      %v2446 = vadd.f32 %v2366, %v2414
      %v2447 = vadd.f32 %v2367, %v2415
      %v2448 = vadd.f32 %v2368, %v2416
      %v2449 = vadd.f32 %v2369, %v2417
      %v2450 = vadd.f32 %v2370, %v2418
      %v2451 = vadd.f32 %v2371, %v2419
      %v2452 = vadd.f32 %v2372, %v2420
      %v2453 = vadd.f32 %v2373, %v2421
      %v2454 = vadd.f32 %v2374, %v2422
      %v2455 = vadd.f32 %v2375, %v2423
      %v2456 = vadd.f32 %v2376, %v2424
      %v2457 = vmul.f32 %v510, -0.0882353
      %v2458 = vmul.f32 %v518, -0.0882353
      %v2459 = vmul.f32 %v526, -0.0882353
      %v2460 = vmul.f32 %v534, -0.0882353
      %v2461 = vmul.f32 %v542, -0.0882353
      %v2462 = vmul.f32 %v550, -0.0882353
      %v2463 = vmul.f32 %v558, -0.0882353
      %v2464 = vmul.f32 %v566, -0.0882353
      %v2465 = vmul.f32 %v574, -0.0882353
      %v2466 = vmul.f32 %v582, -0.0882353
      %v2467 = vmul.f32 %v590, -0.0882353
      %v2468 = vmul.f32 %v598, -0.0882353
      %v2469 = vmul.f32 %v606, -0.0882353
      %v2470 = vmul.f32 %v614, -0.0882353
      %v2471 = vmul.f32 %v622, -0.0882353
      %v2472 = vmul.f32 %v630, -0.0882353
      %v2473 = vmul.f32 %v510, 1.0882353
      %v2474 = vmul.f32 %v518, 1.0882353
      %v2475 = vmul.f32 %v526, 1.0882353
      %v2476 = vmul.f32 %v534, 1.0882353
      %v2477 = vmul.f32 %v542, 1.0882353
      %v2478 = vmul.f32 %v550, 1.0882353
      %v2479 = vmul.f32 %v558, 1.0882353
      %v2480 = vmul.f32 %v566, 1.0882353
      %v2481 = vmul.f32 %v574, 1.0882353
      %v2482 = vmul.f32 %v582, 1.0882353
      %v2483 = vmul.f32 %v590, 1.0882353
      %v2484 = vmul.f32 %v598, 1.0882353
      %v2485 = vmul.f32 %v606, 1.0882353
      %v2486 = vmul.f32 %v614, 1.0882353
      %v2487 = vmul.f32 %v622, 1.0882353
      %v2488 = vmul.f32 %v630, 1.0882353
      %v2505 = vrot.slane %v2473, 1
      %v2506 = vrot.slane %v2474, 1
      %v2507 = vrot.slane %v2475, 1
      %v2508 = vrot.slane %v2476, 1
      %v2509 = vrot.slane %v2477, 1
      %v2510 = vrot.slane %v2478, 1
      %v2511 = vrot.slane %v2479, 1
      %v2512 = vrot.slane %v2480, 1
      %v2513 = vrot.slane %v2481, 1
      %v2514 = vrot.slane %v2482, 1
      %v2515 = vrot.slane %v2483, 1
      %v2516 = vrot.slane %v2484, 1
      %v2517 = vrot.slane %v2485, 1
      %v2518 = vrot.slane %v2486, 1
      %v2519 = vrot.slane %v2487, 1
      %v2520 = vrot.slane %v2488, 1
      %v2537 = vadd.f32 %v2457, %v2505
      %v2538 = vadd.f32 %v2458, %v2506
      %v2539 = vadd.f32 %v2459, %v2507
      %v2540 = vadd.f32 %v2460, %v2508
      %v2541 = vadd.f32 %v2461, %v2509
      %v2542 = vadd.f32 %v2462, %v2510
      %v2543 = vadd.f32 %v2463, %v2511
      %v2544 = vadd.f32 %v2464, %v2512
      %v2545 = vadd.f32 %v2465, %v2513
      %v2546 = vadd.f32 %v2466, %v2514
      %v2547 = vadd.f32 %v2467, %v2515
      %v2548 = vadd.f32 %v2468, %v2516
      %v2549 = vadd.f32 %v2469, %v2517
      %v2550 = vadd.f32 %v2470, %v2518
      %v2551 = vadd.f32 %v2471, %v2519
      %v2552 = vadd.f32 %v2472, %v2520
      %v2569 = vrot.slane %v714, 7
      %vm2570 = vcmask 1041409
      %v2571 = vsel %vm2570, %v2569, %v713
      %v2572 = vrot.slane %v715, 6
      %vm2573 = vcmask 1042434
      %v2574 = vsel %vm2573, %v2572, %v2571
      %v2575 = vrot.slane %v716, 5
      %vm2576 = vcmask 1043459
      %v2577 = vsel %vm2576, %v2575, %v2574
      %v2578 = vrot.slane %v717, 4
      %vm2579 = vcmask 1044484
      %v2580 = vsel %vm2579, %v2578, %v2577
      %v2581 = vrot.slane %v718, 3
      %vm2582 = vcmask 1045509
      %v2583 = vsel %vm2582, %v2581, %v2580
      %v2584 = vrot.slane %v719, 2
      %vm2585 = vcmask 1046534
      %v2586 = vsel %vm2585, %v2584, %v2583
      %v2587 = vrot.slane %v720, 1
      %vm2588 = vcmask 1047559
      %v2589 = vsel %vm2588, %v2587, %v2586
      %v2590 = vrot.slane %v722, 7
      %v2591 = vsel %vm2570, %v2590, %v721
      %v2592 = vrot.slane %v723, 6
      %v2593 = vsel %vm2573, %v2592, %v2591
      %v2594 = vrot.slane %v724, 5
      %v2595 = vsel %vm2576, %v2594, %v2593
      %v2596 = vrot.slane %v725, 4
      %v2597 = vsel %vm2579, %v2596, %v2595
      %v2598 = vrot.slane %v726, 3
      %v2599 = vsel %vm2582, %v2598, %v2597
      %v2600 = vrot.slane %v727, 2
      %v2601 = vsel %vm2585, %v2600, %v2599
      %v2602 = vrot.slane %v728, 1
      %v2603 = vsel %vm2588, %v2602, %v2601
      %v2622 = vrot.slane %v890, 7
      %v2623 = vsel %vm2570, %v2622, %v889
      %v2624 = vrot.slane %v891, 6
      %v2625 = vsel %vm2573, %v2624, %v2623
      %v2626 = vrot.slane %v892, 5
      %v2627 = vsel %vm2576, %v2626, %v2625
      %v2628 = vrot.slane %v893, 4
      %v2629 = vsel %vm2579, %v2628, %v2627
      %v2630 = vrot.slane %v894, 3
      %v2631 = vsel %vm2582, %v2630, %v2629
      %v2632 = vrot.slane %v895, 2
      %v2633 = vsel %vm2585, %v2632, %v2631
      %v2634 = vrot.slane %v896, 1
      %v2635 = vsel %vm2588, %v2634, %v2633
      %v2636 = vrot.slane %v898, 7
      %v2637 = vsel %vm2570, %v2636, %v897
      %v2638 = vrot.slane %v899, 6
      %v2639 = vsel %vm2573, %v2638, %v2637
      %v2640 = vrot.slane %v900, 5
      %v2641 = vsel %vm2576, %v2640, %v2639
      %v2642 = vrot.slane %v901, 4
      %v2643 = vsel %vm2579, %v2642, %v2641
      %v2644 = vrot.slane %v902, 3
      %v2645 = vsel %vm2582, %v2644, %v2643
      %v2646 = vrot.slane %v903, 2
      %v2647 = vsel %vm2585, %v2646, %v2645
      %v2648 = vrot.slane %v904, 1
      %v2649 = vsel %vm2588, %v2648, %v2647
      %2650 = vrot.lane.b32.xlu0 %v2635, 64
      %v2651 = vpop.permute.xlu0 %2650
      %2652 = vrot.lane.b32.xlu0 %v2649, 64
      %v2653 = vpop.permute.xlu0 %2652
      %v2672 = vrot.slane %v1066, 7
      %v2673 = vsel %vm2570, %v2672, %v1065
      %v2674 = vrot.slane %v1067, 6
      %v2675 = vsel %vm2573, %v2674, %v2673
      %v2676 = vrot.slane %v1068, 5
      %v2677 = vsel %vm2576, %v2676, %v2675
      %v2678 = vrot.slane %v1069, 4
      %v2679 = vsel %vm2579, %v2678, %v2677
      %v2680 = vrot.slane %v1070, 3
      %v2681 = vsel %vm2582, %v2680, %v2679
      %v2682 = vrot.slane %v1071, 2
      %v2683 = vsel %vm2585, %v2682, %v2681
      %v2684 = vrot.slane %v1072, 1
      %v2685 = vsel %vm2588, %v2684, %v2683
      %v2686 = vrot.slane %v1074, 7
      %v2687 = vsel %vm2570, %v2686, %v1073
      %v2688 = vrot.slane %v1075, 6
      %v2689 = vsel %vm2573, %v2688, %v2687
      %v2690 = vrot.slane %v1076, 5
      %v2691 = vsel %vm2576, %v2690, %v2689
      %v2692 = vrot.slane %v1077, 4
      %v2693 = vsel %vm2579, %v2692, %v2691
      %v2694 = vrot.slane %v1078, 3
      %v2695 = vsel %vm2582, %v2694, %v2693
      %v2696 = vrot.slane %v1079, 2
      %v2697 = vsel %vm2585, %v2696, %v2695
      %v2698 = vrot.slane %v1080, 1
      %v2699 = vsel %vm2588, %v2698, %v2697
      %v2718 = vrot.slane %v1322, 7
      %v2719 = vsel %vm2570, %v2718, %v1321
      %v2720 = vrot.slane %v1323, 6
      %v2721 = vsel %vm2573, %v2720, %v2719
      %v2722 = vrot.slane %v1324, 5
      %v2723 = vsel %vm2576, %v2722, %v2721
      %v2724 = vrot.slane %v1325, 4
      %v2725 = vsel %vm2579, %v2724, %v2723
      %v2726 = vrot.slane %v1326, 3
      %v2727 = vsel %vm2582, %v2726, %v2725
      %v2728 = vrot.slane %v1327, 2
      %v2729 = vsel %vm2585, %v2728, %v2727
      %v2730 = vrot.slane %v1328, 1
      %v2731 = vsel %vm2588, %v2730, %v2729
      %v2732 = vrot.slane %v1330, 7
      %v2733 = vsel %vm2570, %v2732, %v1329
      %v2734 = vrot.slane %v1331, 6
      %v2735 = vsel %vm2573, %v2734, %v2733
      %v2736 = vrot.slane %v1332, 5
      %v2737 = vsel %vm2576, %v2736, %v2735
      %v2738 = vrot.slane %v1333, 4
      %v2739 = vsel %vm2579, %v2738, %v2737
      %v2740 = vrot.slane %v1334, 3
      %v2741 = vsel %vm2582, %v2740, %v2739
      %v2742 = vrot.slane %v1335, 2
      %v2743 = vsel %vm2585, %v2742, %v2741
      %v2744 = vrot.slane %v1336, 1
      %v2745 = vsel %vm2588, %v2744, %v2743
      %2746 = vrot.lane.b32.xlu0 %v2731, 64
      %v2747 = vpop.permute.xlu0 %2746
      %2748 = vrot.lane.b32.xlu0 %v2745, 64
      %v2749 = vpop.permute.xlu0 %2748
      %v2768 = vrot.slane %v1482, 7
      %v2769 = vsel %vm2570, %v2768, %v1481
      %v2770 = vrot.slane %v1483, 6
      %v2771 = vsel %vm2573, %v2770, %v2769
      %v2772 = vrot.slane %v1484, 5
      %v2773 = vsel %vm2576, %v2772, %v2771
      %v2774 = vrot.slane %v1485, 4
      %v2775 = vsel %vm2579, %v2774, %v2773
      %v2776 = vrot.slane %v1486, 3
      %v2777 = vsel %vm2582, %v2776, %v2775
      %v2778 = vrot.slane %v1487, 2
      %v2779 = vsel %vm2585, %v2778, %v2777
      %v2780 = vrot.slane %v1488, 1
      %v2781 = vsel %vm2588, %v2780, %v2779
      %v2782 = vrot.slane %v1490, 7
      %v2783 = vsel %vm2570, %v2782, %v1489
      %v2784 = vrot.slane %v1491, 6
      %v2785 = vsel %vm2573, %v2784, %v2783
      %v2786 = vrot.slane %v1492, 5
      %v2787 = vsel %vm2576, %v2786, %v2785
      %v2788 = vrot.slane %v1493, 4
      %v2789 = vsel %vm2579, %v2788, %v2787
      %v2790 = vrot.slane %v1494, 3
      %v2791 = vsel %vm2582, %v2790, %v2789
      %v2792 = vrot.slane %v1495, 2
      %v2793 = vsel %vm2585, %v2792, %v2791
      %v2794 = vrot.slane %v1496, 1
      %v2795 = vsel %vm2588, %v2794, %v2793
      %v2798 = vrot.slane %v1321, 1
      %v2799 = vsel %vm2570, %v1322, %v2798
      %v2800 = vrot.slane %v1323, 7
      %v2801 = vsel %vm2573, %v2800, %v2799
      %v2802 = vrot.slane %v1324, 6
      %v2803 = vsel %vm2576, %v2802, %v2801
      %v2804 = vrot.slane %v1325, 5
      %v2805 = vsel %vm2579, %v2804, %v2803
      %v2806 = vrot.slane %v1326, 4
      %v2807 = vsel %vm2582, %v2806, %v2805
      %v2808 = vrot.slane %v1327, 3
      %v2809 = vsel %vm2585, %v2808, %v2807
      %v2810 = vrot.slane %v1328, 2
      %v2811 = vsel %vm2588, %v2810, %v2809
      %v2812 = vrot.slane %v1329, 1
      %v2813 = vsel %vm2570, %v1330, %v2812
      %v2814 = vrot.slane %v1331, 7
      %v2815 = vsel %vm2573, %v2814, %v2813
      %v2816 = vrot.slane %v1332, 6
      %v2817 = vsel %vm2576, %v2816, %v2815
      %v2818 = vrot.slane %v1333, 5
      %v2819 = vsel %vm2579, %v2818, %v2817
      %v2820 = vrot.slane %v1334, 4
      %v2821 = vsel %vm2582, %v2820, %v2819
      %v2822 = vrot.slane %v1335, 3
      %v2823 = vsel %vm2585, %v2822, %v2821
      %v2824 = vrot.slane %v1336, 2
      %v2825 = vsel %vm2588, %v2824, %v2823
      %2826 = vrot.lane.b32.xlu0 %v2811, 64
      %v2827 = vpop.permute.xlu0 %2826
      %2828 = vrot.lane.b32.xlu0 %v2825, 64
      %v2829 = vpop.permute.xlu0 %2828
      %v2832 = vrot.slane %v1481, 1
      %v2833 = vsel %vm2570, %v1482, %v2832
      %v2834 = vrot.slane %v1483, 7
      %v2835 = vsel %vm2573, %v2834, %v2833
      %v2836 = vrot.slane %v1484, 6
      %v2837 = vsel %vm2576, %v2836, %v2835
      %v2838 = vrot.slane %v1485, 5
      %v2839 = vsel %vm2579, %v2838, %v2837
      %v2840 = vrot.slane %v1486, 4
      %v2841 = vsel %vm2582, %v2840, %v2839
      %v2842 = vrot.slane %v1487, 3
      %v2843 = vsel %vm2585, %v2842, %v2841
      %v2844 = vrot.slane %v1488, 2
      %v2845 = vsel %vm2588, %v2844, %v2843
      %v2846 = vrot.slane %v1489, 1
      %v2847 = vsel %vm2570, %v1490, %v2846
      %v2848 = vrot.slane %v1491, 7
      %v2849 = vsel %vm2573, %v2848, %v2847
      %v2850 = vrot.slane %v1492, 6
      %v2851 = vsel %vm2576, %v2850, %v2849
      %v2852 = vrot.slane %v1493, 5
      %v2853 = vsel %vm2579, %v2852, %v2851
      %v2854 = vrot.slane %v1494, 4
      %v2855 = vsel %vm2582, %v2854, %v2853
      %v2856 = vrot.slane %v1495, 3
      %v2857 = vsel %vm2585, %v2856, %v2855
      %v2858 = vrot.slane %v1496, 2
      %v2859 = vsel %vm2588, %v2858, %v2857
      %v2862 = vrot.slane %v1321, 2
      %v2863 = vrot.slane %v1322, 1
      %v2864 = vsel %vm2570, %v2863, %v2862
      %v2865 = vsel %vm2573, %v1323, %v2864
      %v2866 = vrot.slane %v1324, 7
      %v2867 = vsel %vm2576, %v2866, %v2865
      %v2868 = vrot.slane %v1325, 6
      %v2869 = vsel %vm2579, %v2868, %v2867
      %v2870 = vrot.slane %v1326, 5
      %v2871 = vsel %vm2582, %v2870, %v2869
      %v2872 = vrot.slane %v1327, 4
      %v2873 = vsel %vm2585, %v2872, %v2871
      %v2874 = vrot.slane %v1328, 3
      %v2875 = vsel %vm2588, %v2874, %v2873
      %v2876 = vrot.slane %v1329, 2
      %v2877 = vrot.slane %v1330, 1
      %v2878 = vsel %vm2570, %v2877, %v2876
      %v2879 = vsel %vm2573, %v1331, %v2878
      %v2880 = vrot.slane %v1332, 7
      %v2881 = vsel %vm2576, %v2880, %v2879
      %v2882 = vrot.slane %v1333, 6
      %v2883 = vsel %vm2579, %v2882, %v2881
      %v2884 = vrot.slane %v1334, 5
      %v2885 = vsel %vm2582, %v2884, %v2883
      %v2886 = vrot.slane %v1335, 4
      %v2887 = vsel %vm2585, %v2886, %v2885
      %v2888 = vrot.slane %v1336, 3
      %v2889 = vsel %vm2588, %v2888, %v2887
      %2890 = vrot.lane.b32.xlu0 %v2875, 64
      %v2891 = vpop.permute.xlu0 %2890
      %2892 = vrot.lane.b32.xlu0 %v2889, 64
      %v2893 = vpop.permute.xlu0 %2892
      %v2896 = vrot.slane %v1481, 2
      %v2897 = vrot.slane %v1482, 1
      %v2898 = vsel %vm2570, %v2897, %v2896
      %v2899 = vsel %vm2573, %v1483, %v2898
      %v2900 = vrot.slane %v1484, 7
      %v2901 = vsel %vm2576, %v2900, %v2899
      %v2902 = vrot.slane %v1485, 6
      %v2903 = vsel %vm2579, %v2902, %v2901
      %v2904 = vrot.slane %v1486, 5
      %v2905 = vsel %vm2582, %v2904, %v2903
      %v2906 = vrot.slane %v1487, 4
      %v2907 = vsel %vm2585, %v2906, %v2905
      %v2908 = vrot.slane %v1488, 3
      %v2909 = vsel %vm2588, %v2908, %v2907
      %v2910 = vrot.slane %v1489, 2
      %v2911 = vrot.slane %v1490, 1
      %v2912 = vsel %vm2570, %v2911, %v2910
      %v2913 = vsel %vm2573, %v1491, %v2912
      %v2914 = vrot.slane %v1492, 7
      %v2915 = vsel %vm2576, %v2914, %v2913
      %v2916 = vrot.slane %v1493, 6
      %v2917 = vsel %vm2579, %v2916, %v2915
      %v2918 = vrot.slane %v1494, 5
      %v2919 = vsel %vm2582, %v2918, %v2917
      %v2920 = vrot.slane %v1495, 4
      %v2921 = vsel %vm2585, %v2920, %v2919
      %v2922 = vrot.slane %v1496, 3
      %v2923 = vsel %vm2588, %v2922, %v2921
      %v2926 = vrot.slane %v1321, 3
      %v2927 = vrot.slane %v1322, 2
      %v2928 = vsel %vm2570, %v2927, %v2926
      %v2929 = vrot.slane %v1323, 1
      %v2930 = vsel %vm2573, %v2929, %v2928
      %v2931 = vsel %vm2576, %v1324, %v2930
      %v2932 = vrot.slane %v1325, 7
      %v2933 = vsel %vm2579, %v2932, %v2931
      %v2934 = vrot.slane %v1326, 6
      %v2935 = vsel %vm2582, %v2934, %v2933
      %v2936 = vrot.slane %v1327, 5
      %v2937 = vsel %vm2585, %v2936, %v2935
      %v2938 = vrot.slane %v1328, 4
      %v2939 = vsel %vm2588, %v2938, %v2937
      %v2940 = vrot.slane %v1329, 3
      %v2941 = vrot.slane %v1330, 2
      %v2942 = vsel %vm2570, %v2941, %v2940
      %v2943 = vrot.slane %v1331, 1
      %v2944 = vsel %vm2573, %v2943, %v2942
      %v2945 = vsel %vm2576, %v1332, %v2944
      %v2946 = vrot.slane %v1333, 7
      %v2947 = vsel %vm2579, %v2946, %v2945
      %v2948 = vrot.slane %v1334, 6
      %v2949 = vsel %vm2582, %v2948, %v2947
      %v2950 = vrot.slane %v1335, 5
      %v2951 = vsel %vm2585, %v2950, %v2949
      %v2952 = vrot.slane %v1336, 4
      %v2953 = vsel %vm2588, %v2952, %v2951
      %2954 = vrot.lane.b32.xlu0 %v2939, 64
      %v2955 = vpop.permute.xlu0 %2954
      %2956 = vrot.lane.b32.xlu0 %v2953, 64
      %v2957 = vpop.permute.xlu0 %2956
      %v2960 = vrot.slane %v1481, 3
      %v2961 = vrot.slane %v1482, 2
      %v2962 = vsel %vm2570, %v2961, %v2960
      %v2963 = vrot.slane %v1483, 1
      %v2964 = vsel %vm2573, %v2963, %v2962
      %v2965 = vsel %vm2576, %v1484, %v2964
      %v2966 = vrot.slane %v1485, 7
      %v2967 = vsel %vm2579, %v2966, %v2965
      %v2968 = vrot.slane %v1486, 6
      %v2969 = vsel %vm2582, %v2968, %v2967
      %v2970 = vrot.slane %v1487, 5
      %v2971 = vsel %vm2585, %v2970, %v2969
      %v2972 = vrot.slane %v1488, 4
      %v2973 = vsel %vm2588, %v2972, %v2971
      %v2974 = vrot.slane %v1489, 3
      %v2975 = vrot.slane %v1490, 2
      %v2976 = vsel %vm2570, %v2975, %v2974
      %v2977 = vrot.slane %v1491, 1
      %v2978 = vsel %vm2573, %v2977, %v2976
      %v2979 = vsel %vm2576, %v1492, %v2978
      %v2980 = vrot.slane %v1493, 7
      %v2981 = vsel %vm2579, %v2980, %v2979
      %v2982 = vrot.slane %v1494, 6
      %v2983 = vsel %vm2582, %v2982, %v2981
      %v2984 = vrot.slane %v1495, 5
      %v2985 = vsel %vm2585, %v2984, %v2983
      %v2986 = vrot.slane %v1496, 4
      %v2987 = vsel %vm2588, %v2986, %v2985
      %v2990 = vrot.slane %v1321, 4
      %v2991 = vrot.slane %v1322, 3
      %v2992 = vsel %vm2570, %v2991, %v2990
      %v2993 = vrot.slane %v1323, 2
      %v2994 = vsel %vm2573, %v2993, %v2992
      %v2995 = vrot.slane %v1324, 1
      %v2996 = vsel %vm2576, %v2995, %v2994
      %v2997 = vsel %vm2579, %v1325, %v2996
      %v2998 = vrot.slane %v1326, 7
      %v2999 = vsel %vm2582, %v2998, %v2997
      %v3000 = vrot.slane %v1327, 6
      %v3001 = vsel %vm2585, %v3000, %v2999
      %v3002 = vrot.slane %v1328, 5
      %v3003 = vsel %vm2588, %v3002, %v3001
      %v3004 = vrot.slane %v1329, 4
      %v3005 = vrot.slane %v1330, 3
      %v3006 = vsel %vm2570, %v3005, %v3004
      %v3007 = vrot.slane %v1331, 2
      %v3008 = vsel %vm2573, %v3007, %v3006
      %v3009 = vrot.slane %v1332, 1
      %v3010 = vsel %vm2576, %v3009, %v3008
      %v3011 = vsel %vm2579, %v1333, %v3010
      %v3012 = vrot.slane %v1334, 7
      %v3013 = vsel %vm2582, %v3012, %v3011
      %v3014 = vrot.slane %v1335, 6
      %v3015 = vsel %vm2585, %v3014, %v3013
      %v3016 = vrot.slane %v1336, 5
      %v3017 = vsel %vm2588, %v3016, %v3015
      %3018 = vrot.lane.b32.xlu0 %v3003, 64
      %v3019 = vpop.permute.xlu0 %3018
      %3020 = vrot.lane.b32.xlu0 %v3017, 64
      %v3021 = vpop.permute.xlu0 %3020
      %v3024 = vrot.slane %v1481, 4
      %v3025 = vrot.slane %v1482, 3
      %v3026 = vsel %vm2570, %v3025, %v3024
      %v3027 = vrot.slane %v1483, 2
      %v3028 = vsel %vm2573, %v3027, %v3026
      %v3029 = vrot.slane %v1484, 1
      %v3030 = vsel %vm2576, %v3029, %v3028
      %v3031 = vsel %vm2579, %v1485, %v3030
      %v3032 = vrot.slane %v1486, 7
      %v3033 = vsel %vm2582, %v3032, %v3031
      %v3034 = vrot.slane %v1487, 6
      %v3035 = vsel %vm2585, %v3034, %v3033
      %v3036 = vrot.slane %v1488, 5
      %v3037 = vsel %vm2588, %v3036, %v3035
      %v3038 = vrot.slane %v1489, 4
      %v3039 = vrot.slane %v1490, 3
      %v3040 = vsel %vm2570, %v3039, %v3038
      %v3041 = vrot.slane %v1491, 2
      %v3042 = vsel %vm2573, %v3041, %v3040
      %v3043 = vrot.slane %v1492, 1
      %v3044 = vsel %vm2576, %v3043, %v3042
      %v3045 = vsel %vm2579, %v1493, %v3044
      %v3046 = vrot.slane %v1494, 7
      %v3047 = vsel %vm2582, %v3046, %v3045
      %v3048 = vrot.slane %v1495, 6
      %v3049 = vsel %vm2585, %v3048, %v3047
      %v3050 = vrot.slane %v1496, 5
      %v3051 = vsel %vm2588, %v3050, %v3049
      %v3070 = vrot.slane %v1561, 5
      %v3071 = vrot.slane %v1562, 4
      %v3072 = vsel %vm2570, %v3071, %v3070
      %v3073 = vrot.slane %v1563, 3
      %v3074 = vsel %vm2573, %v3073, %v3072
      %v3075 = vrot.slane %v1564, 2
      %v3076 = vsel %vm2576, %v3075, %v3074
      %v3077 = vrot.slane %v1565, 1
      %v3078 = vsel %vm2579, %v3077, %v3076
      %v3079 = vsel %vm2582, %v1566, %v3078
      %v3080 = vrot.slane %v1567, 7
      %v3081 = vsel %vm2585, %v3080, %v3079
      %v3082 = vrot.slane %v1568, 6
      %v3083 = vsel %vm2588, %v3082, %v3081
      %v3084 = vrot.slane %v1569, 5
      %v3085 = vrot.slane %v1570, 4
      %v3086 = vsel %vm2570, %v3085, %v3084
      %v3087 = vrot.slane %v1571, 3
      %v3088 = vsel %vm2573, %v3087, %v3086
      %v3089 = vrot.slane %v1572, 2
      %v3090 = vsel %vm2576, %v3089, %v3088
      %v3091 = vrot.slane %v1573, 1
      %v3092 = vsel %vm2579, %v3091, %v3090
      %v3093 = vsel %vm2582, %v1574, %v3092
      %v3094 = vrot.slane %v1575, 7
      %v3095 = vsel %vm2585, %v3094, %v3093
      %v3096 = vrot.slane %v1576, 6
      %v3097 = vsel %vm2588, %v3096, %v3095
      %3098 = vrot.lane.b32.xlu0 %v3083, 64
      %v3099 = vpop.permute.xlu0 %3098
      %3100 = vrot.lane.b32.xlu0 %v3097, 64
      %v3101 = vpop.permute.xlu0 %3100
      %v3120 = vrot.slane %v1641, 5
      %v3121 = vrot.slane %v1642, 4
      %v3122 = vsel %vm2570, %v3121, %v3120
      %v3123 = vrot.slane %v1643, 3
      %v3124 = vsel %vm2573, %v3123, %v3122
      %v3125 = vrot.slane %v1644, 2
      %v3126 = vsel %vm2576, %v3125, %v3124
      %v3127 = vrot.slane %v1645, 1
      %v3128 = vsel %vm2579, %v3127, %v3126
      %v3129 = vsel %vm2582, %v1646, %v3128
      %v3130 = vrot.slane %v1647, 7
      %v3131 = vsel %vm2585, %v3130, %v3129
      %v3132 = vrot.slane %v1648, 6
      %v3133 = vsel %vm2588, %v3132, %v3131
      %v3134 = vrot.slane %v1649, 5
      %v3135 = vrot.slane %v1650, 4
      %v3136 = vsel %vm2570, %v3135, %v3134
      %v3137 = vrot.slane %v1651, 3
      %v3138 = vsel %vm2573, %v3137, %v3136
      %v3139 = vrot.slane %v1652, 2
      %v3140 = vsel %vm2576, %v3139, %v3138
      %v3141 = vrot.slane %v1653, 1
      %v3142 = vsel %vm2579, %v3141, %v3140
      %v3143 = vsel %vm2582, %v1654, %v3142
      %v3144 = vrot.slane %v1655, 7
      %v3145 = vsel %vm2585, %v3144, %v3143
      %v3146 = vrot.slane %v1656, 6
      %v3147 = vsel %vm2588, %v3146, %v3145
      %v3166 = vrot.slane %v1737, 6
      %v3167 = vrot.slane %v1738, 5
      %v3168 = vsel %vm2570, %v3167, %v3166
      %v3169 = vrot.slane %v1739, 4
      %v3170 = vsel %vm2573, %v3169, %v3168
      %v3171 = vrot.slane %v1740, 3
      %v3172 = vsel %vm2576, %v3171, %v3170
      %v3173 = vrot.slane %v1741, 2
      %v3174 = vsel %vm2579, %v3173, %v3172
      %v3175 = vrot.slane %v1742, 1
      %v3176 = vsel %vm2582, %v3175, %v3174
      %v3177 = vsel %vm2585, %v1743, %v3176
      %v3178 = vrot.slane %v1744, 7
      %v3179 = vsel %vm2588, %v3178, %v3177
      %v3180 = vrot.slane %v1745, 6
      %v3181 = vrot.slane %v1746, 5
      %v3182 = vsel %vm2570, %v3181, %v3180
      %v3183 = vrot.slane %v1747, 4
      %v3184 = vsel %vm2573, %v3183, %v3182
      %v3185 = vrot.slane %v1748, 3
      %v3186 = vsel %vm2576, %v3185, %v3184
      %v3187 = vrot.slane %v1749, 2
      %v3188 = vsel %vm2579, %v3187, %v3186
      %v3189 = vrot.slane %v1750, 1
      %v3190 = vsel %vm2582, %v3189, %v3188
      %v3191 = vsel %vm2585, %v1751, %v3190
      %v3192 = vrot.slane %v1752, 7
      %v3193 = vsel %vm2588, %v3192, %v3191
      %3194 = vrot.lane.b32.xlu0 %v3179, 64
      %v3195 = vpop.permute.xlu0 %3194
      %3196 = vrot.lane.b32.xlu0 %v3193, 64
      %v3197 = vpop.permute.xlu0 %3196
      %vm3200 = vcmask 523264
      %v3201 = vsel %vm3200, %v2589, %v2651
      %v3202 = vsel %vm3200, %v2603, %v2653
      %v3203 = vsel %vm3200, %v2685, %v2747
      %v3204 = vsel %vm3200, %v2699, %v2749
      %v3205 = vsel %vm3200, %v2781, %v2827
      %v3206 = vsel %vm3200, %v2795, %v2829
      %v3207 = vsel %vm3200, %v2845, %v2891
      %v3208 = vsel %vm3200, %v2859, %v2893
      %v3209 = vsel %vm3200, %v2909, %v2955
      %v3210 = vsel %vm3200, %v2923, %v2957
      %v3211 = vsel %vm3200, %v2973, %v3019
      %v3212 = vsel %vm3200, %v2987, %v3021
      %v3213 = vsel %vm3200, %v3037, %v3099
      %v3214 = vsel %vm3200, %v3051, %v3101
      %v3215 = vsel %vm3200, %v3133, %v3195
      %v3216 = vsel %vm3200, %v3147, %v3197
      %v3233 = vrot.slane %v1834, 7
      %v3234 = vsel %vm2588, %v3233, %v1833
      %v3235 = vrot.slane %v1835, 6
      %v3236 = vrot.slane %v1836, 5
      %v3237 = vsel %vm2570, %v3236, %v3235
      %v3238 = vrot.slane %v1837, 4
      %v3239 = vsel %vm2573, %v3238, %v3237
      %v3240 = vrot.slane %v1838, 3
      %v3241 = vsel %vm2576, %v3240, %v3239
      %v3242 = vrot.slane %v1839, 2
      %v3243 = vsel %vm2579, %v3242, %v3241
      %v3244 = vrot.slane %v1840, 1
      %v3245 = vsel %vm2582, %v3244, %v3243
      %v3246 = vsel %vm2585, %v1841, %v3245
      %v3247 = vrot.slane %v1842, 7
      %v3248 = vsel %vm2588, %v3247, %v3246
      %v3249 = vrot.slane %v1843, 6
      %v3250 = vrot.slane %v1844, 5
      %v3251 = vsel %vm2570, %v3250, %v3249
      %v3252 = vrot.slane %v1845, 4
      %v3253 = vsel %vm2573, %v3252, %v3251
      %v3254 = vrot.slane %v1846, 3
      %v3255 = vsel %vm2576, %v3254, %v3253
      %v3256 = vrot.slane %v1847, 2
      %v3257 = vsel %vm2579, %v3256, %v3255
      %v3258 = vrot.slane %v1848, 1
      %v3259 = vsel %vm2582, %v3258, %v3257
      %v3279 = vrot.slane %v1913, 1
      %v3280 = vsel %vm2588, %v1914, %v3279
      %v3281 = vrot.slane %v1915, 7
      %v3282 = vrot.slane %v1916, 6
      %v3283 = vsel %vm2570, %v3282, %v3281
      %v3284 = vrot.slane %v1917, 5
      %v3285 = vsel %vm2573, %v3284, %v3283
      %v3286 = vrot.slane %v1918, 4
      %v3287 = vsel %vm2576, %v3286, %v3285
      %v3288 = vrot.slane %v1919, 3
      %v3289 = vsel %vm2579, %v3288, %v3287
      %v3290 = vrot.slane %v1920, 2
      %v3291 = vsel %vm2582, %v3290, %v3289
      %v3292 = vrot.slane %v1921, 1
      %v3293 = vsel %vm2585, %v3292, %v3291
      %v3294 = vsel %vm2588, %v1922, %v3293
      %v3295 = vrot.slane %v1923, 7
      %v3296 = vrot.slane %v1924, 6
      %v3297 = vsel %vm2570, %v3296, %v3295
      %v3298 = vrot.slane %v1925, 5
      %v3299 = vsel %vm2573, %v3298, %v3297
      %v3300 = vrot.slane %v1926, 4
      %v3301 = vsel %vm2576, %v3300, %v3299
      %v3302 = vrot.slane %v1927, 3
      %v3303 = vsel %vm2579, %v3302, %v3301
      %v3304 = vrot.slane %v1928, 2
      %v3305 = vsel %vm2582, %v3304, %v3303
      %3306 = vrot.lane.b32.xlu0 %v3280, 64
      %v3307 = vpop.permute.xlu0 %3306
      %3308 = vrot.lane.b32.xlu0 %v3294, 64
      %v3309 = vpop.permute.xlu0 %3308
      %3310 = vrot.lane.b32.xlu0 %v3305, 64
      %v3311 = vpop.permute.xlu0 %3310
      %v3331 = vrot.slane %v1993, 1
      %v3332 = vsel %vm2588, %v1994, %v3331
      %v3333 = vrot.slane %v1995, 7
      %v3334 = vrot.slane %v1996, 6
      %v3335 = vsel %vm2570, %v3334, %v3333
      %v3336 = vrot.slane %v1997, 5
      %v3337 = vsel %vm2573, %v3336, %v3335
      %v3338 = vrot.slane %v1998, 4
      %v3339 = vsel %vm2576, %v3338, %v3337
      %v3340 = vrot.slane %v1999, 3
      %v3341 = vsel %vm2579, %v3340, %v3339
      %v3342 = vrot.slane %v2000, 2
      %v3343 = vsel %vm2582, %v3342, %v3341
      %v3344 = vrot.slane %v2001, 1
      %v3345 = vsel %vm2585, %v3344, %v3343
      %v3346 = vsel %vm2588, %v2002, %v3345
      %v3347 = vrot.slane %v2003, 7
      %v3348 = vrot.slane %v2004, 6
      %v3349 = vsel %vm2570, %v3348, %v3347
      %v3350 = vrot.slane %v2005, 5
      %v3351 = vsel %vm2573, %v3350, %v3349
      %v3352 = vrot.slane %v2006, 4
      %v3353 = vsel %vm2576, %v3352, %v3351
      %v3354 = vrot.slane %v2007, 3
      %v3355 = vsel %vm2579, %v3354, %v3353
      %v3356 = vrot.slane %v2008, 2
      %v3357 = vsel %vm2582, %v3356, %v3355
      %v3377 = vrot.slane %v2041, 2
      %v3378 = vrot.slane %v2042, 1
      %v3379 = vsel %vm2588, %v3378, %v3377
      %v3380 = vrot.slane %v2044, 7
      %v3381 = vsel %vm2570, %v3380, %v2043
      %v3382 = vrot.slane %v2045, 6
      %v3383 = vsel %vm2573, %v3382, %v3381
      %v3384 = vrot.slane %v2046, 5
      %v3385 = vsel %vm2576, %v3384, %v3383
      %v3386 = vrot.slane %v2047, 4
      %v3387 = vsel %vm2579, %v3386, %v3385
      %v3388 = vrot.slane %v2048, 3
      %v3389 = vsel %vm2582, %v3388, %v3387
      %v3390 = vrot.slane %v2049, 2
      %v3391 = vsel %vm2585, %v3390, %v3389
      %v3392 = vrot.slane %v2050, 1
      %v3393 = vsel %vm2588, %v3392, %v3391
      %v3394 = vrot.slane %v2052, 7
      %v3395 = vsel %vm2570, %v3394, %v2051
      %v3396 = vrot.slane %v2053, 6
      %v3397 = vsel %vm2573, %v3396, %v3395
      %v3398 = vrot.slane %v2054, 5
      %v3399 = vsel %vm2576, %v3398, %v3397
      %v3400 = vrot.slane %v2055, 4
      %v3401 = vsel %vm2579, %v3400, %v3399
      %v3402 = vrot.slane %v2056, 3
      %v3403 = vsel %vm2582, %v3402, %v3401
      %3404 = vrot.lane.b32.xlu0 %v3379, 64
      %v3405 = vpop.permute.xlu0 %3404
      %3406 = vrot.lane.b32.xlu0 %v3393, 64
      %v3407 = vpop.permute.xlu0 %3406
      %3408 = vrot.lane.b32.xlu0 %v3403, 64
      %v3409 = vpop.permute.xlu0 %3408
      %v3429 = vrot.slane %v2089, 2
      %v3430 = vrot.slane %v2090, 1
      %v3431 = vsel %vm2588, %v3430, %v3429
      %v3432 = vrot.slane %v2092, 7
      %v3433 = vsel %vm2570, %v3432, %v2091
      %v3434 = vrot.slane %v2093, 6
      %v3435 = vsel %vm2573, %v3434, %v3433
      %v3436 = vrot.slane %v2094, 5
      %v3437 = vsel %vm2576, %v3436, %v3435
      %v3438 = vrot.slane %v2095, 4
      %v3439 = vsel %vm2579, %v3438, %v3437
      %v3440 = vrot.slane %v2096, 3
      %v3441 = vsel %vm2582, %v3440, %v3439
      %v3442 = vrot.slane %v2097, 2
      %v3443 = vsel %vm2585, %v3442, %v3441
      %v3444 = vrot.slane %v2098, 1
      %v3445 = vsel %vm2588, %v3444, %v3443
      %v3446 = vrot.slane %v2100, 7
      %v3447 = vsel %vm2570, %v3446, %v2099
      %v3448 = vrot.slane %v2101, 6
      %v3449 = vsel %vm2573, %v3448, %v3447
      %v3450 = vrot.slane %v2102, 5
      %v3451 = vsel %vm2576, %v3450, %v3449
      %v3452 = vrot.slane %v2103, 4
      %v3453 = vsel %vm2579, %v3452, %v3451
      %v3454 = vrot.slane %v2104, 3
      %v3455 = vsel %vm2582, %v3454, %v3453
      %v3459 = vrot.slane %v2041, 3
      %v3460 = vrot.slane %v2042, 2
      %v3461 = vsel %vm2588, %v3460, %v3459
      %v3462 = vrot.slane %v2043, 1
      %v3463 = vsel %vm2570, %v2044, %v3462
      %v3464 = vrot.slane %v2045, 7
      %v3465 = vsel %vm2573, %v3464, %v3463
      %v3466 = vrot.slane %v2046, 6
      %v3467 = vsel %vm2576, %v3466, %v3465
      %v3468 = vrot.slane %v2047, 5
      %v3469 = vsel %vm2579, %v3468, %v3467
      %v3470 = vrot.slane %v2048, 4
      %v3471 = vsel %vm2582, %v3470, %v3469
      %v3472 = vrot.slane %v2049, 3
      %v3473 = vsel %vm2585, %v3472, %v3471
      %v3474 = vrot.slane %v2050, 2
      %v3475 = vsel %vm2588, %v3474, %v3473
      %v3476 = vrot.slane %v2051, 1
      %v3477 = vsel %vm2570, %v2052, %v3476
      %v3478 = vrot.slane %v2053, 7
      %v3479 = vsel %vm2573, %v3478, %v3477
      %v3480 = vrot.slane %v2054, 6
      %v3481 = vsel %vm2576, %v3480, %v3479
      %v3482 = vrot.slane %v2055, 5
      %v3483 = vsel %vm2579, %v3482, %v3481
      %v3484 = vrot.slane %v2056, 4
      %v3485 = vsel %vm2582, %v3484, %v3483
      %3486 = vrot.lane.b32.xlu0 %v3461, 64
      %v3487 = vpop.permute.xlu0 %3486
      %3488 = vrot.lane.b32.xlu0 %v3475, 64
      %v3489 = vpop.permute.xlu0 %3488
      %3490 = vrot.lane.b32.xlu0 %v3485, 64
      %v3491 = vpop.permute.xlu0 %3490
      %v3495 = vrot.slane %v2089, 3
      %v3496 = vrot.slane %v2090, 2
      %v3497 = vsel %vm2588, %v3496, %v3495
      %v3498 = vrot.slane %v2091, 1
      %v3499 = vsel %vm2570, %v2092, %v3498
      %v3500 = vrot.slane %v2093, 7
      %v3501 = vsel %vm2573, %v3500, %v3499
      %v3502 = vrot.slane %v2094, 6
      %v3503 = vsel %vm2576, %v3502, %v3501
      %v3504 = vrot.slane %v2095, 5
      %v3505 = vsel %vm2579, %v3504, %v3503
      %v3506 = vrot.slane %v2096, 4
      %v3507 = vsel %vm2582, %v3506, %v3505
      %v3508 = vrot.slane %v2097, 3
      %v3509 = vsel %vm2585, %v3508, %v3507
      %v3510 = vrot.slane %v2098, 2
      %v3511 = vsel %vm2588, %v3510, %v3509
      %v3512 = vrot.slane %v2099, 1
      %v3513 = vsel %vm2570, %v2100, %v3512
      %v3514 = vrot.slane %v2101, 7
      %v3515 = vsel %vm2573, %v3514, %v3513
      %v3516 = vrot.slane %v2102, 6
      %v3517 = vsel %vm2576, %v3516, %v3515
      %v3518 = vrot.slane %v2103, 5
      %v3519 = vsel %vm2579, %v3518, %v3517
      %v3520 = vrot.slane %v2104, 4
      %v3521 = vsel %vm2582, %v3520, %v3519
      %v3525 = vrot.slane %v2041, 4
      %v3526 = vrot.slane %v2042, 3
      %v3527 = vsel %vm2588, %v3526, %v3525
      %v3528 = vrot.slane %v2043, 2
      %v3529 = vrot.slane %v2044, 1
      %v3530 = vsel %vm2570, %v3529, %v3528
      %v3531 = vsel %vm2573, %v2045, %v3530
      %v3532 = vrot.slane %v2046, 7
      %v3533 = vsel %vm2576, %v3532, %v3531
      %v3534 = vrot.slane %v2047, 6
      %v3535 = vsel %vm2579, %v3534, %v3533
      %v3536 = vrot.slane %v2048, 5
      %v3537 = vsel %vm2582, %v3536, %v3535
      %v3538 = vrot.slane %v2049, 4
      %v3539 = vsel %vm2585, %v3538, %v3537
      %v3540 = vrot.slane %v2050, 3
      %v3541 = vsel %vm2588, %v3540, %v3539
      %v3542 = vrot.slane %v2051, 2
      %v3543 = vrot.slane %v2052, 1
      %v3544 = vsel %vm2570, %v3543, %v3542
      %v3545 = vsel %vm2573, %v2053, %v3544
      %v3546 = vrot.slane %v2054, 7
      %v3547 = vsel %vm2576, %v3546, %v3545
      %v3548 = vrot.slane %v2055, 6
      %v3549 = vsel %vm2579, %v3548, %v3547
      %v3550 = vrot.slane %v2056, 5
      %v3551 = vsel %vm2582, %v3550, %v3549
      %3552 = vrot.lane.b32.xlu0 %v3527, 64
      %v3553 = vpop.permute.xlu0 %3552
      %3554 = vrot.lane.b32.xlu0 %v3541, 64
      %v3555 = vpop.permute.xlu0 %3554
      %3556 = vrot.lane.b32.xlu0 %v3551, 64
      %v3557 = vpop.permute.xlu0 %3556
      %v3561 = vrot.slane %v2089, 4
      %v3562 = vrot.slane %v2090, 3
      %v3563 = vsel %vm2588, %v3562, %v3561
      %v3564 = vrot.slane %v2091, 2
      %v3565 = vrot.slane %v2092, 1
      %v3566 = vsel %vm2570, %v3565, %v3564
      %v3567 = vsel %vm2573, %v2093, %v3566
      %v3568 = vrot.slane %v2094, 7
      %v3569 = vsel %vm2576, %v3568, %v3567
      %v3570 = vrot.slane %v2095, 6
      %v3571 = vsel %vm2579, %v3570, %v3569
      %v3572 = vrot.slane %v2096, 5
      %v3573 = vsel %vm2582, %v3572, %v3571
      %v3574 = vrot.slane %v2097, 4
      %v3575 = vsel %vm2585, %v3574, %v3573
      %v3576 = vrot.slane %v2098, 3
      %v3577 = vsel %vm2588, %v3576, %v3575
      %v3578 = vrot.slane %v2099, 2
      %v3579 = vrot.slane %v2100, 1
      %v3580 = vsel %vm2570, %v3579, %v3578
      %v3581 = vsel %vm2573, %v2101, %v3580
      %v3582 = vrot.slane %v2102, 7
      %v3583 = vsel %vm2576, %v3582, %v3581
      %v3584 = vrot.slane %v2103, 6
      %v3585 = vsel %vm2579, %v3584, %v3583
      %v3586 = vrot.slane %v2104, 5
      %v3587 = vsel %vm2582, %v3586, %v3585
      %v3591 = vrot.slane %v2041, 5
      %v3592 = vrot.slane %v2042, 4
      %v3593 = vsel %vm2588, %v3592, %v3591
      %v3594 = vrot.slane %v2043, 3
      %v3595 = vrot.slane %v2044, 2
      %v3596 = vsel %vm2570, %v3595, %v3594
      %v3597 = vrot.slane %v2045, 1
      %v3598 = vsel %vm2573, %v3597, %v3596
      %v3599 = vsel %vm2576, %v2046, %v3598
      %v3600 = vrot.slane %v2047, 7
      %v3601 = vsel %vm2579, %v3600, %v3599
      %v3602 = vrot.slane %v2048, 6
      %v3603 = vsel %vm2582, %v3602, %v3601
      %v3604 = vrot.slane %v2049, 5
      %v3605 = vsel %vm2585, %v3604, %v3603
      %v3606 = vrot.slane %v2050, 4
      %v3607 = vsel %vm2588, %v3606, %v3605
      %v3608 = vrot.slane %v2051, 3
      %v3609 = vrot.slane %v2052, 2
      %v3610 = vsel %vm2570, %v3609, %v3608
      %v3611 = vrot.slane %v2053, 1
      %v3612 = vsel %vm2573, %v3611, %v3610
      %v3613 = vsel %vm2576, %v2054, %v3612
      %v3614 = vrot.slane %v2055, 7
      %v3615 = vsel %vm2579, %v3614, %v3613
      %v3616 = vrot.slane %v2056, 6
      %v3617 = vsel %vm2582, %v3616, %v3615
      %3618 = vrot.lane.b32.xlu0 %v3593, 64
      %v3619 = vpop.permute.xlu0 %3618
      %3620 = vrot.lane.b32.xlu0 %v3607, 64
      %v3621 = vpop.permute.xlu0 %3620
      %3622 = vrot.lane.b32.xlu0 %v3617, 64
      %v3623 = vpop.permute.xlu0 %3622
      %v3627 = vrot.slane %v2089, 5
      %v3628 = vrot.slane %v2090, 4
      %v3629 = vsel %vm2588, %v3628, %v3627
      %v3630 = vrot.slane %v2091, 3
      %v3631 = vrot.slane %v2092, 2
      %v3632 = vsel %vm2570, %v3631, %v3630
      %v3633 = vrot.slane %v2093, 1
      %v3634 = vsel %vm2573, %v3633, %v3632
      %v3635 = vsel %vm2576, %v2094, %v3634
      %v3636 = vrot.slane %v2095, 7
      %v3637 = vsel %vm2579, %v3636, %v3635
      %v3638 = vrot.slane %v2096, 6
      %v3639 = vsel %vm2582, %v3638, %v3637
      %v3640 = vrot.slane %v2097, 5
      %v3641 = vsel %vm2585, %v3640, %v3639
      %v3642 = vrot.slane %v2098, 4
      %v3643 = vsel %vm2588, %v3642, %v3641
      %v3644 = vrot.slane %v2099, 3
      %v3645 = vrot.slane %v2100, 2
      %v3646 = vsel %vm2570, %v3645, %v3644
      %v3647 = vrot.slane %v2101, 1
      %v3648 = vsel %vm2573, %v3647, %v3646
      %v3649 = vsel %vm2576, %v2102, %v3648
      %v3650 = vrot.slane %v2103, 7
      %v3651 = vsel %vm2579, %v3650, %v3649
      %v3652 = vrot.slane %v2104, 6
      %v3653 = vsel %vm2582, %v3652, %v3651
      %v3657 = vrot.slane %v2041, 6
      %v3658 = vrot.slane %v2042, 5
      %v3659 = vsel %vm2588, %v3658, %v3657
      %v3660 = vrot.slane %v2043, 4
      %v3661 = vrot.slane %v2044, 3
      %v3662 = vsel %vm2570, %v3661, %v3660
      %v3663 = vrot.slane %v2045, 2
      %v3664 = vsel %vm2573, %v3663, %v3662
      %v3665 = vrot.slane %v2046, 1
      %v3666 = vsel %vm2576, %v3665, %v3664
      %v3667 = vsel %vm2579, %v2047, %v3666
      %v3668 = vrot.slane %v2048, 7
      %v3669 = vsel %vm2582, %v3668, %v3667
      %v3670 = vrot.slane %v2049, 6
      %v3671 = vsel %vm2585, %v3670, %v3669
      %v3672 = vrot.slane %v2050, 5
      %v3673 = vsel %vm2588, %v3672, %v3671
      %v3674 = vrot.slane %v2051, 4
      %v3675 = vrot.slane %v2052, 3
      %v3676 = vsel %vm2570, %v3675, %v3674
      %v3677 = vrot.slane %v2053, 2
      %v3678 = vsel %vm2573, %v3677, %v3676
      %v3679 = vrot.slane %v2054, 1
      %v3680 = vsel %vm2576, %v3679, %v3678
      %v3681 = vsel %vm2579, %v2055, %v3680
      %v3682 = vrot.slane %v2056, 7
      %v3683 = vsel %vm2582, %v3682, %v3681
      %3684 = vrot.lane.b32.xlu0 %v3659, 64
      %v3685 = vpop.permute.xlu0 %3684
      %3686 = vrot.lane.b32.xlu0 %v3673, 64
      %v3687 = vpop.permute.xlu0 %3686
      %3688 = vrot.lane.b32.xlu0 %v3683, 64
      %v3689 = vpop.permute.xlu0 %3688
      %v3693 = vrot.slane %v2089, 6
      %v3694 = vrot.slane %v2090, 5
      %v3695 = vsel %vm2588, %v3694, %v3693
      %v3696 = vrot.slane %v2091, 4
      %v3697 = vrot.slane %v2092, 3
      %v3698 = vsel %vm2570, %v3697, %v3696
      %v3699 = vrot.slane %v2093, 2
      %v3700 = vsel %vm2573, %v3699, %v3698
      %v3701 = vrot.slane %v2094, 1
      %v3702 = vsel %vm2576, %v3701, %v3700
      %v3703 = vsel %vm2579, %v2095, %v3702
      %v3704 = vrot.slane %v2096, 7
      %v3705 = vsel %vm2582, %v3704, %v3703
      %v3706 = vrot.slane %v2097, 6
      %v3707 = vsel %vm2585, %v3706, %v3705
      %v3708 = vrot.slane %v2098, 5
      %v3709 = vsel %vm2588, %v3708, %v3707
      %v3710 = vrot.slane %v2099, 4
      %v3711 = vrot.slane %v2100, 3
      %v3712 = vsel %vm2570, %v3711, %v3710
      %v3713 = vrot.slane %v2101, 2
      %v3714 = vsel %vm2573, %v3713, %v3712
      %v3715 = vrot.slane %v2102, 1
      %v3716 = vsel %vm2576, %v3715, %v3714
      %v3717 = vsel %vm2579, %v2103, %v3716
      %v3718 = vrot.slane %v2104, 7
      %v3719 = vsel %vm2582, %v3718, %v3717
      %v3739 = vrot.slane %v2265, 7
      %v3740 = vrot.slane %v2266, 6
      %v3741 = vsel %vm2588, %v3740, %v3739
      %v3742 = vrot.slane %v2267, 5
      %v3743 = vrot.slane %v2268, 4
      %v3744 = vsel %vm2570, %v3743, %v3742
      %v3745 = vrot.slane %v2269, 3
      %v3746 = vsel %vm2573, %v3745, %v3744
      %v3747 = vrot.slane %v2270, 2
      %v3748 = vsel %vm2576, %v3747, %v3746
      %v3749 = vrot.slane %v2271, 1
      %v3750 = vsel %vm2579, %v3749, %v3748
      %v3751 = vsel %vm2582, %v2272, %v3750
      %v3752 = vrot.slane %v2273, 7
      %v3753 = vsel %vm2585, %v3752, %v3751
      %v3754 = vrot.slane %v2274, 6
      %v3755 = vsel %vm2588, %v3754, %v3753
      %v3756 = vrot.slane %v2275, 5
      %v3757 = vrot.slane %v2276, 4
      %v3758 = vsel %vm2570, %v3757, %v3756
      %v3759 = vrot.slane %v2277, 3
      %v3760 = vsel %vm2573, %v3759, %v3758
      %v3761 = vrot.slane %v2278, 2
      %v3762 = vsel %vm2576, %v3761, %v3760
      %v3763 = vrot.slane %v2279, 1
      %v3764 = vsel %vm2579, %v3763, %v3762
      %v3765 = vsel %vm2582, %v2280, %v3764
      %3766 = vrot.lane.b32.xlu0 %v3741, 64
      %v3767 = vpop.permute.xlu0 %3766
      %3768 = vrot.lane.b32.xlu0 %v3755, 64
      %v3769 = vpop.permute.xlu0 %3768
      %3770 = vrot.lane.b32.xlu0 %v3765, 64
      %v3771 = vpop.permute.xlu0 %3770
      %v3791 = vrot.slane %v2441, 7
      %v3792 = vrot.slane %v2442, 6
      %v3793 = vsel %vm2588, %v3792, %v3791
      %v3794 = vrot.slane %v2443, 5
      %v3795 = vrot.slane %v2444, 4
      %v3796 = vsel %vm2570, %v3795, %v3794
      %v3797 = vrot.slane %v2445, 3
      %v3798 = vsel %vm2573, %v3797, %v3796
      %v3799 = vrot.slane %v2446, 2
      %v3800 = vsel %vm2576, %v3799, %v3798
      %v3801 = vrot.slane %v2447, 1
      %v3802 = vsel %vm2579, %v3801, %v3800
      %v3803 = vsel %vm2582, %v2448, %v3802
      %v3804 = vrot.slane %v2449, 7
      %v3805 = vsel %vm2585, %v3804, %v3803
      %v3806 = vrot.slane %v2450, 6
      %v3807 = vsel %vm2588, %v3806, %v3805
      %v3808 = vrot.slane %v2451, 5
      %v3809 = vrot.slane %v2452, 4
      %v3810 = vsel %vm2570, %v3809, %v3808
      %v3811 = vrot.slane %v2453, 3
      %v3812 = vsel %vm2573, %v3811, %v3810
      %v3813 = vrot.slane %v2454, 2
      %v3814 = vsel %vm2576, %v3813, %v3812
      %v3815 = vrot.slane %v2455, 1
      %v3816 = vsel %vm2579, %v3815, %v3814
      %v3817 = vsel %vm2582, %v2456, %v3816
      %v3837 = vrot.slane %v2538, 7
      %v3838 = vsel %vm2588, %v3837, %v2537
      %v3839 = vrot.slane %v2539, 6
      %v3840 = vrot.slane %v2540, 5
      %v3841 = vsel %vm2570, %v3840, %v3839
      %v3842 = vrot.slane %v2541, 4
      %v3843 = vsel %vm2573, %v3842, %v3841
      %v3844 = vrot.slane %v2542, 3
      %v3845 = vsel %vm2576, %v3844, %v3843
      %v3846 = vrot.slane %v2543, 2
      %v3847 = vsel %vm2579, %v3846, %v3845
      %v3848 = vrot.slane %v2544, 1
      %v3849 = vsel %vm2582, %v3848, %v3847
      %v3850 = vsel %vm2585, %v2545, %v3849
      %v3851 = vrot.slane %v2546, 7
      %v3852 = vsel %vm2588, %v3851, %v3850
      %v3853 = vrot.slane %v2547, 6
      %v3854 = vrot.slane %v2548, 5
      %v3855 = vsel %vm2570, %v3854, %v3853
      %v3856 = vrot.slane %v2549, 4
      %v3857 = vsel %vm2573, %v3856, %v3855
      %v3858 = vrot.slane %v2550, 3
      %v3859 = vsel %vm2576, %v3858, %v3857
      %v3860 = vrot.slane %v2551, 2
      %v3861 = vsel %vm2579, %v3860, %v3859
      %v3862 = vrot.slane %v2552, 1
      %v3863 = vsel %vm2582, %v3862, %v3861
      %3864 = vrot.lane.b32.xlu0 %v3838, 64
      %v3865 = vpop.permute.xlu0 %3864
      %3866 = vrot.lane.b32.xlu0 %v3852, 64
      %v3867 = vpop.permute.xlu0 %3866
      %3868 = vrot.lane.b32.xlu0 %v3863, 64
      %v3869 = vpop.permute.xlu0 %3868
      %v3873 = vsel %vm3200, %v3234, %v3307
      %v3874 = vsel %vm3200, %v3248, %v3309
      %v3875 = vsel %vm3200, %v3259, %v3311
      %v3876 = vsel %vm3200, %v3332, %v3405
      %v3877 = vsel %vm3200, %v3346, %v3407
      %v3878 = vsel %vm3200, %v3357, %v3409
      %v3879 = vsel %vm3200, %v3431, %v3487
      %v3880 = vsel %vm3200, %v3445, %v3489
      %v3881 = vsel %vm3200, %v3455, %v3491
      %v3882 = vsel %vm3200, %v3497, %v3553
      %v3883 = vsel %vm3200, %v3511, %v3555
      %v3884 = vsel %vm3200, %v3521, %v3557
      %v3885 = vsel %vm3200, %v3563, %v3619
      %v3886 = vsel %vm3200, %v3577, %v3621
      %v3887 = vsel %vm3200, %v3587, %v3623
      %v3888 = vsel %vm3200, %v3629, %v3685
      %v3889 = vsel %vm3200, %v3643, %v3687
      %v3890 = vsel %vm3200, %v3653, %v3689
      %v3891 = vsel %vm3200, %v3695, %v3767
      %v3892 = vsel %vm3200, %v3709, %v3769
      %v3893 = vsel %vm3200, %v3719, %v3771
      %v3894 = vsel %vm3200, %v3793, %v3865
      %v3895 = vsel %vm3200, %v3807, %v3867
      %v3896 = vsel %vm3200, %v3817, %v3869
      %v3921 = vrot.slane %v3873, 6
      %v3922 = vrot.slane %v3874, 6
      %v3923 = vsel %vm468, %v3921, %v3922
      %v3924 = vrot.slane %v3876, 6
      %v3925 = vrot.slane %v3877, 6
      %v3926 = vsel %vm468, %v3924, %v3925
      %v3927 = vrot.slane %v3879, 6
      %v3928 = vrot.slane %v3880, 6
      %v3929 = vsel %vm468, %v3927, %v3928
      %v3930 = vrot.slane %v3882, 6
      %v3931 = vrot.slane %v3883, 6
      %v3932 = vsel %vm468, %v3930, %v3931
      %v3933 = vrot.slane %v3885, 6
      %v3934 = vrot.slane %v3886, 6
      %v3935 = vsel %vm468, %v3933, %v3934
      %v3936 = vrot.slane %v3888, 6
      %v3937 = vrot.slane %v3889, 6
      %v3938 = vsel %vm468, %v3936, %v3937
      %v3939 = vrot.slane %v3891, 6
      %v3940 = vrot.slane %v3892, 6
      %v3941 = vsel %vm468, %v3939, %v3940
      %v3942 = vrot.slane %v3894, 6
      %v3943 = vrot.slane %v3895, 6
      %v3944 = vsel %vm468, %v3942, %v3943
      %v3945 = vrot.slane %v3875, 6
      %v3946 = vsel %vm468, %v3922, %v3945
      %v3947 = vrot.slane %v3878, 6
      %v3948 = vsel %vm468, %v3925, %v3947
      %v3949 = vrot.slane %v3881, 6
      %v3950 = vsel %vm468, %v3928, %v3949
      %v3951 = vrot.slane %v3884, 6
      %v3952 = vsel %vm468, %v3931, %v3951
      %v3953 = vrot.slane %v3887, 6
      %v3954 = vsel %vm468, %v3934, %v3953
      %v3955 = vrot.slane %v3890, 6
      %v3956 = vsel %vm468, %v3937, %v3955
      %v3957 = vrot.slane %v3893, 6
      %v3958 = vsel %vm468, %v3940, %v3957
      %v3959 = vrot.slane %v3896, 6
      %v3960 = vsel %vm468, %v3943, %v3959
      %v3977 = vld [vmem:[%s3] sm:$0xf]
      %v3978 = vld [vmem:[%s3 + $0x4] sm:$0xf]
      %v3979 = vld [vmem:[%s3 + $0x8] sm:$0xf]
      %v3980 = vld [vmem:[%s3 + $0xc] sm:$0xf]
      %v3981 = vpack.c.bf16 %v3202, %v3201
      %v3982 = vpack.c.bf16 %v3204, %v3203
      %v3983 = vpack.c.bf16 %v3206, %v3205
      %v3984 = vpack.c.bf16 %v3208, %v3207
      %v3985 = vpack.c.bf16 %v3210, %v3209
      %v3986 = vpack.c.bf16 %v3212, %v3211
      %v3987 = vpack.c.bf16 %v3214, %v3213
      %v3988 = vpack.c.bf16 %v3216, %v3215
      %v3989 = vpack.c.bf16 %v3946, %v3923
      %v3990 = vpack.c.bf16 %v3948, %v3926
      %v3991 = vpack.c.bf16 %v3950, %v3929
      %v3992 = vpack.c.bf16 %v3952, %v3932
      %v3993 = vpack.c.bf16 %v3954, %v3935
      %v3994 = vpack.c.bf16 %v3956, %v3938
      %v3995 = vpack.c.bf16 %v3958, %v3941
      %v3996 = vpack.c.bf16 %v3960, %v3944
      %v4001 = vunpack.c.l.b16 %v3977
      %v4002 = vunpack.c.l.b16 %v3978
      %v4003 = vunpack.c.l.b16 %v3979
      %v4004 = vunpack.c.l.b16 %v3980
      %v4005 = vpack.c.b16 %v4002, %v4001
      %v4006 = vpack.c.b16 %v4004, %v4003
      %vm4007 = vcmask 130048
      %v4009 = vsel %vm4007, %v4005, 0
      %v4012 = vsel %vm4007, %v4006, 0
      %4014 = vmatprep.subr.bf16.mxu0 %v3982
      %4015 = vmatpush1.bf16.msra.mxu0 %v3981
      %4016 = vmatprep.subr.bf16.mxu0 0
      %4017 = vmatpush1.bf16.msra.mxu0 0
      %4018 = vmatprep.subr.bf16.mxu0 0
      %4019 = vmatpush1.bf16.msra.mxu0 0
      %4020 = vmatprep.subr.bf16.mxu0 0
      %4021 = vmatpush1.bf16.msra.mxu0 0
      %4022 = vmatprep.subr.bf16.mxu0 0
      %4023 = vmatpush1.bf16.msra.mxu0 0
      %4024 = vmatprep.subr.bf16.mxu0 0
      %4025 = vmatpush1.bf16.msra.mxu0 0
      %4026 = vmatprep.subr.bf16.mxu0 0
      %4027 = vmatpush1.bf16.msra.mxu0 0
      %4028 = vmatprep.subr.bf16.mxu0 0
      %4029 = vmatpush1.bf16.msra.mxu0 0
      %4030 = vmatprep.subr.bf16.mxu0 0
      %4031 = vmatpush1.bf16.msra.mxu0 0
      %4032 = vmatprep.subr.bf16.mxu0 0
      %4033 = vmatpush1.bf16.msra.mxu0 0
      %4034 = vmatprep.subr.bf16.mxu0 0
      %4035 = vmatpush1.bf16.msra.mxu0 0
      %4036 = vmatprep.subr.bf16.mxu0 0
      %4037 = vmatpush1.bf16.msra.mxu0 0
      %4038 = vmatprep.subr.bf16.mxu0 0
      %4039 = vmatpush1.bf16.msra.mxu0 0
      %4040 = vmatprep.subr.bf16.mxu0 0
      %4041 = vmatpush1.bf16.msra.mxu0 0
      %4042 = vmatprep.subr.bf16.mxu0 0
      %4043 = vmatpush1.bf16.msra.mxu0 0
      %4044 = vmatprep.subr.bf16.mxu0 0
      %4045 = vmatpush1.bf16.msra.mxu0 0
      %4046 = vmatprep.mubr.bf16.mxu0 0
      %4047 = vmatmul.mubr.bf16.gmra.mrb[0].mxu0 %v4009
      %v4048 = vpop.f32.mrb[0].mxu0
      %v4049 = vadd.f32 0.0, %v4048
      %v4050 = vpop.f32.mrb[0].mxu0
      %v4051 = vadd.f32 0.0, %v4050
      %v4052 = vpop.f32.mrb[0].mxu0
      %v4053 = vadd.f32 0.0, %v4052
      %v4054 = vpop.f32.mrb[0].mxu0
      %v4055 = vadd.f32 0.0, %v4054
      %4056 = vmatprep.mubr.bf16.mxu0 0
      %4057 = vmatmul.mubr.bf16.gmra.mrb[0].mxu0 %v4012
      %v4058 = vpop.f32.mrb[0].mxu0
      %v4059 = vadd.f32 0.0, %v4058
      %v4060 = vpop.f32.mrb[0].mxu0
      %v4061 = vadd.f32 0.0, %v4060
      %v4062 = vpop.f32.mrb[0].mxu0
      %v4063 = vadd.f32 0.0, %v4062
      %v4064 = vpop.f32.mrb[0].mxu0
      %v4065 = vadd.f32 0.0, %v4064
      %4066 = vdwg.mxu0
      %4067 = vmatprep.subr.bf16.mxu0 %v3984
      %4068 = vmatpush1.bf16.msra.mxu0 %v3983
      %4069 = vmatprep.subr.bf16.mxu0 0
      %4070 = vmatpush1.bf16.msra.mxu0 0
      %4071 = vmatprep.subr.bf16.mxu0 0
      %4072 = vmatpush1.bf16.msra.mxu0 0
      %4073 = vmatprep.subr.bf16.mxu0 0
      %4074 = vmatpush1.bf16.msra.mxu0 0
      %4075 = vmatprep.subr.bf16.mxu0 0
      %4076 = vmatpush1.bf16.msra.mxu0 0
      %4077 = vmatprep.subr.bf16.mxu0 0
      %4078 = vmatpush1.bf16.msra.mxu0 0
      %4079 = vmatprep.subr.bf16.mxu0 0
      %4080 = vmatpush1.bf16.msra.mxu0 0
      %4081 = vmatprep.subr.bf16.mxu0 0
      %4082 = vmatpush1.bf16.msra.mxu0 0
      %4083 = vmatprep.subr.bf16.mxu0 0
      %4084 = vmatpush1.bf16.msra.mxu0 0
      %4085 = vmatprep.subr.bf16.mxu0 0
      %4086 = vmatpush1.bf16.msra.mxu0 0
      %4087 = vmatprep.subr.bf16.mxu0 0
      %4088 = vmatpush1.bf16.msra.mxu0 0
      %4089 = vmatprep.subr.bf16.mxu0 0
      %4090 = vmatpush1.bf16.msra.mxu0 0
      %4091 = vmatprep.subr.bf16.mxu0 0
      %4092 = vmatpush1.bf16.msra.mxu0 0
      %4093 = vmatprep.subr.bf16.mxu0 0
      %4094 = vmatpush1.bf16.msra.mxu0 0
      %4095 = vmatprep.subr.bf16.mxu0 0
      %4096 = vmatpush1.bf16.msra.mxu0 0
      %4097 = vmatprep.subr.bf16.mxu0 0
      %4098 = vmatpush1.bf16.msra.mxu0 0
      %4099 = vmatprep.mubr.bf16.mxu0 0
      %4100 = vmatmul.mubr.bf16.gmra.mrb[0].mxu0 %v4009
      %v4101 = vpop.f32.mrb[0].mxu0
      %v4102 = vadd.f32 0.0, %v4101
      %v4103 = vpop.f32.mrb[0].mxu0
      %v4104 = vadd.f32 0.0, %v4103
      %v4105 = vpop.f32.mrb[0].mxu0
      %v4106 = vadd.f32 0.0, %v4105
      %v4107 = vpop.f32.mrb[0].mxu0
      %v4108 = vadd.f32 0.0, %v4107
      %4109 = vmatprep.mubr.bf16.mxu0 0
      %4110 = vmatmul.mubr.bf16.gmra.mrb[0].mxu0 %v4012
      %v4111 = vpop.f32.mrb[0].mxu0
      %v4112 = vadd.f32 0.0, %v4111
      %v4113 = vpop.f32.mrb[0].mxu0
      %v4114 = vadd.f32 0.0, %v4113
      %v4115 = vpop.f32.mrb[0].mxu0
      %v4116 = vadd.f32 0.0, %v4115
      %v4117 = vpop.f32.mrb[0].mxu0
      %v4118 = vadd.f32 0.0, %v4117
      %4119 = vdwg.mxu0
      %4120 = vmatprep.subr.bf16.mxu0 %v3986
      %4121 = vmatpush1.bf16.msra.mxu0 %v3985
      %4122 = vmatprep.subr.bf16.mxu0 0
      %4123 = vmatpush1.bf16.msra.mxu0 0
      %4124 = vmatprep.subr.bf16.mxu0 0
      %4125 = vmatpush1.bf16.msra.mxu0 0
      %4126 = vmatprep.subr.bf16.mxu0 0
      %4127 = vmatpush1.bf16.msra.mxu0 0
      %4128 = vmatprep.subr.bf16.mxu0 0
      %4129 = vmatpush1.bf16.msra.mxu0 0
      %4130 = vmatprep.subr.bf16.mxu0 0
      %4131 = vmatpush1.bf16.msra.mxu0 0
      %4132 = vmatprep.subr.bf16.mxu0 0
      %4133 = vmatpush1.bf16.msra.mxu0 0
      %4134 = vmatprep.subr.bf16.mxu0 0
      %4135 = vmatpush1.bf16.msra.mxu0 0
      %4136 = vmatprep.subr.bf16.mxu0 0
      %4137 = vmatpush1.bf16.msra.mxu0 0
      %4138 = vmatprep.subr.bf16.mxu0 0
      %4139 = vmatpush1.bf16.msra.mxu0 0
      %4140 = vmatprep.subr.bf16.mxu0 0
      %4141 = vmatpush1.bf16.msra.mxu0 0
      %4142 = vmatprep.subr.bf16.mxu0 0
      %4143 = vmatpush1.bf16.msra.mxu0 0
      %4144 = vmatprep.subr.bf16.mxu0 0
      %4145 = vmatpush1.bf16.msra.mxu0 0
      %4146 = vmatprep.subr.bf16.mxu0 0
      %4147 = vmatpush1.bf16.msra.mxu0 0
      %4148 = vmatprep.subr.bf16.mxu0 0
      %4149 = vmatpush1.bf16.msra.mxu0 0
      %4150 = vmatprep.subr.bf16.mxu0 0
      %4151 = vmatpush1.bf16.msra.mxu0 0
      %4152 = vmatprep.mubr.bf16.mxu0 0
      %4153 = vmatmul.mubr.bf16.gmra.mrb[0].mxu0 %v4009
      %v4154 = vpop.f32.mrb[0].mxu0
      %v4155 = vadd.f32 0.0, %v4154
      %v4156 = vpop.f32.mrb[0].mxu0
      %v4157 = vadd.f32 0.0, %v4156
      %v4158 = vpop.f32.mrb[0].mxu0
      %v4159 = vadd.f32 0.0, %v4158
      %v4160 = vpop.f32.mrb[0].mxu0
      %v4161 = vadd.f32 0.0, %v4160
      %4162 = vmatprep.mubr.bf16.mxu0 0
      %4163 = vmatmul.mubr.bf16.gmra.mrb[0].mxu0 %v4012
      %v4164 = vpop.f32.mrb[0].mxu0
      %v4165 = vadd.f32 0.0, %v4164
      %v4166 = vpop.f32.mrb[0].mxu0
      %v4167 = vadd.f32 0.0, %v4166
      %v4168 = vpop.f32.mrb[0].mxu0
      %v4169 = vadd.f32 0.0, %v4168
      %v4170 = vpop.f32.mrb[0].mxu0
      %v4171 = vadd.f32 0.0, %v4170
      %4172 = vdwg.mxu0
      %4173 = vmatprep.subr.bf16.mxu0 %v3988
      %4174 = vmatpush1.bf16.msra.mxu0 %v3987
      %4175 = vmatprep.subr.bf16.mxu0 0
      %4176 = vmatpush1.bf16.msra.mxu0 0
      %4177 = vmatprep.subr.bf16.mxu0 0
      %4178 = vmatpush1.bf16.msra.mxu0 0
      %4179 = vmatprep.subr.bf16.mxu0 0
      %4180 = vmatpush1.bf16.msra.mxu0 0
      %4181 = vmatprep.subr.bf16.mxu0 0
      %4182 = vmatpush1.bf16.msra.mxu0 0
      %4183 = vmatprep.subr.bf16.mxu0 0
      %4184 = vmatpush1.bf16.msra.mxu0 0
      %4185 = vmatprep.subr.bf16.mxu0 0
      %4186 = vmatpush1.bf16.msra.mxu0 0
      %4187 = vmatprep.subr.bf16.mxu0 0
      %4188 = vmatpush1.bf16.msra.mxu0 0
      %4189 = vmatprep.subr.bf16.mxu0 0
      %4190 = vmatpush1.bf16.msra.mxu0 0
      %4191 = vmatprep.subr.bf16.mxu0 0
      %4192 = vmatpush1.bf16.msra.mxu0 0
      %4193 = vmatprep.subr.bf16.mxu0 0
      %4194 = vmatpush1.bf16.msra.mxu0 0
      %4195 = vmatprep.subr.bf16.mxu0 0
      %4196 = vmatpush1.bf16.msra.mxu0 0
      %4197 = vmatprep.subr.bf16.mxu0 0
      %4198 = vmatpush1.bf16.msra.mxu0 0
      %4199 = vmatprep.subr.bf16.mxu0 0
      %4200 = vmatpush1.bf16.msra.mxu0 0
      %4201 = vmatprep.subr.bf16.mxu0 0
      %4202 = vmatpush1.bf16.msra.mxu0 0
      %4203 = vmatprep.subr.bf16.mxu0 0
      %4204 = vmatpush1.bf16.msra.mxu0 0
      %4205 = vmatprep.mubr.bf16.mxu0 0
      %4206 = vmatmul.mubr.bf16.gmra.mrb[0].mxu0 %v4009
      %v4207 = vpop.f32.mrb[0].mxu0
      %v4208 = vadd.f32 0.0, %v4207
      %v4209 = vpop.f32.mrb[0].mxu0
      %v4210 = vadd.f32 0.0, %v4209
      %v4211 = vpop.f32.mrb[0].mxu0
      %v4212 = vadd.f32 0.0, %v4211
      %v4213 = vpop.f32.mrb[0].mxu0
      %v4214 = vadd.f32 0.0, %v4213
      %4215 = vmatprep.mubr.bf16.mxu0 0
      %4216 = vmatmul.mubr.bf16.gmra.mrb[0].mxu0 %v4012
      %v4217 = vpop.f32.mrb[0].mxu0
      %v4218 = vadd.f32 0.0, %v4217
      %v4219 = vpop.f32.mrb[0].mxu0
      %v4220 = vadd.f32 0.0, %v4219
      %v4221 = vpop.f32.mrb[0].mxu0
      %v4222 = vadd.f32 0.0, %v4221
      %v4223 = vpop.f32.mrb[0].mxu0
      %v4224 = vadd.f32 0.0, %v4223
      %4225 = vdwg.mxu0
      %4226 = vmatprep.subr.bf16.mxu0 %v3990
      %4227 = vmatpush1.bf16.msra.mxu0 %v3989
      %4228 = vmatprep.subr.bf16.mxu0 0
      %4229 = vmatpush1.bf16.msra.mxu0 0
      %4230 = vmatprep.subr.bf16.mxu0 0
      %4231 = vmatpush1.bf16.msra.mxu0 0
      %4232 = vmatprep.subr.bf16.mxu0 0
      %4233 = vmatpush1.bf16.msra.mxu0 0
      %4234 = vmatprep.subr.bf16.mxu0 0
      %4235 = vmatpush1.bf16.msra.mxu0 0
      %4236 = vmatprep.subr.bf16.mxu0 0
      %4237 = vmatpush1.bf16.msra.mxu0 0
      %4238 = vmatprep.subr.bf16.mxu0 0
      %4239 = vmatpush1.bf16.msra.mxu0 0
      %4240 = vmatprep.subr.bf16.mxu0 0
      %4241 = vmatpush1.bf16.msra.mxu0 0
      %4242 = vmatprep.subr.bf16.mxu0 0
      %4243 = vmatpush1.bf16.msra.mxu0 0
      %4244 = vmatprep.subr.bf16.mxu0 0
      %4245 = vmatpush1.bf16.msra.mxu0 0
      %4246 = vmatprep.subr.bf16.mxu0 0
      %4247 = vmatpush1.bf16.msra.mxu0 0
      %4248 = vmatprep.subr.bf16.mxu0 0
      %4249 = vmatpush1.bf16.msra.mxu0 0
      %4250 = vmatprep.subr.bf16.mxu0 0
      %4251 = vmatpush1.bf16.msra.mxu0 0
      %4252 = vmatprep.subr.bf16.mxu0 0
      %4253 = vmatpush1.bf16.msra.mxu0 0
      %4254 = vmatprep.subr.bf16.mxu0 0
      %4255 = vmatpush1.bf16.msra.mxu0 0
      %4256 = vmatprep.subr.bf16.mxu0 0
      %4257 = vmatpush1.bf16.msra.mxu0 0
      %4258 = vmatprep.mubr.bf16.mxu0 0
      %4259 = vmatmul.mubr.bf16.gmra.mrb[0].mxu0 %v4009
      %v4260 = vpop.f32.mrb[0].mxu0
      %v4261 = vadd.f32 0.0, %v4260
      %v4262 = vpop.f32.mrb[0].mxu0
      %v4263 = vadd.f32 0.0, %v4262
      %v4264 = vpop.f32.mrb[0].mxu0
      %v4265 = vadd.f32 0.0, %v4264
      %v4266 = vpop.f32.mrb[0].mxu0
      %v4267 = vadd.f32 0.0, %v4266
      %4268 = vmatprep.mubr.bf16.mxu0 0
      %4269 = vmatmul.mubr.bf16.gmra.mrb[0].mxu0 %v4012
      %v4270 = vpop.f32.mrb[0].mxu0
      %v4271 = vadd.f32 0.0, %v4270
      %v4272 = vpop.f32.mrb[0].mxu0
      %v4273 = vadd.f32 0.0, %v4272
      %v4274 = vpop.f32.mrb[0].mxu0
      %v4275 = vadd.f32 0.0, %v4274
      %v4276 = vpop.f32.mrb[0].mxu0
      %v4277 = vadd.f32 0.0, %v4276
      %4278 = vdwg.mxu0
      %4279 = vmatprep.subr.bf16.mxu0 %v3992
      %4280 = vmatpush1.bf16.msra.mxu0 %v3991
      %4281 = vmatprep.subr.bf16.mxu0 0
      %4282 = vmatpush1.bf16.msra.mxu0 0
      %4283 = vmatprep.subr.bf16.mxu0 0
      %4284 = vmatpush1.bf16.msra.mxu0 0
      %4285 = vmatprep.subr.bf16.mxu0 0
      %4286 = vmatpush1.bf16.msra.mxu0 0
      %4287 = vmatprep.subr.bf16.mxu0 0
      %4288 = vmatpush1.bf16.msra.mxu0 0
      %4289 = vmatprep.subr.bf16.mxu0 0
      %4290 = vmatpush1.bf16.msra.mxu0 0
      %4291 = vmatprep.subr.bf16.mxu0 0
      %4292 = vmatpush1.bf16.msra.mxu0 0
      %4293 = vmatprep.subr.bf16.mxu0 0
      %4294 = vmatpush1.bf16.msra.mxu0 0
      %4295 = vmatprep.subr.bf16.mxu0 0
      %4296 = vmatpush1.bf16.msra.mxu0 0
      %4297 = vmatprep.subr.bf16.mxu0 0
      %4298 = vmatpush1.bf16.msra.mxu0 0
      %4299 = vmatprep.subr.bf16.mxu0 0
      %4300 = vmatpush1.bf16.msra.mxu0 0
      %4301 = vmatprep.subr.bf16.mxu0 0
      %4302 = vmatpush1.bf16.msra.mxu0 0
      %4303 = vmatprep.subr.bf16.mxu0 0
      %4304 = vmatpush1.bf16.msra.mxu0 0
      %4305 = vmatprep.subr.bf16.mxu0 0
      %4306 = vmatpush1.bf16.msra.mxu0 0
      %4307 = vmatprep.subr.bf16.mxu0 0
      %4308 = vmatpush1.bf16.msra.mxu0 0
      %4309 = vmatprep.subr.bf16.mxu0 0
      %4310 = vmatpush1.bf16.msra.mxu0 0
      %4311 = vmatprep.mubr.bf16.mxu0 0
      %4312 = vmatmul.mubr.bf16.gmra.mrb[0].mxu0 %v4009
      %v4313 = vpop.f32.mrb[0].mxu0
      %v4314 = vadd.f32 0.0, %v4313
      %v4315 = vpop.f32.mrb[0].mxu0
      %v4316 = vadd.f32 0.0, %v4315
      %v4317 = vpop.f32.mrb[0].mxu0
      %v4318 = vadd.f32 0.0, %v4317
      %v4319 = vpop.f32.mrb[0].mxu0
      %v4320 = vadd.f32 0.0, %v4319
      %4321 = vmatprep.mubr.bf16.mxu0 0
      %4322 = vmatmul.mubr.bf16.gmra.mrb[0].mxu0 %v4012
      %v4323 = vpop.f32.mrb[0].mxu0
      %v4324 = vadd.f32 0.0, %v4323
      %v4325 = vpop.f32.mrb[0].mxu0
      %v4326 = vadd.f32 0.0, %v4325
      %v4327 = vpop.f32.mrb[0].mxu0
      %v4328 = vadd.f32 0.0, %v4327
      %v4329 = vpop.f32.mrb[0].mxu0
      %v4330 = vadd.f32 0.0, %v4329
      %4331 = vdwg.mxu0
      %4332 = vmatprep.subr.bf16.mxu0 %v3994
      %4333 = vmatpush1.bf16.msra.mxu0 %v3993
      %4334 = vmatprep.subr.bf16.mxu0 0
      %4335 = vmatpush1.bf16.msra.mxu0 0
      %4336 = vmatprep.subr.bf16.mxu0 0
      %4337 = vmatpush1.bf16.msra.mxu0 0
      %4338 = vmatprep.subr.bf16.mxu0 0
      %4339 = vmatpush1.bf16.msra.mxu0 0
      %4340 = vmatprep.subr.bf16.mxu0 0
      %4341 = vmatpush1.bf16.msra.mxu0 0
      %4342 = vmatprep.subr.bf16.mxu0 0
      %4343 = vmatpush1.bf16.msra.mxu0 0
      %4344 = vmatprep.subr.bf16.mxu0 0
      %4345 = vmatpush1.bf16.msra.mxu0 0
      %4346 = vmatprep.subr.bf16.mxu0 0
      %4347 = vmatpush1.bf16.msra.mxu0 0
      %4348 = vmatprep.subr.bf16.mxu0 0
      %4349 = vmatpush1.bf16.msra.mxu0 0
      %4350 = vmatprep.subr.bf16.mxu0 0
      %4351 = vmatpush1.bf16.msra.mxu0 0
      %4352 = vmatprep.subr.bf16.mxu0 0
      %4353 = vmatpush1.bf16.msra.mxu0 0
      %4354 = vmatprep.subr.bf16.mxu0 0
      %4355 = vmatpush1.bf16.msra.mxu0 0
      %4356 = vmatprep.subr.bf16.mxu0 0
      %4357 = vmatpush1.bf16.msra.mxu0 0
      %4358 = vmatprep.subr.bf16.mxu0 0
      %4359 = vmatpush1.bf16.msra.mxu0 0
      %4360 = vmatprep.subr.bf16.mxu0 0
      %4361 = vmatpush1.bf16.msra.mxu0 0
      %4362 = vmatprep.subr.bf16.mxu0 0
      %4363 = vmatpush1.bf16.msra.mxu0 0
      %4364 = vmatprep.mubr.bf16.mxu0 0
      %4365 = vmatmul.mubr.bf16.gmra.mrb[0].mxu0 %v4009
      %v4366 = vpop.f32.mrb[0].mxu0
      %v4367 = vadd.f32 0.0, %v4366
      %v4368 = vpop.f32.mrb[0].mxu0
      %v4369 = vadd.f32 0.0, %v4368
      %v4370 = vpop.f32.mrb[0].mxu0
      %v4371 = vadd.f32 0.0, %v4370
      %v4372 = vpop.f32.mrb[0].mxu0
      %v4373 = vadd.f32 0.0, %v4372
      %4374 = vmatprep.mubr.bf16.mxu0 0
      %4375 = vmatmul.mubr.bf16.gmra.mrb[0].mxu0 %v4012
      %v4376 = vpop.f32.mrb[0].mxu0
      %v4377 = vadd.f32 0.0, %v4376
      %v4378 = vpop.f32.mrb[0].mxu0
      %v4379 = vadd.f32 0.0, %v4378
      %v4380 = vpop.f32.mrb[0].mxu0
      %v4381 = vadd.f32 0.0, %v4380
      %v4382 = vpop.f32.mrb[0].mxu0
      %v4383 = vadd.f32 0.0, %v4382
      %4384 = vdwg.mxu0
      %4385 = vmatprep.subr.bf16.mxu0 %v3996
      %4386 = vmatpush1.bf16.msra.mxu0 %v3995
      %4387 = vmatprep.subr.bf16.mxu0 0
      %4388 = vmatpush1.bf16.msra.mxu0 0
      %4389 = vmatprep.subr.bf16.mxu0 0
      %4390 = vmatpush1.bf16.msra.mxu0 0
      %4391 = vmatprep.subr.bf16.mxu0 0
      %4392 = vmatpush1.bf16.msra.mxu0 0
      %4393 = vmatprep.subr.bf16.mxu0 0
      %4394 = vmatpush1.bf16.msra.mxu0 0
      %4395 = vmatprep.subr.bf16.mxu0 0
      %4396 = vmatpush1.bf16.msra.mxu0 0
      %4397 = vmatprep.subr.bf16.mxu0 0
      %4398 = vmatpush1.bf16.msra.mxu0 0
      %4399 = vmatprep.subr.bf16.mxu0 0
      %4400 = vmatpush1.bf16.msra.mxu0 0
      %4401 = vmatprep.subr.bf16.mxu0 0
      %4402 = vmatpush1.bf16.msra.mxu0 0
      %4403 = vmatprep.subr.bf16.mxu0 0
      %4404 = vmatpush1.bf16.msra.mxu0 0
      %4405 = vmatprep.subr.bf16.mxu0 0
      %4406 = vmatpush1.bf16.msra.mxu0 0
      %4407 = vmatprep.subr.bf16.mxu0 0
      %4408 = vmatpush1.bf16.msra.mxu0 0
      %4409 = vmatprep.subr.bf16.mxu0 0
      %4410 = vmatpush1.bf16.msra.mxu0 0
      %4411 = vmatprep.subr.bf16.mxu0 0
      %4412 = vmatpush1.bf16.msra.mxu0 0
      %4413 = vmatprep.subr.bf16.mxu0 0
      %4414 = vmatpush1.bf16.msra.mxu0 0
      %4415 = vmatprep.subr.bf16.mxu0 0
      %4416 = vmatpush1.bf16.msra.mxu0 0
      %4417 = vmatprep.mubr.bf16.mxu0 0
      %4418 = vmatmul.mubr.bf16.gmra.mrb[0].mxu0 %v4009
      %v4419 = vpop.f32.mrb[0].mxu0
      %v4420 = vadd.f32 0.0, %v4419
      %v4421 = vpop.f32.mrb[0].mxu0
      %v4422 = vadd.f32 0.0, %v4421
      %v4423 = vpop.f32.mrb[0].mxu0
      %v4424 = vadd.f32 0.0, %v4423
      %v4425 = vpop.f32.mrb[0].mxu0
      %v4426 = vadd.f32 0.0, %v4425
      %4427 = vmatprep.mubr.bf16.mxu0 0
      %4428 = vmatmul.mubr.bf16.gmra.mrb[0].mxu0 %v4012
      %v4429 = vpop.f32.mrb[0].mxu0
      %v4430 = vadd.f32 0.0, %v4429
      %v4431 = vpop.f32.mrb[0].mxu0
      %v4432 = vadd.f32 0.0, %v4431
      %v4433 = vpop.f32.mrb[0].mxu0
      %v4434 = vadd.f32 0.0, %v4433
      %v4435 = vpop.f32.mrb[0].mxu0
      %v4436 = vadd.f32 0.0, %v4435
      %4437 = vdwg.mxu0
      %vm4438 = vcmp.ge.f32.partialorder %v4049, 0.0
      %vm4439 = vcmp.ge.f32.partialorder %v4051, 0.0
      %vm4440 = vcmp.ge.f32.partialorder %v4102, 0.0
      %vm4441 = vcmp.ge.f32.partialorder %v4104, 0.0
      %vm4442 = vcmp.ge.f32.partialorder %v4155, 0.0
      %vm4443 = vcmp.ge.f32.partialorder %v4157, 0.0
      %vm4444 = vcmp.ge.f32.partialorder %v4208, 0.0
      %vm4445 = vcmp.ge.f32.partialorder %v4210, 0.0
      %vm4446 = vcmp.ge.f32.partialorder %v4261, 0.0
      %vm4447 = vcmp.ge.f32.partialorder %v4263, 0.0
      %vm4448 = vcmp.ge.f32.partialorder %v4314, 0.0
      %vm4449 = vcmp.ge.f32.partialorder %v4316, 0.0
      %vm4450 = vcmp.ge.f32.partialorder %v4367, 0.0
      %vm4451 = vcmp.ge.f32.partialorder %v4369, 0.0
      %vm4452 = vcmp.ge.f32.partialorder %v4420, 0.0
      %vm4453 = vcmp.ge.f32.partialorder %v4422, 0.0
      %vm4454 = vcmp.ge.f32.partialorder %v4053, 0.0
      %vm4455 = vcmp.ge.f32.partialorder %v4055, 0.0
      %vm4456 = vcmp.ge.f32.partialorder %v4106, 0.0
      %vm4457 = vcmp.ge.f32.partialorder %v4108, 0.0
      %vm4458 = vcmp.ge.f32.partialorder %v4159, 0.0
      %vm4459 = vcmp.ge.f32.partialorder %v4161, 0.0
      %vm4460 = vcmp.ge.f32.partialorder %v4212, 0.0
      %vm4461 = vcmp.ge.f32.partialorder %v4214, 0.0
      %vm4462 = vcmp.ge.f32.partialorder %v4265, 0.0
      %vm4463 = vcmp.ge.f32.partialorder %v4267, 0.0
      %vm4464 = vcmp.ge.f32.partialorder %v4318, 0.0
      %vm4465 = vcmp.ge.f32.partialorder %v4320, 0.0
      %vm4466 = vcmp.ge.f32.partialorder %v4371, 0.0
      %vm4467 = vcmp.ge.f32.partialorder %v4373, 0.0
      %vm4468 = vcmp.ge.f32.partialorder %v4424, 0.0
      %vm4469 = vcmp.ge.f32.partialorder %v4426, 0.0
      %vm4470 = vcmp.ge.f32.partialorder %v4059, 0.0
      %vm4471 = vcmp.ge.f32.partialorder %v4061, 0.0
      %vm4472 = vcmp.ge.f32.partialorder %v4112, 0.0
      %vm4473 = vcmp.ge.f32.partialorder %v4114, 0.0
      %vm4474 = vcmp.ge.f32.partialorder %v4165, 0.0
      %vm4475 = vcmp.ge.f32.partialorder %v4167, 0.0
      %vm4476 = vcmp.ge.f32.partialorder %v4218, 0.0
      %vm4477 = vcmp.ge.f32.partialorder %v4220, 0.0
      %vm4478 = vcmp.ge.f32.partialorder %v4271, 0.0
      %vm4479 = vcmp.ge.f32.partialorder %v4273, 0.0
      %vm4480 = vcmp.ge.f32.partialorder %v4324, 0.0
      %vm4481 = vcmp.ge.f32.partialorder %v4326, 0.0
      %vm4482 = vcmp.ge.f32.partialorder %v4377, 0.0
      %vm4483 = vcmp.ge.f32.partialorder %v4379, 0.0
      %vm4484 = vcmp.ge.f32.partialorder %v4430, 0.0
      %vm4485 = vcmp.ge.f32.partialorder %v4432, 0.0
      %vm4486 = vcmp.ge.f32.partialorder %v4063, 0.0
      %vm4487 = vcmp.ge.f32.partialorder %v4065, 0.0
      %vm4488 = vcmp.ge.f32.partialorder %v4116, 0.0
      %vm4489 = vcmp.ge.f32.partialorder %v4118, 0.0
      %vm4490 = vcmp.ge.f32.partialorder %v4169, 0.0
      %vm4491 = vcmp.ge.f32.partialorder %v4171, 0.0
      %vm4492 = vcmp.ge.f32.partialorder %v4222, 0.0
      %vm4493 = vcmp.ge.f32.partialorder %v4224, 0.0
      %vm4494 = vcmp.ge.f32.partialorder %v4275, 0.0
      %vm4495 = vcmp.ge.f32.partialorder %v4277, 0.0
      %vm4496 = vcmp.ge.f32.partialorder %v4328, 0.0
      %vm4497 = vcmp.ge.f32.partialorder %v4330, 0.0
      %vm4498 = vcmp.ge.f32.partialorder %v4381, 0.0
      %vm4499 = vcmp.ge.f32.partialorder %v4383, 0.0
      %vm4500 = vcmp.ge.f32.partialorder %v4434, 0.0
      %vm4501 = vcmp.ge.f32.partialorder %v4436, 0.0
      %v4502 = vmul.f32 %v4049, 0.01
      %v4503 = vmul.f32 %v4051, 0.01
      %v4504 = vmul.f32 %v4102, 0.01
      %v4505 = vmul.f32 %v4104, 0.01
      %v4506 = vmul.f32 %v4155, 0.01
      %v4507 = vmul.f32 %v4157, 0.01
      %v4508 = vmul.f32 %v4208, 0.01
      %v4509 = vmul.f32 %v4210, 0.01
      %v4510 = vmul.f32 %v4261, 0.01
      %v4511 = vmul.f32 %v4263, 0.01
      %v4512 = vmul.f32 %v4314, 0.01
      %v4513 = vmul.f32 %v4316, 0.01
      %v4514 = vmul.f32 %v4367, 0.01
      %v4515 = vmul.f32 %v4369, 0.01
      %v4516 = vmul.f32 %v4420, 0.01
      %v4517 = vmul.f32 %v4422, 0.01
      %v4518 = vmul.f32 %v4053, 0.01
      %v4519 = vmul.f32 %v4055, 0.01
      %v4520 = vmul.f32 %v4106, 0.01
      %v4521 = vmul.f32 %v4108, 0.01
      %v4522 = vmul.f32 %v4159, 0.01
      %v4523 = vmul.f32 %v4161, 0.01
      %v4524 = vmul.f32 %v4212, 0.01
      %v4525 = vmul.f32 %v4214, 0.01
      %v4526 = vmul.f32 %v4265, 0.01
      %v4527 = vmul.f32 %v4267, 0.01
      %v4528 = vmul.f32 %v4318, 0.01
      %v4529 = vmul.f32 %v4320, 0.01
      %v4530 = vmul.f32 %v4371, 0.01
      %v4531 = vmul.f32 %v4373, 0.01
      %v4532 = vmul.f32 %v4424, 0.01
      %v4533 = vmul.f32 %v4426, 0.01
      %v4534 = vmul.f32 %v4059, 0.01
      %v4535 = vmul.f32 %v4061, 0.01
      %v4536 = vmul.f32 %v4112, 0.01
      %v4537 = vmul.f32 %v4114, 0.01
      %v4538 = vmul.f32 %v4165, 0.01
      %v4539 = vmul.f32 %v4167, 0.01
      %v4540 = vmul.f32 %v4218, 0.01
      %v4541 = vmul.f32 %v4220, 0.01
      %v4542 = vmul.f32 %v4271, 0.01
      %v4543 = vmul.f32 %v4273, 0.01
      %v4544 = vmul.f32 %v4324, 0.01
      %v4545 = vmul.f32 %v4326, 0.01
      %v4546 = vmul.f32 %v4377, 0.01
      %v4547 = vmul.f32 %v4379, 0.01
      %v4548 = vmul.f32 %v4430, 0.01
      %v4549 = vmul.f32 %v4432, 0.01
      %v4550 = vmul.f32 %v4063, 0.01
      %v4551 = vmul.f32 %v4065, 0.01
      %v4552 = vmul.f32 %v4116, 0.01
      %v4553 = vmul.f32 %v4118, 0.01
      %v4554 = vmul.f32 %v4169, 0.01
      %v4555 = vmul.f32 %v4171, 0.01
      %v4556 = vmul.f32 %v4222, 0.01
      %v4557 = vmul.f32 %v4224, 0.01
      %v4558 = vmul.f32 %v4275, 0.01
      %v4559 = vmul.f32 %v4277, 0.01
      %v4560 = vmul.f32 %v4328, 0.01
      %v4561 = vmul.f32 %v4330, 0.01
      %v4562 = vmul.f32 %v4381, 0.01
      %v4563 = vmul.f32 %v4383, 0.01
      %v4564 = vmul.f32 %v4434, 0.01
      %v4565 = vmul.f32 %v4436, 0.01
      %v4566 = vsel %vm4438, %v4049, %v4502
      %v4567 = vsel %vm4439, %v4051, %v4503
      %v4568 = vsel %vm4440, %v4102, %v4504
      %v4569 = vsel %vm4441, %v4104, %v4505
      %v4570 = vsel %vm4442, %v4155, %v4506
      %v4571 = vsel %vm4443, %v4157, %v4507
      %v4572 = vsel %vm4444, %v4208, %v4508
      %v4573 = vsel %vm4445, %v4210, %v4509
      %v4574 = vsel %vm4446, %v4261, %v4510
      %v4575 = vsel %vm4447, %v4263, %v4511
      %v4576 = vsel %vm4448, %v4314, %v4512
      %v4577 = vsel %vm4449, %v4316, %v4513
      %v4578 = vsel %vm4450, %v4367, %v4514
      %v4579 = vsel %vm4451, %v4369, %v4515
      %v4580 = vsel %vm4452, %v4420, %v4516
      %v4581 = vsel %vm4453, %v4422, %v4517
      %v4582 = vsel %vm4454, %v4053, %v4518
      %v4583 = vsel %vm4455, %v4055, %v4519
      %v4584 = vsel %vm4456, %v4106, %v4520
      %v4585 = vsel %vm4457, %v4108, %v4521
      %v4586 = vsel %vm4458, %v4159, %v4522
      %v4587 = vsel %vm4459, %v4161, %v4523
      %v4588 = vsel %vm4460, %v4212, %v4524
      %v4589 = vsel %vm4461, %v4214, %v4525
      %v4590 = vsel %vm4462, %v4265, %v4526
      %v4591 = vsel %vm4463, %v4267, %v4527
      %v4592 = vsel %vm4464, %v4318, %v4528
      %v4593 = vsel %vm4465, %v4320, %v4529
      %v4594 = vsel %vm4466, %v4371, %v4530
      %v4595 = vsel %vm4467, %v4373, %v4531
      %v4596 = vsel %vm4468, %v4424, %v4532
      %v4597 = vsel %vm4469, %v4426, %v4533
      %v4598 = vsel %vm4470, %v4059, %v4534
      %v4599 = vsel %vm4471, %v4061, %v4535
      %v4600 = vsel %vm4472, %v4112, %v4536
      %v4601 = vsel %vm4473, %v4114, %v4537
      %v4602 = vsel %vm4474, %v4165, %v4538
      %v4603 = vsel %vm4475, %v4167, %v4539
      %v4604 = vsel %vm4476, %v4218, %v4540
      %v4605 = vsel %vm4477, %v4220, %v4541
      %v4606 = vsel %vm4478, %v4271, %v4542
      %v4607 = vsel %vm4479, %v4273, %v4543
      %v4608 = vsel %vm4480, %v4324, %v4544
      %v4609 = vsel %vm4481, %v4326, %v4545
      %v4610 = vsel %vm4482, %v4377, %v4546
      %v4611 = vsel %vm4483, %v4379, %v4547
      %v4612 = vsel %vm4484, %v4430, %v4548
      %v4613 = vsel %vm4485, %v4432, %v4549
      %v4614 = vsel %vm4486, %v4063, %v4550
      %v4615 = vsel %vm4487, %v4065, %v4551
      %v4616 = vsel %vm4488, %v4116, %v4552
      %v4617 = vsel %vm4489, %v4118, %v4553
      %v4618 = vsel %vm4490, %v4169, %v4554
      %v4619 = vsel %vm4491, %v4171, %v4555
      %v4620 = vsel %vm4492, %v4222, %v4556
      %v4621 = vsel %vm4493, %v4224, %v4557
      %v4622 = vsel %vm4494, %v4275, %v4558
      %v4623 = vsel %vm4495, %v4277, %v4559
      %v4624 = vsel %vm4496, %v4328, %v4560
      %v4625 = vsel %vm4497, %v4330, %v4561
      %v4626 = vsel %vm4498, %v4381, %v4562
      %v4627 = vsel %vm4499, %v4383, %v4563
      %v4628 = vsel %vm4500, %v4434, %v4564
      %v4629 = vsel %vm4501, %v4436, %v4565
      %v4630 = vld [vmem:[%s4] sm:$0xf]
      %v4631 = vld [vmem:[%s4 + $0x4] sm:$0xf]
      %v4632 = vpack.c.bf16 %v4582, %v4566
      %v4633 = vpack.c.bf16 %v4583, %v4567
      %v4634 = vpack.c.bf16 %v4584, %v4568
      %v4635 = vpack.c.bf16 %v4585, %v4569
      %v4636 = vpack.c.bf16 %v4586, %v4570
      %v4637 = vpack.c.bf16 %v4587, %v4571
      %v4638 = vpack.c.bf16 %v4588, %v4572
      %v4639 = vpack.c.bf16 %v4589, %v4573
      %v4640 = vpack.c.bf16 %v4590, %v4574
      %v4641 = vpack.c.bf16 %v4591, %v4575
      %v4642 = vpack.c.bf16 %v4592, %v4576
      %v4643 = vpack.c.bf16 %v4593, %v4577
      %v4644 = vpack.c.bf16 %v4594, %v4578
      %v4645 = vpack.c.bf16 %v4595, %v4579
      %v4646 = vpack.c.bf16 %v4596, %v4580
      %v4647 = vpack.c.bf16 %v4597, %v4581
      %v4648 = vpack.c.bf16 %v4614, %v4598
      %v4649 = vpack.c.bf16 %v4615, %v4599
      %v4650 = vpack.c.bf16 %v4616, %v4600
      %v4651 = vpack.c.bf16 %v4617, %v4601
      %v4652 = vpack.c.bf16 %v4618, %v4602
      %v4653 = vpack.c.bf16 %v4619, %v4603
      %v4654 = vpack.c.bf16 %v4620, %v4604
      %v4655 = vpack.c.bf16 %v4621, %v4605
      %v4656 = vpack.c.bf16 %v4622, %v4606
      %v4657 = vpack.c.bf16 %v4623, %v4607
      %v4658 = vpack.c.bf16 %v4624, %v4608
      %v4659 = vpack.c.bf16 %v4625, %v4609
      %v4660 = vpack.c.bf16 %v4626, %v4610
      %v4661 = vpack.c.bf16 %v4627, %v4611
      %v4662 = vpack.c.bf16 %v4628, %v4612
      %v4663 = vpack.c.bf16 %v4629, %v4613
      %v4666 = vunpack.c.l.b16 %v4630
      %v4667 = vunpack.c.l.b16 %v4631
      %v4668 = vpack.c.b16 %v4667, %v4666
      %vm4669 = vcmask 261120
      %v4671 = vsel %vm4669, %v4668, 0
      %4673 = vmatprep.subr.bf16.mxu0 %v4633
      %4674 = vmatpush1.bf16.msra.mxu0 %v4632
      %4675 = vmatprep.subr.bf16.mxu0 %v4649
      %4676 = vmatpush1.bf16.msra.mxu0 %v4648
      %4677 = vmatprep.subr.bf16.mxu0 0
      %4678 = vmatpush1.bf16.msra.mxu0 0
      %4679 = vmatprep.subr.bf16.mxu0 0
      %4680 = vmatpush1.bf16.msra.mxu0 0
      %4681 = vmatprep.subr.bf16.mxu0 0
      %4682 = vmatpush1.bf16.msra.mxu0 0
      %4683 = vmatprep.subr.bf16.mxu0 0
      %4684 = vmatpush1.bf16.msra.mxu0 0
      %4685 = vmatprep.subr.bf16.mxu0 0
      %4686 = vmatpush1.bf16.msra.mxu0 0
      %4687 = vmatprep.subr.bf16.mxu0 0
      %4688 = vmatpush1.bf16.msra.mxu0 0
      %4689 = vmatprep.subr.bf16.mxu0 0
      %4690 = vmatpush1.bf16.msra.mxu0 0
      %4691 = vmatprep.subr.bf16.mxu0 0
      %4692 = vmatpush1.bf16.msra.mxu0 0
      %4693 = vmatprep.subr.bf16.mxu0 0
      %4694 = vmatpush1.bf16.msra.mxu0 0
      %4695 = vmatprep.subr.bf16.mxu0 0
      %4696 = vmatpush1.bf16.msra.mxu0 0
      %4697 = vmatprep.subr.bf16.mxu0 0
      %4698 = vmatpush1.bf16.msra.mxu0 0
      %4699 = vmatprep.subr.bf16.mxu0 0
      %4700 = vmatpush1.bf16.msra.mxu0 0
      %4701 = vmatprep.subr.bf16.mxu0 0
      %4702 = vmatpush1.bf16.msra.mxu0 0
      %4703 = vmatprep.subr.bf16.mxu0 0
      %4704 = vmatpush1.bf16.msra.mxu0 0
      %4705 = vmatprep.mubr.bf16.mxu0 0
      %4706 = vmatmul.mubr.bf16.gmra.mrb[0].mxu0 %v4671
      %v4707 = vpop.f32.mrb[0].mxu0
      %v4708 = vadd.f32 0.0, %v4707
      %v4709 = vpop.f32.mrb[0].mxu0
      %v4710 = vadd.f32 0.0, %v4709
      %v4711 = vpop.f32.mrb[0].mxu0
      %v4712 = vadd.f32 0.0, %v4711
      %v4713 = vpop.f32.mrb[0].mxu0
      %v4714 = vadd.f32 0.0, %v4713
      %4715 = vdwg.mxu0
      %4716 = vmatprep.subr.bf16.mxu0 %v4635
      %4717 = vmatpush1.bf16.msra.mxu0 %v4634
      %4718 = vmatprep.subr.bf16.mxu0 %v4651
      %4719 = vmatpush1.bf16.msra.mxu0 %v4650
      %4720 = vmatprep.subr.bf16.mxu0 0
      %4721 = vmatpush1.bf16.msra.mxu0 0
      %4722 = vmatprep.subr.bf16.mxu0 0
      %4723 = vmatpush1.bf16.msra.mxu0 0
      %4724 = vmatprep.subr.bf16.mxu0 0
      %4725 = vmatpush1.bf16.msra.mxu0 0
      %4726 = vmatprep.subr.bf16.mxu0 0
      %4727 = vmatpush1.bf16.msra.mxu0 0
      %4728 = vmatprep.subr.bf16.mxu0 0
      %4729 = vmatpush1.bf16.msra.mxu0 0
      %4730 = vmatprep.subr.bf16.mxu0 0
      %4731 = vmatpush1.bf16.msra.mxu0 0
      %4732 = vmatprep.subr.bf16.mxu0 0
      %4733 = vmatpush1.bf16.msra.mxu0 0
      %4734 = vmatprep.subr.bf16.mxu0 0
      %4735 = vmatpush1.bf16.msra.mxu0 0
      %4736 = vmatprep.subr.bf16.mxu0 0
      %4737 = vmatpush1.bf16.msra.mxu0 0
      %4738 = vmatprep.subr.bf16.mxu0 0
      %4739 = vmatpush1.bf16.msra.mxu0 0
      %4740 = vmatprep.subr.bf16.mxu0 0
      %4741 = vmatpush1.bf16.msra.mxu0 0
      %4742 = vmatprep.subr.bf16.mxu0 0
      %4743 = vmatpush1.bf16.msra.mxu0 0
      %4744 = vmatprep.subr.bf16.mxu0 0
      %4745 = vmatpush1.bf16.msra.mxu0 0
      %4746 = vmatprep.subr.bf16.mxu0 0
      %4747 = vmatpush1.bf16.msra.mxu0 0
      %4748 = vmatprep.mubr.bf16.mxu0 0
      %4749 = vmatmul.mubr.bf16.gmra.mrb[0].mxu0 %v4671
      %v4750 = vpop.f32.mrb[0].mxu0
      %v4751 = vadd.f32 0.0, %v4750
      %v4752 = vpop.f32.mrb[0].mxu0
      %v4753 = vadd.f32 0.0, %v4752
      %v4754 = vpop.f32.mrb[0].mxu0
      %v4755 = vadd.f32 0.0, %v4754
      %v4756 = vpop.f32.mrb[0].mxu0
      %v4757 = vadd.f32 0.0, %v4756
      %4758 = vdwg.mxu0
      %4759 = vmatprep.subr.bf16.mxu0 %v4637
      %4760 = vmatpush1.bf16.msra.mxu0 %v4636
      %4761 = vmatprep.subr.bf16.mxu0 %v4653
      %4762 = vmatpush1.bf16.msra.mxu0 %v4652
      %4763 = vmatprep.subr.bf16.mxu0 0
      %4764 = vmatpush1.bf16.msra.mxu0 0
      %4765 = vmatprep.subr.bf16.mxu0 0
      %4766 = vmatpush1.bf16.msra.mxu0 0
      %4767 = vmatprep.subr.bf16.mxu0 0
      %4768 = vmatpush1.bf16.msra.mxu0 0
      %4769 = vmatprep.subr.bf16.mxu0 0
      %4770 = vmatpush1.bf16.msra.mxu0 0
      %4771 = vmatprep.subr.bf16.mxu0 0
      %4772 = vmatpush1.bf16.msra.mxu0 0
      %4773 = vmatprep.subr.bf16.mxu0 0
      %4774 = vmatpush1.bf16.msra.mxu0 0
      %4775 = vmatprep.subr.bf16.mxu0 0
      %4776 = vmatpush1.bf16.msra.mxu0 0
      %4777 = vmatprep.subr.bf16.mxu0 0
      %4778 = vmatpush1.bf16.msra.mxu0 0
      %4779 = vmatprep.subr.bf16.mxu0 0
      %4780 = vmatpush1.bf16.msra.mxu0 0
      %4781 = vmatprep.subr.bf16.mxu0 0
      %4782 = vmatpush1.bf16.msra.mxu0 0
      %4783 = vmatprep.subr.bf16.mxu0 0
      %4784 = vmatpush1.bf16.msra.mxu0 0
      %4785 = vmatprep.subr.bf16.mxu0 0
      %4786 = vmatpush1.bf16.msra.mxu0 0
      %4787 = vmatprep.subr.bf16.mxu0 0
      %4788 = vmatpush1.bf16.msra.mxu0 0
      %4789 = vmatprep.subr.bf16.mxu0 0
      %4790 = vmatpush1.bf16.msra.mxu0 0
      %4791 = vmatprep.mubr.bf16.mxu0 0
      %4792 = vmatmul.mubr.bf16.gmra.mrb[0].mxu0 %v4671
      %v4793 = vpop.f32.mrb[0].mxu0
      %v4794 = vadd.f32 0.0, %v4793
      %v4795 = vpop.f32.mrb[0].mxu0
      %v4796 = vadd.f32 0.0, %v4795
      %v4797 = vpop.f32.mrb[0].mxu0
      %v4798 = vadd.f32 0.0, %v4797
      %v4799 = vpop.f32.mrb[0].mxu0
      %v4800 = vadd.f32 0.0, %v4799
      %4801 = vdwg.mxu0
      %4802 = vmatprep.subr.bf16.mxu0 %v4639
      %4803 = vmatpush1.bf16.msra.mxu0 %v4638
      %4804 = vmatprep.subr.bf16.mxu0 %v4655
      %4805 = vmatpush1.bf16.msra.mxu0 %v4654
      %4806 = vmatprep.subr.bf16.mxu0 0
      %4807 = vmatpush1.bf16.msra.mxu0 0
      %4808 = vmatprep.subr.bf16.mxu0 0
      %4809 = vmatpush1.bf16.msra.mxu0 0
      %4810 = vmatprep.subr.bf16.mxu0 0
      %4811 = vmatpush1.bf16.msra.mxu0 0
      %4812 = vmatprep.subr.bf16.mxu0 0
      %4813 = vmatpush1.bf16.msra.mxu0 0
      %4814 = vmatprep.subr.bf16.mxu0 0
      %4815 = vmatpush1.bf16.msra.mxu0 0
      %4816 = vmatprep.subr.bf16.mxu0 0
      %4817 = vmatpush1.bf16.msra.mxu0 0
      %4818 = vmatprep.subr.bf16.mxu0 0
      %4819 = vmatpush1.bf16.msra.mxu0 0
      %4820 = vmatprep.subr.bf16.mxu0 0
      %4821 = vmatpush1.bf16.msra.mxu0 0
      %4822 = vmatprep.subr.bf16.mxu0 0
      %4823 = vmatpush1.bf16.msra.mxu0 0
      %4824 = vmatprep.subr.bf16.mxu0 0
      %4825 = vmatpush1.bf16.msra.mxu0 0
      %4826 = vmatprep.subr.bf16.mxu0 0
      %4827 = vmatpush1.bf16.msra.mxu0 0
      %4828 = vmatprep.subr.bf16.mxu0 0
      %4829 = vmatpush1.bf16.msra.mxu0 0
      %4830 = vmatprep.subr.bf16.mxu0 0
      %4831 = vmatpush1.bf16.msra.mxu0 0
      %4832 = vmatprep.subr.bf16.mxu0 0
      %4833 = vmatpush1.bf16.msra.mxu0 0
      %4834 = vmatprep.mubr.bf16.mxu0 0
      %4835 = vmatmul.mubr.bf16.gmra.mrb[0].mxu0 %v4671
      %v4836 = vpop.f32.mrb[0].mxu0
      %v4837 = vadd.f32 0.0, %v4836
      %v4838 = vpop.f32.mrb[0].mxu0
      %v4839 = vadd.f32 0.0, %v4838
      %v4840 = vpop.f32.mrb[0].mxu0
      %v4841 = vadd.f32 0.0, %v4840
      %v4842 = vpop.f32.mrb[0].mxu0
      %v4843 = vadd.f32 0.0, %v4842
      %4844 = vdwg.mxu0
      %4845 = vmatprep.subr.bf16.mxu0 %v4641
      %4846 = vmatpush1.bf16.msra.mxu0 %v4640
      %4847 = vmatprep.subr.bf16.mxu0 %v4657
      %4848 = vmatpush1.bf16.msra.mxu0 %v4656
      %4849 = vmatprep.subr.bf16.mxu0 0
      %4850 = vmatpush1.bf16.msra.mxu0 0
      %4851 = vmatprep.subr.bf16.mxu0 0
      %4852 = vmatpush1.bf16.msra.mxu0 0
      %4853 = vmatprep.subr.bf16.mxu0 0
      %4854 = vmatpush1.bf16.msra.mxu0 0
      %4855 = vmatprep.subr.bf16.mxu0 0
      %4856 = vmatpush1.bf16.msra.mxu0 0
      %4857 = vmatprep.subr.bf16.mxu0 0
      %4858 = vmatpush1.bf16.msra.mxu0 0
      %4859 = vmatprep.subr.bf16.mxu0 0
      %4860 = vmatpush1.bf16.msra.mxu0 0
      %4861 = vmatprep.subr.bf16.mxu0 0
      %4862 = vmatpush1.bf16.msra.mxu0 0
      %4863 = vmatprep.subr.bf16.mxu0 0
      %4864 = vmatpush1.bf16.msra.mxu0 0
      %4865 = vmatprep.subr.bf16.mxu0 0
      %4866 = vmatpush1.bf16.msra.mxu0 0
      %4867 = vmatprep.subr.bf16.mxu0 0
      %4868 = vmatpush1.bf16.msra.mxu0 0
      %4869 = vmatprep.subr.bf16.mxu0 0
      %4870 = vmatpush1.bf16.msra.mxu0 0
      %4871 = vmatprep.subr.bf16.mxu0 0
      %4872 = vmatpush1.bf16.msra.mxu0 0
      %4873 = vmatprep.subr.bf16.mxu0 0
      %4874 = vmatpush1.bf16.msra.mxu0 0
      %4875 = vmatprep.subr.bf16.mxu0 0
      %4876 = vmatpush1.bf16.msra.mxu0 0
      %4877 = vmatprep.mubr.bf16.mxu0 0
      %4878 = vmatmul.mubr.bf16.gmra.mrb[0].mxu0 %v4671
      %v4879 = vpop.f32.mrb[0].mxu0
      %v4880 = vadd.f32 0.0, %v4879
      %v4881 = vpop.f32.mrb[0].mxu0
      %v4882 = vadd.f32 0.0, %v4881
      %v4883 = vpop.f32.mrb[0].mxu0
      %v4884 = vadd.f32 0.0, %v4883
      %v4885 = vpop.f32.mrb[0].mxu0
      %v4886 = vadd.f32 0.0, %v4885
      %4887 = vdwg.mxu0
      %4888 = vmatprep.subr.bf16.mxu0 %v4643
      %4889 = vmatpush1.bf16.msra.mxu0 %v4642
      %4890 = vmatprep.subr.bf16.mxu0 %v4659
      %4891 = vmatpush1.bf16.msra.mxu0 %v4658
      %4892 = vmatprep.subr.bf16.mxu0 0
      %4893 = vmatpush1.bf16.msra.mxu0 0
      %4894 = vmatprep.subr.bf16.mxu0 0
      %4895 = vmatpush1.bf16.msra.mxu0 0
      %4896 = vmatprep.subr.bf16.mxu0 0
      %4897 = vmatpush1.bf16.msra.mxu0 0
      %4898 = vmatprep.subr.bf16.mxu0 0
      %4899 = vmatpush1.bf16.msra.mxu0 0
      %4900 = vmatprep.subr.bf16.mxu0 0
      %4901 = vmatpush1.bf16.msra.mxu0 0
      %4902 = vmatprep.subr.bf16.mxu0 0
      %4903 = vmatpush1.bf16.msra.mxu0 0
      %4904 = vmatprep.subr.bf16.mxu0 0
      %4905 = vmatpush1.bf16.msra.mxu0 0
      %4906 = vmatprep.subr.bf16.mxu0 0
      %4907 = vmatpush1.bf16.msra.mxu0 0
      %4908 = vmatprep.subr.bf16.mxu0 0
      %4909 = vmatpush1.bf16.msra.mxu0 0
      %4910 = vmatprep.subr.bf16.mxu0 0
      %4911 = vmatpush1.bf16.msra.mxu0 0
      %4912 = vmatprep.subr.bf16.mxu0 0
      %4913 = vmatpush1.bf16.msra.mxu0 0
      %4914 = vmatprep.subr.bf16.mxu0 0
      %4915 = vmatpush1.bf16.msra.mxu0 0
      %4916 = vmatprep.subr.bf16.mxu0 0
      %4917 = vmatpush1.bf16.msra.mxu0 0
      %4918 = vmatprep.subr.bf16.mxu0 0
      %4919 = vmatpush1.bf16.msra.mxu0 0
      %4920 = vmatprep.mubr.bf16.mxu0 0
      %4921 = vmatmul.mubr.bf16.gmra.mrb[0].mxu0 %v4671
      %v4922 = vpop.f32.mrb[0].mxu0
      %v4923 = vadd.f32 0.0, %v4922
      %v4924 = vpop.f32.mrb[0].mxu0
      %v4925 = vadd.f32 0.0, %v4924
      %v4926 = vpop.f32.mrb[0].mxu0
      %v4927 = vadd.f32 0.0, %v4926
      %v4928 = vpop.f32.mrb[0].mxu0
      %v4929 = vadd.f32 0.0, %v4928
      %4930 = vdwg.mxu0
      %4931 = vmatprep.subr.bf16.mxu0 %v4645
      %4932 = vmatpush1.bf16.msra.mxu0 %v4644
      %4933 = vmatprep.subr.bf16.mxu0 %v4661
      %4934 = vmatpush1.bf16.msra.mxu0 %v4660
      %4935 = vmatprep.subr.bf16.mxu0 0
      %4936 = vmatpush1.bf16.msra.mxu0 0
      %4937 = vmatprep.subr.bf16.mxu0 0
      %4938 = vmatpush1.bf16.msra.mxu0 0
      %4939 = vmatprep.subr.bf16.mxu0 0
      %4940 = vmatpush1.bf16.msra.mxu0 0
      %4941 = vmatprep.subr.bf16.mxu0 0
      %4942 = vmatpush1.bf16.msra.mxu0 0
      %4943 = vmatprep.subr.bf16.mxu0 0
      %4944 = vmatpush1.bf16.msra.mxu0 0
      %4945 = vmatprep.subr.bf16.mxu0 0
      %4946 = vmatpush1.bf16.msra.mxu0 0
      %4947 = vmatprep.subr.bf16.mxu0 0
      %4948 = vmatpush1.bf16.msra.mxu0 0
      %4949 = vmatprep.subr.bf16.mxu0 0
      %4950 = vmatpush1.bf16.msra.mxu0 0
      %4951 = vmatprep.subr.bf16.mxu0 0
      %4952 = vmatpush1.bf16.msra.mxu0 0
      %4953 = vmatprep.subr.bf16.mxu0 0
      %4954 = vmatpush1.bf16.msra.mxu0 0
      %4955 = vmatprep.subr.bf16.mxu0 0
      %4956 = vmatpush1.bf16.msra.mxu0 0
      %4957 = vmatprep.subr.bf16.mxu0 0
      %4958 = vmatpush1.bf16.msra.mxu0 0
      %4959 = vmatprep.subr.bf16.mxu0 0
      %4960 = vmatpush1.bf16.msra.mxu0 0
      %4961 = vmatprep.subr.bf16.mxu0 0
      %4962 = vmatpush1.bf16.msra.mxu0 0
      %4963 = vmatprep.mubr.bf16.mxu0 0
      %4964 = vmatmul.mubr.bf16.gmra.mrb[0].mxu0 %v4671
      %v4965 = vpop.f32.mrb[0].mxu0
      %v4966 = vadd.f32 0.0, %v4965
      %v4967 = vpop.f32.mrb[0].mxu0
      %v4968 = vadd.f32 0.0, %v4967
      %v4969 = vpop.f32.mrb[0].mxu0
      %v4970 = vadd.f32 0.0, %v4969
      %v4971 = vpop.f32.mrb[0].mxu0
      %v4972 = vadd.f32 0.0, %v4971
      %4973 = vdwg.mxu0
      %4974 = vmatprep.subr.bf16.mxu0 %v4647
      %4975 = vmatpush1.bf16.msra.mxu0 %v4646
      %4976 = vmatprep.subr.bf16.mxu0 %v4663
      %4977 = vmatpush1.bf16.msra.mxu0 %v4662
      %4978 = vmatprep.subr.bf16.mxu0 0
      %4979 = vmatpush1.bf16.msra.mxu0 0
      %4980 = vmatprep.subr.bf16.mxu0 0
      %4981 = vmatpush1.bf16.msra.mxu0 0
      %4982 = vmatprep.subr.bf16.mxu0 0
      %4983 = vmatpush1.bf16.msra.mxu0 0
      %4984 = vmatprep.subr.bf16.mxu0 0
      %4985 = vmatpush1.bf16.msra.mxu0 0
      %4986 = vmatprep.subr.bf16.mxu0 0
      %4987 = vmatpush1.bf16.msra.mxu0 0
      %4988 = vmatprep.subr.bf16.mxu0 0
      %4989 = vmatpush1.bf16.msra.mxu0 0
      %4990 = vmatprep.subr.bf16.mxu0 0
      %4991 = vmatpush1.bf16.msra.mxu0 0
      %4992 = vmatprep.subr.bf16.mxu0 0
      %4993 = vmatpush1.bf16.msra.mxu0 0
      %4994 = vmatprep.subr.bf16.mxu0 0
      %4995 = vmatpush1.bf16.msra.mxu0 0
      %4996 = vmatprep.subr.bf16.mxu0 0
      %4997 = vmatpush1.bf16.msra.mxu0 0
      %4998 = vmatprep.subr.bf16.mxu0 0
      %4999 = vmatpush1.bf16.msra.mxu0 0
      %5000 = vmatprep.subr.bf16.mxu0 0
      %5001 = vmatpush1.bf16.msra.mxu0 0
      %5002 = vmatprep.subr.bf16.mxu0 0
      %5003 = vmatpush1.bf16.msra.mxu0 0
      %5004 = vmatprep.subr.bf16.mxu0 0
      %5005 = vmatpush1.bf16.msra.mxu0 0
      %5006 = vmatprep.mubr.bf16.mxu0 0
      %5007 = vmatmul.mubr.bf16.gmra.mrb[0].mxu0 %v4671
      %v5008 = vpop.f32.mrb[0].mxu0
      %v5009 = vadd.f32 0.0, %v5008
      %v5010 = vpop.f32.mrb[0].mxu0
      %v5011 = vadd.f32 0.0, %v5010
      %v5012 = vpop.f32.mrb[0].mxu0
      %v5013 = vadd.f32 0.0, %v5012
      %v5014 = vpop.f32.mrb[0].mxu0
      %v5015 = vadd.f32 0.0, %v5014
      %5016 = vdwg.mxu0
      %5017 = vst.msk [vmem:[#allocation2] sm:$0xff] %vm3200, 0.0
      %5018 = vst.msk [vmem:[#allocation2 + $0x8] sm:$0xff] %vm3200, 0.0
      %vm5019 = vcmask 517120
      %5020 = vst.msk [vmem:[#allocation2 + $0x10] sm:$0x3] %vm5019, 0.0
      %s5021 = scalar_lea.vmem [#allocation2], 408
      %5022 = vst.msk [vmem:[%s5021] sm:$0xff] %vm3200, 0.0
      %5023 = vst.msk [vmem:[%s5021 + $0x8] sm:$0xff] %vm3200, 0.0
      %5024 = vst.msk [vmem:[%s5021 + $0x10] sm:$0x3] %vm5019, 0.0
      %vm5025 = vcmask 516096
      %5026 = vst.msk [vmem:[#allocation2] sm:$0x1] %vm5025, 0.0
      %5027 = vst.msk [vmem:[#allocation2 + $0x18] sm:$0x1] %vm5025, 0.0
      %5028 = vst.msk [vmem:[#allocation2 + $0x30] sm:$0x1] %vm5025, 0.0
      %5029 = vst.msk [vmem:[#allocation2 + $0x48] sm:$0x1] %vm5025, 0.0
      %5030 = vst.msk [vmem:[#allocation2 + $0x60] sm:$0x1] %vm5025, 0.0
      %5031 = vst.msk [vmem:[#allocation2 + $0x78] sm:$0x1] %vm5025, 0.0
      %5032 = vst.msk [vmem:[#allocation2 + $0x90] sm:$0x1] %vm5025, 0.0
      %5033 = vst.msk [vmem:[#allocation2 + $0xa8] sm:$0x1] %vm5025, 0.0
      %5034 = vst.msk [vmem:[#allocation2 + $0xc0] sm:$0x1] %vm5025, 0.0
      %5035 = vst.msk [vmem:[#allocation2 + $0xd8] sm:$0x1] %vm5025, 0.0
      %5036 = vst.msk [vmem:[#allocation2 + $0xf0] sm:$0x1] %vm5025, 0.0
      %5037 = vst.msk [vmem:[#allocation2 + $0x108] sm:$0x1] %vm5025, 0.0
      %5038 = vst.msk [vmem:[#allocation2 + $0x120] sm:$0x1] %vm5025, 0.0
      %5039 = vst.msk [vmem:[#allocation2 + $0x138] sm:$0x1] %vm5025, 0.0
      %5040 = vst.msk [vmem:[#allocation2 + $0x150] sm:$0x1] %vm5025, 0.0
      %5041 = vst.msk [vmem:[#allocation2 + $0x168] sm:$0x1] %vm5025, 0.0
      %5042 = vst.msk [vmem:[#allocation2 + $0x180] sm:$0x1] %vm5025, 0.0
      %5043 = vst.msk [vmem:[#allocation2 + $0x198] sm:$0x1] %vm5025, 0.0
      %5044 = vst.msk [vmem:[#allocation2 + $0x11] sm:$0x1] %vm5025, 0.0
      %5045 = vst.msk [vmem:[#allocation2 + $0x29] sm:$0x1] %vm5025, 0.0
      %5046 = vst.msk [vmem:[#allocation2 + $0x41] sm:$0x1] %vm5025, 0.0
      %5047 = vst.msk [vmem:[#allocation2 + $0x59] sm:$0x1] %vm5025, 0.0
      %5048 = vst.msk [vmem:[#allocation2 + $0x71] sm:$0x1] %vm5025, 0.0
      %5049 = vst.msk [vmem:[#allocation2 + $0x89] sm:$0x1] %vm5025, 0.0
      %5050 = vst.msk [vmem:[#allocation2 + $0xa1] sm:$0x1] %vm5025, 0.0
      %5051 = vst.msk [vmem:[#allocation2 + $0xb9] sm:$0x1] %vm5025, 0.0
      %5052 = vst.msk [vmem:[#allocation2 + $0xd1] sm:$0x1] %vm5025, 0.0
      %5053 = vst.msk [vmem:[#allocation2 + $0xe9] sm:$0x1] %vm5025, 0.0
      %5054 = vst.msk [vmem:[#allocation2 + $0x101] sm:$0x1] %vm5025, 0.0
      %5055 = vst.msk [vmem:[#allocation2 + $0x119] sm:$0x1] %vm5025, 0.0
      %5056 = vst.msk [vmem:[#allocation2 + $0x131] sm:$0x1] %vm5025, 0.0
      %5057 = vst.msk [vmem:[#allocation2 + $0x149] sm:$0x1] %vm5025, 0.0
      %5058 = vst.msk [vmem:[#allocation2 + $0x161] sm:$0x1] %vm5025, 0.0
      %5059 = vst.msk [vmem:[#allocation2 + $0x179] sm:$0x1] %vm5025, 0.0
      %5060 = vst.msk [vmem:[#allocation2 + $0x191] sm:$0x1] %vm5025, 0.0
      %5061 = vst.msk [vmem:[#allocation2 + $0x1a9] sm:$0x1] %vm5025, 0.0
      %v5062 = vmul.f32 %v4708, 0.46443516
      %v5063 = vmul.f32 %v4712, 0.46443516
      %5066 = vrot.lane.b32.xlu0 %v5062, 64
      %v5067 = vpop.permute.xlu0 %5066
      %5068 = vrot.lane.b32.xlu0 %v5063, 64
      %v5069 = vpop.permute.xlu0 %5068
      %v5072 = vadd.f32 %v5062, %v5067
      %v5073 = vadd.f32 %v5063, %v5069
      %v5074 = vmul.f32 %v4710, 0.12133891
      %v5075 = vmul.f32 %v4714, 0.12133891
      %v5076 = vadd.f32 %v5072, %v5074
      %v5077 = vadd.f32 %v5073, %v5075
      %v5078 = vmul.f32 %v4710, -0.037656903
      %v5079 = vmul.f32 %v4714, -0.037656903
      %5082 = vrot.lane.b32.xlu0 %v5078, 64
      %v5083 = vpop.permute.xlu0 %5082
      %5084 = vrot.lane.b32.xlu0 %v5079, 64
      %v5085 = vpop.permute.xlu0 %5084
      %v5088 = vadd.f32 %v5076, %v5083
      %v5089 = vadd.f32 %v5077, %v5085
      %v5090 = vmul.f32 %v4751, -0.012552301
      %v5091 = vmul.f32 %v4755, -0.012552301
      %v5092 = vadd.f32 %v5088, %v5090
      %v5093 = vadd.f32 %v5089, %v5091
      %v5096 = vcombine.high %v5092, %v5092
      %v5098 = vunpack.c.l.s4 1966171168
      %v5099 = vunpack.c.0.s8 %v5098
      %v5100 = vlaneseq
      %v5101 = vshrl.u32 %v5100, 7
      %v5102 = vsub.s32 %v5099, %v5101
      %v5103 = vrot.slane %v5092, %v5102
      %v5105 = vunpack.c.l.s4 1966171168
      %v5106 = vunpack.c.0.s8 %v5105
      %v5107 = vlaneseq
      %v5108 = vshrl.u32 %v5107, 7
      %v5109 = vsub.s32 %v5106, %v5108
      %v5110 = vrot.slane %v5096, %v5109
      %v5111 = vcombine.high %v5103, %v5103
      %v5112 = vcombine.high %v5110, %v5110
      %v5114 = vunpack.c.l.s4 1966171168
      %v5115 = vunpack.c.0.s8 %v5114
      %v5116 = vlaneseq
      %v5117 = vshrl.u32 %v5116, 7
      %v5118 = vsub.s32 %v5115, %v5117
      %v5119 = vrot.slane %v5103, %v5118
      %v5121 = vunpack.c.l.s4 1966171168
      %v5122 = vunpack.c.0.s8 %v5121
      %v5123 = vlaneseq
      %v5124 = vshrl.u32 %v5123, 7
      %v5125 = vsub.s32 %v5122, %v5124
      %v5126 = vrot.slane %v5110, %v5125
      %v5128 = vunpack.c.l.s4 1966171168
      %v5129 = vunpack.c.0.s8 %v5128
      %v5130 = vlaneseq
      %v5131 = vshrl.u32 %v5130, 7
      %v5132 = vsub.s32 %v5129, %v5131
      %v5133 = vrot.slane %v5111, %v5132
      %v5135 = vunpack.c.l.s4 1966171168
      %v5136 = vunpack.c.0.s8 %v5135
      %v5137 = vlaneseq
      %v5138 = vshrl.u32 %v5137, 7
      %v5139 = vsub.s32 %v5136, %v5138
      %v5140 = vrot.slane %v5112, %v5139
      %v5141 = vcombine.high %v5119, %v5119
      %v5142 = vcombine.high %v5126, %v5126
      %v5143 = vcombine.high %v5133, %v5133
      %v5144 = vcombine.high %v5140, %v5140
      %v5145 = vcombine.high %v5093, %v5093
      %v5147 = vunpack.c.l.s4 1966171168
      %v5148 = vunpack.c.0.s8 %v5147
      %v5149 = vlaneseq
      %v5150 = vshrl.u32 %v5149, 7
      %v5151 = vsub.s32 %v5148, %v5150
      %v5152 = vrot.slane %v5093, %v5151
      %v5154 = vunpack.c.l.s4 1966171168
      %v5155 = vunpack.c.0.s8 %v5154
      %v5156 = vlaneseq
      %v5157 = vshrl.u32 %v5156, 7
      %v5158 = vsub.s32 %v5155, %v5157
      %v5159 = vrot.slane %v5145, %v5158
      %v5160 = vcombine.high %v5152, %v5152
      %v5161 = vcombine.high %v5159, %v5159
      %v5163 = vunpack.c.l.s4 1966171168
      %v5164 = vunpack.c.0.s8 %v5163
      %v5165 = vlaneseq
      %v5166 = vshrl.u32 %v5165, 7
      %v5167 = vsub.s32 %v5164, %v5166
      %v5168 = vrot.slane %v5152, %v5167
      %v5170 = vunpack.c.l.s4 1966171168
      %v5171 = vunpack.c.0.s8 %v5170
      %v5172 = vlaneseq
      %v5173 = vshrl.u32 %v5172, 7
      %v5174 = vsub.s32 %v5171, %v5173
      %v5175 = vrot.slane %v5159, %v5174
      %v5177 = vunpack.c.l.s4 1966171168
      %v5178 = vunpack.c.0.s8 %v5177
      %v5179 = vlaneseq
      %v5180 = vshrl.u32 %v5179, 7
      %v5181 = vsub.s32 %v5178, %v5180
      %v5182 = vrot.slane %v5160, %v5181
      %v5184 = vunpack.c.l.s4 1966171168
      %v5185 = vunpack.c.0.s8 %v5184
      %v5186 = vlaneseq
      %v5187 = vshrl.u32 %v5186, 7
      %v5188 = vsub.s32 %v5185, %v5187
      %v5189 = vrot.slane %v5161, %v5188
      %v5190 = vcombine.high %v5168, %v5168
      %v5191 = vcombine.high %v5175, %v5175
      %v5192 = vcombine.high %v5182, %v5182
      %v5193 = vcombine.high %v5189, %v5189
      %s5210 = scalar_lea.vmem [#allocation2], 24
      %5211 = vst.msk [vmem:[%s5210 + $0x1] sm:$0x1] %vm5025, %v5119
      %5212 = vst.msk [vmem:[%s5210 + $0x19] sm:$0x1] %vm5025, %v5133
      %5213 = vst.msk [vmem:[%s5210 + $0x31] sm:$0x1] %vm5025, %v5141
      %5214 = vst.msk [vmem:[%s5210 + $0x49] sm:$0x1] %vm5025, %v5143
      %5215 = vst.msk [vmem:[%s5210 + $0x61] sm:$0x1] %vm5025, %v5126
      %5216 = vst.msk [vmem:[%s5210 + $0x79] sm:$0x1] %vm5025, %v5140
      %5217 = vst.msk [vmem:[%s5210 + $0x91] sm:$0x1] %vm5025, %v5142
      %5218 = vst.msk [vmem:[%s5210 + $0xa9] sm:$0x1] %vm5025, %v5144
      %5219 = vst.msk [vmem:[%s5210 + $0xc1] sm:$0x1] %vm5025, %v5168
      %5220 = vst.msk [vmem:[%s5210 + $0xd9] sm:$0x1] %vm5025, %v5182
      %5221 = vst.msk [vmem:[%s5210 + $0xf1] sm:$0x1] %vm5025, %v5190
      %5222 = vst.msk [vmem:[%s5210 + $0x109] sm:$0x1] %vm5025, %v5192
      %5223 = vst.msk [vmem:[%s5210 + $0x121] sm:$0x1] %vm5025, %v5175
      %5224 = vst.msk [vmem:[%s5210 + $0x139] sm:$0x1] %vm5025, %v5189
      %5225 = vst.msk [vmem:[%s5210 + $0x151] sm:$0x1] %vm5025, %v5191
      %5226 = vst.msk [vmem:[%s5210 + $0x169] sm:$0x1] %vm5025, %v5193
      %v5227 = vmul.f32 %v4708, -0.034749035
      %v5228 = vmul.f32 %v4712, -0.034749035
      %v5229 = vmul.f32 %v4708, 0.11196911
      %v5230 = vmul.f32 %v4712, 0.11196911
      %5233 = vrot.lane.b32.xlu0 %v5229, 64
      %v5234 = vpop.permute.xlu0 %5233
      %5235 = vrot.lane.b32.xlu0 %v5230, 64
      %v5236 = vpop.permute.xlu0 %5235
      %v5239 = vadd.f32 %v5227, %v5234
      %v5240 = vadd.f32 %v5228, %v5236
      %v5241 = vmul.f32 %v4710, 0.42857143
      %v5242 = vmul.f32 %v4714, 0.42857143
      %v5243 = vadd.f32 %v5239, %v5241
      %v5244 = vadd.f32 %v5240, %v5242
      %5247 = vrot.lane.b32.xlu0 %v5241, 64
      %v5248 = vpop.permute.xlu0 %5247
      %5249 = vrot.lane.b32.xlu0 %v5242, 64
      %v5250 = vpop.permute.xlu0 %5249
      %v5253 = vadd.f32 %v5243, %v5248
      %v5254 = vadd.f32 %v5244, %v5250
      %v5255 = vmul.f32 %v4751, 0.11196911
      %v5256 = vmul.f32 %v4755, 0.11196911
      %v5257 = vadd.f32 %v5253, %v5255
      %v5258 = vadd.f32 %v5254, %v5256
      %v5259 = vmul.f32 %v4751, -0.034749035
      %v5260 = vmul.f32 %v4755, -0.034749035
      %5263 = vrot.lane.b32.xlu0 %v5259, 64
      %v5264 = vpop.permute.xlu0 %5263
      %5265 = vrot.lane.b32.xlu0 %v5260, 64
      %v5266 = vpop.permute.xlu0 %5265
      %v5269 = vadd.f32 %v5257, %v5264
      %v5270 = vadd.f32 %v5258, %v5266
      %v5271 = vmul.f32 %v4753, -0.011583012
      %v5272 = vmul.f32 %v4757, -0.011583012
      %v5273 = vadd.f32 %v5269, %v5271
      %v5274 = vadd.f32 %v5270, %v5272
      %v5277 = vcombine.high %v5273, %v5273
      %v5279 = vunpack.c.l.s4 1966171168
      %v5280 = vunpack.c.0.s8 %v5279
      %v5281 = vlaneseq
      %v5282 = vshrl.u32 %v5281, 7
      %v5283 = vsub.s32 %v5280, %v5282
      %v5284 = vrot.slane %v5273, %v5283
      %v5286 = vunpack.c.l.s4 1966171168
      %v5287 = vunpack.c.0.s8 %v5286
      %v5288 = vlaneseq
      %v5289 = vshrl.u32 %v5288, 7
      %v5290 = vsub.s32 %v5287, %v5289
      %v5291 = vrot.slane %v5277, %v5290
      %v5292 = vcombine.high %v5284, %v5284
      %v5293 = vcombine.high %v5291, %v5291
      %v5295 = vunpack.c.l.s4 1966171168
      %v5296 = vunpack.c.0.s8 %v5295
      %v5297 = vlaneseq
      %v5298 = vshrl.u32 %v5297, 7
      %v5299 = vsub.s32 %v5296, %v5298
      %v5300 = vrot.slane %v5284, %v5299
      %v5302 = vunpack.c.l.s4 1966171168
      %v5303 = vunpack.c.0.s8 %v5302
      %v5304 = vlaneseq
      %v5305 = vshrl.u32 %v5304, 7
      %v5306 = vsub.s32 %v5303, %v5305
      %v5307 = vrot.slane %v5291, %v5306
      %v5309 = vunpack.c.l.s4 1966171168
      %v5310 = vunpack.c.0.s8 %v5309
      %v5311 = vlaneseq
      %v5312 = vshrl.u32 %v5311, 7
      %v5313 = vsub.s32 %v5310, %v5312
      %v5314 = vrot.slane %v5292, %v5313
      %v5316 = vunpack.c.l.s4 1966171168
      %v5317 = vunpack.c.0.s8 %v5316
      %v5318 = vlaneseq
      %v5319 = vshrl.u32 %v5318, 7
      %v5320 = vsub.s32 %v5317, %v5319
      %v5321 = vrot.slane %v5293, %v5320
      %v5322 = vcombine.high %v5300, %v5300
      %v5323 = vcombine.high %v5307, %v5307
      %v5324 = vcombine.high %v5314, %v5314
      %v5325 = vcombine.high %v5321, %v5321
      %v5326 = vcombine.high %v5274, %v5274
      %v5328 = vunpack.c.l.s4 1966171168
      %v5329 = vunpack.c.0.s8 %v5328
      %v5330 = vlaneseq
      %v5331 = vshrl.u32 %v5330, 7
      %v5332 = vsub.s32 %v5329, %v5331
      %v5333 = vrot.slane %v5274, %v5332
      %v5335 = vunpack.c.l.s4 1966171168
      %v5336 = vunpack.c.0.s8 %v5335
      %v5337 = vlaneseq
      %v5338 = vshrl.u32 %v5337, 7
      %v5339 = vsub.s32 %v5336, %v5338
      %v5340 = vrot.slane %v5326, %v5339
      %v5341 = vcombine.high %v5333, %v5333
      %v5342 = vcombine.high %v5340, %v5340
      %v5344 = vunpack.c.l.s4 1966171168
      %v5345 = vunpack.c.0.s8 %v5344
      %v5346 = vlaneseq
      %v5347 = vshrl.u32 %v5346, 7
      %v5348 = vsub.s32 %v5345, %v5347
      %v5349 = vrot.slane %v5333, %v5348
      %v5351 = vunpack.c.l.s4 1966171168
      %v5352 = vunpack.c.0.s8 %v5351
      %v5353 = vlaneseq
      %v5354 = vshrl.u32 %v5353, 7
      %v5355 = vsub.s32 %v5352, %v5354
      %v5356 = vrot.slane %v5340, %v5355
      %v5358 = vunpack.c.l.s4 1966171168
      %v5359 = vunpack.c.0.s8 %v5358
      %v5360 = vlaneseq
      %v5361 = vshrl.u32 %v5360, 7
      %v5362 = vsub.s32 %v5359, %v5361
      %v5363 = vrot.slane %v5341, %v5362
      %v5365 = vunpack.c.l.s4 1966171168
      %v5366 = vunpack.c.0.s8 %v5365
      %v5367 = vlaneseq
      %v5368 = vshrl.u32 %v5367, 7
      %v5369 = vsub.s32 %v5366, %v5368
      %v5370 = vrot.slane %v5342, %v5369
      %v5371 = vcombine.high %v5349, %v5349
      %v5372 = vcombine.high %v5356, %v5356
      %v5373 = vcombine.high %v5363, %v5363
      %v5374 = vcombine.high %v5370, %v5370
      %5391 = vst.msk [vmem:[%s5210 + $0x2] sm:$0x1] %vm5025, %v5300
      %5392 = vst.msk [vmem:[%s5210 + $0x1a] sm:$0x1] %vm5025, %v5314
      %5393 = vst.msk [vmem:[%s5210 + $0x32] sm:$0x1] %vm5025, %v5322
      %5394 = vst.msk [vmem:[%s5210 + $0x4a] sm:$0x1] %vm5025, %v5324
      %5395 = vst.msk [vmem:[%s5210 + $0x62] sm:$0x1] %vm5025, %v5307
      %5396 = vst.msk [vmem:[%s5210 + $0x7a] sm:$0x1] %vm5025, %v5321
      %5397 = vst.msk [vmem:[%s5210 + $0x92] sm:$0x1] %vm5025, %v5323
      %5398 = vst.msk [vmem:[%s5210 + $0xaa] sm:$0x1] %vm5025, %v5325
      %5399 = vst.msk [vmem:[%s5210 + $0xc2] sm:$0x1] %vm5025, %v5349
      %5400 = vst.msk [vmem:[%s5210 + $0xda] sm:$0x1] %vm5025, %v5363
      %5401 = vst.msk [vmem:[%s5210 + $0xf2] sm:$0x1] %vm5025, %v5371
      %5402 = vst.msk [vmem:[%s5210 + $0x10a] sm:$0x1] %vm5025, %v5373
      %5403 = vst.msk [vmem:[%s5210 + $0x122] sm:$0x1] %vm5025, %v5356
      %5404 = vst.msk [vmem:[%s5210 + $0x13a] sm:$0x1] %vm5025, %v5370
      %5405 = vst.msk [vmem:[%s5210 + $0x152] sm:$0x1] %vm5025, %v5372
      %5406 = vst.msk [vmem:[%s5210 + $0x16a] sm:$0x1] %vm5025, %v5374
      %v5407 = vmul.f32 %v4708, -0.01171875
      %v5408 = vmul.f32 %v4712, -0.01171875
      %v5409 = vmul.f32 %v4710, -0.03515625
      %v5410 = vmul.f32 %v4714, -0.03515625
      %5413 = vrot.lane.b32.xlu0 %v5409, 64
      %v5414 = vpop.permute.xlu0 %5413
      %5415 = vrot.lane.b32.xlu0 %v5410, 64
      %v5416 = vpop.permute.xlu0 %5415
      %v5419 = vadd.f32 %v5407, %v5414
      %v5420 = vadd.f32 %v5408, %v5416
      %v5421 = vmul.f32 %v4710, 0.11328125
      %v5422 = vmul.f32 %v4714, 0.11328125
      %v5423 = vadd.f32 %v5419, %v5421
      %v5424 = vadd.f32 %v5420, %v5422
      %v5425 = vmul.f32 %v4751, 0.43359375
      %v5426 = vmul.f32 %v4755, 0.43359375
      %5429 = vrot.lane.b32.xlu0 %v5425, 64
      %v5430 = vpop.permute.xlu0 %5429
      %5431 = vrot.lane.b32.xlu0 %v5426, 64
      %v5432 = vpop.permute.xlu0 %5431
      %v5435 = vadd.f32 %v5423, %v5430
      %v5436 = vadd.f32 %v5424, %v5432
      %v5437 = vadd.f32 %v5435, %v5425
      %v5438 = vadd.f32 %v5436, %v5426
      %v5439 = vmul.f32 %v4753, 0.11328125
      %v5440 = vmul.f32 %v4757, 0.11328125
      %5443 = vrot.lane.b32.xlu0 %v5439, 64
      %v5444 = vpop.permute.xlu0 %5443
      %5445 = vrot.lane.b32.xlu0 %v5440, 64
      %v5446 = vpop.permute.xlu0 %5445
      %v5449 = vadd.f32 %v5437, %v5444
      %v5450 = vadd.f32 %v5438, %v5446
      %v5451 = vmul.f32 %v4753, -0.03515625
      %v5452 = vmul.f32 %v4757, -0.03515625
      %v5453 = vadd.f32 %v5449, %v5451
      %v5454 = vadd.f32 %v5450, %v5452
      %v5455 = vmul.f32 %v4794, -0.01171875
      %v5456 = vmul.f32 %v4798, -0.01171875
      %5459 = vrot.lane.b32.xlu0 %v5455, 64
      %v5460 = vpop.permute.xlu0 %5459
      %5461 = vrot.lane.b32.xlu0 %v5456, 64
      %v5462 = vpop.permute.xlu0 %5461
      %v5465 = vadd.f32 %v5453, %v5460
      %v5466 = vadd.f32 %v5454, %v5462
      %v5469 = vcombine.high %v5465, %v5465
      %v5471 = vunpack.c.l.s4 1966171168
      %v5472 = vunpack.c.0.s8 %v5471
      %v5473 = vlaneseq
      %v5474 = vshrl.u32 %v5473, 7
      %v5475 = vsub.s32 %v5472, %v5474
      %v5476 = vrot.slane %v5465, %v5475
      %v5478 = vunpack.c.l.s4 1966171168
      %v5479 = vunpack.c.0.s8 %v5478
      %v5480 = vlaneseq
      %v5481 = vshrl.u32 %v5480, 7
      %v5482 = vsub.s32 %v5479, %v5481
      %v5483 = vrot.slane %v5469, %v5482
      %v5484 = vcombine.high %v5476, %v5476
      %v5485 = vcombine.high %v5483, %v5483
      %v5487 = vunpack.c.l.s4 1966171168
      %v5488 = vunpack.c.0.s8 %v5487
      %v5489 = vlaneseq
      %v5490 = vshrl.u32 %v5489, 7
      %v5491 = vsub.s32 %v5488, %v5490
      %v5492 = vrot.slane %v5476, %v5491
      %v5494 = vunpack.c.l.s4 1966171168
      %v5495 = vunpack.c.0.s8 %v5494
      %v5496 = vlaneseq
      %v5497 = vshrl.u32 %v5496, 7
      %v5498 = vsub.s32 %v5495, %v5497
      %v5499 = vrot.slane %v5483, %v5498
      %v5501 = vunpack.c.l.s4 1966171168
      %v5502 = vunpack.c.0.s8 %v5501
      %v5503 = vlaneseq
      %v5504 = vshrl.u32 %v5503, 7
      %v5505 = vsub.s32 %v5502, %v5504
      %v5506 = vrot.slane %v5484, %v5505
      %v5508 = vunpack.c.l.s4 1966171168
      %v5509 = vunpack.c.0.s8 %v5508
      %v5510 = vlaneseq
      %v5511 = vshrl.u32 %v5510, 7
      %v5512 = vsub.s32 %v5509, %v5511
      %v5513 = vrot.slane %v5485, %v5512
      %v5514 = vcombine.high %v5492, %v5492
      %v5515 = vcombine.high %v5499, %v5499
      %v5516 = vcombine.high %v5506, %v5506
      %v5517 = vcombine.high %v5513, %v5513
      %v5518 = vcombine.high %v5466, %v5466
      %v5520 = vunpack.c.l.s4 1966171168
      %v5521 = vunpack.c.0.s8 %v5520
      %v5522 = vlaneseq
      %v5523 = vshrl.u32 %v5522, 7
      %v5524 = vsub.s32 %v5521, %v5523
      %v5525 = vrot.slane %v5466, %v5524
      %v5527 = vunpack.c.l.s4 1966171168
      %v5528 = vunpack.c.0.s8 %v5527
      %v5529 = vlaneseq
      %v5530 = vshrl.u32 %v5529, 7
      %v5531 = vsub.s32 %v5528, %v5530
      %v5532 = vrot.slane %v5518, %v5531
      %v5533 = vcombine.high %v5525, %v5525
      %v5534 = vcombine.high %v5532, %v5532
      %v5536 = vunpack.c.l.s4 1966171168
      %v5537 = vunpack.c.0.s8 %v5536
      %v5538 = vlaneseq
      %v5539 = vshrl.u32 %v5538, 7
      %v5540 = vsub.s32 %v5537, %v5539
      %v5541 = vrot.slane %v5525, %v5540
      %v5543 = vunpack.c.l.s4 1966171168
      %v5544 = vunpack.c.0.s8 %v5543
      %v5545 = vlaneseq
      %v5546 = vshrl.u32 %v5545, 7
      %v5547 = vsub.s32 %v5544, %v5546
      %v5548 = vrot.slane %v5532, %v5547
      %v5550 = vunpack.c.l.s4 1966171168
      %v5551 = vunpack.c.0.s8 %v5550
      %v5552 = vlaneseq
      %v5553 = vshrl.u32 %v5552, 7
      %v5554 = vsub.s32 %v5551, %v5553
      %v5555 = vrot.slane %v5533, %v5554
      %v5557 = vunpack.c.l.s4 1966171168
      %v5558 = vunpack.c.0.s8 %v5557
      %v5559 = vlaneseq
      %v5560 = vshrl.u32 %v5559, 7
      %v5561 = vsub.s32 %v5558, %v5560
      %v5562 = vrot.slane %v5534, %v5561
      %v5563 = vcombine.high %v5541, %v5541
      %v5564 = vcombine.high %v5548, %v5548
      %v5565 = vcombine.high %v5555, %v5555
      %v5566 = vcombine.high %v5562, %v5562
      %v5567 = vlaneseq
      %v5568 = vshrl.u32 %v5567, 7
      %v5569 = vsub.s32 0, %v5568
      %v5570 = vrot.slane %v5492, %v5569
      %v5571 = vlaneseq
      %v5572 = vshrl.u32 %v5571, 7
      %v5573 = vsub.s32 0, %v5572
      %v5574 = vrot.slane %v5506, %v5573
      %v5575 = vlaneseq
      %v5576 = vshrl.u32 %v5575, 7
      %v5577 = vsub.s32 0, %v5576
      %v5578 = vrot.slane %v5514, %v5577
      %v5579 = vlaneseq
      %v5580 = vshrl.u32 %v5579, 7
      %v5581 = vsub.s32 0, %v5580
      %v5582 = vrot.slane %v5516, %v5581
      %v5583 = vlaneseq
      %v5584 = vshrl.u32 %v5583, 7
      %v5585 = vsub.s32 0, %v5584
      %v5586 = vrot.slane %v5499, %v5585
      %v5587 = vlaneseq
      %v5588 = vshrl.u32 %v5587, 7
      %v5589 = vsub.s32 0, %v5588
      %v5590 = vrot.slane %v5513, %v5589
      %v5591 = vlaneseq
      %v5592 = vshrl.u32 %v5591, 7
      %v5593 = vsub.s32 0, %v5592
      %v5594 = vrot.slane %v5515, %v5593
      %v5595 = vlaneseq
      %v5596 = vshrl.u32 %v5595, 7
      %v5597 = vsub.s32 0, %v5596
      %v5598 = vrot.slane %v5517, %v5597
      %v5599 = vlaneseq
      %v5600 = vshrl.u32 %v5599, 7
      %v5601 = vsub.s32 0, %v5600
      %v5602 = vrot.slane %v5541, %v5601
      %v5603 = vlaneseq
      %v5604 = vshrl.u32 %v5603, 7
      %v5605 = vsub.s32 0, %v5604
      %v5606 = vrot.slane %v5555, %v5605
      %v5607 = vlaneseq
      %v5608 = vshrl.u32 %v5607, 7
      %v5609 = vsub.s32 0, %v5608
      %v5610 = vrot.slane %v5563, %v5609
      %v5611 = vlaneseq
      %v5612 = vshrl.u32 %v5611, 7
      %v5613 = vsub.s32 0, %v5612
      %v5614 = vrot.slane %v5565, %v5613
      %v5615 = vlaneseq
      %v5616 = vshrl.u32 %v5615, 7
      %v5617 = vsub.s32 0, %v5616
      %v5618 = vrot.slane %v5548, %v5617
      %v5619 = vlaneseq
      %v5620 = vshrl.u32 %v5619, 7
      %v5621 = vsub.s32 0, %v5620
      %v5622 = vrot.slane %v5562, %v5621
      %v5623 = vlaneseq
      %v5624 = vshrl.u32 %v5623, 7
      %v5625 = vsub.s32 0, %v5624
      %v5626 = vrot.slane %v5564, %v5625
      %v5627 = vlaneseq
      %v5628 = vshrl.u32 %v5627, 7
      %v5629 = vsub.s32 0, %v5628
      %v5630 = vrot.slane %v5566, %v5629
      %5631 = vrot.lane.b32.xlu0 %v5570, 64
      %v5632 = vpop.permute.xlu0 %5631
      %5633 = vrot.lane.b32.xlu0 %v5574, 64
      %v5634 = vpop.permute.xlu0 %5633
      %5635 = vrot.lane.b32.xlu0 %v5578, 64
      %v5636 = vpop.permute.xlu0 %5635
      %5637 = vrot.lane.b32.xlu0 %v5582, 64
      %v5638 = vpop.permute.xlu0 %5637
      %5639 = vrot.lane.b32.xlu0 %v5586, 64
      %v5640 = vpop.permute.xlu0 %5639
      %5641 = vrot.lane.b32.xlu0 %v5590, 64
      %v5642 = vpop.permute.xlu0 %5641
      %5643 = vrot.lane.b32.xlu0 %v5594, 64
      %v5644 = vpop.permute.xlu0 %5643
      %5645 = vrot.lane.b32.xlu0 %v5598, 64
      %v5646 = vpop.permute.xlu0 %5645
      %5647 = vrot.lane.b32.xlu0 %v5602, 64
      %v5648 = vpop.permute.xlu0 %5647
      %5649 = vrot.lane.b32.xlu0 %v5606, 64
      %v5650 = vpop.permute.xlu0 %5649
      %5651 = vrot.lane.b32.xlu0 %v5610, 64
      %v5652 = vpop.permute.xlu0 %5651
      %5653 = vrot.lane.b32.xlu0 %v5614, 64
      %v5654 = vpop.permute.xlu0 %5653
      %5655 = vrot.lane.b32.xlu0 %v5618, 64
      %v5656 = vpop.permute.xlu0 %5655
      %5657 = vrot.lane.b32.xlu0 %v5622, 64
      %v5658 = vpop.permute.xlu0 %5657
      %5659 = vrot.lane.b32.xlu0 %v5626, 64
      %v5660 = vpop.permute.xlu0 %5659
      %5661 = vrot.lane.b32.xlu0 %v5630, 64
      %v5662 = vpop.permute.xlu0 %5661
      %5679 = vst.msk [vmem:[%s5210 + $0x3] sm:$0x1] %vm5025, %v5632
      %5680 = vst.msk [vmem:[%s5210 + $0x1b] sm:$0x1] %vm5025, %v5634
      %5681 = vst.msk [vmem:[%s5210 + $0x33] sm:$0x1] %vm5025, %v5636
      %5682 = vst.msk [vmem:[%s5210 + $0x4b] sm:$0x1] %vm5025, %v5638
      %5683 = vst.msk [vmem:[%s5210 + $0x63] sm:$0x1] %vm5025, %v5640
      %5684 = vst.msk [vmem:[%s5210 + $0x7b] sm:$0x1] %vm5025, %v5642
      %5685 = vst.msk [vmem:[%s5210 + $0x93] sm:$0x1] %vm5025, %v5644
      %5686 = vst.msk [vmem:[%s5210 + $0xab] sm:$0x1] %vm5025, %v5646
      %5687 = vst.msk [vmem:[%s5210 + $0xc3] sm:$0x1] %vm5025, %v5648
      %5688 = vst.msk [vmem:[%s5210 + $0xdb] sm:$0x1] %vm5025, %v5650
      %5689 = vst.msk [vmem:[%s5210 + $0xf3] sm:$0x1] %vm5025, %v5652
      %5690 = vst.msk [vmem:[%s5210 + $0x10b] sm:$0x1] %vm5025, %v5654
      %5691 = vst.msk [vmem:[%s5210 + $0x123] sm:$0x1] %vm5025, %v5656
      %5692 = vst.msk [vmem:[%s5210 + $0x13b] sm:$0x1] %vm5025, %v5658
      %5693 = vst.msk [vmem:[%s5210 + $0x153] sm:$0x1] %vm5025, %v5660
      %5694 = vst.msk [vmem:[%s5210 + $0x16b] sm:$0x1] %vm5025, %v5662
      %v5695 = vmul.f32 %v4710, -0.01171875
      %v5696 = vmul.f32 %v4714, -0.01171875
      %v5697 = vmul.f32 %v4751, -0.03515625
      %v5698 = vmul.f32 %v4755, -0.03515625
      %5701 = vrot.lane.b32.xlu0 %v5697, 64
      %v5702 = vpop.permute.xlu0 %5701
      %5703 = vrot.lane.b32.xlu0 %v5698, 64
      %v5704 = vpop.permute.xlu0 %5703
      %v5707 = vadd.f32 %v5695, %v5702
      %v5708 = vadd.f32 %v5696, %v5704
      %v5709 = vmul.f32 %v4751, 0.11328125
      %v5710 = vmul.f32 %v4755, 0.11328125
      %v5711 = vadd.f32 %v5707, %v5709
      %v5712 = vadd.f32 %v5708, %v5710
      %v5713 = vmul.f32 %v4753, 0.43359375
      %v5714 = vmul.f32 %v4757, 0.43359375
      %5717 = vrot.lane.b32.xlu0 %v5713, 64
      %v5718 = vpop.permute.xlu0 %5717
      %5719 = vrot.lane.b32.xlu0 %v5714, 64
      %v5720 = vpop.permute.xlu0 %5719
      %v5723 = vadd.f32 %v5711, %v5718
      %v5724 = vadd.f32 %v5712, %v5720
      %v5725 = vadd.f32 %v5723, %v5713
      %v5726 = vadd.f32 %v5724, %v5714
      %v5727 = vmul.f32 %v4794, 0.11328125
      %v5728 = vmul.f32 %v4798, 0.11328125
      %5731 = vrot.lane.b32.xlu0 %v5727, 64
      %v5732 = vpop.permute.xlu0 %5731
      %5733 = vrot.lane.b32.xlu0 %v5728, 64
      %v5734 = vpop.permute.xlu0 %5733
      %v5737 = vadd.f32 %v5725, %v5732
      %v5738 = vadd.f32 %v5726, %v5734
      %v5739 = vmul.f32 %v4794, -0.03515625
      %v5740 = vmul.f32 %v4798, -0.03515625
      %v5741 = vadd.f32 %v5737, %v5739
      %v5742 = vadd.f32 %v5738, %v5740
      %v5743 = vmul.f32 %v4796, -0.01171875
      %v5744 = vmul.f32 %v4800, -0.01171875
      %5747 = vrot.lane.b32.xlu0 %v5743, 64
      %v5748 = vpop.permute.xlu0 %5747
      %5749 = vrot.lane.b32.xlu0 %v5744, 64
      %v5750 = vpop.permute.xlu0 %5749
      %v5753 = vadd.f32 %v5741, %v5748
      %v5754 = vadd.f32 %v5742, %v5750
      %v5757 = vcombine.high %v5753, %v5753
      %v5759 = vunpack.c.l.s4 1966171168
      %v5760 = vunpack.c.0.s8 %v5759
      %v5761 = vlaneseq
      %v5762 = vshrl.u32 %v5761, 7
      %v5763 = vsub.s32 %v5760, %v5762
      %v5764 = vrot.slane %v5753, %v5763
      %v5766 = vunpack.c.l.s4 1966171168
      %v5767 = vunpack.c.0.s8 %v5766
      %v5768 = vlaneseq
      %v5769 = vshrl.u32 %v5768, 7
      %v5770 = vsub.s32 %v5767, %v5769
      %v5771 = vrot.slane %v5757, %v5770
      %v5772 = vcombine.high %v5764, %v5764
      %v5773 = vcombine.high %v5771, %v5771
      %v5775 = vunpack.c.l.s4 1966171168
      %v5776 = vunpack.c.0.s8 %v5775
      %v5777 = vlaneseq
      %v5778 = vshrl.u32 %v5777, 7
      %v5779 = vsub.s32 %v5776, %v5778
      %v5780 = vrot.slane %v5764, %v5779
      %v5782 = vunpack.c.l.s4 1966171168
      %v5783 = vunpack.c.0.s8 %v5782
      %v5784 = vlaneseq
      %v5785 = vshrl.u32 %v5784, 7
      %v5786 = vsub.s32 %v5783, %v5785
      %v5787 = vrot.slane %v5771, %v5786
      %v5789 = vunpack.c.l.s4 1966171168
      %v5790 = vunpack.c.0.s8 %v5789
      %v5791 = vlaneseq
      %v5792 = vshrl.u32 %v5791, 7
      %v5793 = vsub.s32 %v5790, %v5792
      %v5794 = vrot.slane %v5772, %v5793
      %v5796 = vunpack.c.l.s4 1966171168
      %v5797 = vunpack.c.0.s8 %v5796
      %v5798 = vlaneseq
      %v5799 = vshrl.u32 %v5798, 7
      %v5800 = vsub.s32 %v5797, %v5799
      %v5801 = vrot.slane %v5773, %v5800
      %v5802 = vcombine.high %v5780, %v5780
      %v5803 = vcombine.high %v5787, %v5787
      %v5804 = vcombine.high %v5794, %v5794
      %v5805 = vcombine.high %v5801, %v5801
      %v5806 = vcombine.high %v5754, %v5754
      %v5808 = vunpack.c.l.s4 1966171168
      %v5809 = vunpack.c.0.s8 %v5808
      %v5810 = vlaneseq
      %v5811 = vshrl.u32 %v5810, 7
      %v5812 = vsub.s32 %v5809, %v5811
      %v5813 = vrot.slane %v5754, %v5812
      %v5815 = vunpack.c.l.s4 1966171168
      %v5816 = vunpack.c.0.s8 %v5815
      %v5817 = vlaneseq
      %v5818 = vshrl.u32 %v5817, 7
      %v5819 = vsub.s32 %v5816, %v5818
      %v5820 = vrot.slane %v5806, %v5819
      %v5821 = vcombine.high %v5813, %v5813
      %v5822 = vcombine.high %v5820, %v5820
      %v5824 = vunpack.c.l.s4 1966171168
      %v5825 = vunpack.c.0.s8 %v5824
      %v5826 = vlaneseq
      %v5827 = vshrl.u32 %v5826, 7
      %v5828 = vsub.s32 %v5825, %v5827
      %v5829 = vrot.slane %v5813, %v5828
      %v5831 = vunpack.c.l.s4 1966171168
      %v5832 = vunpack.c.0.s8 %v5831
      %v5833 = vlaneseq
      %v5834 = vshrl.u32 %v5833, 7
      %v5835 = vsub.s32 %v5832, %v5834
      %v5836 = vrot.slane %v5820, %v5835
      %v5838 = vunpack.c.l.s4 1966171168
      %v5839 = vunpack.c.0.s8 %v5838
      %v5840 = vlaneseq
      %v5841 = vshrl.u32 %v5840, 7
      %v5842 = vsub.s32 %v5839, %v5841
      %v5843 = vrot.slane %v5821, %v5842
      %v5845 = vunpack.c.l.s4 1966171168
      %v5846 = vunpack.c.0.s8 %v5845
      %v5847 = vlaneseq
      %v5848 = vshrl.u32 %v5847, 7
      %v5849 = vsub.s32 %v5846, %v5848
      %v5850 = vrot.slane %v5822, %v5849
      %v5851 = vcombine.high %v5829, %v5829
      %v5852 = vcombine.high %v5836, %v5836
      %v5853 = vcombine.high %v5843, %v5843
      %v5854 = vcombine.high %v5850, %v5850
      %v5855 = vlaneseq
      %v5856 = vshrl.u32 %v5855, 7
      %v5857 = vsub.s32 0, %v5856
      %v5858 = vrot.slane %v5780, %v5857
      %v5859 = vlaneseq
      %v5860 = vshrl.u32 %v5859, 7
      %v5861 = vsub.s32 0, %v5860
      %v5862 = vrot.slane %v5794, %v5861
      %v5863 = vlaneseq
      %v5864 = vshrl.u32 %v5863, 7
      %v5865 = vsub.s32 0, %v5864
      %v5866 = vrot.slane %v5802, %v5865
      %v5867 = vlaneseq
      %v5868 = vshrl.u32 %v5867, 7
      %v5869 = vsub.s32 0, %v5868
      %v5870 = vrot.slane %v5804, %v5869
      %v5871 = vlaneseq
      %v5872 = vshrl.u32 %v5871, 7
      %v5873 = vsub.s32 0, %v5872
      %v5874 = vrot.slane %v5787, %v5873
      %v5875 = vlaneseq
      %v5876 = vshrl.u32 %v5875, 7
      %v5877 = vsub.s32 0, %v5876
      %v5878 = vrot.slane %v5801, %v5877
      %v5879 = vlaneseq
      %v5880 = vshrl.u32 %v5879, 7
      %v5881 = vsub.s32 0, %v5880
      %v5882 = vrot.slane %v5803, %v5881
      %v5883 = vlaneseq
      %v5884 = vshrl.u32 %v5883, 7
      %v5885 = vsub.s32 0, %v5884
      %v5886 = vrot.slane %v5805, %v5885
      %v5887 = vlaneseq
      %v5888 = vshrl.u32 %v5887, 7
      %v5889 = vsub.s32 0, %v5888
      %v5890 = vrot.slane %v5829, %v5889
      %v5891 = vlaneseq
      %v5892 = vshrl.u32 %v5891, 7
      %v5893 = vsub.s32 0, %v5892
      %v5894 = vrot.slane %v5843, %v5893
      %v5895 = vlaneseq
      %v5896 = vshrl.u32 %v5895, 7
      %v5897 = vsub.s32 0, %v5896
      %v5898 = vrot.slane %v5851, %v5897
      %v5899 = vlaneseq
      %v5900 = vshrl.u32 %v5899, 7
      %v5901 = vsub.s32 0, %v5900
      %v5902 = vrot.slane %v5853, %v5901
      %v5903 = vlaneseq
      %v5904 = vshrl.u32 %v5903, 7
      %v5905 = vsub.s32 0, %v5904
      %v5906 = vrot.slane %v5836, %v5905
      %v5907 = vlaneseq
      %v5908 = vshrl.u32 %v5907, 7
      %v5909 = vsub.s32 0, %v5908
      %v5910 = vrot.slane %v5850, %v5909
      %v5911 = vlaneseq
      %v5912 = vshrl.u32 %v5911, 7
      %v5913 = vsub.s32 0, %v5912
      %v5914 = vrot.slane %v5852, %v5913
      %v5915 = vlaneseq
      %v5916 = vshrl.u32 %v5915, 7
      %v5917 = vsub.s32 0, %v5916
      %v5918 = vrot.slane %v5854, %v5917
      %5919 = vrot.lane.b32.xlu0 %v5858, 64
      %v5920 = vpop.permute.xlu0 %5919
      %5921 = vrot.lane.b32.xlu0 %v5862, 64
      %v5922 = vpop.permute.xlu0 %5921
      %5923 = vrot.lane.b32.xlu0 %v5866, 64
      %v5924 = vpop.permute.xlu0 %5923
      %5925 = vrot.lane.b32.xlu0 %v5870, 64
      %v5926 = vpop.permute.xlu0 %5925
      %5927 = vrot.lane.b32.xlu0 %v5874, 64
      %v5928 = vpop.permute.xlu0 %5927
      %5929 = vrot.lane.b32.xlu0 %v5878, 64
      %v5930 = vpop.permute.xlu0 %5929
      %5931 = vrot.lane.b32.xlu0 %v5882, 64
      %v5932 = vpop.permute.xlu0 %5931
      %5933 = vrot.lane.b32.xlu0 %v5886, 64
      %v5934 = vpop.permute.xlu0 %5933
      %5935 = vrot.lane.b32.xlu0 %v5890, 64
      %v5936 = vpop.permute.xlu0 %5935
      %5937 = vrot.lane.b32.xlu0 %v5894, 64
      %v5938 = vpop.permute.xlu0 %5937
      %5939 = vrot.lane.b32.xlu0 %v5898, 64
      %v5940 = vpop.permute.xlu0 %5939
      %5941 = vrot.lane.b32.xlu0 %v5902, 64
      %v5942 = vpop.permute.xlu0 %5941
      %5943 = vrot.lane.b32.xlu0 %v5906, 64
      %v5944 = vpop.permute.xlu0 %5943
      %5945 = vrot.lane.b32.xlu0 %v5910, 64
      %v5946 = vpop.permute.xlu0 %5945
      %5947 = vrot.lane.b32.xlu0 %v5914, 64
      %v5948 = vpop.permute.xlu0 %5947
      %5949 = vrot.lane.b32.xlu0 %v5918, 64
      %v5950 = vpop.permute.xlu0 %5949
      %5967 = vst.msk [vmem:[%s5210 + $0x4] sm:$0x1] %vm5025, %v5920
      %5968 = vst.msk [vmem:[%s5210 + $0x1c] sm:$0x1] %vm5025, %v5922
      %5969 = vst.msk [vmem:[%s5210 + $0x34] sm:$0x1] %vm5025, %v5924
      %5970 = vst.msk [vmem:[%s5210 + $0x4c] sm:$0x1] %vm5025, %v5926
      %5971 = vst.msk [vmem:[%s5210 + $0x64] sm:$0x1] %vm5025, %v5928
      %5972 = vst.msk [vmem:[%s5210 + $0x7c] sm:$0x1] %vm5025, %v5930
      %5973 = vst.msk [vmem:[%s5210 + $0x94] sm:$0x1] %vm5025, %v5932
      %5974 = vst.msk [vmem:[%s5210 + $0xac] sm:$0x1] %vm5025, %v5934
      %5975 = vst.msk [vmem:[%s5210 + $0xc4] sm:$0x1] %vm5025, %v5936
      %5976 = vst.msk [vmem:[%s5210 + $0xdc] sm:$0x1] %vm5025, %v5938
      %5977 = vst.msk [vmem:[%s5210 + $0xf4] sm:$0x1] %vm5025, %v5940
      %5978 = vst.msk [vmem:[%s5210 + $0x10c] sm:$0x1] %vm5025, %v5942
      %5979 = vst.msk [vmem:[%s5210 + $0x124] sm:$0x1] %vm5025, %v5944
      %5980 = vst.msk [vmem:[%s5210 + $0x13c] sm:$0x1] %vm5025, %v5946
      %5981 = vst.msk [vmem:[%s5210 + $0x154] sm:$0x1] %vm5025, %v5948
      %5982 = vst.msk [vmem:[%s5210 + $0x16c] sm:$0x1] %vm5025, %v5950
      %v5983 = vmul.f32 %v4751, -0.01171875
      %v5984 = vmul.f32 %v4755, -0.01171875
      %5987 = vrot.lane.b32.xlu0 %v5451, 64
      %v5988 = vpop.permute.xlu0 %5987
      %5989 = vrot.lane.b32.xlu0 %v5452, 64
      %v5990 = vpop.permute.xlu0 %5989
      %v5993 = vadd.f32 %v5983, %v5988
      %v5994 = vadd.f32 %v5984, %v5990
      %v5995 = vadd.f32 %v5993, %v5439
      %v5996 = vadd.f32 %v5994, %v5440
      %v5997 = vmul.f32 %v4794, 0.43359375
      %v5998 = vmul.f32 %v4798, 0.43359375
      %6001 = vrot.lane.b32.xlu0 %v5997, 64
      %v6002 = vpop.permute.xlu0 %6001
      %6003 = vrot.lane.b32.xlu0 %v5998, 64
      %v6004 = vpop.permute.xlu0 %6003
      %v6007 = vadd.f32 %v5995, %v6002
      %v6008 = vadd.f32 %v5996, %v6004
      %v6009 = vadd.f32 %v6007, %v5997
      %v6010 = vadd.f32 %v6008, %v5998
      %v6011 = vmul.f32 %v4796, 0.11328125
      %v6012 = vmul.f32 %v4800, 0.11328125
      %6015 = vrot.lane.b32.xlu0 %v6011, 64
      %v6016 = vpop.permute.xlu0 %6015
      %6017 = vrot.lane.b32.xlu0 %v6012, 64
      %v6018 = vpop.permute.xlu0 %6017
      %v6021 = vadd.f32 %v6009, %v6016
      %v6022 = vadd.f32 %v6010, %v6018
      %v6023 = vmul.f32 %v4796, -0.03515625
      %v6024 = vmul.f32 %v4800, -0.03515625
      %v6025 = vadd.f32 %v6021, %v6023
      %v6026 = vadd.f32 %v6022, %v6024
      %v6027 = vmul.f32 %v4837, -0.01171875
      %v6028 = vmul.f32 %v4841, -0.01171875
      %6031 = vrot.lane.b32.xlu0 %v6027, 64
      %v6032 = vpop.permute.xlu0 %6031
      %6033 = vrot.lane.b32.xlu0 %v6028, 64
      %v6034 = vpop.permute.xlu0 %6033
      %v6037 = vadd.f32 %v6025, %v6032
      %v6038 = vadd.f32 %v6026, %v6034
      %v6041 = vcombine.high %v6037, %v6037
      %v6043 = vunpack.c.l.s4 1966171168
      %v6044 = vunpack.c.0.s8 %v6043
      %v6045 = vlaneseq
      %v6046 = vshrl.u32 %v6045, 7
      %v6047 = vsub.s32 %v6044, %v6046
      %v6048 = vrot.slane %v6037, %v6047
      %v6050 = vunpack.c.l.s4 1966171168
      %v6051 = vunpack.c.0.s8 %v6050
      %v6052 = vlaneseq
      %v6053 = vshrl.u32 %v6052, 7
      %v6054 = vsub.s32 %v6051, %v6053
      %v6055 = vrot.slane %v6041, %v6054
      %v6056 = vcombine.high %v6048, %v6048
      %v6057 = vcombine.high %v6055, %v6055
      %v6059 = vunpack.c.l.s4 1966171168
      %v6060 = vunpack.c.0.s8 %v6059
      %v6061 = vlaneseq
      %v6062 = vshrl.u32 %v6061, 7
      %v6063 = vsub.s32 %v6060, %v6062
      %v6064 = vrot.slane %v6048, %v6063
      %v6066 = vunpack.c.l.s4 1966171168
      %v6067 = vunpack.c.0.s8 %v6066
      %v6068 = vlaneseq
      %v6069 = vshrl.u32 %v6068, 7
      %v6070 = vsub.s32 %v6067, %v6069
      %v6071 = vrot.slane %v6055, %v6070
      %v6073 = vunpack.c.l.s4 1966171168
      %v6074 = vunpack.c.0.s8 %v6073
      %v6075 = vlaneseq
      %v6076 = vshrl.u32 %v6075, 7
      %v6077 = vsub.s32 %v6074, %v6076
      %v6078 = vrot.slane %v6056, %v6077
      %v6080 = vunpack.c.l.s4 1966171168
      %v6081 = vunpack.c.0.s8 %v6080
      %v6082 = vlaneseq
      %v6083 = vshrl.u32 %v6082, 7
      %v6084 = vsub.s32 %v6081, %v6083
      %v6085 = vrot.slane %v6057, %v6084
      %v6086 = vcombine.high %v6064, %v6064
      %v6087 = vcombine.high %v6071, %v6071
      %v6088 = vcombine.high %v6078, %v6078
      %v6089 = vcombine.high %v6085, %v6085
      %v6090 = vcombine.high %v6038, %v6038
      %v6092 = vunpack.c.l.s4 1966171168
      %v6093 = vunpack.c.0.s8 %v6092
      %v6094 = vlaneseq
      %v6095 = vshrl.u32 %v6094, 7
      %v6096 = vsub.s32 %v6093, %v6095
      %v6097 = vrot.slane %v6038, %v6096
      %v6099 = vunpack.c.l.s4 1966171168
      %v6100 = vunpack.c.0.s8 %v6099
      %v6101 = vlaneseq
      %v6102 = vshrl.u32 %v6101, 7
      %v6103 = vsub.s32 %v6100, %v6102
      %v6104 = vrot.slane %v6090, %v6103
      %v6105 = vcombine.high %v6097, %v6097
      %v6106 = vcombine.high %v6104, %v6104
      %v6108 = vunpack.c.l.s4 1966171168
      %v6109 = vunpack.c.0.s8 %v6108
      %v6110 = vlaneseq
      %v6111 = vshrl.u32 %v6110, 7
      %v6112 = vsub.s32 %v6109, %v6111
      %v6113 = vrot.slane %v6097, %v6112
      %v6115 = vunpack.c.l.s4 1966171168
      %v6116 = vunpack.c.0.s8 %v6115
      %v6117 = vlaneseq
      %v6118 = vshrl.u32 %v6117, 7
      %v6119 = vsub.s32 %v6116, %v6118
      %v6120 = vrot.slane %v6104, %v6119
      %v6122 = vunpack.c.l.s4 1966171168
      %v6123 = vunpack.c.0.s8 %v6122
      %v6124 = vlaneseq
      %v6125 = vshrl.u32 %v6124, 7
      %v6126 = vsub.s32 %v6123, %v6125
      %v6127 = vrot.slane %v6105, %v6126
      %v6129 = vunpack.c.l.s4 1966171168
      %v6130 = vunpack.c.0.s8 %v6129
      %v6131 = vlaneseq
      %v6132 = vshrl.u32 %v6131, 7
      %v6133 = vsub.s32 %v6130, %v6132
      %v6134 = vrot.slane %v6106, %v6133
      %v6135 = vcombine.high %v6113, %v6113
      %v6136 = vcombine.high %v6120, %v6120
      %v6137 = vcombine.high %v6127, %v6127
      %v6138 = vcombine.high %v6134, %v6134
      %v6139 = vlaneseq
      %v6140 = vshrl.u32 %v6139, 7
      %v6141 = vsub.s32 0, %v6140
      %v6142 = vrot.slane %v6064, %v6141
      %v6143 = vlaneseq
      %v6144 = vshrl.u32 %v6143, 7
      %v6145 = vsub.s32 0, %v6144
      %v6146 = vrot.slane %v6078, %v6145
      %v6147 = vlaneseq
      %v6148 = vshrl.u32 %v6147, 7
      %v6149 = vsub.s32 0, %v6148
      %v6150 = vrot.slane %v6086, %v6149
      %v6151 = vlaneseq
      %v6152 = vshrl.u32 %v6151, 7
      %v6153 = vsub.s32 0, %v6152
      %v6154 = vrot.slane %v6088, %v6153
      %v6155 = vlaneseq
      %v6156 = vshrl.u32 %v6155, 7
      %v6157 = vsub.s32 0, %v6156
      %v6158 = vrot.slane %v6071, %v6157
      %v6159 = vlaneseq
      %v6160 = vshrl.u32 %v6159, 7
      %v6161 = vsub.s32 0, %v6160
      %v6162 = vrot.slane %v6085, %v6161
      %v6163 = vlaneseq
      %v6164 = vshrl.u32 %v6163, 7
      %v6165 = vsub.s32 0, %v6164
      %v6166 = vrot.slane %v6087, %v6165
      %v6167 = vlaneseq
      %v6168 = vshrl.u32 %v6167, 7
      %v6169 = vsub.s32 0, %v6168
      %v6170 = vrot.slane %v6089, %v6169
      %v6171 = vlaneseq
      %v6172 = vshrl.u32 %v6171, 7
      %v6173 = vsub.s32 0, %v6172
      %v6174 = vrot.slane %v6113, %v6173
      %v6175 = vlaneseq
      %v6176 = vshrl.u32 %v6175, 7
      %v6177 = vsub.s32 0, %v6176
      %v6178 = vrot.slane %v6127, %v6177
      %v6179 = vlaneseq
      %v6180 = vshrl.u32 %v6179, 7
      %v6181 = vsub.s32 0, %v6180
      %v6182 = vrot.slane %v6135, %v6181
      %v6183 = vlaneseq
      %v6184 = vshrl.u32 %v6183, 7
      %v6185 = vsub.s32 0, %v6184
      %v6186 = vrot.slane %v6137, %v6185
      %v6187 = vlaneseq
      %v6188 = vshrl.u32 %v6187, 7
      %v6189 = vsub.s32 0, %v6188
      %v6190 = vrot.slane %v6120, %v6189
      %v6191 = vlaneseq
      %v6192 = vshrl.u32 %v6191, 7
      %v6193 = vsub.s32 0, %v6192
      %v6194 = vrot.slane %v6134, %v6193
      %v6195 = vlaneseq
      %v6196 = vshrl.u32 %v6195, 7
      %v6197 = vsub.s32 0, %v6196
      %v6198 = vrot.slane %v6136, %v6197
      %v6199 = vlaneseq
      %v6200 = vshrl.u32 %v6199, 7
      %v6201 = vsub.s32 0, %v6200
      %v6202 = vrot.slane %v6138, %v6201
      %6203 = vrot.lane.b32.xlu0 %v6142, 64
      %v6204 = vpop.permute.xlu0 %6203
      %6205 = vrot.lane.b32.xlu0 %v6146, 64
      %v6206 = vpop.permute.xlu0 %6205
      %6207 = vrot.lane.b32.xlu0 %v6150, 64
      %v6208 = vpop.permute.xlu0 %6207
      %6209 = vrot.lane.b32.xlu0 %v6154, 64
      %v6210 = vpop.permute.xlu0 %6209
      %6211 = vrot.lane.b32.xlu0 %v6158, 64
      %v6212 = vpop.permute.xlu0 %6211
      %6213 = vrot.lane.b32.xlu0 %v6162, 64
      %v6214 = vpop.permute.xlu0 %6213
      %6215 = vrot.lane.b32.xlu0 %v6166, 64
      %v6216 = vpop.permute.xlu0 %6215
      %6217 = vrot.lane.b32.xlu0 %v6170, 64
      %v6218 = vpop.permute.xlu0 %6217
      %6219 = vrot.lane.b32.xlu0 %v6174, 64
      %v6220 = vpop.permute.xlu0 %6219
      %6221 = vrot.lane.b32.xlu0 %v6178, 64
      %v6222 = vpop.permute.xlu0 %6221
      %6223 = vrot.lane.b32.xlu0 %v6182, 64
      %v6224 = vpop.permute.xlu0 %6223
      %6225 = vrot.lane.b32.xlu0 %v6186, 64
      %v6226 = vpop.permute.xlu0 %6225
      %6227 = vrot.lane.b32.xlu0 %v6190, 64
      %v6228 = vpop.permute.xlu0 %6227
      %6229 = vrot.lane.b32.xlu0 %v6194, 64
      %v6230 = vpop.permute.xlu0 %6229
      %6231 = vrot.lane.b32.xlu0 %v6198, 64
      %v6232 = vpop.permute.xlu0 %6231
      %6233 = vrot.lane.b32.xlu0 %v6202, 64
      %v6234 = vpop.permute.xlu0 %6233
      %6251 = vst.msk [vmem:[%s5210 + $0x5] sm:$0x1] %vm5025, %v6204
      %6252 = vst.msk [vmem:[%s5210 + $0x1d] sm:$0x1] %vm5025, %v6206
      %6253 = vst.msk [vmem:[%s5210 + $0x35] sm:$0x1] %vm5025, %v6208
      %6254 = vst.msk [vmem:[%s5210 + $0x4d] sm:$0x1] %vm5025, %v6210
      %6255 = vst.msk [vmem:[%s5210 + $0x65] sm:$0x1] %vm5025, %v6212
      %6256 = vst.msk [vmem:[%s5210 + $0x7d] sm:$0x1] %vm5025, %v6214
      %6257 = vst.msk [vmem:[%s5210 + $0x95] sm:$0x1] %vm5025, %v6216
      %6258 = vst.msk [vmem:[%s5210 + $0xad] sm:$0x1] %vm5025, %v6218
      %6259 = vst.msk [vmem:[%s5210 + $0xc5] sm:$0x1] %vm5025, %v6220
      %6260 = vst.msk [vmem:[%s5210 + $0xdd] sm:$0x1] %vm5025, %v6222
      %6261 = vst.msk [vmem:[%s5210 + $0xf5] sm:$0x1] %vm5025, %v6224
      %6262 = vst.msk [vmem:[%s5210 + $0x10d] sm:$0x1] %vm5025, %v6226
      %6263 = vst.msk [vmem:[%s5210 + $0x125] sm:$0x1] %vm5025, %v6228
      %6264 = vst.msk [vmem:[%s5210 + $0x13d] sm:$0x1] %vm5025, %v6230
      %6265 = vst.msk [vmem:[%s5210 + $0x155] sm:$0x1] %vm5025, %v6232
      %6266 = vst.msk [vmem:[%s5210 + $0x16d] sm:$0x1] %vm5025, %v6234
      %v6267 = vmul.f32 %v4753, -0.01171875
      %v6268 = vmul.f32 %v4757, -0.01171875
      %6271 = vrot.lane.b32.xlu0 %v5739, 64
      %v6272 = vpop.permute.xlu0 %6271
      %6273 = vrot.lane.b32.xlu0 %v5740, 64
      %v6274 = vpop.permute.xlu0 %6273
      %v6277 = vadd.f32 %v6267, %v6272
      %v6278 = vadd.f32 %v6268, %v6274
      %v6279 = vadd.f32 %v6277, %v5727
      %v6280 = vadd.f32 %v6278, %v5728
      %v6281 = vmul.f32 %v4796, 0.43359375
      %v6282 = vmul.f32 %v4800, 0.43359375
      %6285 = vrot.lane.b32.xlu0 %v6281, 64
      %v6286 = vpop.permute.xlu0 %6285
      %6287 = vrot.lane.b32.xlu0 %v6282, 64
      %v6288 = vpop.permute.xlu0 %6287
      %v6291 = vadd.f32 %v6279, %v6286
      %v6292 = vadd.f32 %v6280, %v6288
      %v6293 = vadd.f32 %v6291, %v6281
      %v6294 = vadd.f32 %v6292, %v6282
      %v6295 = vmul.f32 %v4837, 0.11328125
      %v6296 = vmul.f32 %v4841, 0.11328125
      %6299 = vrot.lane.b32.xlu0 %v6295, 64
      %v6300 = vpop.permute.xlu0 %6299
      %6301 = vrot.lane.b32.xlu0 %v6296, 64
      %v6302 = vpop.permute.xlu0 %6301
      %v6305 = vadd.f32 %v6293, %v6300
      %v6306 = vadd.f32 %v6294, %v6302
      %v6307 = vmul.f32 %v4837, -0.03515625
      %v6308 = vmul.f32 %v4841, -0.03515625
      %v6309 = vadd.f32 %v6305, %v6307
      %v6310 = vadd.f32 %v6306, %v6308
      %v6311 = vmul.f32 %v4839, -0.01171875
      %v6312 = vmul.f32 %v4843, -0.01171875
      %6315 = vrot.lane.b32.xlu0 %v6311, 64
      %v6316 = vpop.permute.xlu0 %6315
      %6317 = vrot.lane.b32.xlu0 %v6312, 64
      %v6318 = vpop.permute.xlu0 %6317
      %v6321 = vadd.f32 %v6309, %v6316
      %v6322 = vadd.f32 %v6310, %v6318
      %v6325 = vcombine.high %v6321, %v6321
      %v6327 = vunpack.c.l.s4 1966171168
      %v6328 = vunpack.c.0.s8 %v6327
      %v6329 = vlaneseq
      %v6330 = vshrl.u32 %v6329, 7
      %v6331 = vsub.s32 %v6328, %v6330
      %v6332 = vrot.slane %v6321, %v6331
      %v6334 = vunpack.c.l.s4 1966171168
      %v6335 = vunpack.c.0.s8 %v6334
      %v6336 = vlaneseq
      %v6337 = vshrl.u32 %v6336, 7
      %v6338 = vsub.s32 %v6335, %v6337
      %v6339 = vrot.slane %v6325, %v6338
      %v6340 = vcombine.high %v6332, %v6332
      %v6341 = vcombine.high %v6339, %v6339
      %v6343 = vunpack.c.l.s4 1966171168
      %v6344 = vunpack.c.0.s8 %v6343
      %v6345 = vlaneseq
      %v6346 = vshrl.u32 %v6345, 7
      %v6347 = vsub.s32 %v6344, %v6346
      %v6348 = vrot.slane %v6332, %v6347
      %v6350 = vunpack.c.l.s4 1966171168
      %v6351 = vunpack.c.0.s8 %v6350
      %v6352 = vlaneseq
      %v6353 = vshrl.u32 %v6352, 7
      %v6354 = vsub.s32 %v6351, %v6353
      %v6355 = vrot.slane %v6339, %v6354
      %v6357 = vunpack.c.l.s4 1966171168
      %v6358 = vunpack.c.0.s8 %v6357
      %v6359 = vlaneseq
      %v6360 = vshrl.u32 %v6359, 7
      %v6361 = vsub.s32 %v6358, %v6360
      %v6362 = vrot.slane %v6340, %v6361
      %v6364 = vunpack.c.l.s4 1966171168
      %v6365 = vunpack.c.0.s8 %v6364
      %v6366 = vlaneseq
      %v6367 = vshrl.u32 %v6366, 7
      %v6368 = vsub.s32 %v6365, %v6367
      %v6369 = vrot.slane %v6341, %v6368
      %v6370 = vcombine.high %v6348, %v6348
      %v6371 = vcombine.high %v6355, %v6355
      %v6372 = vcombine.high %v6362, %v6362
      %v6373 = vcombine.high %v6369, %v6369
      %v6374 = vcombine.high %v6322, %v6322
      %v6376 = vunpack.c.l.s4 1966171168
      %v6377 = vunpack.c.0.s8 %v6376
      %v6378 = vlaneseq
      %v6379 = vshrl.u32 %v6378, 7
      %v6380 = vsub.s32 %v6377, %v6379
      %v6381 = vrot.slane %v6322, %v6380
      %v6383 = vunpack.c.l.s4 1966171168
      %v6384 = vunpack.c.0.s8 %v6383
      %v6385 = vlaneseq
      %v6386 = vshrl.u32 %v6385, 7
      %v6387 = vsub.s32 %v6384, %v6386
      %v6388 = vrot.slane %v6374, %v6387
      %v6389 = vcombine.high %v6381, %v6381
      %v6390 = vcombine.high %v6388, %v6388
      %v6392 = vunpack.c.l.s4 1966171168
      %v6393 = vunpack.c.0.s8 %v6392
      %v6394 = vlaneseq
      %v6395 = vshrl.u32 %v6394, 7
      %v6396 = vsub.s32 %v6393, %v6395
      %v6397 = vrot.slane %v6381, %v6396
      %v6399 = vunpack.c.l.s4 1966171168
      %v6400 = vunpack.c.0.s8 %v6399
      %v6401 = vlaneseq
      %v6402 = vshrl.u32 %v6401, 7
      %v6403 = vsub.s32 %v6400, %v6402
      %v6404 = vrot.slane %v6388, %v6403
      %v6406 = vunpack.c.l.s4 1966171168
      %v6407 = vunpack.c.0.s8 %v6406
      %v6408 = vlaneseq
      %v6409 = vshrl.u32 %v6408, 7
      %v6410 = vsub.s32 %v6407, %v6409
      %v6411 = vrot.slane %v6389, %v6410
      %v6413 = vunpack.c.l.s4 1966171168
      %v6414 = vunpack.c.0.s8 %v6413
      %v6415 = vlaneseq
      %v6416 = vshrl.u32 %v6415, 7
      %v6417 = vsub.s32 %v6414, %v6416
      %v6418 = vrot.slane %v6390, %v6417
      %v6419 = vcombine.high %v6397, %v6397
      %v6420 = vcombine.high %v6404, %v6404
      %v6421 = vcombine.high %v6411, %v6411
      %v6422 = vcombine.high %v6418, %v6418
      %v6423 = vlaneseq
      %v6424 = vshrl.u32 %v6423, 7
      %v6425 = vsub.s32 0, %v6424
      %v6426 = vrot.slane %v6348, %v6425
      %v6427 = vlaneseq
      %v6428 = vshrl.u32 %v6427, 7
      %v6429 = vsub.s32 0, %v6428
      %v6430 = vrot.slane %v6362, %v6429
      %v6431 = vlaneseq
      %v6432 = vshrl.u32 %v6431, 7
      %v6433 = vsub.s32 0, %v6432
      %v6434 = vrot.slane %v6370, %v6433
      %v6435 = vlaneseq
      %v6436 = vshrl.u32 %v6435, 7
      %v6437 = vsub.s32 0, %v6436
      %v6438 = vrot.slane %v6372, %v6437
      %v6439 = vlaneseq
      %v6440 = vshrl.u32 %v6439, 7
      %v6441 = vsub.s32 0, %v6440
      %v6442 = vrot.slane %v6355, %v6441
      %v6443 = vlaneseq
      %v6444 = vshrl.u32 %v6443, 7
      %v6445 = vsub.s32 0, %v6444
      %v6446 = vrot.slane %v6369, %v6445
      %v6447 = vlaneseq
      %v6448 = vshrl.u32 %v6447, 7
      %v6449 = vsub.s32 0, %v6448
      %v6450 = vrot.slane %v6371, %v6449
      %v6451 = vlaneseq
      %v6452 = vshrl.u32 %v6451, 7
      %v6453 = vsub.s32 0, %v6452
      %v6454 = vrot.slane %v6373, %v6453
      %v6455 = vlaneseq
      %v6456 = vshrl.u32 %v6455, 7
      %v6457 = vsub.s32 0, %v6456
      %v6458 = vrot.slane %v6397, %v6457
      %v6459 = vlaneseq
      %v6460 = vshrl.u32 %v6459, 7
      %v6461 = vsub.s32 0, %v6460
      %v6462 = vrot.slane %v6411, %v6461
      %v6463 = vlaneseq
      %v6464 = vshrl.u32 %v6463, 7
      %v6465 = vsub.s32 0, %v6464
      %v6466 = vrot.slane %v6419, %v6465
      %v6467 = vlaneseq
      %v6468 = vshrl.u32 %v6467, 7
      %v6469 = vsub.s32 0, %v6468
      %v6470 = vrot.slane %v6421, %v6469
      %v6471 = vlaneseq
      %v6472 = vshrl.u32 %v6471, 7
      %v6473 = vsub.s32 0, %v6472
      %v6474 = vrot.slane %v6404, %v6473
      %v6475 = vlaneseq
      %v6476 = vshrl.u32 %v6475, 7
      %v6477 = vsub.s32 0, %v6476
      %v6478 = vrot.slane %v6418, %v6477
      %v6479 = vlaneseq
      %v6480 = vshrl.u32 %v6479, 7
      %v6481 = vsub.s32 0, %v6480
      %v6482 = vrot.slane %v6420, %v6481
      %v6483 = vlaneseq
      %v6484 = vshrl.u32 %v6483, 7
      %v6485 = vsub.s32 0, %v6484
      %v6486 = vrot.slane %v6422, %v6485
      %6487 = vrot.lane.b32.xlu0 %v6426, 64
      %v6488 = vpop.permute.xlu0 %6487
      %6489 = vrot.lane.b32.xlu0 %v6430, 64
      %v6490 = vpop.permute.xlu0 %6489
      %6491 = vrot.lane.b32.xlu0 %v6434, 64
      %v6492 = vpop.permute.xlu0 %6491
      %6493 = vrot.lane.b32.xlu0 %v6438, 64
      %v6494 = vpop.permute.xlu0 %6493
      %6495 = vrot.lane.b32.xlu0 %v6442, 64
      %v6496 = vpop.permute.xlu0 %6495
      %6497 = vrot.lane.b32.xlu0 %v6446, 64
      %v6498 = vpop.permute.xlu0 %6497
      %6499 = vrot.lane.b32.xlu0 %v6450, 64
      %v6500 = vpop.permute.xlu0 %6499
      %6501 = vrot.lane.b32.xlu0 %v6454, 64
      %v6502 = vpop.permute.xlu0 %6501
      %6503 = vrot.lane.b32.xlu0 %v6458, 64
      %v6504 = vpop.permute.xlu0 %6503
      %6505 = vrot.lane.b32.xlu0 %v6462, 64
      %v6506 = vpop.permute.xlu0 %6505
      %6507 = vrot.lane.b32.xlu0 %v6466, 64
      %v6508 = vpop.permute.xlu0 %6507
      %6509 = vrot.lane.b32.xlu0 %v6470, 64
      %v6510 = vpop.permute.xlu0 %6509
      %6511 = vrot.lane.b32.xlu0 %v6474, 64
      %v6512 = vpop.permute.xlu0 %6511
      %6513 = vrot.lane.b32.xlu0 %v6478, 64
      %v6514 = vpop.permute.xlu0 %6513
      %6515 = vrot.lane.b32.xlu0 %v6482, 64
      %v6516 = vpop.permute.xlu0 %6515
      %6517 = vrot.lane.b32.xlu0 %v6486, 64
      %v6518 = vpop.permute.xlu0 %6517
      %6535 = vst.msk [vmem:[%s5210 + $0x6] sm:$0x1] %vm5025, %v6488
      %6536 = vst.msk [vmem:[%s5210 + $0x1e] sm:$0x1] %vm5025, %v6490
      %6537 = vst.msk [vmem:[%s5210 + $0x36] sm:$0x1] %vm5025, %v6492
      %6538 = vst.msk [vmem:[%s5210 + $0x4e] sm:$0x1] %vm5025, %v6494
      %6539 = vst.msk [vmem:[%s5210 + $0x66] sm:$0x1] %vm5025, %v6496
      %6540 = vst.msk [vmem:[%s5210 + $0x7e] sm:$0x1] %vm5025, %v6498
      %6541 = vst.msk [vmem:[%s5210 + $0x96] sm:$0x1] %vm5025, %v6500
      %6542 = vst.msk [vmem:[%s5210 + $0xae] sm:$0x1] %vm5025, %v6502
      %6543 = vst.msk [vmem:[%s5210 + $0xc6] sm:$0x1] %vm5025, %v6504
      %6544 = vst.msk [vmem:[%s5210 + $0xde] sm:$0x1] %vm5025, %v6506
      %6545 = vst.msk [vmem:[%s5210 + $0xf6] sm:$0x1] %vm5025, %v6508
      %6546 = vst.msk [vmem:[%s5210 + $0x10e] sm:$0x1] %vm5025, %v6510
      %6547 = vst.msk [vmem:[%s5210 + $0x126] sm:$0x1] %vm5025, %v6512
      %6548 = vst.msk [vmem:[%s5210 + $0x13e] sm:$0x1] %vm5025, %v6514
      %6549 = vst.msk [vmem:[%s5210 + $0x156] sm:$0x1] %vm5025, %v6516
      %6550 = vst.msk [vmem:[%s5210 + $0x16e] sm:$0x1] %vm5025, %v6518
      %6553 = vrot.lane.b32.xlu0 %v6023, 64
      %v6554 = vpop.permute.xlu0 %6553
      %6555 = vrot.lane.b32.xlu0 %v6024, 64
      %v6556 = vpop.permute.xlu0 %6555
      %v6559 = vadd.f32 %v5455, %v6554
      %v6560 = vadd.f32 %v5456, %v6556
      %v6561 = vadd.f32 %v6559, %v6011
      %v6562 = vadd.f32 %v6560, %v6012
      %v6563 = vmul.f32 %v4837, 0.43359375
      %v6564 = vmul.f32 %v4841, 0.43359375
      %6567 = vrot.lane.b32.xlu0 %v6563, 64
      %v6568 = vpop.permute.xlu0 %6567
      %6569 = vrot.lane.b32.xlu0 %v6564, 64
      %v6570 = vpop.permute.xlu0 %6569
      %v6573 = vadd.f32 %v6561, %v6568
      %v6574 = vadd.f32 %v6562, %v6570
      %v6575 = vadd.f32 %v6573, %v6563
      %v6576 = vadd.f32 %v6574, %v6564
      %v6577 = vmul.f32 %v4839, 0.11328125
      %v6578 = vmul.f32 %v4843, 0.11328125
      %6581 = vrot.lane.b32.xlu0 %v6577, 64
      %v6582 = vpop.permute.xlu0 %6581
      %6583 = vrot.lane.b32.xlu0 %v6578, 64
      %v6584 = vpop.permute.xlu0 %6583
      %v6587 = vadd.f32 %v6575, %v6582
      %v6588 = vadd.f32 %v6576, %v6584
      %v6589 = vmul.f32 %v4839, -0.03515625
      %v6590 = vmul.f32 %v4843, -0.03515625
      %v6591 = vadd.f32 %v6587, %v6589
      %v6592 = vadd.f32 %v6588, %v6590
      %v6593 = vmul.f32 %v4880, -0.01171875
      %v6594 = vmul.f32 %v4884, -0.01171875
      %6597 = vrot.lane.b32.xlu0 %v6593, 64
      %v6598 = vpop.permute.xlu0 %6597
      %6599 = vrot.lane.b32.xlu0 %v6594, 64
      %v6600 = vpop.permute.xlu0 %6599
      %v6603 = vadd.f32 %v6591, %v6598
      %v6604 = vadd.f32 %v6592, %v6600
      %v6607 = vcombine.high %v6603, %v6603
      %v6609 = vunpack.c.l.s4 1966171168
      %v6610 = vunpack.c.0.s8 %v6609
      %v6611 = vlaneseq
      %v6612 = vshrl.u32 %v6611, 7
      %v6613 = vsub.s32 %v6610, %v6612
      %v6614 = vrot.slane %v6603, %v6613
      %v6616 = vunpack.c.l.s4 1966171168
      %v6617 = vunpack.c.0.s8 %v6616
      %v6618 = vlaneseq
      %v6619 = vshrl.u32 %v6618, 7
      %v6620 = vsub.s32 %v6617, %v6619
      %v6621 = vrot.slane %v6607, %v6620
      %v6622 = vcombine.high %v6614, %v6614
      %v6623 = vcombine.high %v6621, %v6621
      %v6625 = vunpack.c.l.s4 1966171168
      %v6626 = vunpack.c.0.s8 %v6625
      %v6627 = vlaneseq
      %v6628 = vshrl.u32 %v6627, 7
      %v6629 = vsub.s32 %v6626, %v6628
      %v6630 = vrot.slane %v6614, %v6629
      %v6632 = vunpack.c.l.s4 1966171168
      %v6633 = vunpack.c.0.s8 %v6632
      %v6634 = vlaneseq
      %v6635 = vshrl.u32 %v6634, 7
      %v6636 = vsub.s32 %v6633, %v6635
      %v6637 = vrot.slane %v6621, %v6636
      %v6639 = vunpack.c.l.s4 1966171168
      %v6640 = vunpack.c.0.s8 %v6639
      %v6641 = vlaneseq
      %v6642 = vshrl.u32 %v6641, 7
      %v6643 = vsub.s32 %v6640, %v6642
      %v6644 = vrot.slane %v6622, %v6643
      %v6646 = vunpack.c.l.s4 1966171168
      %v6647 = vunpack.c.0.s8 %v6646
      %v6648 = vlaneseq
      %v6649 = vshrl.u32 %v6648, 7
      %v6650 = vsub.s32 %v6647, %v6649
      %v6651 = vrot.slane %v6623, %v6650
      %v6652 = vcombine.high %v6630, %v6630
      %v6653 = vcombine.high %v6637, %v6637
      %v6654 = vcombine.high %v6644, %v6644
      %v6655 = vcombine.high %v6651, %v6651
      %v6656 = vcombine.high %v6604, %v6604
      %v6658 = vunpack.c.l.s4 1966171168
      %v6659 = vunpack.c.0.s8 %v6658
      %v6660 = vlaneseq
      %v6661 = vshrl.u32 %v6660, 7
      %v6662 = vsub.s32 %v6659, %v6661
      %v6663 = vrot.slane %v6604, %v6662
      %v6665 = vunpack.c.l.s4 1966171168
      %v6666 = vunpack.c.0.s8 %v6665
      %v6667 = vlaneseq
      %v6668 = vshrl.u32 %v6667, 7
      %v6669 = vsub.s32 %v6666, %v6668
      %v6670 = vrot.slane %v6656, %v6669
      %v6671 = vcombine.high %v6663, %v6663
      %v6672 = vcombine.high %v6670, %v6670
      %v6674 = vunpack.c.l.s4 1966171168
      %v6675 = vunpack.c.0.s8 %v6674
      %v6676 = vlaneseq
      %v6677 = vshrl.u32 %v6676, 7
      %v6678 = vsub.s32 %v6675, %v6677
      %v6679 = vrot.slane %v6663, %v6678
      %v6681 = vunpack.c.l.s4 1966171168
      %v6682 = vunpack.c.0.s8 %v6681
      %v6683 = vlaneseq
      %v6684 = vshrl.u32 %v6683, 7
      %v6685 = vsub.s32 %v6682, %v6684
      %v6686 = vrot.slane %v6670, %v6685
      %v6688 = vunpack.c.l.s4 1966171168
      %v6689 = vunpack.c.0.s8 %v6688
      %v6690 = vlaneseq
      %v6691 = vshrl.u32 %v6690, 7
      %v6692 = vsub.s32 %v6689, %v6691
      %v6693 = vrot.slane %v6671, %v6692
      %v6695 = vunpack.c.l.s4 1966171168
      %v6696 = vunpack.c.0.s8 %v6695
      %v6697 = vlaneseq
      %v6698 = vshrl.u32 %v6697, 7
      %v6699 = vsub.s32 %v6696, %v6698
      %v6700 = vrot.slane %v6672, %v6699
      %v6701 = vcombine.high %v6679, %v6679
      %v6702 = vcombine.high %v6686, %v6686
      %v6703 = vcombine.high %v6693, %v6693
      %v6704 = vcombine.high %v6700, %v6700
      %v6705 = vlaneseq
      %v6706 = vshrl.u32 %v6705, 7
      %v6707 = vsub.s32 0, %v6706
      %v6708 = vrot.slane %v6630, %v6707
      %v6709 = vlaneseq
      %v6710 = vshrl.u32 %v6709, 7
      %v6711 = vsub.s32 0, %v6710
      %v6712 = vrot.slane %v6644, %v6711
      %v6713 = vlaneseq
      %v6714 = vshrl.u32 %v6713, 7
      %v6715 = vsub.s32 0, %v6714
      %v6716 = vrot.slane %v6652, %v6715
      %v6717 = vlaneseq
      %v6718 = vshrl.u32 %v6717, 7
      %v6719 = vsub.s32 0, %v6718
      %v6720 = vrot.slane %v6654, %v6719
      %v6721 = vlaneseq
      %v6722 = vshrl.u32 %v6721, 7
      %v6723 = vsub.s32 0, %v6722
      %v6724 = vrot.slane %v6637, %v6723
      %v6725 = vlaneseq
      %v6726 = vshrl.u32 %v6725, 7
      %v6727 = vsub.s32 0, %v6726
      %v6728 = vrot.slane %v6651, %v6727
      %v6729 = vlaneseq
      %v6730 = vshrl.u32 %v6729, 7
      %v6731 = vsub.s32 0, %v6730
      %v6732 = vrot.slane %v6653, %v6731
      %v6733 = vlaneseq
      %v6734 = vshrl.u32 %v6733, 7
      %v6735 = vsub.s32 0, %v6734
      %v6736 = vrot.slane %v6655, %v6735
      %v6737 = vlaneseq
      %v6738 = vshrl.u32 %v6737, 7
      %v6739 = vsub.s32 0, %v6738
      %v6740 = vrot.slane %v6679, %v6739
      %v6741 = vlaneseq
      %v6742 = vshrl.u32 %v6741, 7
      %v6743 = vsub.s32 0, %v6742
      %v6744 = vrot.slane %v6693, %v6743
      %v6745 = vlaneseq
      %v6746 = vshrl.u32 %v6745, 7
      %v6747 = vsub.s32 0, %v6746
      %v6748 = vrot.slane %v6701, %v6747
      %v6749 = vlaneseq
      %v6750 = vshrl.u32 %v6749, 7
      %v6751 = vsub.s32 0, %v6750
      %v6752 = vrot.slane %v6703, %v6751
      %v6753 = vlaneseq
      %v6754 = vshrl.u32 %v6753, 7
      %v6755 = vsub.s32 0, %v6754
      %v6756 = vrot.slane %v6686, %v6755
      %v6757 = vlaneseq
      %v6758 = vshrl.u32 %v6757, 7
      %v6759 = vsub.s32 0, %v6758
      %v6760 = vrot.slane %v6700, %v6759
      %v6761 = vlaneseq
      %v6762 = vshrl.u32 %v6761, 7
      %v6763 = vsub.s32 0, %v6762
      %v6764 = vrot.slane %v6702, %v6763
      %v6765 = vlaneseq
      %v6766 = vshrl.u32 %v6765, 7
      %v6767 = vsub.s32 0, %v6766
      %v6768 = vrot.slane %v6704, %v6767
      %6769 = vrot.lane.b32.xlu0 %v6708, 64
      %v6770 = vpop.permute.xlu0 %6769
      %6771 = vrot.lane.b32.xlu0 %v6712, 64
      %v6772 = vpop.permute.xlu0 %6771
      %6773 = vrot.lane.b32.xlu0 %v6716, 64
      %v6774 = vpop.permute.xlu0 %6773
      %6775 = vrot.lane.b32.xlu0 %v6720, 64
      %v6776 = vpop.permute.xlu0 %6775
      %6777 = vrot.lane.b32.xlu0 %v6724, 64
      %v6778 = vpop.permute.xlu0 %6777
      %6779 = vrot.lane.b32.xlu0 %v6728, 64
      %v6780 = vpop.permute.xlu0 %6779
      %6781 = vrot.lane.b32.xlu0 %v6732, 64
      %v6782 = vpop.permute.xlu0 %6781
      %6783 = vrot.lane.b32.xlu0 %v6736, 64
      %v6784 = vpop.permute.xlu0 %6783
      %6785 = vrot.lane.b32.xlu0 %v6740, 64
      %v6786 = vpop.permute.xlu0 %6785
      %6787 = vrot.lane.b32.xlu0 %v6744, 64
      %v6788 = vpop.permute.xlu0 %6787
      %6789 = vrot.lane.b32.xlu0 %v6748, 64
      %v6790 = vpop.permute.xlu0 %6789
      %6791 = vrot.lane.b32.xlu0 %v6752, 64
      %v6792 = vpop.permute.xlu0 %6791
      %6793 = vrot.lane.b32.xlu0 %v6756, 64
      %v6794 = vpop.permute.xlu0 %6793
      %6795 = vrot.lane.b32.xlu0 %v6760, 64
      %v6796 = vpop.permute.xlu0 %6795
      %6797 = vrot.lane.b32.xlu0 %v6764, 64
      %v6798 = vpop.permute.xlu0 %6797
      %6799 = vrot.lane.b32.xlu0 %v6768, 64
      %v6800 = vpop.permute.xlu0 %6799
      %6817 = vst.msk [vmem:[%s5210 + $0x7] sm:$0x1] %vm5025, %v6770
      %6818 = vst.msk [vmem:[%s5210 + $0x1f] sm:$0x1] %vm5025, %v6772
      %6819 = vst.msk [vmem:[%s5210 + $0x37] sm:$0x1] %vm5025, %v6774
      %6820 = vst.msk [vmem:[%s5210 + $0x4f] sm:$0x1] %vm5025, %v6776
      %6821 = vst.msk [vmem:[%s5210 + $0x67] sm:$0x1] %vm5025, %v6778
      %6822 = vst.msk [vmem:[%s5210 + $0x7f] sm:$0x1] %vm5025, %v6780
      %6823 = vst.msk [vmem:[%s5210 + $0x97] sm:$0x1] %vm5025, %v6782
      %6824 = vst.msk [vmem:[%s5210 + $0xaf] sm:$0x1] %vm5025, %v6784
      %6825 = vst.msk [vmem:[%s5210 + $0xc7] sm:$0x1] %vm5025, %v6786
      %6826 = vst.msk [vmem:[%s5210 + $0xdf] sm:$0x1] %vm5025, %v6788
      %6827 = vst.msk [vmem:[%s5210 + $0xf7] sm:$0x1] %vm5025, %v6790
      %6828 = vst.msk [vmem:[%s5210 + $0x10f] sm:$0x1] %vm5025, %v6792
      %6829 = vst.msk [vmem:[%s5210 + $0x127] sm:$0x1] %vm5025, %v6794
      %6830 = vst.msk [vmem:[%s5210 + $0x13f] sm:$0x1] %vm5025, %v6796
      %6831 = vst.msk [vmem:[%s5210 + $0x157] sm:$0x1] %vm5025, %v6798
      %6832 = vst.msk [vmem:[%s5210 + $0x16f] sm:$0x1] %vm5025, %v6800
      %6835 = vrot.lane.b32.xlu0 %v6307, 64
      %v6836 = vpop.permute.xlu0 %6835
      %6837 = vrot.lane.b32.xlu0 %v6308, 64
      %v6838 = vpop.permute.xlu0 %6837
      %v6841 = vadd.f32 %v5743, %v6836
      %v6842 = vadd.f32 %v5744, %v6838
      %v6843 = vadd.f32 %v6841, %v6295
      %v6844 = vadd.f32 %v6842, %v6296
      %v6845 = vmul.f32 %v4839, 0.43359375
      %v6846 = vmul.f32 %v4843, 0.43359375
      %6849 = vrot.lane.b32.xlu0 %v6845, 64
      %v6850 = vpop.permute.xlu0 %6849
      %6851 = vrot.lane.b32.xlu0 %v6846, 64
      %v6852 = vpop.permute.xlu0 %6851
      %v6855 = vadd.f32 %v6843, %v6850
      %v6856 = vadd.f32 %v6844, %v6852
      %v6857 = vadd.f32 %v6855, %v6845
      %v6858 = vadd.f32 %v6856, %v6846
      %v6859 = vmul.f32 %v4880, 0.11328125
      %v6860 = vmul.f32 %v4884, 0.11328125
      %6863 = vrot.lane.b32.xlu0 %v6859, 64
      %v6864 = vpop.permute.xlu0 %6863
      %6865 = vrot.lane.b32.xlu0 %v6860, 64
      %v6866 = vpop.permute.xlu0 %6865
      %v6869 = vadd.f32 %v6857, %v6864
      %v6870 = vadd.f32 %v6858, %v6866
      %v6871 = vmul.f32 %v4880, -0.03515625
      %v6872 = vmul.f32 %v4884, -0.03515625
      %v6873 = vadd.f32 %v6869, %v6871
      %v6874 = vadd.f32 %v6870, %v6872
      %v6875 = vmul.f32 %v4882, -0.01171875
      %v6876 = vmul.f32 %v4886, -0.01171875
      %6879 = vrot.lane.b32.xlu0 %v6875, 64
      %v6880 = vpop.permute.xlu0 %6879
      %6881 = vrot.lane.b32.xlu0 %v6876, 64
      %v6882 = vpop.permute.xlu0 %6881
      %v6885 = vadd.f32 %v6873, %v6880
      %v6886 = vadd.f32 %v6874, %v6882
      %v6889 = vcombine.high %v6885, %v6885
      %v6891 = vunpack.c.l.s4 1966171168
      %v6892 = vunpack.c.0.s8 %v6891
      %v6893 = vlaneseq
      %v6894 = vshrl.u32 %v6893, 7
      %v6895 = vsub.s32 %v6892, %v6894
      %v6896 = vrot.slane %v6885, %v6895
      %v6898 = vunpack.c.l.s4 1966171168
      %v6899 = vunpack.c.0.s8 %v6898
      %v6900 = vlaneseq
      %v6901 = vshrl.u32 %v6900, 7
      %v6902 = vsub.s32 %v6899, %v6901
      %v6903 = vrot.slane %v6889, %v6902
      %v6904 = vcombine.high %v6896, %v6896
      %v6905 = vcombine.high %v6903, %v6903
      %v6907 = vunpack.c.l.s4 1966171168
      %v6908 = vunpack.c.0.s8 %v6907
      %v6909 = vlaneseq
      %v6910 = vshrl.u32 %v6909, 7
      %v6911 = vsub.s32 %v6908, %v6910
      %v6912 = vrot.slane %v6896, %v6911
      %v6914 = vunpack.c.l.s4 1966171168
      %v6915 = vunpack.c.0.s8 %v6914
      %v6916 = vlaneseq
      %v6917 = vshrl.u32 %v6916, 7
      %v6918 = vsub.s32 %v6915, %v6917
      %v6919 = vrot.slane %v6903, %v6918
      %v6921 = vunpack.c.l.s4 1966171168
      %v6922 = vunpack.c.0.s8 %v6921
      %v6923 = vlaneseq
      %v6924 = vshrl.u32 %v6923, 7
      %v6925 = vsub.s32 %v6922, %v6924
      %v6926 = vrot.slane %v6904, %v6925
      %v6928 = vunpack.c.l.s4 1966171168
      %v6929 = vunpack.c.0.s8 %v6928
      %v6930 = vlaneseq
      %v6931 = vshrl.u32 %v6930, 7
      %v6932 = vsub.s32 %v6929, %v6931
      %v6933 = vrot.slane %v6905, %v6932
      %v6934 = vcombine.high %v6912, %v6912
      %v6935 = vcombine.high %v6919, %v6919
      %v6936 = vcombine.high %v6926, %v6926
      %v6937 = vcombine.high %v6933, %v6933
      %v6938 = vcombine.high %v6886, %v6886
      %v6940 = vunpack.c.l.s4 1966171168
      %v6941 = vunpack.c.0.s8 %v6940
      %v6942 = vlaneseq
      %v6943 = vshrl.u32 %v6942, 7
      %v6944 = vsub.s32 %v6941, %v6943
      %v6945 = vrot.slane %v6886, %v6944
      %v6947 = vunpack.c.l.s4 1966171168
      %v6948 = vunpack.c.0.s8 %v6947
      %v6949 = vlaneseq
      %v6950 = vshrl.u32 %v6949, 7
      %v6951 = vsub.s32 %v6948, %v6950
      %v6952 = vrot.slane %v6938, %v6951
      %v6953 = vcombine.high %v6945, %v6945
      %v6954 = vcombine.high %v6952, %v6952
      %v6956 = vunpack.c.l.s4 1966171168
      %v6957 = vunpack.c.0.s8 %v6956
      %v6958 = vlaneseq
      %v6959 = vshrl.u32 %v6958, 7
      %v6960 = vsub.s32 %v6957, %v6959
      %v6961 = vrot.slane %v6945, %v6960
      %v6963 = vunpack.c.l.s4 1966171168
      %v6964 = vunpack.c.0.s8 %v6963
      %v6965 = vlaneseq
      %v6966 = vshrl.u32 %v6965, 7
      %v6967 = vsub.s32 %v6964, %v6966
      %v6968 = vrot.slane %v6952, %v6967
      %v6970 = vunpack.c.l.s4 1966171168
      %v6971 = vunpack.c.0.s8 %v6970
      %v6972 = vlaneseq
      %v6973 = vshrl.u32 %v6972, 7
      %v6974 = vsub.s32 %v6971, %v6973
      %v6975 = vrot.slane %v6953, %v6974
      %v6977 = vunpack.c.l.s4 1966171168
      %v6978 = vunpack.c.0.s8 %v6977
      %v6979 = vlaneseq
      %v6980 = vshrl.u32 %v6979, 7
      %v6981 = vsub.s32 %v6978, %v6980
      %v6982 = vrot.slane %v6954, %v6981
      %v6983 = vcombine.high %v6961, %v6961
      %v6984 = vcombine.high %v6968, %v6968
      %v6985 = vcombine.high %v6975, %v6975
      %v6986 = vcombine.high %v6982, %v6982
      %v6987 = vlaneseq
      %v6988 = vshrl.u32 %v6987, 7
      %v6989 = vsub.s32 0, %v6988
      %v6990 = vrot.slane %v6912, %v6989
      %v6991 = vlaneseq
      %v6992 = vshrl.u32 %v6991, 7
      %v6993 = vsub.s32 0, %v6992
      %v6994 = vrot.slane %v6926, %v6993
      %v6995 = vlaneseq
      %v6996 = vshrl.u32 %v6995, 7
      %v6997 = vsub.s32 0, %v6996
      %v6998 = vrot.slane %v6934, %v6997
      %v6999 = vlaneseq
      %v7000 = vshrl.u32 %v6999, 7
      %v7001 = vsub.s32 0, %v7000
      %v7002 = vrot.slane %v6936, %v7001
      %v7003 = vlaneseq
      %v7004 = vshrl.u32 %v7003, 7
      %v7005 = vsub.s32 0, %v7004
      %v7006 = vrot.slane %v6919, %v7005
      %v7007 = vlaneseq
      %v7008 = vshrl.u32 %v7007, 7
      %v7009 = vsub.s32 0, %v7008
      %v7010 = vrot.slane %v6933, %v7009
      %v7011 = vlaneseq
      %v7012 = vshrl.u32 %v7011, 7
      %v7013 = vsub.s32 0, %v7012
      %v7014 = vrot.slane %v6935, %v7013
      %v7015 = vlaneseq
      %v7016 = vshrl.u32 %v7015, 7
      %v7017 = vsub.s32 0, %v7016
      %v7018 = vrot.slane %v6937, %v7017
      %v7019 = vlaneseq
      %v7020 = vshrl.u32 %v7019, 7
      %v7021 = vsub.s32 0, %v7020
      %v7022 = vrot.slane %v6961, %v7021
      %v7023 = vlaneseq
      %v7024 = vshrl.u32 %v7023, 7
      %v7025 = vsub.s32 0, %v7024
      %v7026 = vrot.slane %v6975, %v7025
      %v7027 = vlaneseq
      %v7028 = vshrl.u32 %v7027, 7
      %v7029 = vsub.s32 0, %v7028
      %v7030 = vrot.slane %v6983, %v7029
      %v7031 = vlaneseq
      %v7032 = vshrl.u32 %v7031, 7
      %v7033 = vsub.s32 0, %v7032
      %v7034 = vrot.slane %v6985, %v7033
      %v7035 = vlaneseq
      %v7036 = vshrl.u32 %v7035, 7
      %v7037 = vsub.s32 0, %v7036
      %v7038 = vrot.slane %v6968, %v7037
      %v7039 = vlaneseq
      %v7040 = vshrl.u32 %v7039, 7
      %v7041 = vsub.s32 0, %v7040
      %v7042 = vrot.slane %v6982, %v7041
      %v7043 = vlaneseq
      %v7044 = vshrl.u32 %v7043, 7
      %v7045 = vsub.s32 0, %v7044
      %v7046 = vrot.slane %v6984, %v7045
      %v7047 = vlaneseq
      %v7048 = vshrl.u32 %v7047, 7
      %v7049 = vsub.s32 0, %v7048
      %v7050 = vrot.slane %v6986, %v7049
      %7051 = vrot.lane.b32.xlu0 %v6990, 64
      %v7052 = vpop.permute.xlu0 %7051
      %7053 = vrot.lane.b32.xlu0 %v6994, 64
      %v7054 = vpop.permute.xlu0 %7053
      %7055 = vrot.lane.b32.xlu0 %v6998, 64
      %v7056 = vpop.permute.xlu0 %7055
      %7057 = vrot.lane.b32.xlu0 %v7002, 64
      %v7058 = vpop.permute.xlu0 %7057
      %7059 = vrot.lane.b32.xlu0 %v7006, 64
      %v7060 = vpop.permute.xlu0 %7059
      %7061 = vrot.lane.b32.xlu0 %v7010, 64
      %v7062 = vpop.permute.xlu0 %7061
      %7063 = vrot.lane.b32.xlu0 %v7014, 64
      %v7064 = vpop.permute.xlu0 %7063
      %7065 = vrot.lane.b32.xlu0 %v7018, 64
      %v7066 = vpop.permute.xlu0 %7065
      %7067 = vrot.lane.b32.xlu0 %v7022, 64
      %v7068 = vpop.permute.xlu0 %7067
      %7069 = vrot.lane.b32.xlu0 %v7026, 64
      %v7070 = vpop.permute.xlu0 %7069
      %7071 = vrot.lane.b32.xlu0 %v7030, 64
      %v7072 = vpop.permute.xlu0 %7071
      %7073 = vrot.lane.b32.xlu0 %v7034, 64
      %v7074 = vpop.permute.xlu0 %7073
      %7075 = vrot.lane.b32.xlu0 %v7038, 64
      %v7076 = vpop.permute.xlu0 %7075
      %7077 = vrot.lane.b32.xlu0 %v7042, 64
      %v7078 = vpop.permute.xlu0 %7077
      %7079 = vrot.lane.b32.xlu0 %v7046, 64
      %v7080 = vpop.permute.xlu0 %7079
      %7081 = vrot.lane.b32.xlu0 %v7050, 64
      %v7082 = vpop.permute.xlu0 %7081
      %7099 = vst.msk [vmem:[%s5210 + $0x8] sm:$0x1] %vm5025, %v7052
      %7100 = vst.msk [vmem:[%s5210 + $0x20] sm:$0x1] %vm5025, %v7054
      %7101 = vst.msk [vmem:[%s5210 + $0x38] sm:$0x1] %vm5025, %v7056
      %7102 = vst.msk [vmem:[%s5210 + $0x50] sm:$0x1] %vm5025, %v7058
      %7103 = vst.msk [vmem:[%s5210 + $0x68] sm:$0x1] %vm5025, %v7060
      %7104 = vst.msk [vmem:[%s5210 + $0x80] sm:$0x1] %vm5025, %v7062
      %7105 = vst.msk [vmem:[%s5210 + $0x98] sm:$0x1] %vm5025, %v7064
      %7106 = vst.msk [vmem:[%s5210 + $0xb0] sm:$0x1] %vm5025, %v7066
      %7107 = vst.msk [vmem:[%s5210 + $0xc8] sm:$0x1] %vm5025, %v7068
      %7108 = vst.msk [vmem:[%s5210 + $0xe0] sm:$0x1] %vm5025, %v7070
      %7109 = vst.msk [vmem:[%s5210 + $0xf8] sm:$0x1] %vm5025, %v7072
      %7110 = vst.msk [vmem:[%s5210 + $0x110] sm:$0x1] %vm5025, %v7074
      %7111 = vst.msk [vmem:[%s5210 + $0x128] sm:$0x1] %vm5025, %v7076
      %7112 = vst.msk [vmem:[%s5210 + $0x140] sm:$0x1] %vm5025, %v7078
      %7113 = vst.msk [vmem:[%s5210 + $0x158] sm:$0x1] %vm5025, %v7080
      %7114 = vst.msk [vmem:[%s5210 + $0x170] sm:$0x1] %vm5025, %v7082
      %7117 = vrot.lane.b32.xlu0 %v6589, 64
      %v7118 = vpop.permute.xlu0 %7117
      %7119 = vrot.lane.b32.xlu0 %v6590, 64
      %v7120 = vpop.permute.xlu0 %7119
      %v7123 = vadd.f32 %v6027, %v7118
      %v7124 = vadd.f32 %v6028, %v7120
      %v7125 = vadd.f32 %v7123, %v6577
      %v7126 = vadd.f32 %v7124, %v6578
      %v7127 = vmul.f32 %v4880, 0.43359375
      %v7128 = vmul.f32 %v4884, 0.43359375
      %7131 = vrot.lane.b32.xlu0 %v7127, 64
      %v7132 = vpop.permute.xlu0 %7131
      %7133 = vrot.lane.b32.xlu0 %v7128, 64
      %v7134 = vpop.permute.xlu0 %7133
      %v7137 = vadd.f32 %v7125, %v7132
      %v7138 = vadd.f32 %v7126, %v7134
      %v7139 = vadd.f32 %v7137, %v7127
      %v7140 = vadd.f32 %v7138, %v7128
      %v7141 = vmul.f32 %v4882, 0.11328125
      %v7142 = vmul.f32 %v4886, 0.11328125
      %7145 = vrot.lane.b32.xlu0 %v7141, 64
      %v7146 = vpop.permute.xlu0 %7145
      %7147 = vrot.lane.b32.xlu0 %v7142, 64
      %v7148 = vpop.permute.xlu0 %7147
      %v7151 = vadd.f32 %v7139, %v7146
      %v7152 = vadd.f32 %v7140, %v7148
      %v7153 = vmul.f32 %v4882, -0.03515625
      %v7154 = vmul.f32 %v4886, -0.03515625
      %v7155 = vadd.f32 %v7151, %v7153
      %v7156 = vadd.f32 %v7152, %v7154
      %v7157 = vmul.f32 %v4923, -0.01171875
      %v7158 = vmul.f32 %v4927, -0.01171875
      %7161 = vrot.lane.b32.xlu0 %v7157, 64
      %v7162 = vpop.permute.xlu0 %7161
      %7163 = vrot.lane.b32.xlu0 %v7158, 64
      %v7164 = vpop.permute.xlu0 %7163
      %v7167 = vadd.f32 %v7155, %v7162
      %v7168 = vadd.f32 %v7156, %v7164
      %v7171 = vcombine.high %v7167, %v7167
      %v7173 = vunpack.c.l.s4 1966171168
      %v7174 = vunpack.c.0.s8 %v7173
      %v7175 = vlaneseq
      %v7176 = vshrl.u32 %v7175, 7
      %v7177 = vsub.s32 %v7174, %v7176
      %v7178 = vrot.slane %v7167, %v7177
      %v7180 = vunpack.c.l.s4 1966171168
      %v7181 = vunpack.c.0.s8 %v7180
      %v7182 = vlaneseq
      %v7183 = vshrl.u32 %v7182, 7
      %v7184 = vsub.s32 %v7181, %v7183
      %v7185 = vrot.slane %v7171, %v7184
      %v7186 = vcombine.high %v7178, %v7178
      %v7187 = vcombine.high %v7185, %v7185
      %v7189 = vunpack.c.l.s4 1966171168
      %v7190 = vunpack.c.0.s8 %v7189
      %v7191 = vlaneseq
      %v7192 = vshrl.u32 %v7191, 7
      %v7193 = vsub.s32 %v7190, %v7192
      %v7194 = vrot.slane %v7178, %v7193
      %v7196 = vunpack.c.l.s4 1966171168
      %v7197 = vunpack.c.0.s8 %v7196
      %v7198 = vlaneseq
      %v7199 = vshrl.u32 %v7198, 7
      %v7200 = vsub.s32 %v7197, %v7199
      %v7201 = vrot.slane %v7185, %v7200
      %v7203 = vunpack.c.l.s4 1966171168
      %v7204 = vunpack.c.0.s8 %v7203
      %v7205 = vlaneseq
      %v7206 = vshrl.u32 %v7205, 7
      %v7207 = vsub.s32 %v7204, %v7206
      %v7208 = vrot.slane %v7186, %v7207
      %v7210 = vunpack.c.l.s4 1966171168
      %v7211 = vunpack.c.0.s8 %v7210
      %v7212 = vlaneseq
      %v7213 = vshrl.u32 %v7212, 7
      %v7214 = vsub.s32 %v7211, %v7213
      %v7215 = vrot.slane %v7187, %v7214
      %v7216 = vcombine.high %v7194, %v7194
      %v7217 = vcombine.high %v7201, %v7201
      %v7218 = vcombine.high %v7208, %v7208
      %v7219 = vcombine.high %v7215, %v7215
      %v7220 = vcombine.high %v7168, %v7168
      %v7222 = vunpack.c.l.s4 1966171168
      %v7223 = vunpack.c.0.s8 %v7222
      %v7224 = vlaneseq
      %v7225 = vshrl.u32 %v7224, 7
      %v7226 = vsub.s32 %v7223, %v7225
      %v7227 = vrot.slane %v7168, %v7226
      %v7229 = vunpack.c.l.s4 1966171168
      %v7230 = vunpack.c.0.s8 %v7229
      %v7231 = vlaneseq
      %v7232 = vshrl.u32 %v7231, 7
      %v7233 = vsub.s32 %v7230, %v7232
      %v7234 = vrot.slane %v7220, %v7233
      %v7235 = vcombine.high %v7227, %v7227
      %v7236 = vcombine.high %v7234, %v7234
      %v7238 = vunpack.c.l.s4 1966171168
      %v7239 = vunpack.c.0.s8 %v7238
      %v7240 = vlaneseq
      %v7241 = vshrl.u32 %v7240, 7
      %v7242 = vsub.s32 %v7239, %v7241
      %v7243 = vrot.slane %v7227, %v7242
      %v7245 = vunpack.c.l.s4 1966171168
      %v7246 = vunpack.c.0.s8 %v7245
      %v7247 = vlaneseq
      %v7248 = vshrl.u32 %v7247, 7
      %v7249 = vsub.s32 %v7246, %v7248
      %v7250 = vrot.slane %v7234, %v7249
      %v7252 = vunpack.c.l.s4 1966171168
      %v7253 = vunpack.c.0.s8 %v7252
      %v7254 = vlaneseq
      %v7255 = vshrl.u32 %v7254, 7
      %v7256 = vsub.s32 %v7253, %v7255
      %v7257 = vrot.slane %v7235, %v7256
      %v7259 = vunpack.c.l.s4 1966171168
      %v7260 = vunpack.c.0.s8 %v7259
      %v7261 = vlaneseq
      %v7262 = vshrl.u32 %v7261, 7
      %v7263 = vsub.s32 %v7260, %v7262
      %v7264 = vrot.slane %v7236, %v7263
      %v7265 = vcombine.high %v7243, %v7243
      %v7266 = vcombine.high %v7250, %v7250
      %v7267 = vcombine.high %v7257, %v7257
      %v7268 = vcombine.high %v7264, %v7264
      %v7269 = vlaneseq
      %v7270 = vshrl.u32 %v7269, 7
      %v7271 = vsub.s32 0, %v7270
      %v7272 = vrot.slane %v7194, %v7271
      %v7273 = vlaneseq
      %v7274 = vshrl.u32 %v7273, 7
      %v7275 = vsub.s32 0, %v7274
      %v7276 = vrot.slane %v7208, %v7275
      %v7277 = vlaneseq
      %v7278 = vshrl.u32 %v7277, 7
      %v7279 = vsub.s32 0, %v7278
      %v7280 = vrot.slane %v7216, %v7279
      %v7281 = vlaneseq
      %v7282 = vshrl.u32 %v7281, 7
      %v7283 = vsub.s32 0, %v7282
      %v7284 = vrot.slane %v7218, %v7283
      %v7285 = vlaneseq
      %v7286 = vshrl.u32 %v7285, 7
      %v7287 = vsub.s32 0, %v7286
      %v7288 = vrot.slane %v7201, %v7287
      %v7289 = vlaneseq
      %v7290 = vshrl.u32 %v7289, 7
      %v7291 = vsub.s32 0, %v7290
      %v7292 = vrot.slane %v7215, %v7291
      %v7293 = vlaneseq
      %v7294 = vshrl.u32 %v7293, 7
      %v7295 = vsub.s32 0, %v7294
      %v7296 = vrot.slane %v7217, %v7295
      %v7297 = vlaneseq
      %v7298 = vshrl.u32 %v7297, 7
      %v7299 = vsub.s32 0, %v7298
      %v7300 = vrot.slane %v7219, %v7299
      %v7301 = vlaneseq
      %v7302 = vshrl.u32 %v7301, 7
      %v7303 = vsub.s32 0, %v7302
      %v7304 = vrot.slane %v7243, %v7303
      %v7305 = vlaneseq
      %v7306 = vshrl.u32 %v7305, 7
      %v7307 = vsub.s32 0, %v7306
      %v7308 = vrot.slane %v7257, %v7307
      %v7309 = vlaneseq
      %v7310 = vshrl.u32 %v7309, 7
      %v7311 = vsub.s32 0, %v7310
      %v7312 = vrot.slane %v7265, %v7311
      %v7313 = vlaneseq
      %v7314 = vshrl.u32 %v7313, 7
      %v7315 = vsub.s32 0, %v7314
      %v7316 = vrot.slane %v7267, %v7315
      %v7317 = vlaneseq
      %v7318 = vshrl.u32 %v7317, 7
      %v7319 = vsub.s32 0, %v7318
      %v7320 = vrot.slane %v7250, %v7319
      %v7321 = vlaneseq
      %v7322 = vshrl.u32 %v7321, 7
      %v7323 = vsub.s32 0, %v7322
      %v7324 = vrot.slane %v7264, %v7323
      %v7325 = vlaneseq
      %v7326 = vshrl.u32 %v7325, 7
      %v7327 = vsub.s32 0, %v7326
      %v7328 = vrot.slane %v7266, %v7327
      %v7329 = vlaneseq
      %v7330 = vshrl.u32 %v7329, 7
      %v7331 = vsub.s32 0, %v7330
      %v7332 = vrot.slane %v7268, %v7331
      %7333 = vrot.lane.b32.xlu0 %v7272, 64
      %v7334 = vpop.permute.xlu0 %7333
      %7335 = vrot.lane.b32.xlu0 %v7276, 64
      %v7336 = vpop.permute.xlu0 %7335
      %7337 = vrot.lane.b32.xlu0 %v7280, 64
      %v7338 = vpop.permute.xlu0 %7337
      %7339 = vrot.lane.b32.xlu0 %v7284, 64
      %v7340 = vpop.permute.xlu0 %7339
      %7341 = vrot.lane.b32.xlu0 %v7288, 64
      %v7342 = vpop.permute.xlu0 %7341
      %7343 = vrot.lane.b32.xlu0 %v7292, 64
      %v7344 = vpop.permute.xlu0 %7343
      %7345 = vrot.lane.b32.xlu0 %v7296, 64
      %v7346 = vpop.permute.xlu0 %7345
      %7347 = vrot.lane.b32.xlu0 %v7300, 64
      %v7348 = vpop.permute.xlu0 %7347
      %7349 = vrot.lane.b32.xlu0 %v7304, 64
      %v7350 = vpop.permute.xlu0 %7349
      %7351 = vrot.lane.b32.xlu0 %v7308, 64
      %v7352 = vpop.permute.xlu0 %7351
      %7353 = vrot.lane.b32.xlu0 %v7312, 64
      %v7354 = vpop.permute.xlu0 %7353
      %7355 = vrot.lane.b32.xlu0 %v7316, 64
      %v7356 = vpop.permute.xlu0 %7355
      %7357 = vrot.lane.b32.xlu0 %v7320, 64
      %v7358 = vpop.permute.xlu0 %7357
      %7359 = vrot.lane.b32.xlu0 %v7324, 64
      %v7360 = vpop.permute.xlu0 %7359
      %7361 = vrot.lane.b32.xlu0 %v7328, 64
      %v7362 = vpop.permute.xlu0 %7361
      %7363 = vrot.lane.b32.xlu0 %v7332, 64
      %v7364 = vpop.permute.xlu0 %7363
      %7381 = vst.msk [vmem:[%s5210 + $0x9] sm:$0x1] %vm5025, %v7334
      %7382 = vst.msk [vmem:[%s5210 + $0x21] sm:$0x1] %vm5025, %v7336
      %7383 = vst.msk [vmem:[%s5210 + $0x39] sm:$0x1] %vm5025, %v7338
      %7384 = vst.msk [vmem:[%s5210 + $0x51] sm:$0x1] %vm5025, %v7340
      %7385 = vst.msk [vmem:[%s5210 + $0x69] sm:$0x1] %vm5025, %v7342
      %7386 = vst.msk [vmem:[%s5210 + $0x81] sm:$0x1] %vm5025, %v7344
      %7387 = vst.msk [vmem:[%s5210 + $0x99] sm:$0x1] %vm5025, %v7346
      %7388 = vst.msk [vmem:[%s5210 + $0xb1] sm:$0x1] %vm5025, %v7348
      %7389 = vst.msk [vmem:[%s5210 + $0xc9] sm:$0x1] %vm5025, %v7350
      %7390 = vst.msk [vmem:[%s5210 + $0xe1] sm:$0x1] %vm5025, %v7352
      %7391 = vst.msk [vmem:[%s5210 + $0xf9] sm:$0x1] %vm5025, %v7354
      %7392 = vst.msk [vmem:[%s5210 + $0x111] sm:$0x1] %vm5025, %v7356
      %7393 = vst.msk [vmem:[%s5210 + $0x129] sm:$0x1] %vm5025, %v7358
      %7394 = vst.msk [vmem:[%s5210 + $0x141] sm:$0x1] %vm5025, %v7360
      %7395 = vst.msk [vmem:[%s5210 + $0x159] sm:$0x1] %vm5025, %v7362
      %7396 = vst.msk [vmem:[%s5210 + $0x171] sm:$0x1] %vm5025, %v7364
      %7399 = vrot.lane.b32.xlu0 %v6871, 64
      %v7400 = vpop.permute.xlu0 %7399
      %7401 = vrot.lane.b32.xlu0 %v6872, 64
      %v7402 = vpop.permute.xlu0 %7401
      %v7405 = vadd.f32 %v6311, %v7400
      %v7406 = vadd.f32 %v6312, %v7402
      %v7407 = vadd.f32 %v7405, %v6859
      %v7408 = vadd.f32 %v7406, %v6860
      %v7409 = vmul.f32 %v4882, 0.43359375
      %v7410 = vmul.f32 %v4886, 0.43359375
      %7413 = vrot.lane.b32.xlu0 %v7409, 64
      %v7414 = vpop.permute.xlu0 %7413
      %7415 = vrot.lane.b32.xlu0 %v7410, 64
      %v7416 = vpop.permute.xlu0 %7415
      %v7419 = vadd.f32 %v7407, %v7414
      %v7420 = vadd.f32 %v7408, %v7416
      %v7421 = vadd.f32 %v7419, %v7409
      %v7422 = vadd.f32 %v7420, %v7410
      %v7423 = vmul.f32 %v4923, 0.11328125
      %v7424 = vmul.f32 %v4927, 0.11328125
      %7427 = vrot.lane.b32.xlu0 %v7423, 64
      %v7428 = vpop.permute.xlu0 %7427
      %7429 = vrot.lane.b32.xlu0 %v7424, 64
      %v7430 = vpop.permute.xlu0 %7429
      %v7433 = vadd.f32 %v7421, %v7428
      %v7434 = vadd.f32 %v7422, %v7430
      %v7435 = vmul.f32 %v4923, -0.03515625
      %v7436 = vmul.f32 %v4927, -0.03515625
      %v7437 = vadd.f32 %v7433, %v7435
      %v7438 = vadd.f32 %v7434, %v7436
      %v7439 = vmul.f32 %v4925, -0.01171875
      %v7440 = vmul.f32 %v4929, -0.01171875
      %7443 = vrot.lane.b32.xlu0 %v7439, 64
      %v7444 = vpop.permute.xlu0 %7443
      %7445 = vrot.lane.b32.xlu0 %v7440, 64
      %v7446 = vpop.permute.xlu0 %7445
      %v7449 = vadd.f32 %v7437, %v7444
      %v7450 = vadd.f32 %v7438, %v7446
      %v7453 = vcombine.high %v7449, %v7449
      %v7455 = vunpack.c.l.s4 1966171168
      %v7456 = vunpack.c.0.s8 %v7455
      %v7457 = vlaneseq
      %v7458 = vshrl.u32 %v7457, 7
      %v7459 = vsub.s32 %v7456, %v7458
      %v7460 = vrot.slane %v7449, %v7459
      %v7462 = vunpack.c.l.s4 1966171168
      %v7463 = vunpack.c.0.s8 %v7462
      %v7464 = vlaneseq
      %v7465 = vshrl.u32 %v7464, 7
      %v7466 = vsub.s32 %v7463, %v7465
      %v7467 = vrot.slane %v7453, %v7466
      %v7468 = vcombine.high %v7460, %v7460
      %v7469 = vcombine.high %v7467, %v7467
      %v7471 = vunpack.c.l.s4 1966171168
      %v7472 = vunpack.c.0.s8 %v7471
      %v7473 = vlaneseq
      %v7474 = vshrl.u32 %v7473, 7
      %v7475 = vsub.s32 %v7472, %v7474
      %v7476 = vrot.slane %v7460, %v7475
      %v7478 = vunpack.c.l.s4 1966171168
      %v7479 = vunpack.c.0.s8 %v7478
      %v7480 = vlaneseq
      %v7481 = vshrl.u32 %v7480, 7
      %v7482 = vsub.s32 %v7479, %v7481
      %v7483 = vrot.slane %v7467, %v7482
      %v7485 = vunpack.c.l.s4 1966171168
      %v7486 = vunpack.c.0.s8 %v7485
      %v7487 = vlaneseq
      %v7488 = vshrl.u32 %v7487, 7
      %v7489 = vsub.s32 %v7486, %v7488
      %v7490 = vrot.slane %v7468, %v7489
      %v7492 = vunpack.c.l.s4 1966171168
      %v7493 = vunpack.c.0.s8 %v7492
      %v7494 = vlaneseq
      %v7495 = vshrl.u32 %v7494, 7
      %v7496 = vsub.s32 %v7493, %v7495
      %v7497 = vrot.slane %v7469, %v7496
      %v7498 = vcombine.high %v7476, %v7476
      %v7499 = vcombine.high %v7483, %v7483
      %v7500 = vcombine.high %v7490, %v7490
      %v7501 = vcombine.high %v7497, %v7497
      %v7502 = vcombine.high %v7450, %v7450
      %v7504 = vunpack.c.l.s4 1966171168
      %v7505 = vunpack.c.0.s8 %v7504
      %v7506 = vlaneseq
      %v7507 = vshrl.u32 %v7506, 7
      %v7508 = vsub.s32 %v7505, %v7507
      %v7509 = vrot.slane %v7450, %v7508
      %v7511 = vunpack.c.l.s4 1966171168
      %v7512 = vunpack.c.0.s8 %v7511
      %v7513 = vlaneseq
      %v7514 = vshrl.u32 %v7513, 7
      %v7515 = vsub.s32 %v7512, %v7514
      %v7516 = vrot.slane %v7502, %v7515
      %v7517 = vcombine.high %v7509, %v7509
      %v7518 = vcombine.high %v7516, %v7516
      %v7520 = vunpack.c.l.s4 1966171168
      %v7521 = vunpack.c.0.s8 %v7520
      %v7522 = vlaneseq
      %v7523 = vshrl.u32 %v7522, 7
      %v7524 = vsub.s32 %v7521, %v7523
      %v7525 = vrot.slane %v7509, %v7524
      %v7527 = vunpack.c.l.s4 1966171168
      %v7528 = vunpack.c.0.s8 %v7527
      %v7529 = vlaneseq
      %v7530 = vshrl.u32 %v7529, 7
      %v7531 = vsub.s32 %v7528, %v7530
      %v7532 = vrot.slane %v7516, %v7531
      %v7534 = vunpack.c.l.s4 1966171168
      %v7535 = vunpack.c.0.s8 %v7534
      %v7536 = vlaneseq
      %v7537 = vshrl.u32 %v7536, 7
      %v7538 = vsub.s32 %v7535, %v7537
      %v7539 = vrot.slane %v7517, %v7538
      %v7541 = vunpack.c.l.s4 1966171168
      %v7542 = vunpack.c.0.s8 %v7541
      %v7543 = vlaneseq
      %v7544 = vshrl.u32 %v7543, 7
      %v7545 = vsub.s32 %v7542, %v7544
      %v7546 = vrot.slane %v7518, %v7545
      %v7547 = vcombine.high %v7525, %v7525
      %v7548 = vcombine.high %v7532, %v7532
      %v7549 = vcombine.high %v7539, %v7539
      %v7550 = vcombine.high %v7546, %v7546
      %v7551 = vlaneseq
      %v7552 = vshrl.u32 %v7551, 7
      %v7553 = vsub.s32 0, %v7552
      %v7554 = vrot.slane %v7476, %v7553
      %v7555 = vlaneseq
      %v7556 = vshrl.u32 %v7555, 7
      %v7557 = vsub.s32 0, %v7556
      %v7558 = vrot.slane %v7490, %v7557
      %v7559 = vlaneseq
      %v7560 = vshrl.u32 %v7559, 7
      %v7561 = vsub.s32 0, %v7560
      %v7562 = vrot.slane %v7498, %v7561
      %v7563 = vlaneseq
      %v7564 = vshrl.u32 %v7563, 7
      %v7565 = vsub.s32 0, %v7564
      %v7566 = vrot.slane %v7500, %v7565
      %v7567 = vlaneseq
      %v7568 = vshrl.u32 %v7567, 7
      %v7569 = vsub.s32 0, %v7568
      %v7570 = vrot.slane %v7483, %v7569
      %v7571 = vlaneseq
      %v7572 = vshrl.u32 %v7571, 7
      %v7573 = vsub.s32 0, %v7572
      %v7574 = vrot.slane %v7497, %v7573
      %v7575 = vlaneseq
      %v7576 = vshrl.u32 %v7575, 7
      %v7577 = vsub.s32 0, %v7576
      %v7578 = vrot.slane %v7499, %v7577
      %v7579 = vlaneseq
      %v7580 = vshrl.u32 %v7579, 7
      %v7581 = vsub.s32 0, %v7580
      %v7582 = vrot.slane %v7501, %v7581
      %v7583 = vlaneseq
      %v7584 = vshrl.u32 %v7583, 7
      %v7585 = vsub.s32 0, %v7584
      %v7586 = vrot.slane %v7525, %v7585
      %v7587 = vlaneseq
      %v7588 = vshrl.u32 %v7587, 7
      %v7589 = vsub.s32 0, %v7588
      %v7590 = vrot.slane %v7539, %v7589
      %v7591 = vlaneseq
      %v7592 = vshrl.u32 %v7591, 7
      %v7593 = vsub.s32 0, %v7592
      %v7594 = vrot.slane %v7547, %v7593
      %v7595 = vlaneseq
      %v7596 = vshrl.u32 %v7595, 7
      %v7597 = vsub.s32 0, %v7596
      %v7598 = vrot.slane %v7549, %v7597
      %v7599 = vlaneseq
      %v7600 = vshrl.u32 %v7599, 7
      %v7601 = vsub.s32 0, %v7600
      %v7602 = vrot.slane %v7532, %v7601
      %v7603 = vlaneseq
      %v7604 = vshrl.u32 %v7603, 7
      %v7605 = vsub.s32 0, %v7604
      %v7606 = vrot.slane %v7546, %v7605
      %v7607 = vlaneseq
      %v7608 = vshrl.u32 %v7607, 7
      %v7609 = vsub.s32 0, %v7608
      %v7610 = vrot.slane %v7548, %v7609
      %v7611 = vlaneseq
      %v7612 = vshrl.u32 %v7611, 7
      %v7613 = vsub.s32 0, %v7612
      %v7614 = vrot.slane %v7550, %v7613
      %7615 = vrot.lane.b32.xlu0 %v7554, 64
      %v7616 = vpop.permute.xlu0 %7615
      %7617 = vrot.lane.b32.xlu0 %v7558, 64
      %v7618 = vpop.permute.xlu0 %7617
      %7619 = vrot.lane.b32.xlu0 %v7562, 64
      %v7620 = vpop.permute.xlu0 %7619
      %7621 = vrot.lane.b32.xlu0 %v7566, 64
      %v7622 = vpop.permute.xlu0 %7621
      %7623 = vrot.lane.b32.xlu0 %v7570, 64
      %v7624 = vpop.permute.xlu0 %7623
      %7625 = vrot.lane.b32.xlu0 %v7574, 64
      %v7626 = vpop.permute.xlu0 %7625
      %7627 = vrot.lane.b32.xlu0 %v7578, 64
      %v7628 = vpop.permute.xlu0 %7627
      %7629 = vrot.lane.b32.xlu0 %v7582, 64
      %v7630 = vpop.permute.xlu0 %7629
      %7631 = vrot.lane.b32.xlu0 %v7586, 64
      %v7632 = vpop.permute.xlu0 %7631
      %7633 = vrot.lane.b32.xlu0 %v7590, 64
      %v7634 = vpop.permute.xlu0 %7633
      %7635 = vrot.lane.b32.xlu0 %v7594, 64
      %v7636 = vpop.permute.xlu0 %7635
      %7637 = vrot.lane.b32.xlu0 %v7598, 64
      %v7638 = vpop.permute.xlu0 %7637
      %7639 = vrot.lane.b32.xlu0 %v7602, 64
      %v7640 = vpop.permute.xlu0 %7639
      %7641 = vrot.lane.b32.xlu0 %v7606, 64
      %v7642 = vpop.permute.xlu0 %7641
      %7643 = vrot.lane.b32.xlu0 %v7610, 64
      %v7644 = vpop.permute.xlu0 %7643
      %7645 = vrot.lane.b32.xlu0 %v7614, 64
      %v7646 = vpop.permute.xlu0 %7645
      %7663 = vst.msk [vmem:[%s5210 + $0xa] sm:$0x1] %vm5025, %v7616
      %7664 = vst.msk [vmem:[%s5210 + $0x22] sm:$0x1] %vm5025, %v7618
      %7665 = vst.msk [vmem:[%s5210 + $0x3a] sm:$0x1] %vm5025, %v7620
      %7666 = vst.msk [vmem:[%s5210 + $0x52] sm:$0x1] %vm5025, %v7622
      %7667 = vst.msk [vmem:[%s5210 + $0x6a] sm:$0x1] %vm5025, %v7624
      %7668 = vst.msk [vmem:[%s5210 + $0x82] sm:$0x1] %vm5025, %v7626
      %7669 = vst.msk [vmem:[%s5210 + $0x9a] sm:$0x1] %vm5025, %v7628
      %7670 = vst.msk [vmem:[%s5210 + $0xb2] sm:$0x1] %vm5025, %v7630
      %7671 = vst.msk [vmem:[%s5210 + $0xca] sm:$0x1] %vm5025, %v7632
      %7672 = vst.msk [vmem:[%s5210 + $0xe2] sm:$0x1] %vm5025, %v7634
      %7673 = vst.msk [vmem:[%s5210 + $0xfa] sm:$0x1] %vm5025, %v7636
      %7674 = vst.msk [vmem:[%s5210 + $0x112] sm:$0x1] %vm5025, %v7638
      %7675 = vst.msk [vmem:[%s5210 + $0x12a] sm:$0x1] %vm5025, %v7640
      %7676 = vst.msk [vmem:[%s5210 + $0x142] sm:$0x1] %vm5025, %v7642
      %7677 = vst.msk [vmem:[%s5210 + $0x15a] sm:$0x1] %vm5025, %v7644
      %7678 = vst.msk [vmem:[%s5210 + $0x172] sm:$0x1] %vm5025, %v7646
      %7681 = vrot.lane.b32.xlu0 %v7153, 64
      %v7682 = vpop.permute.xlu0 %7681
      %7683 = vrot.lane.b32.xlu0 %v7154, 64
      %v7684 = vpop.permute.xlu0 %7683
      %v7687 = vadd.f32 %v6593, %v7682
      %v7688 = vadd.f32 %v6594, %v7684
      %v7689 = vadd.f32 %v7687, %v7141
      %v7690 = vadd.f32 %v7688, %v7142
      %v7691 = vmul.f32 %v4923, 0.43359375
      %v7692 = vmul.f32 %v4927, 0.43359375
      %7695 = vrot.lane.b32.xlu0 %v7691, 64
      %v7696 = vpop.permute.xlu0 %7695
      %7697 = vrot.lane.b32.xlu0 %v7692, 64
      %v7698 = vpop.permute.xlu0 %7697
      %v7701 = vadd.f32 %v7689, %v7696
      %v7702 = vadd.f32 %v7690, %v7698
      %v7703 = vadd.f32 %v7701, %v7691
      %v7704 = vadd.f32 %v7702, %v7692
      %v7705 = vmul.f32 %v4925, 0.11328125
      %v7706 = vmul.f32 %v4929, 0.11328125
      %7709 = vrot.lane.b32.xlu0 %v7705, 64
      %v7710 = vpop.permute.xlu0 %7709
      %7711 = vrot.lane.b32.xlu0 %v7706, 64
      %v7712 = vpop.permute.xlu0 %7711
      %v7715 = vadd.f32 %v7703, %v7710
      %v7716 = vadd.f32 %v7704, %v7712
      %v7717 = vmul.f32 %v4925, -0.03515625
      %v7718 = vmul.f32 %v4929, -0.03515625
      %v7719 = vadd.f32 %v7715, %v7717
      %v7720 = vadd.f32 %v7716, %v7718
      %v7721 = vmul.f32 %v4966, -0.01171875
      %v7722 = vmul.f32 %v4970, -0.01171875
      %7725 = vrot.lane.b32.xlu0 %v7721, 64
      %v7726 = vpop.permute.xlu0 %7725
      %7727 = vrot.lane.b32.xlu0 %v7722, 64
      %v7728 = vpop.permute.xlu0 %7727
      %v7731 = vadd.f32 %v7719, %v7726
      %v7732 = vadd.f32 %v7720, %v7728
      %v7735 = vcombine.high %v7731, %v7731
      %v7737 = vunpack.c.l.s4 1966171168
      %v7738 = vunpack.c.0.s8 %v7737
      %v7739 = vlaneseq
      %v7740 = vshrl.u32 %v7739, 7
      %v7741 = vsub.s32 %v7738, %v7740
      %v7742 = vrot.slane %v7731, %v7741
      %v7744 = vunpack.c.l.s4 1966171168
      %v7745 = vunpack.c.0.s8 %v7744
      %v7746 = vlaneseq
      %v7747 = vshrl.u32 %v7746, 7
      %v7748 = vsub.s32 %v7745, %v7747
      %v7749 = vrot.slane %v7735, %v7748
      %v7750 = vcombine.high %v7742, %v7742
      %v7751 = vcombine.high %v7749, %v7749
      %v7753 = vunpack.c.l.s4 1966171168
      %v7754 = vunpack.c.0.s8 %v7753
      %v7755 = vlaneseq
      %v7756 = vshrl.u32 %v7755, 7
      %v7757 = vsub.s32 %v7754, %v7756
      %v7758 = vrot.slane %v7742, %v7757
      %v7760 = vunpack.c.l.s4 1966171168
      %v7761 = vunpack.c.0.s8 %v7760
      %v7762 = vlaneseq
      %v7763 = vshrl.u32 %v7762, 7
      %v7764 = vsub.s32 %v7761, %v7763
      %v7765 = vrot.slane %v7749, %v7764
      %v7767 = vunpack.c.l.s4 1966171168
      %v7768 = vunpack.c.0.s8 %v7767
      %v7769 = vlaneseq
      %v7770 = vshrl.u32 %v7769, 7
      %v7771 = vsub.s32 %v7768, %v7770
      %v7772 = vrot.slane %v7750, %v7771
      %v7774 = vunpack.c.l.s4 1966171168
      %v7775 = vunpack.c.0.s8 %v7774
      %v7776 = vlaneseq
      %v7777 = vshrl.u32 %v7776, 7
      %v7778 = vsub.s32 %v7775, %v7777
      %v7779 = vrot.slane %v7751, %v7778
      %v7780 = vcombine.high %v7758, %v7758
      %v7781 = vcombine.high %v7765, %v7765
      %v7782 = vcombine.high %v7772, %v7772
      %v7783 = vcombine.high %v7779, %v7779
      %v7784 = vcombine.high %v7732, %v7732
      %v7786 = vunpack.c.l.s4 1966171168
      %v7787 = vunpack.c.0.s8 %v7786
      %v7788 = vlaneseq
      %v7789 = vshrl.u32 %v7788, 7
      %v7790 = vsub.s32 %v7787, %v7789
      %v7791 = vrot.slane %v7732, %v7790
      %v7793 = vunpack.c.l.s4 1966171168
      %v7794 = vunpack.c.0.s8 %v7793
      %v7795 = vlaneseq
      %v7796 = vshrl.u32 %v7795, 7
      %v7797 = vsub.s32 %v7794, %v7796
      %v7798 = vrot.slane %v7784, %v7797
      %v7799 = vcombine.high %v7791, %v7791
      %v7800 = vcombine.high %v7798, %v7798
      %v7802 = vunpack.c.l.s4 1966171168
      %v7803 = vunpack.c.0.s8 %v7802
      %v7804 = vlaneseq
      %v7805 = vshrl.u32 %v7804, 7
      %v7806 = vsub.s32 %v7803, %v7805
      %v7807 = vrot.slane %v7791, %v7806
      %v7809 = vunpack.c.l.s4 1966171168
      %v7810 = vunpack.c.0.s8 %v7809
      %v7811 = vlaneseq
      %v7812 = vshrl.u32 %v7811, 7
      %v7813 = vsub.s32 %v7810, %v7812
      %v7814 = vrot.slane %v7798, %v7813
      %v7816 = vunpack.c.l.s4 1966171168
      %v7817 = vunpack.c.0.s8 %v7816
      %v7818 = vlaneseq
      %v7819 = vshrl.u32 %v7818, 7
      %v7820 = vsub.s32 %v7817, %v7819
      %v7821 = vrot.slane %v7799, %v7820
      %v7823 = vunpack.c.l.s4 1966171168
      %v7824 = vunpack.c.0.s8 %v7823
      %v7825 = vlaneseq
      %v7826 = vshrl.u32 %v7825, 7
      %v7827 = vsub.s32 %v7824, %v7826
      %v7828 = vrot.slane %v7800, %v7827
      %v7829 = vcombine.high %v7807, %v7807
      %v7830 = vcombine.high %v7814, %v7814
      %v7831 = vcombine.high %v7821, %v7821
      %v7832 = vcombine.high %v7828, %v7828
      %v7833 = vlaneseq
      %v7834 = vshrl.u32 %v7833, 7
      %v7835 = vsub.s32 0, %v7834
      %v7836 = vrot.slane %v7758, %v7835
      %v7837 = vlaneseq
      %v7838 = vshrl.u32 %v7837, 7
      %v7839 = vsub.s32 0, %v7838
      %v7840 = vrot.slane %v7772, %v7839
      %v7841 = vlaneseq
      %v7842 = vshrl.u32 %v7841, 7
      %v7843 = vsub.s32 0, %v7842
      %v7844 = vrot.slane %v7780, %v7843
      %v7845 = vlaneseq
      %v7846 = vshrl.u32 %v7845, 7
      %v7847 = vsub.s32 0, %v7846
      %v7848 = vrot.slane %v7782, %v7847
      %v7849 = vlaneseq
      %v7850 = vshrl.u32 %v7849, 7
      %v7851 = vsub.s32 0, %v7850
      %v7852 = vrot.slane %v7765, %v7851
      %v7853 = vlaneseq
      %v7854 = vshrl.u32 %v7853, 7
      %v7855 = vsub.s32 0, %v7854
      %v7856 = vrot.slane %v7779, %v7855
      %v7857 = vlaneseq
      %v7858 = vshrl.u32 %v7857, 7
      %v7859 = vsub.s32 0, %v7858
      %v7860 = vrot.slane %v7781, %v7859
      %v7861 = vlaneseq
      %v7862 = vshrl.u32 %v7861, 7
      %v7863 = vsub.s32 0, %v7862
      %v7864 = vrot.slane %v7783, %v7863
      %v7865 = vlaneseq
      %v7866 = vshrl.u32 %v7865, 7
      %v7867 = vsub.s32 0, %v7866
      %v7868 = vrot.slane %v7807, %v7867
      %v7869 = vlaneseq
      %v7870 = vshrl.u32 %v7869, 7
      %v7871 = vsub.s32 0, %v7870
      %v7872 = vrot.slane %v7821, %v7871
      %v7873 = vlaneseq
      %v7874 = vshrl.u32 %v7873, 7
      %v7875 = vsub.s32 0, %v7874
      %v7876 = vrot.slane %v7829, %v7875
      %v7877 = vlaneseq
      %v7878 = vshrl.u32 %v7877, 7
      %v7879 = vsub.s32 0, %v7878
      %v7880 = vrot.slane %v7831, %v7879
      %v7881 = vlaneseq
      %v7882 = vshrl.u32 %v7881, 7
      %v7883 = vsub.s32 0, %v7882
      %v7884 = vrot.slane %v7814, %v7883
      %v7885 = vlaneseq
      %v7886 = vshrl.u32 %v7885, 7
      %v7887 = vsub.s32 0, %v7886
      %v7888 = vrot.slane %v7828, %v7887
      %v7889 = vlaneseq
      %v7890 = vshrl.u32 %v7889, 7
      %v7891 = vsub.s32 0, %v7890
      %v7892 = vrot.slane %v7830, %v7891
      %v7893 = vlaneseq
      %v7894 = vshrl.u32 %v7893, 7
      %v7895 = vsub.s32 0, %v7894
      %v7896 = vrot.slane %v7832, %v7895
      %7897 = vrot.lane.b32.xlu0 %v7836, 64
      %v7898 = vpop.permute.xlu0 %7897
      %7899 = vrot.lane.b32.xlu0 %v7840, 64
      %v7900 = vpop.permute.xlu0 %7899
      %7901 = vrot.lane.b32.xlu0 %v7844, 64
      %v7902 = vpop.permute.xlu0 %7901
      %7903 = vrot.lane.b32.xlu0 %v7848, 64
      %v7904 = vpop.permute.xlu0 %7903
      %7905 = vrot.lane.b32.xlu0 %v7852, 64
      %v7906 = vpop.permute.xlu0 %7905
      %7907 = vrot.lane.b32.xlu0 %v7856, 64
      %v7908 = vpop.permute.xlu0 %7907
      %7909 = vrot.lane.b32.xlu0 %v7860, 64
      %v7910 = vpop.permute.xlu0 %7909
      %7911 = vrot.lane.b32.xlu0 %v7864, 64
      %v7912 = vpop.permute.xlu0 %7911
      %7913 = vrot.lane.b32.xlu0 %v7868, 64
      %v7914 = vpop.permute.xlu0 %7913
      %7915 = vrot.lane.b32.xlu0 %v7872, 64
      %v7916 = vpop.permute.xlu0 %7915
      %7917 = vrot.lane.b32.xlu0 %v7876, 64
      %v7918 = vpop.permute.xlu0 %7917
      %7919 = vrot.lane.b32.xlu0 %v7880, 64
      %v7920 = vpop.permute.xlu0 %7919
      %7921 = vrot.lane.b32.xlu0 %v7884, 64
      %v7922 = vpop.permute.xlu0 %7921
      %7923 = vrot.lane.b32.xlu0 %v7888, 64
      %v7924 = vpop.permute.xlu0 %7923
      %7925 = vrot.lane.b32.xlu0 %v7892, 64
      %v7926 = vpop.permute.xlu0 %7925
      %7927 = vrot.lane.b32.xlu0 %v7896, 64
      %v7928 = vpop.permute.xlu0 %7927
      %7945 = vst.msk [vmem:[%s5210 + $0xb] sm:$0x1] %vm5025, %v7898
      %7946 = vst.msk [vmem:[%s5210 + $0x23] sm:$0x1] %vm5025, %v7900
      %7947 = vst.msk [vmem:[%s5210 + $0x3b] sm:$0x1] %vm5025, %v7902
      %7948 = vst.msk [vmem:[%s5210 + $0x53] sm:$0x1] %vm5025, %v7904
      %7949 = vst.msk [vmem:[%s5210 + $0x6b] sm:$0x1] %vm5025, %v7906
      %7950 = vst.msk [vmem:[%s5210 + $0x83] sm:$0x1] %vm5025, %v7908
      %7951 = vst.msk [vmem:[%s5210 + $0x9b] sm:$0x1] %vm5025, %v7910
      %7952 = vst.msk [vmem:[%s5210 + $0xb3] sm:$0x1] %vm5025, %v7912
      %7953 = vst.msk [vmem:[%s5210 + $0xcb] sm:$0x1] %vm5025, %v7914
      %7954 = vst.msk [vmem:[%s5210 + $0xe3] sm:$0x1] %vm5025, %v7916
      %7955 = vst.msk [vmem:[%s5210 + $0xfb] sm:$0x1] %vm5025, %v7918
      %7956 = vst.msk [vmem:[%s5210 + $0x113] sm:$0x1] %vm5025, %v7920
      %7957 = vst.msk [vmem:[%s5210 + $0x12b] sm:$0x1] %vm5025, %v7922
      %7958 = vst.msk [vmem:[%s5210 + $0x143] sm:$0x1] %vm5025, %v7924
      %7959 = vst.msk [vmem:[%s5210 + $0x15b] sm:$0x1] %vm5025, %v7926
      %7960 = vst.msk [vmem:[%s5210 + $0x173] sm:$0x1] %vm5025, %v7928
      %7963 = vrot.lane.b32.xlu0 %v7435, 64
      %v7964 = vpop.permute.xlu0 %7963
      %7965 = vrot.lane.b32.xlu0 %v7436, 64
      %v7966 = vpop.permute.xlu0 %7965
      %v7969 = vadd.f32 %v6875, %v7964
      %v7970 = vadd.f32 %v6876, %v7966
      %v7971 = vadd.f32 %v7969, %v7423
      %v7972 = vadd.f32 %v7970, %v7424
      %v7973 = vmul.f32 %v4925, 0.43359375
      %v7974 = vmul.f32 %v4929, 0.43359375
      %7977 = vrot.lane.b32.xlu0 %v7973, 64
      %v7978 = vpop.permute.xlu0 %7977
      %7979 = vrot.lane.b32.xlu0 %v7974, 64
      %v7980 = vpop.permute.xlu0 %7979
      %v7983 = vadd.f32 %v7971, %v7978
      %v7984 = vadd.f32 %v7972, %v7980
      %v7985 = vadd.f32 %v7983, %v7973
      %v7986 = vadd.f32 %v7984, %v7974
      %v7987 = vmul.f32 %v4966, 0.11328125
      %v7988 = vmul.f32 %v4970, 0.11328125
      %7991 = vrot.lane.b32.xlu0 %v7987, 64
      %v7992 = vpop.permute.xlu0 %7991
      %7993 = vrot.lane.b32.xlu0 %v7988, 64
      %v7994 = vpop.permute.xlu0 %7993
      %v7997 = vadd.f32 %v7985, %v7992
      %v7998 = vadd.f32 %v7986, %v7994
      %v7999 = vmul.f32 %v4966, -0.03515625
      %v8000 = vmul.f32 %v4970, -0.03515625
      %v8001 = vadd.f32 %v7997, %v7999
      %v8002 = vadd.f32 %v7998, %v8000
      %v8003 = vmul.f32 %v4968, -0.01171875
      %v8004 = vmul.f32 %v4972, -0.01171875
      %8007 = vrot.lane.b32.xlu0 %v8003, 64
      %v8008 = vpop.permute.xlu0 %8007
      %8009 = vrot.lane.b32.xlu0 %v8004, 64
      %v8010 = vpop.permute.xlu0 %8009
      %v8013 = vadd.f32 %v8001, %v8008
      %v8014 = vadd.f32 %v8002, %v8010
      %v8017 = vcombine.high %v8013, %v8013
      %v8019 = vunpack.c.l.s4 1966171168
      %v8020 = vunpack.c.0.s8 %v8019
      %v8021 = vlaneseq
      %v8022 = vshrl.u32 %v8021, 7
      %v8023 = vsub.s32 %v8020, %v8022
      %v8024 = vrot.slane %v8013, %v8023
      %v8026 = vunpack.c.l.s4 1966171168
      %v8027 = vunpack.c.0.s8 %v8026
      %v8028 = vlaneseq
      %v8029 = vshrl.u32 %v8028, 7
      %v8030 = vsub.s32 %v8027, %v8029
      %v8031 = vrot.slane %v8017, %v8030
      %v8032 = vcombine.high %v8024, %v8024
      %v8033 = vcombine.high %v8031, %v8031
      %v8035 = vunpack.c.l.s4 1966171168
      %v8036 = vunpack.c.0.s8 %v8035
      %v8037 = vlaneseq
      %v8038 = vshrl.u32 %v8037, 7
      %v8039 = vsub.s32 %v8036, %v8038
      %v8040 = vrot.slane %v8024, %v8039
      %v8042 = vunpack.c.l.s4 1966171168
      %v8043 = vunpack.c.0.s8 %v8042
      %v8044 = vlaneseq
      %v8045 = vshrl.u32 %v8044, 7
      %v8046 = vsub.s32 %v8043, %v8045
      %v8047 = vrot.slane %v8031, %v8046
      %v8049 = vunpack.c.l.s4 1966171168
      %v8050 = vunpack.c.0.s8 %v8049
      %v8051 = vlaneseq
      %v8052 = vshrl.u32 %v8051, 7
      %v8053 = vsub.s32 %v8050, %v8052
      %v8054 = vrot.slane %v8032, %v8053
      %v8056 = vunpack.c.l.s4 1966171168
      %v8057 = vunpack.c.0.s8 %v8056
      %v8058 = vlaneseq
      %v8059 = vshrl.u32 %v8058, 7
      %v8060 = vsub.s32 %v8057, %v8059
      %v8061 = vrot.slane %v8033, %v8060
      %v8062 = vcombine.high %v8040, %v8040
      %v8063 = vcombine.high %v8047, %v8047
      %v8064 = vcombine.high %v8054, %v8054
      %v8065 = vcombine.high %v8061, %v8061
      %v8066 = vcombine.high %v8014, %v8014
      %v8068 = vunpack.c.l.s4 1966171168
      %v8069 = vunpack.c.0.s8 %v8068
      %v8070 = vlaneseq
      %v8071 = vshrl.u32 %v8070, 7
      %v8072 = vsub.s32 %v8069, %v8071
      %v8073 = vrot.slane %v8014, %v8072
      %v8075 = vunpack.c.l.s4 1966171168
      %v8076 = vunpack.c.0.s8 %v8075
      %v8077 = vlaneseq
      %v8078 = vshrl.u32 %v8077, 7
      %v8079 = vsub.s32 %v8076, %v8078
      %v8080 = vrot.slane %v8066, %v8079
      %v8081 = vcombine.high %v8073, %v8073
      %v8082 = vcombine.high %v8080, %v8080
      %v8084 = vunpack.c.l.s4 1966171168
      %v8085 = vunpack.c.0.s8 %v8084
      %v8086 = vlaneseq
      %v8087 = vshrl.u32 %v8086, 7
      %v8088 = vsub.s32 %v8085, %v8087
      %v8089 = vrot.slane %v8073, %v8088
      %v8091 = vunpack.c.l.s4 1966171168
      %v8092 = vunpack.c.0.s8 %v8091
      %v8093 = vlaneseq
      %v8094 = vshrl.u32 %v8093, 7
      %v8095 = vsub.s32 %v8092, %v8094
      %v8096 = vrot.slane %v8080, %v8095
      %v8098 = vunpack.c.l.s4 1966171168
      %v8099 = vunpack.c.0.s8 %v8098
      %v8100 = vlaneseq
      %v8101 = vshrl.u32 %v8100, 7
      %v8102 = vsub.s32 %v8099, %v8101
      %v8103 = vrot.slane %v8081, %v8102
      %v8105 = vunpack.c.l.s4 1966171168
      %v8106 = vunpack.c.0.s8 %v8105
      %v8107 = vlaneseq
      %v8108 = vshrl.u32 %v8107, 7
      %v8109 = vsub.s32 %v8106, %v8108
      %v8110 = vrot.slane %v8082, %v8109
      %v8111 = vcombine.high %v8089, %v8089
      %v8112 = vcombine.high %v8096, %v8096
      %v8113 = vcombine.high %v8103, %v8103
      %v8114 = vcombine.high %v8110, %v8110
      %v8115 = vlaneseq
      %v8116 = vshrl.u32 %v8115, 7
      %v8117 = vsub.s32 0, %v8116
      %v8118 = vrot.slane %v8040, %v8117
      %v8119 = vlaneseq
      %v8120 = vshrl.u32 %v8119, 7
      %v8121 = vsub.s32 0, %v8120
      %v8122 = vrot.slane %v8054, %v8121
      %v8123 = vlaneseq
      %v8124 = vshrl.u32 %v8123, 7
      %v8125 = vsub.s32 0, %v8124
      %v8126 = vrot.slane %v8062, %v8125
      %v8127 = vlaneseq
      %v8128 = vshrl.u32 %v8127, 7
      %v8129 = vsub.s32 0, %v8128
      %v8130 = vrot.slane %v8064, %v8129
      %v8131 = vlaneseq
      %v8132 = vshrl.u32 %v8131, 7
      %v8133 = vsub.s32 0, %v8132
      %v8134 = vrot.slane %v8047, %v8133
      %v8135 = vlaneseq
      %v8136 = vshrl.u32 %v8135, 7
      %v8137 = vsub.s32 0, %v8136
      %v8138 = vrot.slane %v8061, %v8137
      %v8139 = vlaneseq
      %v8140 = vshrl.u32 %v8139, 7
      %v8141 = vsub.s32 0, %v8140
      %v8142 = vrot.slane %v8063, %v8141
      %v8143 = vlaneseq
      %v8144 = vshrl.u32 %v8143, 7
      %v8145 = vsub.s32 0, %v8144
      %v8146 = vrot.slane %v8065, %v8145
      %v8147 = vlaneseq
      %v8148 = vshrl.u32 %v8147, 7
      %v8149 = vsub.s32 0, %v8148
      %v8150 = vrot.slane %v8089, %v8149
      %v8151 = vlaneseq
      %v8152 = vshrl.u32 %v8151, 7
      %v8153 = vsub.s32 0, %v8152
      %v8154 = vrot.slane %v8103, %v8153
      %v8155 = vlaneseq
      %v8156 = vshrl.u32 %v8155, 7
      %v8157 = vsub.s32 0, %v8156
      %v8158 = vrot.slane %v8111, %v8157
      %v8159 = vlaneseq
      %v8160 = vshrl.u32 %v8159, 7
      %v8161 = vsub.s32 0, %v8160
      %v8162 = vrot.slane %v8113, %v8161
      %v8163 = vlaneseq
      %v8164 = vshrl.u32 %v8163, 7
      %v8165 = vsub.s32 0, %v8164
      %v8166 = vrot.slane %v8096, %v8165
      %v8167 = vlaneseq
      %v8168 = vshrl.u32 %v8167, 7
      %v8169 = vsub.s32 0, %v8168
      %v8170 = vrot.slane %v8110, %v8169
      %v8171 = vlaneseq
      %v8172 = vshrl.u32 %v8171, 7
      %v8173 = vsub.s32 0, %v8172
      %v8174 = vrot.slane %v8112, %v8173
      %v8175 = vlaneseq
      %v8176 = vshrl.u32 %v8175, 7
      %v8177 = vsub.s32 0, %v8176
      %v8178 = vrot.slane %v8114, %v8177
      %8179 = vrot.lane.b32.xlu0 %v8118, 64
      %v8180 = vpop.permute.xlu0 %8179
      %8181 = vrot.lane.b32.xlu0 %v8122, 64
      %v8182 = vpop.permute.xlu0 %8181
      %8183 = vrot.lane.b32.xlu0 %v8126, 64
      %v8184 = vpop.permute.xlu0 %8183
      %8185 = vrot.lane.b32.xlu0 %v8130, 64
      %v8186 = vpop.permute.xlu0 %8185
      %8187 = vrot.lane.b32.xlu0 %v8134, 64
      %v8188 = vpop.permute.xlu0 %8187
      %8189 = vrot.lane.b32.xlu0 %v8138, 64
      %v8190 = vpop.permute.xlu0 %8189
      %8191 = vrot.lane.b32.xlu0 %v8142, 64
      %v8192 = vpop.permute.xlu0 %8191
      %8193 = vrot.lane.b32.xlu0 %v8146, 64
      %v8194 = vpop.permute.xlu0 %8193
      %8195 = vrot.lane.b32.xlu0 %v8150, 64
      %v8196 = vpop.permute.xlu0 %8195
      %8197 = vrot.lane.b32.xlu0 %v8154, 64
      %v8198 = vpop.permute.xlu0 %8197
      %8199 = vrot.lane.b32.xlu0 %v8158, 64
      %v8200 = vpop.permute.xlu0 %8199
      %8201 = vrot.lane.b32.xlu0 %v8162, 64
      %v8202 = vpop.permute.xlu0 %8201
      %8203 = vrot.lane.b32.xlu0 %v8166, 64
      %v8204 = vpop.permute.xlu0 %8203
      %8205 = vrot.lane.b32.xlu0 %v8170, 64
      %v8206 = vpop.permute.xlu0 %8205
      %8207 = vrot.lane.b32.xlu0 %v8174, 64
      %v8208 = vpop.permute.xlu0 %8207
      %8209 = vrot.lane.b32.xlu0 %v8178, 64
      %v8210 = vpop.permute.xlu0 %8209
      %8227 = vst.msk [vmem:[%s5210 + $0xc] sm:$0x1] %vm5025, %v8180
      %8228 = vst.msk [vmem:[%s5210 + $0x24] sm:$0x1] %vm5025, %v8182
      %8229 = vst.msk [vmem:[%s5210 + $0x3c] sm:$0x1] %vm5025, %v8184
      %8230 = vst.msk [vmem:[%s5210 + $0x54] sm:$0x1] %vm5025, %v8186
      %8231 = vst.msk [vmem:[%s5210 + $0x6c] sm:$0x1] %vm5025, %v8188
      %8232 = vst.msk [vmem:[%s5210 + $0x84] sm:$0x1] %vm5025, %v8190
      %8233 = vst.msk [vmem:[%s5210 + $0x9c] sm:$0x1] %vm5025, %v8192
      %8234 = vst.msk [vmem:[%s5210 + $0xb4] sm:$0x1] %vm5025, %v8194
      %8235 = vst.msk [vmem:[%s5210 + $0xcc] sm:$0x1] %vm5025, %v8196
      %8236 = vst.msk [vmem:[%s5210 + $0xe4] sm:$0x1] %vm5025, %v8198
      %8237 = vst.msk [vmem:[%s5210 + $0xfc] sm:$0x1] %vm5025, %v8200
      %8238 = vst.msk [vmem:[%s5210 + $0x114] sm:$0x1] %vm5025, %v8202
      %8239 = vst.msk [vmem:[%s5210 + $0x12c] sm:$0x1] %vm5025, %v8204
      %8240 = vst.msk [vmem:[%s5210 + $0x144] sm:$0x1] %vm5025, %v8206
      %8241 = vst.msk [vmem:[%s5210 + $0x15c] sm:$0x1] %vm5025, %v8208
      %8242 = vst.msk [vmem:[%s5210 + $0x174] sm:$0x1] %vm5025, %v8210
      %8245 = vrot.lane.b32.xlu0 %v7717, 64
      %v8246 = vpop.permute.xlu0 %8245
      %8247 = vrot.lane.b32.xlu0 %v7718, 64
      %v8248 = vpop.permute.xlu0 %8247
      %v8251 = vadd.f32 %v7157, %v8246
      %v8252 = vadd.f32 %v7158, %v8248
      %v8253 = vadd.f32 %v8251, %v7705
      %v8254 = vadd.f32 %v8252, %v7706
      %v8255 = vmul.f32 %v4966, 0.43359375
      %v8256 = vmul.f32 %v4970, 0.43359375
      %8259 = vrot.lane.b32.xlu0 %v8255, 64
      %v8260 = vpop.permute.xlu0 %8259
      %8261 = vrot.lane.b32.xlu0 %v8256, 64
      %v8262 = vpop.permute.xlu0 %8261
      %v8265 = vadd.f32 %v8253, %v8260
      %v8266 = vadd.f32 %v8254, %v8262
      %v8267 = vadd.f32 %v8265, %v8255
      %v8268 = vadd.f32 %v8266, %v8256
      %v8269 = vmul.f32 %v4968, 0.11328125
      %v8270 = vmul.f32 %v4972, 0.11328125
      %8273 = vrot.lane.b32.xlu0 %v8269, 64
      %v8274 = vpop.permute.xlu0 %8273
      %8275 = vrot.lane.b32.xlu0 %v8270, 64
      %v8276 = vpop.permute.xlu0 %8275
      %v8279 = vadd.f32 %v8267, %v8274
      %v8280 = vadd.f32 %v8268, %v8276
      %v8281 = vmul.f32 %v4968, -0.03515625
      %v8282 = vmul.f32 %v4972, -0.03515625
      %v8283 = vadd.f32 %v8279, %v8281
      %v8284 = vadd.f32 %v8280, %v8282
      %v8285 = vmul.f32 %v5009, -0.01171875
      %v8286 = vmul.f32 %v5013, -0.01171875
      %8289 = vrot.lane.b32.xlu0 %v8285, 64
      %v8290 = vpop.permute.xlu0 %8289
      %8291 = vrot.lane.b32.xlu0 %v8286, 64
      %v8292 = vpop.permute.xlu0 %8291
      %v8295 = vadd.f32 %v8283, %v8290
      %v8296 = vadd.f32 %v8284, %v8292
      %v8299 = vcombine.high %v8295, %v8295
      %v8301 = vunpack.c.l.s4 1966171168
      %v8302 = vunpack.c.0.s8 %v8301
      %v8303 = vlaneseq
      %v8304 = vshrl.u32 %v8303, 7
      %v8305 = vsub.s32 %v8302, %v8304
      %v8306 = vrot.slane %v8295, %v8305
      %v8308 = vunpack.c.l.s4 1966171168
      %v8309 = vunpack.c.0.s8 %v8308
      %v8310 = vlaneseq
      %v8311 = vshrl.u32 %v8310, 7
      %v8312 = vsub.s32 %v8309, %v8311
      %v8313 = vrot.slane %v8299, %v8312
      %v8314 = vcombine.high %v8306, %v8306
      %v8315 = vcombine.high %v8313, %v8313
      %v8317 = vunpack.c.l.s4 1966171168
      %v8318 = vunpack.c.0.s8 %v8317
      %v8319 = vlaneseq
      %v8320 = vshrl.u32 %v8319, 7
      %v8321 = vsub.s32 %v8318, %v8320
      %v8322 = vrot.slane %v8306, %v8321
      %v8324 = vunpack.c.l.s4 1966171168
      %v8325 = vunpack.c.0.s8 %v8324
      %v8326 = vlaneseq
      %v8327 = vshrl.u32 %v8326, 7
      %v8328 = vsub.s32 %v8325, %v8327
      %v8329 = vrot.slane %v8313, %v8328
      %v8331 = vunpack.c.l.s4 1966171168
      %v8332 = vunpack.c.0.s8 %v8331
      %v8333 = vlaneseq
      %v8334 = vshrl.u32 %v8333, 7
      %v8335 = vsub.s32 %v8332, %v8334
      %v8336 = vrot.slane %v8314, %v8335
      %v8338 = vunpack.c.l.s4 1966171168
      %v8339 = vunpack.c.0.s8 %v8338
      %v8340 = vlaneseq
      %v8341 = vshrl.u32 %v8340, 7
      %v8342 = vsub.s32 %v8339, %v8341
      %v8343 = vrot.slane %v8315, %v8342
      %v8344 = vcombine.high %v8322, %v8322
      %v8345 = vcombine.high %v8329, %v8329
      %v8346 = vcombine.high %v8336, %v8336
      %v8347 = vcombine.high %v8343, %v8343
      %v8348 = vcombine.high %v8296, %v8296
      %v8350 = vunpack.c.l.s4 1966171168
      %v8351 = vunpack.c.0.s8 %v8350
      %v8352 = vlaneseq
      %v8353 = vshrl.u32 %v8352, 7
      %v8354 = vsub.s32 %v8351, %v8353
      %v8355 = vrot.slane %v8296, %v8354
      %v8357 = vunpack.c.l.s4 1966171168
      %v8358 = vunpack.c.0.s8 %v8357
      %v8359 = vlaneseq
      %v8360 = vshrl.u32 %v8359, 7
      %v8361 = vsub.s32 %v8358, %v8360
      %v8362 = vrot.slane %v8348, %v8361
      %v8363 = vcombine.high %v8355, %v8355
      %v8364 = vcombine.high %v8362, %v8362
      %v8366 = vunpack.c.l.s4 1966171168
      %v8367 = vunpack.c.0.s8 %v8366
      %v8368 = vlaneseq
      %v8369 = vshrl.u32 %v8368, 7
      %v8370 = vsub.s32 %v8367, %v8369
      %v8371 = vrot.slane %v8355, %v8370
      %v8373 = vunpack.c.l.s4 1966171168
      %v8374 = vunpack.c.0.s8 %v8373
      %v8375 = vlaneseq
      %v8376 = vshrl.u32 %v8375, 7
      %v8377 = vsub.s32 %v8374, %v8376
      %v8378 = vrot.slane %v8362, %v8377
      %v8380 = vunpack.c.l.s4 1966171168
      %v8381 = vunpack.c.0.s8 %v8380
      %v8382 = vlaneseq
      %v8383 = vshrl.u32 %v8382, 7
      %v8384 = vsub.s32 %v8381, %v8383
      %v8385 = vrot.slane %v8363, %v8384
      %v8387 = vunpack.c.l.s4 1966171168
      %v8388 = vunpack.c.0.s8 %v8387
      %v8389 = vlaneseq
      %v8390 = vshrl.u32 %v8389, 7
      %v8391 = vsub.s32 %v8388, %v8390
      %v8392 = vrot.slane %v8364, %v8391
      %v8393 = vcombine.high %v8371, %v8371
      %v8394 = vcombine.high %v8378, %v8378
      %v8395 = vcombine.high %v8385, %v8385
      %v8396 = vcombine.high %v8392, %v8392
      %v8397 = vlaneseq
      %v8398 = vshrl.u32 %v8397, 7
      %v8399 = vsub.s32 0, %v8398
      %v8400 = vrot.slane %v8322, %v8399
      %v8401 = vlaneseq
      %v8402 = vshrl.u32 %v8401, 7
      %v8403 = vsub.s32 0, %v8402
      %v8404 = vrot.slane %v8336, %v8403
      %v8405 = vlaneseq
      %v8406 = vshrl.u32 %v8405, 7
      %v8407 = vsub.s32 0, %v8406
      %v8408 = vrot.slane %v8344, %v8407
      %v8409 = vlaneseq
      %v8410 = vshrl.u32 %v8409, 7
      %v8411 = vsub.s32 0, %v8410
      %v8412 = vrot.slane %v8346, %v8411
      %v8413 = vlaneseq
      %v8414 = vshrl.u32 %v8413, 7
      %v8415 = vsub.s32 0, %v8414
      %v8416 = vrot.slane %v8329, %v8415
      %v8417 = vlaneseq
      %v8418 = vshrl.u32 %v8417, 7
      %v8419 = vsub.s32 0, %v8418
      %v8420 = vrot.slane %v8343, %v8419
      %v8421 = vlaneseq
      %v8422 = vshrl.u32 %v8421, 7
      %v8423 = vsub.s32 0, %v8422
      %v8424 = vrot.slane %v8345, %v8423
      %v8425 = vlaneseq
      %v8426 = vshrl.u32 %v8425, 7
      %v8427 = vsub.s32 0, %v8426
      %v8428 = vrot.slane %v8347, %v8427
      %v8429 = vlaneseq
      %v8430 = vshrl.u32 %v8429, 7
      %v8431 = vsub.s32 0, %v8430
      %v8432 = vrot.slane %v8371, %v8431
      %v8433 = vlaneseq
      %v8434 = vshrl.u32 %v8433, 7
      %v8435 = vsub.s32 0, %v8434
      %v8436 = vrot.slane %v8385, %v8435
      %v8437 = vlaneseq
      %v8438 = vshrl.u32 %v8437, 7
      %v8439 = vsub.s32 0, %v8438
      %v8440 = vrot.slane %v8393, %v8439
      %v8441 = vlaneseq
      %v8442 = vshrl.u32 %v8441, 7
      %v8443 = vsub.s32 0, %v8442
      %v8444 = vrot.slane %v8395, %v8443
      %v8445 = vlaneseq
      %v8446 = vshrl.u32 %v8445, 7
      %v8447 = vsub.s32 0, %v8446
      %v8448 = vrot.slane %v8378, %v8447
      %v8449 = vlaneseq
      %v8450 = vshrl.u32 %v8449, 7
      %v8451 = vsub.s32 0, %v8450
      %v8452 = vrot.slane %v8392, %v8451
      %v8453 = vlaneseq
      %v8454 = vshrl.u32 %v8453, 7
      %v8455 = vsub.s32 0, %v8454
      %v8456 = vrot.slane %v8394, %v8455
      %v8457 = vlaneseq
      %v8458 = vshrl.u32 %v8457, 7
      %v8459 = vsub.s32 0, %v8458
      %v8460 = vrot.slane %v8396, %v8459
      %8461 = vrot.lane.b32.xlu0 %v8400, 64
      %v8462 = vpop.permute.xlu0 %8461
      %8463 = vrot.lane.b32.xlu0 %v8404, 64
      %v8464 = vpop.permute.xlu0 %8463
      %8465 = vrot.lane.b32.xlu0 %v8408, 64
      %v8466 = vpop.permute.xlu0 %8465
      %8467 = vrot.lane.b32.xlu0 %v8412, 64
      %v8468 = vpop.permute.xlu0 %8467
      %8469 = vrot.lane.b32.xlu0 %v8416, 64
      %v8470 = vpop.permute.xlu0 %8469
      %8471 = vrot.lane.b32.xlu0 %v8420, 64
      %v8472 = vpop.permute.xlu0 %8471
      %8473 = vrot.lane.b32.xlu0 %v8424, 64
      %v8474 = vpop.permute.xlu0 %8473
      %8475 = vrot.lane.b32.xlu0 %v8428, 64
      %v8476 = vpop.permute.xlu0 %8475
      %8477 = vrot.lane.b32.xlu0 %v8432, 64
      %v8478 = vpop.permute.xlu0 %8477
      %8479 = vrot.lane.b32.xlu0 %v8436, 64
      %v8480 = vpop.permute.xlu0 %8479
      %8481 = vrot.lane.b32.xlu0 %v8440, 64
      %v8482 = vpop.permute.xlu0 %8481
      %8483 = vrot.lane.b32.xlu0 %v8444, 64
      %v8484 = vpop.permute.xlu0 %8483
      %8485 = vrot.lane.b32.xlu0 %v8448, 64
      %v8486 = vpop.permute.xlu0 %8485
      %8487 = vrot.lane.b32.xlu0 %v8452, 64
      %v8488 = vpop.permute.xlu0 %8487
      %8489 = vrot.lane.b32.xlu0 %v8456, 64
      %v8490 = vpop.permute.xlu0 %8489
      %8491 = vrot.lane.b32.xlu0 %v8460, 64
      %v8492 = vpop.permute.xlu0 %8491
      %8509 = vst.msk [vmem:[%s5210 + $0xd] sm:$0x1] %vm5025, %v8462
      %8510 = vst.msk [vmem:[%s5210 + $0x25] sm:$0x1] %vm5025, %v8464
      %8511 = vst.msk [vmem:[%s5210 + $0x3d] sm:$0x1] %vm5025, %v8466
      %8512 = vst.msk [vmem:[%s5210 + $0x55] sm:$0x1] %vm5025, %v8468
      %8513 = vst.msk [vmem:[%s5210 + $0x6d] sm:$0x1] %vm5025, %v8470
      %8514 = vst.msk [vmem:[%s5210 + $0x85] sm:$0x1] %vm5025, %v8472
      %8515 = vst.msk [vmem:[%s5210 + $0x9d] sm:$0x1] %vm5025, %v8474
      %8516 = vst.msk [vmem:[%s5210 + $0xb5] sm:$0x1] %vm5025, %v8476
      %8517 = vst.msk [vmem:[%s5210 + $0xcd] sm:$0x1] %vm5025, %v8478
      %8518 = vst.msk [vmem:[%s5210 + $0xe5] sm:$0x1] %vm5025, %v8480
      %8519 = vst.msk [vmem:[%s5210 + $0xfd] sm:$0x1] %vm5025, %v8482
      %8520 = vst.msk [vmem:[%s5210 + $0x115] sm:$0x1] %vm5025, %v8484
      %8521 = vst.msk [vmem:[%s5210 + $0x12d] sm:$0x1] %vm5025, %v8486
      %8522 = vst.msk [vmem:[%s5210 + $0x145] sm:$0x1] %vm5025, %v8488
      %8523 = vst.msk [vmem:[%s5210 + $0x15d] sm:$0x1] %vm5025, %v8490
      %8524 = vst.msk [vmem:[%s5210 + $0x175] sm:$0x1] %vm5025, %v8492
      %8527 = vrot.lane.b32.xlu0 %v7999, 64
      %v8528 = vpop.permute.xlu0 %8527
      %8529 = vrot.lane.b32.xlu0 %v8000, 64
      %v8530 = vpop.permute.xlu0 %8529
      %v8533 = vadd.f32 %v7439, %v8528
      %v8534 = vadd.f32 %v7440, %v8530
      %v8535 = vadd.f32 %v8533, %v7987
      %v8536 = vadd.f32 %v8534, %v7988
      %v8537 = vmul.f32 %v4968, 0.43359375
      %v8538 = vmul.f32 %v4972, 0.43359375
      %8541 = vrot.lane.b32.xlu0 %v8537, 64
      %v8542 = vpop.permute.xlu0 %8541
      %8543 = vrot.lane.b32.xlu0 %v8538, 64
      %v8544 = vpop.permute.xlu0 %8543
      %v8547 = vadd.f32 %v8535, %v8542
      %v8548 = vadd.f32 %v8536, %v8544
      %v8549 = vadd.f32 %v8547, %v8537
      %v8550 = vadd.f32 %v8548, %v8538
      %v8551 = vmul.f32 %v5009, 0.11328125
      %v8552 = vmul.f32 %v5013, 0.11328125
      %8555 = vrot.lane.b32.xlu0 %v8551, 64
      %v8556 = vpop.permute.xlu0 %8555
      %8557 = vrot.lane.b32.xlu0 %v8552, 64
      %v8558 = vpop.permute.xlu0 %8557
      %v8561 = vadd.f32 %v8549, %v8556
      %v8562 = vadd.f32 %v8550, %v8558
      %v8563 = vmul.f32 %v5009, -0.03515625
      %v8564 = vmul.f32 %v5013, -0.03515625
      %v8565 = vadd.f32 %v8561, %v8563
      %v8566 = vadd.f32 %v8562, %v8564
      %v8567 = vmul.f32 %v5011, -0.01171875
      %v8568 = vmul.f32 %v5015, -0.01171875
      %8571 = vrot.lane.b32.xlu0 %v8567, 64
      %v8572 = vpop.permute.xlu0 %8571
      %8573 = vrot.lane.b32.xlu0 %v8568, 64
      %v8574 = vpop.permute.xlu0 %8573
      %v8577 = vadd.f32 %v8565, %v8572
      %v8578 = vadd.f32 %v8566, %v8574
      %v8581 = vcombine.high %v8577, %v8577
      %v8583 = vunpack.c.l.s4 1966171168
      %v8584 = vunpack.c.0.s8 %v8583
      %v8585 = vlaneseq
      %v8586 = vshrl.u32 %v8585, 7
      %v8587 = vsub.s32 %v8584, %v8586
      %v8588 = vrot.slane %v8577, %v8587
      %v8590 = vunpack.c.l.s4 1966171168
      %v8591 = vunpack.c.0.s8 %v8590
      %v8592 = vlaneseq
      %v8593 = vshrl.u32 %v8592, 7
      %v8594 = vsub.s32 %v8591, %v8593
      %v8595 = vrot.slane %v8581, %v8594
      %v8596 = vcombine.high %v8588, %v8588
      %v8597 = vcombine.high %v8595, %v8595
      %v8599 = vunpack.c.l.s4 1966171168
      %v8600 = vunpack.c.0.s8 %v8599
      %v8601 = vlaneseq
      %v8602 = vshrl.u32 %v8601, 7
      %v8603 = vsub.s32 %v8600, %v8602
      %v8604 = vrot.slane %v8588, %v8603
      %v8606 = vunpack.c.l.s4 1966171168
      %v8607 = vunpack.c.0.s8 %v8606
      %v8608 = vlaneseq
      %v8609 = vshrl.u32 %v8608, 7
      %v8610 = vsub.s32 %v8607, %v8609
      %v8611 = vrot.slane %v8595, %v8610
      %v8613 = vunpack.c.l.s4 1966171168
      %v8614 = vunpack.c.0.s8 %v8613
      %v8615 = vlaneseq
      %v8616 = vshrl.u32 %v8615, 7
      %v8617 = vsub.s32 %v8614, %v8616
      %v8618 = vrot.slane %v8596, %v8617
      %v8620 = vunpack.c.l.s4 1966171168
      %v8621 = vunpack.c.0.s8 %v8620
      %v8622 = vlaneseq
      %v8623 = vshrl.u32 %v8622, 7
      %v8624 = vsub.s32 %v8621, %v8623
      %v8625 = vrot.slane %v8597, %v8624
      %v8626 = vcombine.high %v8604, %v8604
      %v8627 = vcombine.high %v8611, %v8611
      %v8628 = vcombine.high %v8618, %v8618
      %v8629 = vcombine.high %v8625, %v8625
      %v8630 = vcombine.high %v8578, %v8578
      %v8632 = vunpack.c.l.s4 1966171168
      %v8633 = vunpack.c.0.s8 %v8632
      %v8634 = vlaneseq
      %v8635 = vshrl.u32 %v8634, 7
      %v8636 = vsub.s32 %v8633, %v8635
      %v8637 = vrot.slane %v8578, %v8636
      %v8639 = vunpack.c.l.s4 1966171168
      %v8640 = vunpack.c.0.s8 %v8639
      %v8641 = vlaneseq
      %v8642 = vshrl.u32 %v8641, 7
      %v8643 = vsub.s32 %v8640, %v8642
      %v8644 = vrot.slane %v8630, %v8643
      %v8645 = vcombine.high %v8637, %v8637
      %v8646 = vcombine.high %v8644, %v8644
      %v8648 = vunpack.c.l.s4 1966171168
      %v8649 = vunpack.c.0.s8 %v8648
      %v8650 = vlaneseq
      %v8651 = vshrl.u32 %v8650, 7
      %v8652 = vsub.s32 %v8649, %v8651
      %v8653 = vrot.slane %v8637, %v8652
      %v8655 = vunpack.c.l.s4 1966171168
      %v8656 = vunpack.c.0.s8 %v8655
      %v8657 = vlaneseq
      %v8658 = vshrl.u32 %v8657, 7
      %v8659 = vsub.s32 %v8656, %v8658
      %v8660 = vrot.slane %v8644, %v8659
      %v8662 = vunpack.c.l.s4 1966171168
      %v8663 = vunpack.c.0.s8 %v8662
      %v8664 = vlaneseq
      %v8665 = vshrl.u32 %v8664, 7
      %v8666 = vsub.s32 %v8663, %v8665
      %v8667 = vrot.slane %v8645, %v8666
      %v8669 = vunpack.c.l.s4 1966171168
      %v8670 = vunpack.c.0.s8 %v8669
      %v8671 = vlaneseq
      %v8672 = vshrl.u32 %v8671, 7
      %v8673 = vsub.s32 %v8670, %v8672
      %v8674 = vrot.slane %v8646, %v8673
      %v8675 = vcombine.high %v8653, %v8653
      %v8676 = vcombine.high %v8660, %v8660
      %v8677 = vcombine.high %v8667, %v8667
      %v8678 = vcombine.high %v8674, %v8674
      %v8679 = vlaneseq
      %v8680 = vshrl.u32 %v8679, 7
      %v8681 = vsub.s32 0, %v8680
      %v8682 = vrot.slane %v8604, %v8681
      %v8683 = vlaneseq
      %v8684 = vshrl.u32 %v8683, 7
      %v8685 = vsub.s32 0, %v8684
      %v8686 = vrot.slane %v8618, %v8685
      %v8687 = vlaneseq
      %v8688 = vshrl.u32 %v8687, 7
      %v8689 = vsub.s32 0, %v8688
      %v8690 = vrot.slane %v8626, %v8689
      %v8691 = vlaneseq
      %v8692 = vshrl.u32 %v8691, 7
      %v8693 = vsub.s32 0, %v8692
      %v8694 = vrot.slane %v8628, %v8693
      %v8695 = vlaneseq
      %v8696 = vshrl.u32 %v8695, 7
      %v8697 = vsub.s32 0, %v8696
      %v8698 = vrot.slane %v8611, %v8697
      %v8699 = vlaneseq
      %v8700 = vshrl.u32 %v8699, 7
      %v8701 = vsub.s32 0, %v8700
      %v8702 = vrot.slane %v8625, %v8701
      %v8703 = vlaneseq
      %v8704 = vshrl.u32 %v8703, 7
      %v8705 = vsub.s32 0, %v8704
      %v8706 = vrot.slane %v8627, %v8705
      %v8707 = vlaneseq
      %v8708 = vshrl.u32 %v8707, 7
      %v8709 = vsub.s32 0, %v8708
      %v8710 = vrot.slane %v8629, %v8709
      %v8711 = vlaneseq
      %v8712 = vshrl.u32 %v8711, 7
      %v8713 = vsub.s32 0, %v8712
      %v8714 = vrot.slane %v8653, %v8713
      %v8715 = vlaneseq
      %v8716 = vshrl.u32 %v8715, 7
      %v8717 = vsub.s32 0, %v8716
      %v8718 = vrot.slane %v8667, %v8717
      %v8719 = vlaneseq
      %v8720 = vshrl.u32 %v8719, 7
      %v8721 = vsub.s32 0, %v8720
      %v8722 = vrot.slane %v8675, %v8721
      %v8723 = vlaneseq
      %v8724 = vshrl.u32 %v8723, 7
      %v8725 = vsub.s32 0, %v8724
      %v8726 = vrot.slane %v8677, %v8725
      %v8727 = vlaneseq
      %v8728 = vshrl.u32 %v8727, 7
      %v8729 = vsub.s32 0, %v8728
      %v8730 = vrot.slane %v8660, %v8729
      %v8731 = vlaneseq
      %v8732 = vshrl.u32 %v8731, 7
      %v8733 = vsub.s32 0, %v8732
      %v8734 = vrot.slane %v8674, %v8733
      %v8735 = vlaneseq
      %v8736 = vshrl.u32 %v8735, 7
      %v8737 = vsub.s32 0, %v8736
      %v8738 = vrot.slane %v8676, %v8737
      %v8739 = vlaneseq
      %v8740 = vshrl.u32 %v8739, 7
      %v8741 = vsub.s32 0, %v8740
      %v8742 = vrot.slane %v8678, %v8741
      %8743 = vrot.lane.b32.xlu0 %v8682, 64
      %v8744 = vpop.permute.xlu0 %8743
      %8745 = vrot.lane.b32.xlu0 %v8686, 64
      %v8746 = vpop.permute.xlu0 %8745
      %8747 = vrot.lane.b32.xlu0 %v8690, 64
      %v8748 = vpop.permute.xlu0 %8747
      %8749 = vrot.lane.b32.xlu0 %v8694, 64
      %v8750 = vpop.permute.xlu0 %8749
      %8751 = vrot.lane.b32.xlu0 %v8698, 64
      %v8752 = vpop.permute.xlu0 %8751
      %8753 = vrot.lane.b32.xlu0 %v8702, 64
      %v8754 = vpop.permute.xlu0 %8753
      %8755 = vrot.lane.b32.xlu0 %v8706, 64
      %v8756 = vpop.permute.xlu0 %8755
      %8757 = vrot.lane.b32.xlu0 %v8710, 64
      %v8758 = vpop.permute.xlu0 %8757
      %8759 = vrot.lane.b32.xlu0 %v8714, 64
      %v8760 = vpop.permute.xlu0 %8759
      %8761 = vrot.lane.b32.xlu0 %v8718, 64
      %v8762 = vpop.permute.xlu0 %8761
      %8763 = vrot.lane.b32.xlu0 %v8722, 64
      %v8764 = vpop.permute.xlu0 %8763
      %8765 = vrot.lane.b32.xlu0 %v8726, 64
      %v8766 = vpop.permute.xlu0 %8765
      %8767 = vrot.lane.b32.xlu0 %v8730, 64
      %v8768 = vpop.permute.xlu0 %8767
      %8769 = vrot.lane.b32.xlu0 %v8734, 64
      %v8770 = vpop.permute.xlu0 %8769
      %8771 = vrot.lane.b32.xlu0 %v8738, 64
      %v8772 = vpop.permute.xlu0 %8771
      %8773 = vrot.lane.b32.xlu0 %v8742, 64
      %v8774 = vpop.permute.xlu0 %8773
      %8791 = vst.msk [vmem:[%s5210 + $0xe] sm:$0x1] %vm5025, %v8744
      %8792 = vst.msk [vmem:[%s5210 + $0x26] sm:$0x1] %vm5025, %v8746
      %8793 = vst.msk [vmem:[%s5210 + $0x3e] sm:$0x1] %vm5025, %v8748
      %8794 = vst.msk [vmem:[%s5210 + $0x56] sm:$0x1] %vm5025, %v8750
      %8795 = vst.msk [vmem:[%s5210 + $0x6e] sm:$0x1] %vm5025, %v8752
      %8796 = vst.msk [vmem:[%s5210 + $0x86] sm:$0x1] %vm5025, %v8754
      %8797 = vst.msk [vmem:[%s5210 + $0x9e] sm:$0x1] %vm5025, %v8756
      %8798 = vst.msk [vmem:[%s5210 + $0xb6] sm:$0x1] %vm5025, %v8758
      %8799 = vst.msk [vmem:[%s5210 + $0xce] sm:$0x1] %vm5025, %v8760
      %8800 = vst.msk [vmem:[%s5210 + $0xe6] sm:$0x1] %vm5025, %v8762
      %8801 = vst.msk [vmem:[%s5210 + $0xfe] sm:$0x1] %vm5025, %v8764
      %8802 = vst.msk [vmem:[%s5210 + $0x116] sm:$0x1] %vm5025, %v8766
      %8803 = vst.msk [vmem:[%s5210 + $0x12e] sm:$0x1] %vm5025, %v8768
      %8804 = vst.msk [vmem:[%s5210 + $0x146] sm:$0x1] %vm5025, %v8770
      %8805 = vst.msk [vmem:[%s5210 + $0x15e] sm:$0x1] %vm5025, %v8772
      %8806 = vst.msk [vmem:[%s5210 + $0x176] sm:$0x1] %vm5025, %v8774
      %v8807 = vmul.f32 %v4966, -0.011583012
      %v8808 = vmul.f32 %v4970, -0.011583012
      %v8809 = vmul.f32 %v4968, -0.034749035
      %v8810 = vmul.f32 %v4972, -0.034749035
      %8813 = vrot.lane.b32.xlu0 %v8809, 64
      %v8814 = vpop.permute.xlu0 %8813
      %8815 = vrot.lane.b32.xlu0 %v8810, 64
      %v8816 = vpop.permute.xlu0 %8815
      %v8819 = vadd.f32 %v8807, %v8814
      %v8820 = vadd.f32 %v8808, %v8816
      %v8821 = vmul.f32 %v4968, 0.11196911
      %v8822 = vmul.f32 %v4972, 0.11196911
      %v8823 = vadd.f32 %v8819, %v8821
      %v8824 = vadd.f32 %v8820, %v8822
      %v8825 = vmul.f32 %v5009, 0.42857143
      %v8826 = vmul.f32 %v5013, 0.42857143
      %8829 = vrot.lane.b32.xlu0 %v8825, 64
      %v8830 = vpop.permute.xlu0 %8829
      %8831 = vrot.lane.b32.xlu0 %v8826, 64
      %v8832 = vpop.permute.xlu0 %8831
      %v8835 = vadd.f32 %v8823, %v8830
      %v8836 = vadd.f32 %v8824, %v8832
      %v8837 = vadd.f32 %v8835, %v8825
      %v8838 = vadd.f32 %v8836, %v8826
      %v8839 = vmul.f32 %v5011, 0.11196911
      %v8840 = vmul.f32 %v5015, 0.11196911
      %8843 = vrot.lane.b32.xlu0 %v8839, 64
      %v8844 = vpop.permute.xlu0 %8843
      %8845 = vrot.lane.b32.xlu0 %v8840, 64
      %v8846 = vpop.permute.xlu0 %8845
      %v8849 = vadd.f32 %v8837, %v8844
      %v8850 = vadd.f32 %v8838, %v8846
      %v8851 = vmul.f32 %v5011, -0.034749035
      %v8852 = vmul.f32 %v5015, -0.034749035
      %v8853 = vadd.f32 %v8849, %v8851
      %v8854 = vadd.f32 %v8850, %v8852
      %v8857 = vcombine.high %v8853, %v8853
      %v8859 = vunpack.c.l.s4 1966171168
      %v8860 = vunpack.c.0.s8 %v8859
      %v8861 = vlaneseq
      %v8862 = vshrl.u32 %v8861, 7
      %v8863 = vsub.s32 %v8860, %v8862
      %v8864 = vrot.slane %v8853, %v8863
      %v8866 = vunpack.c.l.s4 1966171168
      %v8867 = vunpack.c.0.s8 %v8866
      %v8868 = vlaneseq
      %v8869 = vshrl.u32 %v8868, 7
      %v8870 = vsub.s32 %v8867, %v8869
      %v8871 = vrot.slane %v8857, %v8870
      %v8872 = vcombine.high %v8864, %v8864
      %v8873 = vcombine.high %v8871, %v8871
      %v8875 = vunpack.c.l.s4 1966171168
      %v8876 = vunpack.c.0.s8 %v8875
      %v8877 = vlaneseq
      %v8878 = vshrl.u32 %v8877, 7
      %v8879 = vsub.s32 %v8876, %v8878
      %v8880 = vrot.slane %v8864, %v8879
      %v8882 = vunpack.c.l.s4 1966171168
      %v8883 = vunpack.c.0.s8 %v8882
      %v8884 = vlaneseq
      %v8885 = vshrl.u32 %v8884, 7
      %v8886 = vsub.s32 %v8883, %v8885
      %v8887 = vrot.slane %v8871, %v8886
      %v8889 = vunpack.c.l.s4 1966171168
      %v8890 = vunpack.c.0.s8 %v8889
      %v8891 = vlaneseq
      %v8892 = vshrl.u32 %v8891, 7
      %v8893 = vsub.s32 %v8890, %v8892
      %v8894 = vrot.slane %v8872, %v8893
      %v8896 = vunpack.c.l.s4 1966171168
      %v8897 = vunpack.c.0.s8 %v8896
      %v8898 = vlaneseq
      %v8899 = vshrl.u32 %v8898, 7
      %v8900 = vsub.s32 %v8897, %v8899
      %v8901 = vrot.slane %v8873, %v8900
      %v8902 = vcombine.high %v8880, %v8880
      %v8903 = vcombine.high %v8887, %v8887
      %v8904 = vcombine.high %v8894, %v8894
      %v8905 = vcombine.high %v8901, %v8901
      %v8906 = vcombine.high %v8854, %v8854
      %v8908 = vunpack.c.l.s4 1966171168
      %v8909 = vunpack.c.0.s8 %v8908
      %v8910 = vlaneseq
      %v8911 = vshrl.u32 %v8910, 7
      %v8912 = vsub.s32 %v8909, %v8911
      %v8913 = vrot.slane %v8854, %v8912
      %v8915 = vunpack.c.l.s4 1966171168
      %v8916 = vunpack.c.0.s8 %v8915
      %v8917 = vlaneseq
      %v8918 = vshrl.u32 %v8917, 7
      %v8919 = vsub.s32 %v8916, %v8918
      %v8920 = vrot.slane %v8906, %v8919
      %v8921 = vcombine.high %v8913, %v8913
      %v8922 = vcombine.high %v8920, %v8920
      %v8924 = vunpack.c.l.s4 1966171168
      %v8925 = vunpack.c.0.s8 %v8924
      %v8926 = vlaneseq
      %v8927 = vshrl.u32 %v8926, 7
      %v8928 = vsub.s32 %v8925, %v8927
      %v8929 = vrot.slane %v8913, %v8928
      %v8931 = vunpack.c.l.s4 1966171168
      %v8932 = vunpack.c.0.s8 %v8931
      %v8933 = vlaneseq
      %v8934 = vshrl.u32 %v8933, 7
      %v8935 = vsub.s32 %v8932, %v8934
      %v8936 = vrot.slane %v8920, %v8935
      %v8938 = vunpack.c.l.s4 1966171168
      %v8939 = vunpack.c.0.s8 %v8938
      %v8940 = vlaneseq
      %v8941 = vshrl.u32 %v8940, 7
      %v8942 = vsub.s32 %v8939, %v8941
      %v8943 = vrot.slane %v8921, %v8942
      %v8945 = vunpack.c.l.s4 1966171168
      %v8946 = vunpack.c.0.s8 %v8945
      %v8947 = vlaneseq
      %v8948 = vshrl.u32 %v8947, 7
      %v8949 = vsub.s32 %v8946, %v8948
      %v8950 = vrot.slane %v8922, %v8949
      %v8951 = vcombine.high %v8929, %v8929
      %v8952 = vcombine.high %v8936, %v8936
      %v8953 = vcombine.high %v8943, %v8943
      %v8954 = vcombine.high %v8950, %v8950
      %v8955 = vlaneseq
      %v8956 = vshrl.u32 %v8955, 7
      %v8957 = vsub.s32 0, %v8956
      %v8958 = vrot.slane %v8880, %v8957
      %v8959 = vlaneseq
      %v8960 = vshrl.u32 %v8959, 7
      %v8961 = vsub.s32 0, %v8960
      %v8962 = vrot.slane %v8894, %v8961
      %v8963 = vlaneseq
      %v8964 = vshrl.u32 %v8963, 7
      %v8965 = vsub.s32 0, %v8964
      %v8966 = vrot.slane %v8902, %v8965
      %v8967 = vlaneseq
      %v8968 = vshrl.u32 %v8967, 7
      %v8969 = vsub.s32 0, %v8968
      %v8970 = vrot.slane %v8904, %v8969
      %v8971 = vlaneseq
      %v8972 = vshrl.u32 %v8971, 7
      %v8973 = vsub.s32 0, %v8972
      %v8974 = vrot.slane %v8887, %v8973
      %v8975 = vlaneseq
      %v8976 = vshrl.u32 %v8975, 7
      %v8977 = vsub.s32 0, %v8976
      %v8978 = vrot.slane %v8901, %v8977
      %v8979 = vlaneseq
      %v8980 = vshrl.u32 %v8979, 7
      %v8981 = vsub.s32 0, %v8980
      %v8982 = vrot.slane %v8903, %v8981
      %v8983 = vlaneseq
      %v8984 = vshrl.u32 %v8983, 7
      %v8985 = vsub.s32 0, %v8984
      %v8986 = vrot.slane %v8905, %v8985
      %v8987 = vlaneseq
      %v8988 = vshrl.u32 %v8987, 7
      %v8989 = vsub.s32 0, %v8988
      %v8990 = vrot.slane %v8929, %v8989
      %v8991 = vlaneseq
      %v8992 = vshrl.u32 %v8991, 7
      %v8993 = vsub.s32 0, %v8992
      %v8994 = vrot.slane %v8943, %v8993
      %v8995 = vlaneseq
      %v8996 = vshrl.u32 %v8995, 7
      %v8997 = vsub.s32 0, %v8996
      %v8998 = vrot.slane %v8951, %v8997
      %v8999 = vlaneseq
      %v9000 = vshrl.u32 %v8999, 7
      %v9001 = vsub.s32 0, %v9000
      %v9002 = vrot.slane %v8953, %v9001
      %v9003 = vlaneseq
      %v9004 = vshrl.u32 %v9003, 7
      %v9005 = vsub.s32 0, %v9004
      %v9006 = vrot.slane %v8936, %v9005
      %v9007 = vlaneseq
      %v9008 = vshrl.u32 %v9007, 7
      %v9009 = vsub.s32 0, %v9008
      %v9010 = vrot.slane %v8950, %v9009
      %v9011 = vlaneseq
      %v9012 = vshrl.u32 %v9011, 7
      %v9013 = vsub.s32 0, %v9012
      %v9014 = vrot.slane %v8952, %v9013
      %v9015 = vlaneseq
      %v9016 = vshrl.u32 %v9015, 7
      %v9017 = vsub.s32 0, %v9016
      %v9018 = vrot.slane %v8954, %v9017
      %9019 = vrot.lane.b32.xlu0 %v8958, 64
      %v9020 = vpop.permute.xlu0 %9019
      %9021 = vrot.lane.b32.xlu0 %v8962, 64
      %v9022 = vpop.permute.xlu0 %9021
      %9023 = vrot.lane.b32.xlu0 %v8966, 64
      %v9024 = vpop.permute.xlu0 %9023
      %9025 = vrot.lane.b32.xlu0 %v8970, 64
      %v9026 = vpop.permute.xlu0 %9025
      %9027 = vrot.lane.b32.xlu0 %v8974, 64
      %v9028 = vpop.permute.xlu0 %9027
      %9029 = vrot.lane.b32.xlu0 %v8978, 64
      %v9030 = vpop.permute.xlu0 %9029
      %9031 = vrot.lane.b32.xlu0 %v8982, 64
      %v9032 = vpop.permute.xlu0 %9031
      %9033 = vrot.lane.b32.xlu0 %v8986, 64
      %v9034 = vpop.permute.xlu0 %9033
      %9035 = vrot.lane.b32.xlu0 %v8990, 64
      %v9036 = vpop.permute.xlu0 %9035
      %9037 = vrot.lane.b32.xlu0 %v8994, 64
      %v9038 = vpop.permute.xlu0 %9037
      %9039 = vrot.lane.b32.xlu0 %v8998, 64
      %v9040 = vpop.permute.xlu0 %9039
      %9041 = vrot.lane.b32.xlu0 %v9002, 64
      %v9042 = vpop.permute.xlu0 %9041
      %9043 = vrot.lane.b32.xlu0 %v9006, 64
      %v9044 = vpop.permute.xlu0 %9043
      %9045 = vrot.lane.b32.xlu0 %v9010, 64
      %v9046 = vpop.permute.xlu0 %9045
      %9047 = vrot.lane.b32.xlu0 %v9014, 64
      %v9048 = vpop.permute.xlu0 %9047
      %9049 = vrot.lane.b32.xlu0 %v9018, 64
      %v9050 = vpop.permute.xlu0 %9049
      %9067 = vst.msk [vmem:[%s5210 + $0xf] sm:$0x1] %vm5025, %v9020
      %9068 = vst.msk [vmem:[%s5210 + $0x27] sm:$0x1] %vm5025, %v9022
      %9069 = vst.msk [vmem:[%s5210 + $0x3f] sm:$0x1] %vm5025, %v9024
      %9070 = vst.msk [vmem:[%s5210 + $0x57] sm:$0x1] %vm5025, %v9026
      %9071 = vst.msk [vmem:[%s5210 + $0x6f] sm:$0x1] %vm5025, %v9028
      %9072 = vst.msk [vmem:[%s5210 + $0x87] sm:$0x1] %vm5025, %v9030
      %9073 = vst.msk [vmem:[%s5210 + $0x9f] sm:$0x1] %vm5025, %v9032
      %9074 = vst.msk [vmem:[%s5210 + $0xb7] sm:$0x1] %vm5025, %v9034
      %9075 = vst.msk [vmem:[%s5210 + $0xcf] sm:$0x1] %vm5025, %v9036
      %9076 = vst.msk [vmem:[%s5210 + $0xe7] sm:$0x1] %vm5025, %v9038
      %9077 = vst.msk [vmem:[%s5210 + $0xff] sm:$0x1] %vm5025, %v9040
      %9078 = vst.msk [vmem:[%s5210 + $0x117] sm:$0x1] %vm5025, %v9042
      %9079 = vst.msk [vmem:[%s5210 + $0x12f] sm:$0x1] %vm5025, %v9044
      %9080 = vst.msk [vmem:[%s5210 + $0x147] sm:$0x1] %vm5025, %v9046
      %9081 = vst.msk [vmem:[%s5210 + $0x15f] sm:$0x1] %vm5025, %v9048
      %9082 = vst.msk [vmem:[%s5210 + $0x177] sm:$0x1] %vm5025, %v9050
      %v9083 = vmul.f32 %v4968, -0.012552301
      %v9084 = vmul.f32 %v4972, -0.012552301
      %v9085 = vmul.f32 %v5009, -0.037656903
      %v9086 = vmul.f32 %v5013, -0.037656903
      %9089 = vrot.lane.b32.xlu0 %v9085, 64
      %v9090 = vpop.permute.xlu0 %9089
      %9091 = vrot.lane.b32.xlu0 %v9086, 64
      %v9092 = vpop.permute.xlu0 %9091
      %v9095 = vadd.f32 %v9083, %v9090
      %v9096 = vadd.f32 %v9084, %v9092
      %v9097 = vmul.f32 %v5009, 0.12133891
      %v9098 = vmul.f32 %v5013, 0.12133891
      %v9099 = vadd.f32 %v9095, %v9097
      %v9100 = vadd.f32 %v9096, %v9098
      %v9101 = vmul.f32 %v5011, 0.46443516
      %v9102 = vmul.f32 %v5015, 0.46443516
      %9105 = vrot.lane.b32.xlu0 %v9101, 64
      %v9106 = vpop.permute.xlu0 %9105
      %9107 = vrot.lane.b32.xlu0 %v9102, 64
      %v9108 = vpop.permute.xlu0 %9107
      %v9111 = vadd.f32 %v9099, %v9106
      %v9112 = vadd.f32 %v9100, %v9108
      %v9113 = vadd.f32 %v9111, %v9101
      %v9114 = vadd.f32 %v9112, %v9102
      %v9117 = vcombine.high %v9113, %v9113
      %v9119 = vunpack.c.l.s4 1966171168
      %v9120 = vunpack.c.0.s8 %v9119
      %v9121 = vlaneseq
      %v9122 = vshrl.u32 %v9121, 7
      %v9123 = vsub.s32 %v9120, %v9122
      %v9124 = vrot.slane %v9113, %v9123
      %v9126 = vunpack.c.l.s4 1966171168
      %v9127 = vunpack.c.0.s8 %v9126
      %v9128 = vlaneseq
      %v9129 = vshrl.u32 %v9128, 7
      %v9130 = vsub.s32 %v9127, %v9129
      %v9131 = vrot.slane %v9117, %v9130
      %v9132 = vcombine.high %v9124, %v9124
      %v9133 = vcombine.high %v9131, %v9131
      %v9135 = vunpack.c.l.s4 1966171168
      %v9136 = vunpack.c.0.s8 %v9135
      %v9137 = vlaneseq
      %v9138 = vshrl.u32 %v9137, 7
      %v9139 = vsub.s32 %v9136, %v9138
      %v9140 = vrot.slane %v9124, %v9139
      %v9142 = vunpack.c.l.s4 1966171168
      %v9143 = vunpack.c.0.s8 %v9142
      %v9144 = vlaneseq
      %v9145 = vshrl.u32 %v9144, 7
      %v9146 = vsub.s32 %v9143, %v9145
      %v9147 = vrot.slane %v9131, %v9146
      %v9149 = vunpack.c.l.s4 1966171168
      %v9150 = vunpack.c.0.s8 %v9149
      %v9151 = vlaneseq
      %v9152 = vshrl.u32 %v9151, 7
      %v9153 = vsub.s32 %v9150, %v9152
      %v9154 = vrot.slane %v9132, %v9153
      %v9156 = vunpack.c.l.s4 1966171168
      %v9157 = vunpack.c.0.s8 %v9156
      %v9158 = vlaneseq
      %v9159 = vshrl.u32 %v9158, 7
      %v9160 = vsub.s32 %v9157, %v9159
      %v9161 = vrot.slane %v9133, %v9160
      %v9162 = vcombine.high %v9140, %v9140
      %v9163 = vcombine.high %v9147, %v9147
      %v9164 = vcombine.high %v9154, %v9154
      %v9165 = vcombine.high %v9161, %v9161
      %v9166 = vcombine.high %v9114, %v9114
      %v9168 = vunpack.c.l.s4 1966171168
      %v9169 = vunpack.c.0.s8 %v9168
      %v9170 = vlaneseq
      %v9171 = vshrl.u32 %v9170, 7
      %v9172 = vsub.s32 %v9169, %v9171
      %v9173 = vrot.slane %v9114, %v9172
      %v9175 = vunpack.c.l.s4 1966171168
      %v9176 = vunpack.c.0.s8 %v9175
      %v9177 = vlaneseq
      %v9178 = vshrl.u32 %v9177, 7
      %v9179 = vsub.s32 %v9176, %v9178
      %v9180 = vrot.slane %v9166, %v9179
      %v9181 = vcombine.high %v9173, %v9173
      %v9182 = vcombine.high %v9180, %v9180
      %v9184 = vunpack.c.l.s4 1966171168
      %v9185 = vunpack.c.0.s8 %v9184
      %v9186 = vlaneseq
      %v9187 = vshrl.u32 %v9186, 7
      %v9188 = vsub.s32 %v9185, %v9187
      %v9189 = vrot.slane %v9173, %v9188
      %v9191 = vunpack.c.l.s4 1966171168
      %v9192 = vunpack.c.0.s8 %v9191
      %v9193 = vlaneseq
      %v9194 = vshrl.u32 %v9193, 7
      %v9195 = vsub.s32 %v9192, %v9194
      %v9196 = vrot.slane %v9180, %v9195
      %v9198 = vunpack.c.l.s4 1966171168
      %v9199 = vunpack.c.0.s8 %v9198
      %v9200 = vlaneseq
      %v9201 = vshrl.u32 %v9200, 7
      %v9202 = vsub.s32 %v9199, %v9201
      %v9203 = vrot.slane %v9181, %v9202
      %v9205 = vunpack.c.l.s4 1966171168
      %v9206 = vunpack.c.0.s8 %v9205
      %v9207 = vlaneseq
      %v9208 = vshrl.u32 %v9207, 7
      %v9209 = vsub.s32 %v9206, %v9208
      %v9210 = vrot.slane %v9182, %v9209
      %v9211 = vcombine.high %v9189, %v9189
      %v9212 = vcombine.high %v9196, %v9196
      %v9213 = vcombine.high %v9203, %v9203
      %v9214 = vcombine.high %v9210, %v9210
      %v9215 = vlaneseq
      %v9216 = vshrl.u32 %v9215, 7
      %v9217 = vsub.s32 0, %v9216
      %v9218 = vrot.slane %v9140, %v9217
      %v9219 = vlaneseq
      %v9220 = vshrl.u32 %v9219, 7
      %v9221 = vsub.s32 0, %v9220
      %v9222 = vrot.slane %v9154, %v9221
      %v9223 = vlaneseq
      %v9224 = vshrl.u32 %v9223, 7
      %v9225 = vsub.s32 0, %v9224
      %v9226 = vrot.slane %v9162, %v9225
      %v9227 = vlaneseq
      %v9228 = vshrl.u32 %v9227, 7
      %v9229 = vsub.s32 0, %v9228
      %v9230 = vrot.slane %v9164, %v9229
      %v9231 = vlaneseq
      %v9232 = vshrl.u32 %v9231, 7
      %v9233 = vsub.s32 0, %v9232
      %v9234 = vrot.slane %v9147, %v9233
      %v9235 = vlaneseq
      %v9236 = vshrl.u32 %v9235, 7
      %v9237 = vsub.s32 0, %v9236
      %v9238 = vrot.slane %v9161, %v9237
      %v9239 = vlaneseq
      %v9240 = vshrl.u32 %v9239, 7
      %v9241 = vsub.s32 0, %v9240
      %v9242 = vrot.slane %v9163, %v9241
      %v9243 = vlaneseq
      %v9244 = vshrl.u32 %v9243, 7
      %v9245 = vsub.s32 0, %v9244
      %v9246 = vrot.slane %v9165, %v9245
      %v9247 = vlaneseq
      %v9248 = vshrl.u32 %v9247, 7
      %v9249 = vsub.s32 0, %v9248
      %v9250 = vrot.slane %v9189, %v9249
      %v9251 = vlaneseq
      %v9252 = vshrl.u32 %v9251, 7
      %v9253 = vsub.s32 0, %v9252
      %v9254 = vrot.slane %v9203, %v9253
      %v9255 = vlaneseq
      %v9256 = vshrl.u32 %v9255, 7
      %v9257 = vsub.s32 0, %v9256
      %v9258 = vrot.slane %v9211, %v9257
      %v9259 = vlaneseq
      %v9260 = vshrl.u32 %v9259, 7
      %v9261 = vsub.s32 0, %v9260
      %v9262 = vrot.slane %v9213, %v9261
      %v9263 = vlaneseq
      %v9264 = vshrl.u32 %v9263, 7
      %v9265 = vsub.s32 0, %v9264
      %v9266 = vrot.slane %v9196, %v9265
      %v9267 = vlaneseq
      %v9268 = vshrl.u32 %v9267, 7
      %v9269 = vsub.s32 0, %v9268
      %v9270 = vrot.slane %v9210, %v9269
      %v9271 = vlaneseq
      %v9272 = vshrl.u32 %v9271, 7
      %v9273 = vsub.s32 0, %v9272
      %v9274 = vrot.slane %v9212, %v9273
      %v9275 = vlaneseq
      %v9276 = vshrl.u32 %v9275, 7
      %v9277 = vsub.s32 0, %v9276
      %v9278 = vrot.slane %v9214, %v9277
      %9279 = vrot.lane.b32.xlu0 %v9218, 64
      %v9280 = vpop.permute.xlu0 %9279
      %9281 = vrot.lane.b32.xlu0 %v9222, 64
      %v9282 = vpop.permute.xlu0 %9281
      %9283 = vrot.lane.b32.xlu0 %v9226, 64
      %v9284 = vpop.permute.xlu0 %9283
      %9285 = vrot.lane.b32.xlu0 %v9230, 64
      %v9286 = vpop.permute.xlu0 %9285
      %9287 = vrot.lane.b32.xlu0 %v9234, 64
      %v9288 = vpop.permute.xlu0 %9287
      %9289 = vrot.lane.b32.xlu0 %v9238, 64
      %v9290 = vpop.permute.xlu0 %9289
      %9291 = vrot.lane.b32.xlu0 %v9242, 64
      %v9292 = vpop.permute.xlu0 %9291
      %9293 = vrot.lane.b32.xlu0 %v9246, 64
      %v9294 = vpop.permute.xlu0 %9293
      %9295 = vrot.lane.b32.xlu0 %v9250, 64
      %v9296 = vpop.permute.xlu0 %9295
      %9297 = vrot.lane.b32.xlu0 %v9254, 64
      %v9298 = vpop.permute.xlu0 %9297
      %9299 = vrot.lane.b32.xlu0 %v9258, 64
      %v9300 = vpop.permute.xlu0 %9299
      %9301 = vrot.lane.b32.xlu0 %v9262, 64
      %v9302 = vpop.permute.xlu0 %9301
      %9303 = vrot.lane.b32.xlu0 %v9266, 64
      %v9304 = vpop.permute.xlu0 %9303
      %9305 = vrot.lane.b32.xlu0 %v9270, 64
      %v9306 = vpop.permute.xlu0 %9305
      %9307 = vrot.lane.b32.xlu0 %v9274, 64
      %v9308 = vpop.permute.xlu0 %9307
      %9309 = vrot.lane.b32.xlu0 %v9278, 64
      %v9310 = vpop.permute.xlu0 %9309
      %9327 = vst.msk [vmem:[%s5210 + $0x10] sm:$0x1] %vm5025, %v9280
      %9328 = vst.msk [vmem:[%s5210 + $0x28] sm:$0x1] %vm5025, %v9282
      %9329 = vst.msk [vmem:[%s5210 + $0x40] sm:$0x1] %vm5025, %v9284
      %9330 = vst.msk [vmem:[%s5210 + $0x58] sm:$0x1] %vm5025, %v9286
      %9331 = vst.msk [vmem:[%s5210 + $0x70] sm:$0x1] %vm5025, %v9288
      %9332 = vst.msk [vmem:[%s5210 + $0x88] sm:$0x1] %vm5025, %v9290
      %9333 = vst.msk [vmem:[%s5210 + $0xa0] sm:$0x1] %vm5025, %v9292
      %9334 = vst.msk [vmem:[%s5210 + $0xb8] sm:$0x1] %vm5025, %v9294
      %9335 = vst.msk [vmem:[%s5210 + $0xd0] sm:$0x1] %vm5025, %v9296
      %9336 = vst.msk [vmem:[%s5210 + $0xe8] sm:$0x1] %vm5025, %v9298
      %9337 = vst.msk [vmem:[%s5210 + $0x100] sm:$0x1] %vm5025, %v9300
      %9338 = vst.msk [vmem:[%s5210 + $0x118] sm:$0x1] %vm5025, %v9302
      %9339 = vst.msk [vmem:[%s5210 + $0x130] sm:$0x1] %vm5025, %v9304
      %9340 = vst.msk [vmem:[%s5210 + $0x148] sm:$0x1] %vm5025, %v9306
      %9341 = vst.msk [vmem:[%s5210 + $0x160] sm:$0x1] %vm5025, %v9308
      %9342 = vst.msk [vmem:[%s5210 + $0x178] sm:$0x1] %vm5025, %v9310
      %v9343 = vld [vmem:[#allocation2] sm:$0xff]
      %v9344 = vld [vmem:[#allocation2 + $0x8] sm:$0xff]
      %v9345 = vld [vmem:[#allocation2 + $0x18] sm:$0xff]
      %v9346 = vld [vmem:[#allocation2 + $0x20] sm:$0xff]
      %v9347 = vld [vmem:[#allocation2 + $0x30] sm:$0xff]
      %v9348 = vld [vmem:[#allocation2 + $0x38] sm:$0xff]
      %v9349 = vld [vmem:[#allocation2 + $0x48] sm:$0xff]
      %v9350 = vld [vmem:[#allocation2 + $0x50] sm:$0xff]
      %v9351 = vld [vmem:[#allocation2 + $0x60] sm:$0xff]
      %v9352 = vld [vmem:[#allocation2 + $0x68] sm:$0xff]
      %v9353 = vld [vmem:[#allocation2 + $0x78] sm:$0xff]
      %v9354 = vld [vmem:[#allocation2 + $0x80] sm:$0xff]
      %v9355 = vld [vmem:[#allocation2 + $0x90] sm:$0xff]
      %v9356 = vld [vmem:[#allocation2 + $0x98] sm:$0xff]
      %v9357 = vld [vmem:[#allocation2 + $0xa8] sm:$0xff]
      %v9358 = vld [vmem:[#allocation2 + $0xb0] sm:$0xff]
      %v9359 = vld [vmem:[#allocation2 + $0xc0] sm:$0xff]
      %v9360 = vld [vmem:[#allocation2 + $0xc8] sm:$0xff]
      %v9361 = vld [vmem:[#allocation2 + $0xd8] sm:$0xff]
      %v9362 = vld [vmem:[#allocation2 + $0xe0] sm:$0xff]
      %v9363 = vld [vmem:[#allocation2 + $0xf0] sm:$0xff]
      %v9364 = vld [vmem:[#allocation2 + $0xf8] sm:$0xff]
      %v9365 = vld [vmem:[#allocation2 + $0x108] sm:$0xff]
      %v9366 = vld [vmem:[#allocation2 + $0x110] sm:$0xff]
      %v9367 = vld [vmem:[#allocation2 + $0x120] sm:$0xff]
      %v9368 = vld [vmem:[#allocation2 + $0x128] sm:$0xff]
      %v9369 = vld [vmem:[#allocation2 + $0x138] sm:$0xff]
      %v9370 = vld [vmem:[#allocation2 + $0x140] sm:$0xff]
      %v9371 = vld [vmem:[#allocation2 + $0x150] sm:$0xff]
      %v9372 = vld [vmem:[#allocation2 + $0x158] sm:$0xff]
      %v9373 = vld [vmem:[#allocation2 + $0x168] sm:$0xff]
      %v9374 = vld [vmem:[#allocation2 + $0x170] sm:$0xff]
      %v9375 = vld [vmem:[#allocation2 + $0x1] sm:$0xff]
      %v9376 = vld [vmem:[#allocation2 + $0x9] sm:$0xff]
      %v9377 = vld [vmem:[#allocation2 + $0x19] sm:$0xff]
      %v9378 = vld [vmem:[#allocation2 + $0x21] sm:$0xff]
      %v9379 = vld [vmem:[#allocation2 + $0x31] sm:$0xff]
      %v9380 = vld [vmem:[#allocation2 + $0x39] sm:$0xff]
      %v9381 = vld [vmem:[#allocation2 + $0x49] sm:$0xff]
      %v9382 = vld [vmem:[#allocation2 + $0x51] sm:$0xff]
      %v9383 = vld [vmem:[#allocation2 + $0x61] sm:$0xff]
      %v9384 = vld [vmem:[#allocation2 + $0x69] sm:$0xff]
      %v9385 = vld [vmem:[#allocation2 + $0x79] sm:$0xff]
      %v9386 = vld [vmem:[#allocation2 + $0x81] sm:$0xff]
      %v9387 = vld [vmem:[#allocation2 + $0x91] sm:$0xff]
      %v9388 = vld [vmem:[#allocation2 + $0x99] sm:$0xff]
      %v9389 = vld [vmem:[#allocation2 + $0xa9] sm:$0xff]
      %v9390 = vld [vmem:[#allocation2 + $0xb1] sm:$0xff]
      %v9391 = vld [vmem:[#allocation2 + $0xc1] sm:$0xff]
      %v9392 = vld [vmem:[#allocation2 + $0xc9] sm:$0xff]
      %v9393 = vld [vmem:[#allocation2 + $0xd9] sm:$0xff]
      %v9394 = vld [vmem:[#allocation2 + $0xe1] sm:$0xff]
      %v9395 = vld [vmem:[#allocation2 + $0xf1] sm:$0xff]
      %v9396 = vld [vmem:[#allocation2 + $0xf9] sm:$0xff]
      %v9397 = vld [vmem:[#allocation2 + $0x109] sm:$0xff]
      %v9398 = vld [vmem:[#allocation2 + $0x111] sm:$0xff]
      %v9399 = vld [vmem:[#allocation2 + $0x121] sm:$0xff]
      %v9400 = vld [vmem:[#allocation2 + $0x129] sm:$0xff]
      %v9401 = vld [vmem:[#allocation2 + $0x139] sm:$0xff]
      %v9402 = vld [vmem:[#allocation2 + $0x141] sm:$0xff]
      %v9403 = vld [vmem:[#allocation2 + $0x151] sm:$0xff]
      %v9404 = vld [vmem:[#allocation2 + $0x159] sm:$0xff]
      %v9405 = vld [vmem:[#allocation2 + $0x169] sm:$0xff]
      %v9406 = vld [vmem:[#allocation2 + $0x171] sm:$0xff]
      %v9407 = vld [vmem:[#allocation2 + $0x2] sm:$0xff]
      %v9408 = vld [vmem:[#allocation2 + $0xa] sm:$0xff]
      %v9409 = vld [vmem:[#allocation2 + $0x1a] sm:$0xff]
      %v9410 = vld [vmem:[#allocation2 + $0x22] sm:$0xff]
      %v9411 = vld [vmem:[#allocation2 + $0x32] sm:$0xff]
      %v9412 = vld [vmem:[#allocation2 + $0x3a] sm:$0xff]
      %v9413 = vld [vmem:[#allocation2 + $0x4a] sm:$0xff]
      %v9414 = vld [vmem:[#allocation2 + $0x52] sm:$0xff]
      %v9415 = vld [vmem:[#allocation2 + $0x62] sm:$0xff]
      %v9416 = vld [vmem:[#allocation2 + $0x6a] sm:$0xff]
      %v9417 = vld [vmem:[#allocation2 + $0x7a] sm:$0xff]
      %v9418 = vld [vmem:[#allocation2 + $0x82] sm:$0xff]
      %v9419 = vld [vmem:[#allocation2 + $0x92] sm:$0xff]
      %v9420 = vld [vmem:[#allocation2 + $0x9a] sm:$0xff]
      %v9421 = vld [vmem:[#allocation2 + $0xaa] sm:$0xff]
      %v9422 = vld [vmem:[#allocation2 + $0xb2] sm:$0xff]
      %v9423 = vld [vmem:[#allocation2 + $0xc2] sm:$0xff]
      %v9424 = vld [vmem:[#allocation2 + $0xca] sm:$0xff]
      %v9425 = vld [vmem:[#allocation2 + $0xda] sm:$0xff]
      %v9426 = vld [vmem:[#allocation2 + $0xe2] sm:$0xff]
      %v9427 = vld [vmem:[#allocation2 + $0xf2] sm:$0xff]
      %v9428 = vld [vmem:[#allocation2 + $0xfa] sm:$0xff]
      %v9429 = vld [vmem:[#allocation2 + $0x10a] sm:$0xff]
      %v9430 = vld [vmem:[#allocation2 + $0x112] sm:$0xff]
      %v9431 = vld [vmem:[#allocation2 + $0x122] sm:$0xff]
      %v9432 = vld [vmem:[#allocation2 + $0x12a] sm:$0xff]
      %v9433 = vld [vmem:[#allocation2 + $0x13a] sm:$0xff]
      %v9434 = vld [vmem:[#allocation2 + $0x142] sm:$0xff]
      %v9435 = vld [vmem:[#allocation2 + $0x152] sm:$0xff]
      %v9436 = vld [vmem:[#allocation2 + $0x15a] sm:$0xff]
      %v9437 = vld [vmem:[#allocation2 + $0x16a] sm:$0xff]
      %v9438 = vld [vmem:[#allocation2 + $0x172] sm:$0xff]
      %v9439 = vld [vmem:[%s5210] sm:$0xff]
      %v9440 = vld [vmem:[%s5210 + $0x8] sm:$0xff]
      %v9441 = vld [vmem:[%s5210 + $0x18] sm:$0xff]
      %v9442 = vld [vmem:[%s5210 + $0x20] sm:$0xff]
      %v9443 = vld [vmem:[%s5210 + $0x30] sm:$0xff]
      %v9444 = vld [vmem:[%s5210 + $0x38] sm:$0xff]
      %v9445 = vld [vmem:[%s5210 + $0x48] sm:$0xff]
      %v9446 = vld [vmem:[%s5210 + $0x50] sm:$0xff]
      %v9447 = vld [vmem:[%s5210 + $0x60] sm:$0xff]
      %v9448 = vld [vmem:[%s5210 + $0x68] sm:$0xff]
      %v9449 = vld [vmem:[%s5210 + $0x78] sm:$0xff]
      %v9450 = vld [vmem:[%s5210 + $0x80] sm:$0xff]
      %v9451 = vld [vmem:[%s5210 + $0x90] sm:$0xff]
      %v9452 = vld [vmem:[%s5210 + $0x98] sm:$0xff]
      %v9453 = vld [vmem:[%s5210 + $0xa8] sm:$0xff]
      %v9454 = vld [vmem:[%s5210 + $0xb0] sm:$0xff]
      %v9455 = vld [vmem:[%s5210 + $0xc0] sm:$0xff]
      %v9456 = vld [vmem:[%s5210 + $0xc8] sm:$0xff]
      %v9457 = vld [vmem:[%s5210 + $0xd8] sm:$0xff]
      %v9458 = vld [vmem:[%s5210 + $0xe0] sm:$0xff]
      %v9459 = vld [vmem:[%s5210 + $0xf0] sm:$0xff]
      %v9460 = vld [vmem:[%s5210 + $0xf8] sm:$0xff]
      %v9461 = vld [vmem:[%s5210 + $0x108] sm:$0xff]
      %v9462 = vld [vmem:[%s5210 + $0x110] sm:$0xff]
      %v9463 = vld [vmem:[%s5210 + $0x120] sm:$0xff]
      %v9464 = vld [vmem:[%s5210 + $0x128] sm:$0xff]
      %v9465 = vld [vmem:[%s5210 + $0x138] sm:$0xff]
      %v9466 = vld [vmem:[%s5210 + $0x140] sm:$0xff]
      %v9467 = vld [vmem:[%s5210 + $0x150] sm:$0xff]
      %v9468 = vld [vmem:[%s5210 + $0x158] sm:$0xff]
      %v9469 = vld [vmem:[%s5210 + $0x168] sm:$0xff]
      %v9470 = vld [vmem:[%s5210 + $0x170] sm:$0xff]
      %v9471 = vld [vmem:[%s5210 + $0x1] sm:$0xff]
      %v9472 = vld [vmem:[%s5210 + $0x9] sm:$0xff]
      %v9473 = vld [vmem:[%s5210 + $0x19] sm:$0xff]
      %v9474 = vld [vmem:[%s5210 + $0x21] sm:$0xff]
      %v9475 = vld [vmem:[%s5210 + $0x31] sm:$0xff]
      %v9476 = vld [vmem:[%s5210 + $0x39] sm:$0xff]
      %v9477 = vld [vmem:[%s5210 + $0x49] sm:$0xff]
      %v9478 = vld [vmem:[%s5210 + $0x51] sm:$0xff]
      %v9479 = vld [vmem:[%s5210 + $0x61] sm:$0xff]
      %v9480 = vld [vmem:[%s5210 + $0x69] sm:$0xff]
      %v9481 = vld [vmem:[%s5210 + $0x79] sm:$0xff]
      %v9482 = vld [vmem:[%s5210 + $0x81] sm:$0xff]
      %v9483 = vld [vmem:[%s5210 + $0x91] sm:$0xff]
      %v9484 = vld [vmem:[%s5210 + $0x99] sm:$0xff]
      %v9485 = vld [vmem:[%s5210 + $0xa9] sm:$0xff]
      %v9486 = vld [vmem:[%s5210 + $0xb1] sm:$0xff]
      %v9487 = vld [vmem:[%s5210 + $0xc1] sm:$0xff]
      %v9488 = vld [vmem:[%s5210 + $0xc9] sm:$0xff]
      %v9489 = vld [vmem:[%s5210 + $0xd9] sm:$0xff]
      %v9490 = vld [vmem:[%s5210 + $0xe1] sm:$0xff]
      %v9491 = vld [vmem:[%s5210 + $0xf1] sm:$0xff]
      %v9492 = vld [vmem:[%s5210 + $0xf9] sm:$0xff]
      %v9493 = vld [vmem:[%s5210 + $0x109] sm:$0xff]
      %v9494 = vld [vmem:[%s5210 + $0x111] sm:$0xff]
      %v9495 = vld [vmem:[%s5210 + $0x121] sm:$0xff]
      %v9496 = vld [vmem:[%s5210 + $0x129] sm:$0xff]
      %v9497 = vld [vmem:[%s5210 + $0x139] sm:$0xff]
      %v9498 = vld [vmem:[%s5210 + $0x141] sm:$0xff]
      %v9499 = vld [vmem:[%s5210 + $0x151] sm:$0xff]
      %v9500 = vld [vmem:[%s5210 + $0x159] sm:$0xff]
      %v9501 = vld [vmem:[%s5210 + $0x169] sm:$0xff]
      %v9502 = vld [vmem:[%s5210 + $0x171] sm:$0xff]
      %v9503 = vld [vmem:[%s5210 + $0x2] sm:$0xff]
      %v9504 = vld [vmem:[%s5210 + $0xa] sm:$0xff]
      %v9505 = vld [vmem:[%s5210 + $0x1a] sm:$0xff]
      %v9506 = vld [vmem:[%s5210 + $0x22] sm:$0xff]
      %v9507 = vld [vmem:[%s5210 + $0x32] sm:$0xff]
      %v9508 = vld [vmem:[%s5210 + $0x3a] sm:$0xff]
      %v9509 = vld [vmem:[%s5210 + $0x4a] sm:$0xff]
      %v9510 = vld [vmem:[%s5210 + $0x52] sm:$0xff]
      %v9511 = vld [vmem:[%s5210 + $0x62] sm:$0xff]
      %v9512 = vld [vmem:[%s5210 + $0x6a] sm:$0xff]
      %v9513 = vld [vmem:[%s5210 + $0x7a] sm:$0xff]
      %v9514 = vld [vmem:[%s5210 + $0x82] sm:$0xff]
      %v9515 = vld [vmem:[%s5210 + $0x92] sm:$0xff]
      %v9516 = vld [vmem:[%s5210 + $0x9a] sm:$0xff]
      %v9517 = vld [vmem:[%s5210 + $0xaa] sm:$0xff]
      %v9518 = vld [vmem:[%s5210 + $0xb2] sm:$0xff]
      %v9519 = vld [vmem:[%s5210 + $0xc2] sm:$0xff]
      %v9520 = vld [vmem:[%s5210 + $0xca] sm:$0xff]
      %v9521 = vld [vmem:[%s5210 + $0xda] sm:$0xff]
      %v9522 = vld [vmem:[%s5210 + $0xe2] sm:$0xff]
      %v9523 = vld [vmem:[%s5210 + $0xf2] sm:$0xff]
      %v9524 = vld [vmem:[%s5210 + $0xfa] sm:$0xff]
      %v9525 = vld [vmem:[%s5210 + $0x10a] sm:$0xff]
      %v9526 = vld [vmem:[%s5210 + $0x112] sm:$0xff]
      %v9527 = vld [vmem:[%s5210 + $0x122] sm:$0xff]
      %v9528 = vld [vmem:[%s5210 + $0x12a] sm:$0xff]
      %v9529 = vld [vmem:[%s5210 + $0x13a] sm:$0xff]
      %v9530 = vld [vmem:[%s5210 + $0x142] sm:$0xff]
      %v9531 = vld [vmem:[%s5210 + $0x152] sm:$0xff]
      %v9532 = vld [vmem:[%s5210 + $0x15a] sm:$0xff]
      %v9533 = vld [vmem:[%s5210 + $0x16a] sm:$0xff]
      %v9534 = vld [vmem:[%s5210 + $0x172] sm:$0xff]
      %s9535 = scalar_lea.vmem [#allocation2], 48
      %v9536 = vld [vmem:[%s9535] sm:$0xff]
      %v9537 = vld [vmem:[%s9535 + $0x8] sm:$0xff]
      %v9538 = vld [vmem:[%s9535 + $0x18] sm:$0xff]
      %v9539 = vld [vmem:[%s9535 + $0x20] sm:$0xff]
      %v9540 = vld [vmem:[%s9535 + $0x30] sm:$0xff]
      %v9541 = vld [vmem:[%s9535 + $0x38] sm:$0xff]
      %v9542 = vld [vmem:[%s9535 + $0x48] sm:$0xff]
      %v9543 = vld [vmem:[%s9535 + $0x50] sm:$0xff]
      %v9544 = vld [vmem:[%s9535 + $0x60] sm:$0xff]
      %v9545 = vld [vmem:[%s9535 + $0x68] sm:$0xff]
      %v9546 = vld [vmem:[%s9535 + $0x78] sm:$0xff]
      %v9547 = vld [vmem:[%s9535 + $0x80] sm:$0xff]
      %v9548 = vld [vmem:[%s9535 + $0x90] sm:$0xff]
      %v9549 = vld [vmem:[%s9535 + $0x98] sm:$0xff]
      %v9550 = vld [vmem:[%s9535 + $0xa8] sm:$0xff]
      %v9551 = vld [vmem:[%s9535 + $0xb0] sm:$0xff]
      %v9552 = vld [vmem:[%s9535 + $0xc0] sm:$0xff]
      %v9553 = vld [vmem:[%s9535 + $0xc8] sm:$0xff]
      %v9554 = vld [vmem:[%s9535 + $0xd8] sm:$0xff]
      %v9555 = vld [vmem:[%s9535 + $0xe0] sm:$0xff]
      %v9556 = vld [vmem:[%s9535 + $0xf0] sm:$0xff]
      %v9557 = vld [vmem:[%s9535 + $0xf8] sm:$0xff]
      %v9558 = vld [vmem:[%s9535 + $0x108] sm:$0xff]
      %v9559 = vld [vmem:[%s9535 + $0x110] sm:$0xff]
      %v9560 = vld [vmem:[%s9535 + $0x120] sm:$0xff]
      %v9561 = vld [vmem:[%s9535 + $0x128] sm:$0xff]
      %v9562 = vld [vmem:[%s9535 + $0x138] sm:$0xff]
      %v9563 = vld [vmem:[%s9535 + $0x140] sm:$0xff]
      %v9564 = vld [vmem:[%s9535 + $0x150] sm:$0xff]
      %v9565 = vld [vmem:[%s9535 + $0x158] sm:$0xff]
      %v9566 = vld [vmem:[%s9535 + $0x168] sm:$0xff]
      %v9567 = vld [vmem:[%s9535 + $0x170] sm:$0xff]
      %v9568 = vld [vmem:[%s9535 + $0x1] sm:$0xff]
      %v9569 = vld [vmem:[%s9535 + $0x9] sm:$0xff]
      %v9570 = vld [vmem:[%s9535 + $0x19] sm:$0xff]
      %v9571 = vld [vmem:[%s9535 + $0x21] sm:$0xff]
      %v9572 = vld [vmem:[%s9535 + $0x31] sm:$0xff]
      %v9573 = vld [vmem:[%s9535 + $0x39] sm:$0xff]
      %v9574 = vld [vmem:[%s9535 + $0x49] sm:$0xff]
      %v9575 = vld [vmem:[%s9535 + $0x51] sm:$0xff]
      %v9576 = vld [vmem:[%s9535 + $0x61] sm:$0xff]
      %v9577 = vld [vmem:[%s9535 + $0x69] sm:$0xff]
      %v9578 = vld [vmem:[%s9535 + $0x79] sm:$0xff]
      %v9579 = vld [vmem:[%s9535 + $0x81] sm:$0xff]
      %v9580 = vld [vmem:[%s9535 + $0x91] sm:$0xff]
      %v9581 = vld [vmem:[%s9535 + $0x99] sm:$0xff]
      %v9582 = vld [vmem:[%s9535 + $0xa9] sm:$0xff]
      %v9583 = vld [vmem:[%s9535 + $0xb1] sm:$0xff]
      %v9584 = vld [vmem:[%s9535 + $0xc1] sm:$0xff]
      %v9585 = vld [vmem:[%s9535 + $0xc9] sm:$0xff]
      %v9586 = vld [vmem:[%s9535 + $0xd9] sm:$0xff]
      %v9587 = vld [vmem:[%s9535 + $0xe1] sm:$0xff]
      %v9588 = vld [vmem:[%s9535 + $0xf1] sm:$0xff]
      %v9589 = vld [vmem:[%s9535 + $0xf9] sm:$0xff]
      %v9590 = vld [vmem:[%s9535 + $0x109] sm:$0xff]
      %v9591 = vld [vmem:[%s9535 + $0x111] sm:$0xff]
      %v9592 = vld [vmem:[%s9535 + $0x121] sm:$0xff]
      %v9593 = vld [vmem:[%s9535 + $0x129] sm:$0xff]
      %v9594 = vld [vmem:[%s9535 + $0x139] sm:$0xff]
      %v9595 = vld [vmem:[%s9535 + $0x141] sm:$0xff]
      %v9596 = vld [vmem:[%s9535 + $0x151] sm:$0xff]
      %v9597 = vld [vmem:[%s9535 + $0x159] sm:$0xff]
      %v9598 = vld [vmem:[%s9535 + $0x169] sm:$0xff]
      %v9599 = vld [vmem:[%s9535 + $0x171] sm:$0xff]
      %v9600 = vld [vmem:[%s9535 + $0x2] sm:$0xff]
      %v9601 = vld [vmem:[%s9535 + $0xa] sm:$0xff]
      %v9602 = vld [vmem:[%s9535 + $0x1a] sm:$0xff]
      %v9603 = vld [vmem:[%s9535 + $0x22] sm:$0xff]
      %v9604 = vld [vmem:[%s9535 + $0x32] sm:$0xff]
      %v9605 = vld [vmem:[%s9535 + $0x3a] sm:$0xff]
      %v9606 = vld [vmem:[%s9535 + $0x4a] sm:$0xff]
      %v9607 = vld [vmem:[%s9535 + $0x52] sm:$0xff]
      %v9608 = vld [vmem:[%s9535 + $0x62] sm:$0xff]
      %v9609 = vld [vmem:[%s9535 + $0x6a] sm:$0xff]
      %v9610 = vld [vmem:[%s9535 + $0x7a] sm:$0xff]
      %v9611 = vld [vmem:[%s9535 + $0x82] sm:$0xff]
      %v9612 = vld [vmem:[%s9535 + $0x92] sm:$0xff]
      %v9613 = vld [vmem:[%s9535 + $0x9a] sm:$0xff]
      %v9614 = vld [vmem:[%s9535 + $0xaa] sm:$0xff]
      %v9615 = vld [vmem:[%s9535 + $0xb2] sm:$0xff]
      %v9616 = vld [vmem:[%s9535 + $0xc2] sm:$0xff]
      %v9617 = vld [vmem:[%s9535 + $0xca] sm:$0xff]
      %v9618 = vld [vmem:[%s9535 + $0xda] sm:$0xff]
      %v9619 = vld [vmem:[%s9535 + $0xe2] sm:$0xff]
      %v9620 = vld [vmem:[%s9535 + $0xf2] sm:$0xff]
      %v9621 = vld [vmem:[%s9535 + $0xfa] sm:$0xff]
      %v9622 = vld [vmem:[%s9535 + $0x10a] sm:$0xff]
      %v9623 = vld [vmem:[%s9535 + $0x112] sm:$0xff]
      %v9624 = vld [vmem:[%s9535 + $0x122] sm:$0xff]
      %v9625 = vld [vmem:[%s9535 + $0x12a] sm:$0xff]
      %v9626 = vld [vmem:[%s9535 + $0x13a] sm:$0xff]
      %v9627 = vld [vmem:[%s9535 + $0x142] sm:$0xff]
      %v9628 = vld [vmem:[%s9535 + $0x152] sm:$0xff]
      %v9629 = vld [vmem:[%s9535 + $0x15a] sm:$0xff]
      %v9630 = vld [vmem:[%s9535 + $0x16a] sm:$0xff]
      %v9631 = vld [vmem:[%s9535 + $0x172] sm:$0xff]
      %9664 = vrot.lane.b32.xlu0 %v9375, 64
      %v9665 = vpop.permute.xlu0 %9664
      %9666 = vrot.lane.b32.xlu0 %v9376, 64
      %v9667 = vpop.permute.xlu0 %9666
      %9668 = vrot.lane.b32.xlu0 %v9377, 64
      %v9669 = vpop.permute.xlu0 %9668
      %9670 = vrot.lane.b32.xlu0 %v9378, 64
      %v9671 = vpop.permute.xlu0 %9670
      %9672 = vrot.lane.b32.xlu0 %v9379, 64
      %v9673 = vpop.permute.xlu0 %9672
      %9674 = vrot.lane.b32.xlu0 %v9380, 64
      %v9675 = vpop.permute.xlu0 %9674
      %9676 = vrot.lane.b32.xlu0 %v9381, 64
      %v9677 = vpop.permute.xlu0 %9676
      %9678 = vrot.lane.b32.xlu0 %v9382, 64
      %v9679 = vpop.permute.xlu0 %9678
      %9680 = vrot.lane.b32.xlu0 %v9383, 64
      %v9681 = vpop.permute.xlu0 %9680
      %9682 = vrot.lane.b32.xlu0 %v9384, 64
      %v9683 = vpop.permute.xlu0 %9682
      %9684 = vrot.lane.b32.xlu0 %v9385, 64
      %v9685 = vpop.permute.xlu0 %9684
      %9686 = vrot.lane.b32.xlu0 %v9386, 64
      %v9687 = vpop.permute.xlu0 %9686
      %9688 = vrot.lane.b32.xlu0 %v9387, 64
      %v9689 = vpop.permute.xlu0 %9688
      %9690 = vrot.lane.b32.xlu0 %v9388, 64
      %v9691 = vpop.permute.xlu0 %9690
      %9692 = vrot.lane.b32.xlu0 %v9389, 64
      %v9693 = vpop.permute.xlu0 %9692
      %9694 = vrot.lane.b32.xlu0 %v9390, 64
      %v9695 = vpop.permute.xlu0 %9694
      %9696 = vrot.lane.b32.xlu0 %v9391, 64
      %v9697 = vpop.permute.xlu0 %9696
      %9698 = vrot.lane.b32.xlu0 %v9392, 64
      %v9699 = vpop.permute.xlu0 %9698
      %9700 = vrot.lane.b32.xlu0 %v9393, 64
      %v9701 = vpop.permute.xlu0 %9700
      %9702 = vrot.lane.b32.xlu0 %v9394, 64
      %v9703 = vpop.permute.xlu0 %9702
      %9704 = vrot.lane.b32.xlu0 %v9395, 64
      %v9705 = vpop.permute.xlu0 %9704
      %9706 = vrot.lane.b32.xlu0 %v9396, 64
      %v9707 = vpop.permute.xlu0 %9706
      %9708 = vrot.lane.b32.xlu0 %v9397, 64
      %v9709 = vpop.permute.xlu0 %9708
      %9710 = vrot.lane.b32.xlu0 %v9398, 64
      %v9711 = vpop.permute.xlu0 %9710
      %9712 = vrot.lane.b32.xlu0 %v9399, 64
      %v9713 = vpop.permute.xlu0 %9712
      %9714 = vrot.lane.b32.xlu0 %v9400, 64
      %v9715 = vpop.permute.xlu0 %9714
      %9716 = vrot.lane.b32.xlu0 %v9401, 64
      %v9717 = vpop.permute.xlu0 %9716
      %9718 = vrot.lane.b32.xlu0 %v9402, 64
      %v9719 = vpop.permute.xlu0 %9718
      %9720 = vrot.lane.b32.xlu0 %v9403, 64
      %v9721 = vpop.permute.xlu0 %9720
      %9722 = vrot.lane.b32.xlu0 %v9404, 64
      %v9723 = vpop.permute.xlu0 %9722
      %9724 = vrot.lane.b32.xlu0 %v9405, 64
      %v9725 = vpop.permute.xlu0 %9724
      %9726 = vrot.lane.b32.xlu0 %v9406, 64
      %v9727 = vpop.permute.xlu0 %9726
      %9792 = vrot.lane.b32.xlu0 %v9439, 64
      %v9793 = vpop.permute.xlu0 %9792
      %9794 = vrot.lane.b32.xlu0 %v9440, 64
      %v9795 = vpop.permute.xlu0 %9794
      %9796 = vrot.lane.b32.xlu0 %v9441, 64
      %v9797 = vpop.permute.xlu0 %9796
      %9798 = vrot.lane.b32.xlu0 %v9442, 64
      %v9799 = vpop.permute.xlu0 %9798
      %9800 = vrot.lane.b32.xlu0 %v9443, 64
      %v9801 = vpop.permute.xlu0 %9800
      %9802 = vrot.lane.b32.xlu0 %v9444, 64
      %v9803 = vpop.permute.xlu0 %9802
      %9804 = vrot.lane.b32.xlu0 %v9445, 64
      %v9805 = vpop.permute.xlu0 %9804
      %9806 = vrot.lane.b32.xlu0 %v9446, 64
      %v9807 = vpop.permute.xlu0 %9806
      %9808 = vrot.lane.b32.xlu0 %v9447, 64
      %v9809 = vpop.permute.xlu0 %9808
      %9810 = vrot.lane.b32.xlu0 %v9448, 64
      %v9811 = vpop.permute.xlu0 %9810
      %9812 = vrot.lane.b32.xlu0 %v9449, 64
      %v9813 = vpop.permute.xlu0 %9812
      %9814 = vrot.lane.b32.xlu0 %v9450, 64
      %v9815 = vpop.permute.xlu0 %9814
      %9816 = vrot.lane.b32.xlu0 %v9451, 64
      %v9817 = vpop.permute.xlu0 %9816
      %9818 = vrot.lane.b32.xlu0 %v9452, 64
      %v9819 = vpop.permute.xlu0 %9818
      %9820 = vrot.lane.b32.xlu0 %v9453, 64
      %v9821 = vpop.permute.xlu0 %9820
      %9822 = vrot.lane.b32.xlu0 %v9454, 64
      %v9823 = vpop.permute.xlu0 %9822
      %9824 = vrot.lane.b32.xlu0 %v9455, 64
      %v9825 = vpop.permute.xlu0 %9824
      %9826 = vrot.lane.b32.xlu0 %v9456, 64
      %v9827 = vpop.permute.xlu0 %9826
      %9828 = vrot.lane.b32.xlu0 %v9457, 64
      %v9829 = vpop.permute.xlu0 %9828
      %9830 = vrot.lane.b32.xlu0 %v9458, 64
      %v9831 = vpop.permute.xlu0 %9830
      %9832 = vrot.lane.b32.xlu0 %v9459, 64
      %v9833 = vpop.permute.xlu0 %9832
      %9834 = vrot.lane.b32.xlu0 %v9460, 64
      %v9835 = vpop.permute.xlu0 %9834
      %9836 = vrot.lane.b32.xlu0 %v9461, 64
      %v9837 = vpop.permute.xlu0 %9836
      %9838 = vrot.lane.b32.xlu0 %v9462, 64
      %v9839 = vpop.permute.xlu0 %9838
      %9840 = vrot.lane.b32.xlu0 %v9463, 64
      %v9841 = vpop.permute.xlu0 %9840
      %9842 = vrot.lane.b32.xlu0 %v9464, 64
      %v9843 = vpop.permute.xlu0 %9842
      %9844 = vrot.lane.b32.xlu0 %v9465, 64
      %v9845 = vpop.permute.xlu0 %9844
      %9846 = vrot.lane.b32.xlu0 %v9466, 64
      %v9847 = vpop.permute.xlu0 %9846
      %9848 = vrot.lane.b32.xlu0 %v9467, 64
      %v9849 = vpop.permute.xlu0 %9848
      %9850 = vrot.lane.b32.xlu0 %v9468, 64
      %v9851 = vpop.permute.xlu0 %9850
      %9852 = vrot.lane.b32.xlu0 %v9469, 64
      %v9853 = vpop.permute.xlu0 %9852
      %9854 = vrot.lane.b32.xlu0 %v9470, 64
      %v9855 = vpop.permute.xlu0 %9854
      %9920 = vrot.lane.b32.xlu0 %v9503, 64
      %v9921 = vpop.permute.xlu0 %9920
      %9922 = vrot.lane.b32.xlu0 %v9504, 64
      %v9923 = vpop.permute.xlu0 %9922
      %9924 = vrot.lane.b32.xlu0 %v9505, 64
      %v9925 = vpop.permute.xlu0 %9924
      %9926 = vrot.lane.b32.xlu0 %v9506, 64
      %v9927 = vpop.permute.xlu0 %9926
      %9928 = vrot.lane.b32.xlu0 %v9507, 64
      %v9929 = vpop.permute.xlu0 %9928
      %9930 = vrot.lane.b32.xlu0 %v9508, 64
      %v9931 = vpop.permute.xlu0 %9930
      %9932 = vrot.lane.b32.xlu0 %v9509, 64
      %v9933 = vpop.permute.xlu0 %9932
      %9934 = vrot.lane.b32.xlu0 %v9510, 64
      %v9935 = vpop.permute.xlu0 %9934
      %9936 = vrot.lane.b32.xlu0 %v9511, 64
      %v9937 = vpop.permute.xlu0 %9936
      %9938 = vrot.lane.b32.xlu0 %v9512, 64
      %v9939 = vpop.permute.xlu0 %9938
      %9940 = vrot.lane.b32.xlu0 %v9513, 64
      %v9941 = vpop.permute.xlu0 %9940
      %9942 = vrot.lane.b32.xlu0 %v9514, 64
      %v9943 = vpop.permute.xlu0 %9942
      %9944 = vrot.lane.b32.xlu0 %v9515, 64
      %v9945 = vpop.permute.xlu0 %9944
      %9946 = vrot.lane.b32.xlu0 %v9516, 64
      %v9947 = vpop.permute.xlu0 %9946
      %9948 = vrot.lane.b32.xlu0 %v9517, 64
      %v9949 = vpop.permute.xlu0 %9948
      %9950 = vrot.lane.b32.xlu0 %v9518, 64
      %v9951 = vpop.permute.xlu0 %9950
      %9952 = vrot.lane.b32.xlu0 %v9519, 64
      %v9953 = vpop.permute.xlu0 %9952
      %9954 = vrot.lane.b32.xlu0 %v9520, 64
      %v9955 = vpop.permute.xlu0 %9954
      %9956 = vrot.lane.b32.xlu0 %v9521, 64
      %v9957 = vpop.permute.xlu0 %9956
      %9958 = vrot.lane.b32.xlu0 %v9522, 64
      %v9959 = vpop.permute.xlu0 %9958
      %9960 = vrot.lane.b32.xlu0 %v9523, 64
      %v9961 = vpop.permute.xlu0 %9960
      %9962 = vrot.lane.b32.xlu0 %v9524, 64
      %v9963 = vpop.permute.xlu0 %9962
      %9964 = vrot.lane.b32.xlu0 %v9525, 64
      %v9965 = vpop.permute.xlu0 %9964
      %9966 = vrot.lane.b32.xlu0 %v9526, 64
      %v9967 = vpop.permute.xlu0 %9966
      %9968 = vrot.lane.b32.xlu0 %v9527, 64
      %v9969 = vpop.permute.xlu0 %9968
      %9970 = vrot.lane.b32.xlu0 %v9528, 64
      %v9971 = vpop.permute.xlu0 %9970
      %9972 = vrot.lane.b32.xlu0 %v9529, 64
      %v9973 = vpop.permute.xlu0 %9972
      %9974 = vrot.lane.b32.xlu0 %v9530, 64
      %v9975 = vpop.permute.xlu0 %9974
      %9976 = vrot.lane.b32.xlu0 %v9531, 64
      %v9977 = vpop.permute.xlu0 %9976
      %9978 = vrot.lane.b32.xlu0 %v9532, 64
      %v9979 = vpop.permute.xlu0 %9978
      %9980 = vrot.lane.b32.xlu0 %v9533, 64
      %v9981 = vpop.permute.xlu0 %9980
      %9982 = vrot.lane.b32.xlu0 %v9534, 64
      %v9983 = vpop.permute.xlu0 %9982
      %10048 = vrot.lane.b32.xlu0 %v9568, 64
      %v10049 = vpop.permute.xlu0 %10048
      %10050 = vrot.lane.b32.xlu0 %v9569, 64
      %v10051 = vpop.permute.xlu0 %10050
      %10052 = vrot.lane.b32.xlu0 %v9570, 64
      %v10053 = vpop.permute.xlu0 %10052
      %10054 = vrot.lane.b32.xlu0 %v9571, 64
      %v10055 = vpop.permute.xlu0 %10054
      %10056 = vrot.lane.b32.xlu0 %v9572, 64
      %v10057 = vpop.permute.xlu0 %10056
      %10058 = vrot.lane.b32.xlu0 %v9573, 64
      %v10059 = vpop.permute.xlu0 %10058
      %10060 = vrot.lane.b32.xlu0 %v9574, 64
      %v10061 = vpop.permute.xlu0 %10060
      %10062 = vrot.lane.b32.xlu0 %v9575, 64
      %v10063 = vpop.permute.xlu0 %10062
      %10064 = vrot.lane.b32.xlu0 %v9576, 64
      %v10065 = vpop.permute.xlu0 %10064
      %10066 = vrot.lane.b32.xlu0 %v9577, 64
      %v10067 = vpop.permute.xlu0 %10066
      %10068 = vrot.lane.b32.xlu0 %v9578, 64
      %v10069 = vpop.permute.xlu0 %10068
      %10070 = vrot.lane.b32.xlu0 %v9579, 64
      %v10071 = vpop.permute.xlu0 %10070
      %10072 = vrot.lane.b32.xlu0 %v9580, 64
      %v10073 = vpop.permute.xlu0 %10072
      %10074 = vrot.lane.b32.xlu0 %v9581, 64
      %v10075 = vpop.permute.xlu0 %10074
      %10076 = vrot.lane.b32.xlu0 %v9582, 64
      %v10077 = vpop.permute.xlu0 %10076
      %10078 = vrot.lane.b32.xlu0 %v9583, 64
      %v10079 = vpop.permute.xlu0 %10078
      %10080 = vrot.lane.b32.xlu0 %v9584, 64
      %v10081 = vpop.permute.xlu0 %10080
      %10082 = vrot.lane.b32.xlu0 %v9585, 64
      %v10083 = vpop.permute.xlu0 %10082
      %10084 = vrot.lane.b32.xlu0 %v9586, 64
      %v10085 = vpop.permute.xlu0 %10084
      %10086 = vrot.lane.b32.xlu0 %v9587, 64
      %v10087 = vpop.permute.xlu0 %10086
      %10088 = vrot.lane.b32.xlu0 %v9588, 64
      %v10089 = vpop.permute.xlu0 %10088
      %10090 = vrot.lane.b32.xlu0 %v9589, 64
      %v10091 = vpop.permute.xlu0 %10090
      %10092 = vrot.lane.b32.xlu0 %v9590, 64
      %v10093 = vpop.permute.xlu0 %10092
      %10094 = vrot.lane.b32.xlu0 %v9591, 64
      %v10095 = vpop.permute.xlu0 %10094
      %10096 = vrot.lane.b32.xlu0 %v9592, 64
      %v10097 = vpop.permute.xlu0 %10096
      %10098 = vrot.lane.b32.xlu0 %v9593, 64
      %v10099 = vpop.permute.xlu0 %10098
      %10100 = vrot.lane.b32.xlu0 %v9594, 64
      %v10101 = vpop.permute.xlu0 %10100
      %10102 = vrot.lane.b32.xlu0 %v9595, 64
      %v10103 = vpop.permute.xlu0 %10102
      %10104 = vrot.lane.b32.xlu0 %v9596, 64
      %v10105 = vpop.permute.xlu0 %10104
      %10106 = vrot.lane.b32.xlu0 %v9597, 64
      %v10107 = vpop.permute.xlu0 %10106
      %10108 = vrot.lane.b32.xlu0 %v9598, 64
      %v10109 = vpop.permute.xlu0 %10108
      %10110 = vrot.lane.b32.xlu0 %v9599, 64
      %v10111 = vpop.permute.xlu0 %10110
      %v10144 = vsel %vm3200, %v9343, %v9665
      %v10145 = vsel %vm3200, %v9344, %v9667
      %v10146 = vsel %vm3200, %v9345, %v9669
      %v10147 = vsel %vm3200, %v9346, %v9671
      %v10148 = vsel %vm3200, %v9347, %v9673
      %v10149 = vsel %vm3200, %v9348, %v9675
      %v10150 = vsel %vm3200, %v9349, %v9677
      %v10151 = vsel %vm3200, %v9350, %v9679
      %v10152 = vsel %vm3200, %v9351, %v9681
      %v10153 = vsel %vm3200, %v9352, %v9683
      %v10154 = vsel %vm3200, %v9353, %v9685
      %v10155 = vsel %vm3200, %v9354, %v9687
      %v10156 = vsel %vm3200, %v9355, %v9689
      %v10157 = vsel %vm3200, %v9356, %v9691
      %v10158 = vsel %vm3200, %v9357, %v9693
      %v10159 = vsel %vm3200, %v9358, %v9695
      %v10160 = vsel %vm3200, %v9359, %v9697
      %v10161 = vsel %vm3200, %v9360, %v9699
      %v10162 = vsel %vm3200, %v9361, %v9701
      %v10163 = vsel %vm3200, %v9362, %v9703
      %v10164 = vsel %vm3200, %v9363, %v9705
      %v10165 = vsel %vm3200, %v9364, %v9707
      %v10166 = vsel %vm3200, %v9365, %v9709
      %v10167 = vsel %vm3200, %v9366, %v9711
      %v10168 = vsel %vm3200, %v9367, %v9713
      %v10169 = vsel %vm3200, %v9368, %v9715
      %v10170 = vsel %vm3200, %v9369, %v9717
      %v10171 = vsel %vm3200, %v9370, %v9719
      %v10172 = vsel %vm3200, %v9371, %v9721
      %v10173 = vsel %vm3200, %v9372, %v9723
      %v10174 = vsel %vm3200, %v9373, %v9725
      %v10175 = vsel %vm3200, %v9374, %v9727
      %v10176 = vsel %vm3200, %v9407, %v9793
      %v10177 = vsel %vm3200, %v9408, %v9795
      %v10178 = vsel %vm3200, %v9409, %v9797
      %v10179 = vsel %vm3200, %v9410, %v9799
      %v10180 = vsel %vm3200, %v9411, %v9801
      %v10181 = vsel %vm3200, %v9412, %v9803
      %v10182 = vsel %vm3200, %v9413, %v9805
      %v10183 = vsel %vm3200, %v9414, %v9807
      %v10184 = vsel %vm3200, %v9415, %v9809
      %v10185 = vsel %vm3200, %v9416, %v9811
      %v10186 = vsel %vm3200, %v9417, %v9813
      %v10187 = vsel %vm3200, %v9418, %v9815
      %v10188 = vsel %vm3200, %v9419, %v9817
      %v10189 = vsel %vm3200, %v9420, %v9819
      %v10190 = vsel %vm3200, %v9421, %v9821
      %v10191 = vsel %vm3200, %v9422, %v9823
      %v10192 = vsel %vm3200, %v9423, %v9825
      %v10193 = vsel %vm3200, %v9424, %v9827
      %v10194 = vsel %vm3200, %v9425, %v9829
      %v10195 = vsel %vm3200, %v9426, %v9831
      %v10196 = vsel %vm3200, %v9427, %v9833
      %v10197 = vsel %vm3200, %v9428, %v9835
      %v10198 = vsel %vm3200, %v9429, %v9837
      %v10199 = vsel %vm3200, %v9430, %v9839
      %v10200 = vsel %vm3200, %v9431, %v9841
      %v10201 = vsel %vm3200, %v9432, %v9843
      %v10202 = vsel %vm3200, %v9433, %v9845
      %v10203 = vsel %vm3200, %v9434, %v9847
      %v10204 = vsel %vm3200, %v9435, %v9849
      %v10205 = vsel %vm3200, %v9436, %v9851
      %v10206 = vsel %vm3200, %v9437, %v9853
      %v10207 = vsel %vm3200, %v9438, %v9855
      %v10208 = vsel %vm3200, %v9471, %v9921
      %v10209 = vsel %vm3200, %v9472, %v9923
      %v10210 = vsel %vm3200, %v9473, %v9925
      %v10211 = vsel %vm3200, %v9474, %v9927
      %v10212 = vsel %vm3200, %v9475, %v9929
      %v10213 = vsel %vm3200, %v9476, %v9931
      %v10214 = vsel %vm3200, %v9477, %v9933
      %v10215 = vsel %vm3200, %v9478, %v9935
      %v10216 = vsel %vm3200, %v9479, %v9937
      %v10217 = vsel %vm3200, %v9480, %v9939
      %v10218 = vsel %vm3200, %v9481, %v9941
      %v10219 = vsel %vm3200, %v9482, %v9943
      %v10220 = vsel %vm3200, %v9483, %v9945
      %v10221 = vsel %vm3200, %v9484, %v9947
      %v10222 = vsel %vm3200, %v9485, %v9949
      %v10223 = vsel %vm3200, %v9486, %v9951
      %v10224 = vsel %vm3200, %v9487, %v9953
      %v10225 = vsel %vm3200, %v9488, %v9955
      %v10226 = vsel %vm3200, %v9489, %v9957
      %v10227 = vsel %vm3200, %v9490, %v9959
      %v10228 = vsel %vm3200, %v9491, %v9961
      %v10229 = vsel %vm3200, %v9492, %v9963
      %v10230 = vsel %vm3200, %v9493, %v9965
      %v10231 = vsel %vm3200, %v9494, %v9967
      %v10232 = vsel %vm3200, %v9495, %v9969
      %v10233 = vsel %vm3200, %v9496, %v9971
      %v10234 = vsel %vm3200, %v9497, %v9973
      %v10235 = vsel %vm3200, %v9498, %v9975
      %v10236 = vsel %vm3200, %v9499, %v9977
      %v10237 = vsel %vm3200, %v9500, %v9979
      %v10238 = vsel %vm3200, %v9501, %v9981
      %v10239 = vsel %vm3200, %v9502, %v9983
      %v10240 = vsel %vm3200, %v9536, %v10049
      %v10241 = vsel %vm3200, %v9537, %v10051
      %v10242 = vsel %vm3200, %v9538, %v10053
      %v10243 = vsel %vm3200, %v9539, %v10055
      %v10244 = vsel %vm3200, %v9540, %v10057
      %v10245 = vsel %vm3200, %v9541, %v10059
      %v10246 = vsel %vm3200, %v9542, %v10061
      %v10247 = vsel %vm3200, %v9543, %v10063
      %v10248 = vsel %vm3200, %v9544, %v10065
      %v10249 = vsel %vm3200, %v9545, %v10067
      %v10250 = vsel %vm3200, %v9546, %v10069
      %v10251 = vsel %vm3200, %v9547, %v10071
      %v10252 = vsel %vm3200, %v9548, %v10073
      %v10253 = vsel %vm3200, %v9549, %v10075
      %v10254 = vsel %vm3200, %v9550, %v10077
      %v10255 = vsel %vm3200, %v9551, %v10079
      %v10256 = vsel %vm3200, %v9552, %v10081
      %v10257 = vsel %vm3200, %v9553, %v10083
      %v10258 = vsel %vm3200, %v9554, %v10085
      %v10259 = vsel %vm3200, %v9555, %v10087
      %v10260 = vsel %vm3200, %v9556, %v10089
      %v10261 = vsel %vm3200, %v9557, %v10091
      %v10262 = vsel %vm3200, %v9558, %v10093
      %v10263 = vsel %vm3200, %v9559, %v10095
      %v10264 = vsel %vm3200, %v9560, %v10097
      %v10265 = vsel %vm3200, %v9561, %v10099
      %v10266 = vsel %vm3200, %v9562, %v10101
      %v10267 = vsel %vm3200, %v9563, %v10103
      %v10268 = vsel %vm3200, %v9564, %v10105
      %v10269 = vsel %vm3200, %v9565, %v10107
      %v10270 = vsel %vm3200, %v9566, %v10109
      %v10271 = vsel %vm3200, %v9567, %v10111
      %v10272 = vpack.c.bf16 %v10145, %v10144
      %v10273 = vpack.c.bf16 %v10177, %v10176
      %v10274 = vpack.c.bf16 %v10209, %v10208
      %v10275 = vpack.c.bf16 %v10241, %v10240
      %v10276 = vpack.c.bf16 %v9601, %v9600
      %v10277 = vpack.c.bf16 %v10147, %v10146
      %v10278 = vpack.c.bf16 %v10179, %v10178
      %v10279 = vpack.c.bf16 %v10211, %v10210
      %v10280 = vpack.c.bf16 %v10243, %v10242
      %v10281 = vpack.c.bf16 %v9603, %v9602
      %v10282 = vpack.c.bf16 %v10149, %v10148
      %v10283 = vpack.c.bf16 %v10181, %v10180
      %v10284 = vpack.c.bf16 %v10213, %v10212
      %v10285 = vpack.c.bf16 %v10245, %v10244
      %v10286 = vpack.c.bf16 %v9605, %v9604
      %v10287 = vpack.c.bf16 %v10151, %v10150
      %v10288 = vpack.c.bf16 %v10183, %v10182
      %v10289 = vpack.c.bf16 %v10215, %v10214
      %v10290 = vpack.c.bf16 %v10247, %v10246
      %v10291 = vpack.c.bf16 %v9607, %v9606
      %v10292 = vpack.c.bf16 %v10153, %v10152
      %v10293 = vpack.c.bf16 %v10185, %v10184
      %v10294 = vpack.c.bf16 %v10217, %v10216
      %v10295 = vpack.c.bf16 %v10249, %v10248
      %v10296 = vpack.c.bf16 %v9609, %v9608
      %v10297 = vpack.c.bf16 %v10155, %v10154
      %v10298 = vpack.c.bf16 %v10187, %v10186
      %v10299 = vpack.c.bf16 %v10219, %v10218
      %v10300 = vpack.c.bf16 %v10251, %v10250
      %v10301 = vpack.c.bf16 %v9611, %v9610
      %v10302 = vpack.c.bf16 %v10157, %v10156
      %v10303 = vpack.c.bf16 %v10189, %v10188
      %v10304 = vpack.c.bf16 %v10221, %v10220
      %v10305 = vpack.c.bf16 %v10253, %v10252
      %v10306 = vpack.c.bf16 %v9613, %v9612
      %v10307 = vpack.c.bf16 %v10159, %v10158
      %v10308 = vpack.c.bf16 %v10191, %v10190
      %v10309 = vpack.c.bf16 %v10223, %v10222
      %v10310 = vpack.c.bf16 %v10255, %v10254
      %v10311 = vpack.c.bf16 %v9615, %v9614
      %v10312 = vpack.c.bf16 %v10161, %v10160
      %v10313 = vpack.c.bf16 %v10193, %v10192
      %v10314 = vpack.c.bf16 %v10225, %v10224
      %v10315 = vpack.c.bf16 %v10257, %v10256
      %v10316 = vpack.c.bf16 %v9617, %v9616
      %v10317 = vpack.c.bf16 %v10163, %v10162
      %v10318 = vpack.c.bf16 %v10195, %v10194
      %v10319 = vpack.c.bf16 %v10227, %v10226
      %v10320 = vpack.c.bf16 %v10259, %v10258
      %v10321 = vpack.c.bf16 %v9619, %v9618
      %v10322 = vpack.c.bf16 %v10165, %v10164
      %v10323 = vpack.c.bf16 %v10197, %v10196
      %v10324 = vpack.c.bf16 %v10229, %v10228
      %v10325 = vpack.c.bf16 %v10261, %v10260
      %v10326 = vpack.c.bf16 %v9621, %v9620
      %v10327 = vpack.c.bf16 %v10167, %v10166
      %v10328 = vpack.c.bf16 %v10199, %v10198
      %v10329 = vpack.c.bf16 %v10231, %v10230
      %v10330 = vpack.c.bf16 %v10263, %v10262
      %v10331 = vpack.c.bf16 %v9623, %v9622
      %v10332 = vpack.c.bf16 %v10169, %v10168
      %v10333 = vpack.c.bf16 %v10201, %v10200
      %v10334 = vpack.c.bf16 %v10233, %v10232
      %v10335 = vpack.c.bf16 %v10265, %v10264
      %v10336 = vpack.c.bf16 %v9625, %v9624
      %v10337 = vpack.c.bf16 %v10171, %v10170
      %v10338 = vpack.c.bf16 %v10203, %v10202
      %v10339 = vpack.c.bf16 %v10235, %v10234
      %v10340 = vpack.c.bf16 %v10267, %v10266
      %v10341 = vpack.c.bf16 %v9627, %v9626
      %v10342 = vpack.c.bf16 %v10173, %v10172
      %v10343 = vpack.c.bf16 %v10205, %v10204
      %v10344 = vpack.c.bf16 %v10237, %v10236
      %v10345 = vpack.c.bf16 %v10269, %v10268
      %v10346 = vpack.c.bf16 %v9629, %v9628
      %v10347 = vpack.c.bf16 %v10175, %v10174
      %v10348 = vpack.c.bf16 %v10207, %v10206
      %v10349 = vpack.c.bf16 %v10239, %v10238
      %v10350 = vpack.c.bf16 %v10271, %v10270
      %v10351 = vpack.c.bf16 %v9631, %v9630
      %v10352 = vld [vmem:[%s5] sm:$0xf]
      %v10353 = vld [vmem:[%s5 + $0x4] sm:$0xf]
      %v10354 = vld [vmem:[%s5 + $0x8] sm:$0xf]
      %v10355 = vld [vmem:[%s5 + $0xc] sm:$0xf]
      %v10356 = vld [vmem:[%s5 + $0x10] sm:$0xf]
      %v10357 = vld [vmem:[%s5 + $0x14] sm:$0xf]
      %v10358 = vld [vmem:[%s5 + $0x18] sm:$0xf]
      %v10359 = vld [vmem:[%s5 + $0x1c] sm:$0xf]
      %v10360 = vld [vmem:[%s5 + $0x20] sm:$0xf]
      %v10361 = vld [vmem:[%s5 + $0x24] sm:$0xf]
      %v10362 = vld [vmem:[%s5 + $0x28] sm:$0xf]
      %v10363 = vld [vmem:[%s5 + $0x2c] sm:$0xf]
      %v10364 = vld [vmem:[%s5 + $0x30] sm:$0xf]
      %v10365 = vld [vmem:[%s5 + $0x34] sm:$0xf]
      %v10366 = vld [vmem:[%s5 + $0x38] sm:$0xf]
      %v10367 = vld [vmem:[%s5 + $0x3c] sm:$0xf]
      %v10368 = vld [vmem:[%s5 + $0x40] sm:$0xf]
      %v10369 = vld [vmem:[%s5 + $0x44] sm:$0xf]
      %v10370 = vld [vmem:[%s5 + $0x48] sm:$0xf]
      %v10371 = vld [vmem:[%s5 + $0x4c] sm:$0xf]
      %v10372 = vld [vmem:[%s5 + $0x50] sm:$0xf]
      %v10373 = vld [vmem:[%s5 + $0x54] sm:$0xf]
      %v10374 = vld [vmem:[%s5 + $0x58] sm:$0xf]
      %v10375 = vld [vmem:[%s5 + $0x5c] sm:$0xf]
      %v10376 = vld [vmem:[%s5 + $0x60] sm:$0xf]
      %v10377 = vld [vmem:[%s5 + $0x64] sm:$0xf]
      %v10378 = vld [vmem:[%s5 + $0x68] sm:$0xf]
      %v10379 = vld [vmem:[%s5 + $0x6c] sm:$0xf]
      %v10380 = vld [vmem:[%s5 + $0x70] sm:$0xf]
      %v10381 = vld [vmem:[%s5 + $0x74] sm:$0xf]
      %v10382 = vld [vmem:[%s5 + $0x78] sm:$0xf]
      %v10383 = vld [vmem:[%s5 + $0x7c] sm:$0xf]
      %v10384 = vld [vmem:[%s5 + $0x80] sm:$0xf]
      %v10385 = vld [vmem:[%s5 + $0x84] sm:$0xf]
      %v10386 = vld [vmem:[%s5 + $0x88] sm:$0xf]
      %v10387 = vld [vmem:[%s5 + $0x8c] sm:$0xf]
      %v10388 = vld [vmem:[%s5 + $0x90] sm:$0xf]
      %v10389 = vld [vmem:[%s5 + $0x94] sm:$0xf]
      %v10390 = vld [vmem:[%s5 + $0x98] sm:$0xf]
      %v10391 = vld [vmem:[%s5 + $0x9c] sm:$0xf]
      %v10392 = vld [vmem:[%s5 + $0xa0] sm:$0xf]
      %v10393 = vld [vmem:[%s5 + $0xa4] sm:$0xf]
      %v10394 = vld [vmem:[%s5 + $0xa8] sm:$0xf]
      %v10395 = vld [vmem:[%s5 + $0xac] sm:$0xf]
      %v10396 = vld [vmem:[%s5 + $0xb0] sm:$0xf]
      %v10397 = vld [vmem:[%s5 + $0xb4] sm:$0xf]
      %v10398 = vld [vmem:[%s5 + $0xb8] sm:$0xf]
      %v10399 = vld [vmem:[%s5 + $0xbc] sm:$0xf]
      %v10400 = vld [vmem:[%s5 + $0xc0] sm:$0xf]
      %v10401 = vld [vmem:[%s5 + $0xc4] sm:$0xf]
      %v10402 = vld [vmem:[%s5 + $0xc8] sm:$0xf]
      %v10403 = vld [vmem:[%s5 + $0xcc] sm:$0xf]
      %v10404 = vld [vmem:[%s5 + $0xd0] sm:$0xf]
      %v10405 = vld [vmem:[%s5 + $0xd4] sm:$0xf]
      %v10406 = vld [vmem:[%s5 + $0xd8] sm:$0xf]
      %v10407 = vld [vmem:[%s5 + $0xdc] sm:$0xf]
      %v10408 = vld [vmem:[%s5 + $0xe0] sm:$0xf]
      %v10409 = vld [vmem:[%s5 + $0xe4] sm:$0xf]
      %v10410 = vld [vmem:[%s5 + $0xe8] sm:$0xf]
      %v10411 = vld [vmem:[%s5 + $0xec] sm:$0xf]
      %v10412 = vld [vmem:[%s5 + $0xf0] sm:$0xf]
      %v10413 = vld [vmem:[%s5 + $0xf4] sm:$0xf]
      %v10414 = vld [vmem:[%s5 + $0xf8] sm:$0xf]
      %v10415 = vld [vmem:[%s5 + $0xfc] sm:$0xf]
      %v10416 = vld [vmem:[%s5 + $0x100] sm:$0xf]
      %v10417 = vld [vmem:[%s5 + $0x104] sm:$0xf]
      %v10418 = vld [vmem:[%s5 + $0x108] sm:$0xf]
      %v10419 = vld [vmem:[%s5 + $0x10c] sm:$0xf]
      %v10420 = vld [vmem:[%s5 + $0x110] sm:$0xf]
      %v10421 = vld [vmem:[%s5 + $0x114] sm:$0xf]
      %v10422 = vld [vmem:[%s5 + $0x118] sm:$0xf]
      %v10423 = vld [vmem:[%s5 + $0x11c] sm:$0xf]
      %v10424 = vld [vmem:[%s6] sm:$0x1]
      %v10426 = vlaneseq
      %v10427 = vshrl.u32 %v10426, 7
      %v10428 = vsub.s32 0, %v10427
      %v10429 = vrot.slane %v10424, %v10428
      %v10503 = vunpack.c.l.b16 %v10352
      %v10504 = vunpack.c.l.b16 %v10353
      %v10505 = vunpack.c.l.b16 %v10354
      %v10506 = vunpack.c.l.b16 %v10355
      %v10507 = vunpack.c.l.b16 %v10356
      %v10508 = vunpack.c.l.b16 %v10357
      %v10509 = vunpack.c.l.b16 %v10358
      %v10510 = vunpack.c.l.b16 %v10359
      %v10511 = vunpack.c.l.b16 %v10360
      %v10512 = vunpack.c.l.b16 %v10361
      %v10513 = vunpack.c.l.b16 %v10362
      %v10514 = vunpack.c.l.b16 %v10363
      %v10515 = vunpack.c.l.b16 %v10364
      %v10516 = vunpack.c.l.b16 %v10365
      %v10517 = vunpack.c.l.b16 %v10366
      %v10518 = vunpack.c.l.b16 %v10367
      %v10519 = vunpack.c.l.b16 %v10368
      %v10520 = vunpack.c.l.b16 %v10369
      %v10521 = vunpack.c.l.b16 %v10370
      %v10522 = vunpack.c.l.b16 %v10371
      %v10523 = vunpack.c.l.b16 %v10372
      %v10524 = vunpack.c.l.b16 %v10373
      %v10525 = vunpack.c.l.b16 %v10374
      %v10526 = vunpack.c.l.b16 %v10375
      %v10527 = vunpack.c.l.b16 %v10376
      %v10528 = vunpack.c.l.b16 %v10377
      %v10529 = vunpack.c.l.b16 %v10378
      %v10530 = vunpack.c.l.b16 %v10379
      %v10531 = vunpack.c.l.b16 %v10380
      %v10532 = vunpack.c.l.b16 %v10381
      %v10533 = vunpack.c.l.b16 %v10382
      %v10534 = vunpack.c.l.b16 %v10383
      %v10535 = vunpack.c.l.b16 %v10384
      %v10536 = vunpack.c.l.b16 %v10385
      %v10537 = vunpack.c.l.b16 %v10386
      %v10538 = vunpack.c.l.b16 %v10387
      %v10539 = vunpack.c.l.b16 %v10388
      %v10540 = vunpack.c.l.b16 %v10389
      %v10541 = vunpack.c.l.b16 %v10390
      %v10542 = vunpack.c.l.b16 %v10391
      %v10543 = vunpack.c.l.b16 %v10392
      %v10544 = vunpack.c.l.b16 %v10393
      %v10545 = vunpack.c.l.b16 %v10394
      %v10546 = vunpack.c.l.b16 %v10395
      %v10547 = vunpack.c.l.b16 %v10396
      %v10548 = vunpack.c.l.b16 %v10397
      %v10549 = vunpack.c.l.b16 %v10398
      %v10550 = vunpack.c.l.b16 %v10399
      %v10551 = vunpack.c.l.b16 %v10400
      %v10552 = vunpack.c.l.b16 %v10401
      %v10553 = vunpack.c.l.b16 %v10402
      %v10554 = vunpack.c.l.b16 %v10403
      %v10555 = vunpack.c.l.b16 %v10404
      %v10556 = vunpack.c.l.b16 %v10405
      %v10557 = vunpack.c.l.b16 %v10406
      %v10558 = vunpack.c.l.b16 %v10407
      %v10559 = vunpack.c.l.b16 %v10408
      %v10560 = vunpack.c.l.b16 %v10409
      %v10561 = vunpack.c.l.b16 %v10410
      %v10562 = vunpack.c.l.b16 %v10411
      %v10563 = vunpack.c.l.b16 %v10412
      %v10564 = vunpack.c.l.b16 %v10413
      %v10565 = vunpack.c.l.b16 %v10414
      %v10566 = vunpack.c.l.b16 %v10415
      %v10567 = vunpack.c.l.b16 %v10416
      %v10568 = vunpack.c.l.b16 %v10417
      %v10569 = vunpack.c.l.b16 %v10418
      %v10570 = vunpack.c.l.b16 %v10419
      %v10571 = vunpack.c.l.b16 %v10420
      %v10572 = vunpack.c.l.b16 %v10421
      %v10573 = vunpack.c.l.b16 %v10422
      %v10574 = vunpack.c.l.b16 %v10423
      %v10575 = vpack.c.b16 %v10504, %v10503
      %v10576 = vpack.c.b16 %v10506, %v10505
      %v10577 = vpack.c.b16 %v10508, %v10507
      %v10578 = vpack.c.b16 %v10510, %v10509
      %v10579 = vpack.c.b16 %v10512, %v10511
      %v10580 = vpack.c.b16 %v10514, %v10513
      %v10581 = vpack.c.b16 %v10516, %v10515
      %v10582 = vpack.c.b16 %v10518, %v10517
      %v10583 = vpack.c.b16 %v10520, %v10519
      %v10584 = vpack.c.b16 %v10522, %v10521
      %v10585 = vpack.c.b16 %v10524, %v10523
      %v10586 = vpack.c.b16 %v10526, %v10525
      %v10587 = vpack.c.b16 %v10528, %v10527
      %v10588 = vpack.c.b16 %v10530, %v10529
      %v10589 = vpack.c.b16 %v10532, %v10531
      %v10590 = vpack.c.b16 %v10534, %v10533
      %v10591 = vpack.c.b16 %v10536, %v10535
      %v10592 = vpack.c.b16 %v10538, %v10537
      %v10593 = vpack.c.b16 %v10540, %v10539
      %v10594 = vpack.c.b16 %v10542, %v10541
      %v10595 = vpack.c.b16 %v10544, %v10543
      %v10596 = vpack.c.b16 %v10546, %v10545
      %v10597 = vpack.c.b16 %v10548, %v10547
      %v10598 = vpack.c.b16 %v10550, %v10549
      %v10599 = vpack.c.b16 %v10552, %v10551
      %v10600 = vpack.c.b16 %v10554, %v10553
      %v10601 = vpack.c.b16 %v10556, %v10555
      %v10602 = vpack.c.b16 %v10558, %v10557
      %v10603 = vpack.c.b16 %v10560, %v10559
      %v10604 = vpack.c.b16 %v10562, %v10561
      %v10605 = vpack.c.b16 %v10564, %v10563
      %v10606 = vpack.c.b16 %v10566, %v10565
      %v10607 = vpack.c.b16 %v10568, %v10567
      %v10608 = vpack.c.b16 %v10570, %v10569
      %v10609 = vpack.c.b16 %v10572, %v10571
      %v10610 = vpack.c.b16 %v10574, %v10573
      %v10648 = vsel %vm3200, %v10276, 0
      %v10651 = vsel %vm3200, %v10281, 0
      %v10654 = vsel %vm3200, %v10286, 0
      %v10657 = vsel %vm3200, %v10291, 0
      %v10660 = vsel %vm3200, %v10296, 0
      %v10663 = vsel %vm3200, %v10301, 0
      %v10666 = vsel %vm3200, %v10306, 0
      %v10669 = vsel %vm3200, %v10311, 0
      %v10672 = vsel %vm3200, %v10316, 0
      %v10675 = vsel %vm3200, %v10321, 0
      %v10678 = vsel %vm3200, %v10326, 0
      %v10681 = vsel %vm3200, %v10331, 0
      %v10684 = vsel %vm3200, %v10336, 0
      %v10687 = vsel %vm3200, %v10341, 0
      %v10690 = vsel %vm3200, %v10346, 0
      %v10693 = vsel %vm3200, %v10351, 0
      %10695 = vmatprep.subr.bf16.mxu0 0
      %10696 = vmatpush1.bf16.msra.mxu0 %v10575
      %10697 = vmatprep.subr.bf16.mxu0 0
      %10698 = vmatpush1.bf16.msra.mxu0 %v10576
      %10699 = vmatprep.subr.bf16.mxu0 0
      %10700 = vmatpush1.bf16.msra.mxu0 %v10577
      %10701 = vmatprep.subr.bf16.mxu0 0
      %10702 = vmatpush1.bf16.msra.mxu0 %v10578
      %10703 = vmatprep.subr.bf16.mxu0 0
      %10704 = vmatpush1.bf16.msra.mxu0 %v10579
      %10705 = vmatprep.subr.bf16.mxu0 0
      %10706 = vmatpush1.bf16.msra.mxu0 %v10580
      %10707 = vmatprep.subr.bf16.mxu0 0
      %10708 = vmatpush1.bf16.msra.mxu0 %v10581
      %10709 = vmatprep.subr.bf16.mxu0 0
      %10710 = vmatpush1.bf16.msra.mxu0 %v10582
      %10711 = vmatprep.subr.bf16.mxu0 0
      %10712 = vmatpush1.bf16.msra.mxu0 %v10583
      %10713 = vmatprep.subr.bf16.mxu0 0
      %10714 = vmatpush1.bf16.msra.mxu0 %v10584
      %10715 = vmatprep.subr.bf16.mxu0 0
      %10716 = vmatpush1.bf16.msra.mxu0 %v10585
      %10717 = vmatprep.subr.bf16.mxu0 0
      %10718 = vmatpush1.bf16.msra.mxu0 %v10586
      %10719 = vmatprep.subr.bf16.mxu0 0
      %10720 = vmatpush1.bf16.msra.mxu0 %v10587
      %10721 = vmatprep.subr.bf16.mxu0 0
      %10722 = vmatpush1.bf16.msra.mxu0 %v10588
      %10723 = vmatprep.subr.bf16.mxu0 0
      %10724 = vmatpush1.bf16.msra.mxu0 %v10589
      %10725 = vmatprep.subr.bf16.mxu0 0
      %10726 = vmatpush1.bf16.msra.mxu0 %v10590
      %10727 = vmatprep.mubr.bf16.mxu0 %v10273
      %10728 = vmatmul.mubr.bf16.gmra.mrb[0].mxu0 %v10272
      %v10729 = vpop.f32.mrb[0].mxu0
      %v10730 = vadd.f32 %v10429, %v10729
      %v10731 = vpop.f32.mrb[0].mxu0
      %v10732 = vpop.f32.mrb[0].mxu0
      %v10733 = vadd.f32 %v10429, %v10732
      %v10734 = vpop.f32.mrb[0].mxu0
      %10735 = vmatprep.mubr.bf16.mxu0 %v10278
      %10736 = vmatmul.mubr.bf16.gmra.mrb[0].mxu0 %v10277
      %v10737 = vpop.f32.mrb[0].mxu0
      %v10738 = vadd.f32 %v10429, %v10737
      %v10739 = vpop.f32.mrb[0].mxu0
      %v10740 = vpop.f32.mrb[0].mxu0
      %v10741 = vadd.f32 %v10429, %v10740
      %v10742 = vpop.f32.mrb[0].mxu0
      %10743 = vmatprep.mubr.bf16.mxu0 %v10283
      %10744 = vmatmul.mubr.bf16.gmra.mrb[0].mxu0 %v10282
      %v10745 = vpop.f32.mrb[0].mxu0
      %v10746 = vadd.f32 %v10429, %v10745
      %v10747 = vpop.f32.mrb[0].mxu0
      %v10748 = vpop.f32.mrb[0].mxu0
      %v10749 = vadd.f32 %v10429, %v10748
      %v10750 = vpop.f32.mrb[0].mxu0
      %10751 = vmatprep.mubr.bf16.mxu0 %v10288
      %10752 = vmatmul.mubr.bf16.gmra.mrb[0].mxu0 %v10287
      %v10753 = vpop.f32.mrb[0].mxu0
      %v10754 = vadd.f32 %v10429, %v10753
      %v10755 = vpop.f32.mrb[0].mxu0
      %v10756 = vpop.f32.mrb[0].mxu0
      %v10757 = vadd.f32 %v10429, %v10756
      %v10758 = vpop.f32.mrb[0].mxu0
      %10759 = vmatprep.mubr.bf16.mxu0 %v10293
      %10760 = vmatmul.mubr.bf16.gmra.mrb[0].mxu0 %v10292
      %v10761 = vpop.f32.mrb[0].mxu0
      %v10762 = vadd.f32 %v10429, %v10761
      %v10763 = vpop.f32.mrb[0].mxu0
      %v10764 = vpop.f32.mrb[0].mxu0
      %v10765 = vadd.f32 %v10429, %v10764
      %v10766 = vpop.f32.mrb[0].mxu0
      %10767 = vmatprep.mubr.bf16.mxu0 %v10298
      %10768 = vmatmul.mubr.bf16.gmra.mrb[0].mxu0 %v10297
      %v10769 = vpop.f32.mrb[0].mxu0
      %v10770 = vadd.f32 %v10429, %v10769
      %v10771 = vpop.f32.mrb[0].mxu0
      %v10772 = vpop.f32.mrb[0].mxu0
      %v10773 = vadd.f32 %v10429, %v10772
      %v10774 = vpop.f32.mrb[0].mxu0
      %10775 = vmatprep.mubr.bf16.mxu0 %v10303
      %10776 = vmatmul.mubr.bf16.gmra.mrb[0].mxu0 %v10302
      %v10777 = vpop.f32.mrb[0].mxu0
      %v10778 = vadd.f32 %v10429, %v10777
      %v10779 = vpop.f32.mrb[0].mxu0
      %v10780 = vpop.f32.mrb[0].mxu0
      %v10781 = vadd.f32 %v10429, %v10780
      %v10782 = vpop.f32.mrb[0].mxu0
      %10783 = vmatprep.mubr.bf16.mxu0 %v10308
      %10784 = vmatmul.mubr.bf16.gmra.mrb[0].mxu0 %v10307
      %v10785 = vpop.f32.mrb[0].mxu0
      %v10786 = vadd.f32 %v10429, %v10785
      %v10787 = vpop.f32.mrb[0].mxu0
      %v10788 = vpop.f32.mrb[0].mxu0
      %v10789 = vadd.f32 %v10429, %v10788
      %v10790 = vpop.f32.mrb[0].mxu0
      %10791 = vmatprep.mubr.bf16.mxu0 %v10313
      %10792 = vmatmul.mubr.bf16.gmra.mrb[0].mxu0 %v10312
      %v10793 = vpop.f32.mrb[0].mxu0
      %v10794 = vadd.f32 %v10429, %v10793
      %v10795 = vpop.f32.mrb[0].mxu0
      %v10796 = vpop.f32.mrb[0].mxu0
      %v10797 = vadd.f32 %v10429, %v10796
      %v10798 = vpop.f32.mrb[0].mxu0
      %10799 = vmatprep.mubr.bf16.mxu0 %v10318
      %10800 = vmatmul.mubr.bf16.gmra.mrb[0].mxu0 %v10317
      %v10801 = vpop.f32.mrb[0].mxu0
      %v10802 = vadd.f32 %v10429, %v10801
      %v10803 = vpop.f32.mrb[0].mxu0
      %v10804 = vpop.f32.mrb[0].mxu0
      %v10805 = vadd.f32 %v10429, %v10804
      %v10806 = vpop.f32.mrb[0].mxu0
      %10807 = vmatprep.mubr.bf16.mxu0 %v10323
      %10808 = vmatmul.mubr.bf16.gmra.mrb[0].mxu0 %v10322
      %v10809 = vpop.f32.mrb[0].mxu0
      %v10810 = vadd.f32 %v10429, %v10809
      %v10811 = vpop.f32.mrb[0].mxu0
      %v10812 = vpop.f32.mrb[0].mxu0
      %v10813 = vadd.f32 %v10429, %v10812
      %v10814 = vpop.f32.mrb[0].mxu0
      %10815 = vmatprep.mubr.bf16.mxu0 %v10328
      %10816 = vmatmul.mubr.bf16.gmra.mrb[0].mxu0 %v10327
      %v10817 = vpop.f32.mrb[0].mxu0
      %v10818 = vadd.f32 %v10429, %v10817
      %v10819 = vpop.f32.mrb[0].mxu0
      %v10820 = vpop.f32.mrb[0].mxu0
      %v10821 = vadd.f32 %v10429, %v10820
      %v10822 = vpop.f32.mrb[0].mxu0
      %10823 = vmatprep.mubr.bf16.mxu0 %v10333
      %10824 = vmatmul.mubr.bf16.gmra.mrb[0].mxu0 %v10332
      %v10825 = vpop.f32.mrb[0].mxu0
      %v10826 = vadd.f32 %v10429, %v10825
      %v10827 = vpop.f32.mrb[0].mxu0
      %v10828 = vpop.f32.mrb[0].mxu0
      %v10829 = vadd.f32 %v10429, %v10828
      %v10830 = vpop.f32.mrb[0].mxu0
      %10831 = vmatprep.mubr.bf16.mxu0 %v10338
      %10832 = vmatmul.mubr.bf16.gmra.mrb[0].mxu0 %v10337
      %v10833 = vpop.f32.mrb[0].mxu0
      %v10834 = vadd.f32 %v10429, %v10833
      %v10835 = vpop.f32.mrb[0].mxu0
      %v10836 = vpop.f32.mrb[0].mxu0
      %v10837 = vadd.f32 %v10429, %v10836
      %v10838 = vpop.f32.mrb[0].mxu0
      %10839 = vmatprep.mubr.bf16.mxu0 %v10343
      %10840 = vmatmul.mubr.bf16.gmra.mrb[0].mxu0 %v10342
      %v10841 = vpop.f32.mrb[0].mxu0
      %v10842 = vadd.f32 %v10429, %v10841
      %v10843 = vpop.f32.mrb[0].mxu0
      %v10844 = vpop.f32.mrb[0].mxu0
      %v10845 = vadd.f32 %v10429, %v10844
      %v10846 = vpop.f32.mrb[0].mxu0
      %10847 = vmatprep.mubr.bf16.mxu0 %v10348
      %10848 = vmatmul.mubr.bf16.gmra.mrb[0].mxu0 %v10347
      %v10849 = vpop.f32.mrb[0].mxu0
      %v10850 = vadd.f32 %v10429, %v10849
      %v10851 = vpop.f32.mrb[0].mxu0
      %v10852 = vpop.f32.mrb[0].mxu0
      %v10853 = vadd.f32 %v10429, %v10852
      %v10854 = vpop.f32.mrb[0].mxu0
      %10855 = vdwg.mxu0
      %10856 = vmatprep.subr.bf16.mxu0 0
      %10857 = vmatpush1.bf16.msra.mxu0 %v10591
      %10858 = vmatprep.subr.bf16.mxu0 0
      %10859 = vmatpush1.bf16.msra.mxu0 %v10592
      %10860 = vmatprep.subr.bf16.mxu0 0
      %10861 = vmatpush1.bf16.msra.mxu0 %v10593
      %10862 = vmatprep.subr.bf16.mxu0 0
      %10863 = vmatpush1.bf16.msra.mxu0 %v10594
      %10864 = vmatprep.subr.bf16.mxu0 0
      %10865 = vmatpush1.bf16.msra.mxu0 %v10595
      %10866 = vmatprep.subr.bf16.mxu0 0
      %10867 = vmatpush1.bf16.msra.mxu0 %v10596
      %10868 = vmatprep.subr.bf16.mxu0 0
      %10869 = vmatpush1.bf16.msra.mxu0 %v10597
      %10870 = vmatprep.subr.bf16.mxu0 0
      %10871 = vmatpush1.bf16.msra.mxu0 %v10598
      %10872 = vmatprep.subr.bf16.mxu0 0
      %10873 = vmatpush1.bf16.msra.mxu0 %v10599
      %10874 = vmatprep.subr.bf16.mxu0 0
      %10875 = vmatpush1.bf16.msra.mxu0 %v10600
      %10876 = vmatprep.subr.bf16.mxu0 0
      %10877 = vmatpush1.bf16.msra.mxu0 %v10601
      %10878 = vmatprep.subr.bf16.mxu0 0
      %10879 = vmatpush1.bf16.msra.mxu0 %v10602
      %10880 = vmatprep.subr.bf16.mxu0 0
      %10881 = vmatpush1.bf16.msra.mxu0 %v10603
      %10882 = vmatprep.subr.bf16.mxu0 0
      %10883 = vmatpush1.bf16.msra.mxu0 %v10604
      %10884 = vmatprep.subr.bf16.mxu0 0
      %10885 = vmatpush1.bf16.msra.mxu0 %v10605
      %10886 = vmatprep.subr.bf16.mxu0 0
      %10887 = vmatpush1.bf16.msra.mxu0 %v10606
      %10888 = vmatprep.mubr.bf16.mxu0 %v10275
      %10889 = vmatmul.mubr.bf16.gmra.mrb[0].mxu0 %v10274
      %v10890 = vpop.f32.mrb[0].mxu0
      %v10891 = vadd.f32 %v10730, %v10890
      %v10892 = vpop.f32.mrb[0].mxu0
      %v10893 = vpop.f32.mrb[0].mxu0
      %v10894 = vadd.f32 %v10733, %v10893
      %v10895 = vpop.f32.mrb[0].mxu0
      %10896 = vmatprep.mubr.bf16.mxu0 %v10280
      %10897 = vmatmul.mubr.bf16.gmra.mrb[0].mxu0 %v10279
      %v10898 = vpop.f32.mrb[0].mxu0
      %v10899 = vadd.f32 %v10738, %v10898
      %v10900 = vpop.f32.mrb[0].mxu0
      %v10901 = vpop.f32.mrb[0].mxu0
      %v10902 = vadd.f32 %v10741, %v10901
      %v10903 = vpop.f32.mrb[0].mxu0
      %10904 = vmatprep.mubr.bf16.mxu0 %v10285
      %10905 = vmatmul.mubr.bf16.gmra.mrb[0].mxu0 %v10284
      %v10906 = vpop.f32.mrb[0].mxu0
      %v10907 = vadd.f32 %v10746, %v10906
      %v10908 = vpop.f32.mrb[0].mxu0
      %v10909 = vpop.f32.mrb[0].mxu0
      %v10910 = vadd.f32 %v10749, %v10909
      %v10911 = vpop.f32.mrb[0].mxu0
      %10912 = vmatprep.mubr.bf16.mxu0 %v10290
      %10913 = vmatmul.mubr.bf16.gmra.mrb[0].mxu0 %v10289
      %v10914 = vpop.f32.mrb[0].mxu0
      %v10915 = vadd.f32 %v10754, %v10914
      %v10916 = vpop.f32.mrb[0].mxu0
      %v10917 = vpop.f32.mrb[0].mxu0
      %v10918 = vadd.f32 %v10757, %v10917
      %v10919 = vpop.f32.mrb[0].mxu0
      %10920 = vmatprep.mubr.bf16.mxu0 %v10295
      %10921 = vmatmul.mubr.bf16.gmra.mrb[0].mxu0 %v10294
      %v10922 = vpop.f32.mrb[0].mxu0
      %v10923 = vadd.f32 %v10762, %v10922
      %v10924 = vpop.f32.mrb[0].mxu0
      %v10925 = vpop.f32.mrb[0].mxu0
      %v10926 = vadd.f32 %v10765, %v10925
      %v10927 = vpop.f32.mrb[0].mxu0
      %10928 = vmatprep.mubr.bf16.mxu0 %v10300
      %10929 = vmatmul.mubr.bf16.gmra.mrb[0].mxu0 %v10299
      %v10930 = vpop.f32.mrb[0].mxu0
      %v10931 = vadd.f32 %v10770, %v10930
      %v10932 = vpop.f32.mrb[0].mxu0
      %v10933 = vpop.f32.mrb[0].mxu0
      %v10934 = vadd.f32 %v10773, %v10933
      %v10935 = vpop.f32.mrb[0].mxu0
      %10936 = vmatprep.mubr.bf16.mxu0 %v10305
      %10937 = vmatmul.mubr.bf16.gmra.mrb[0].mxu0 %v10304
      %v10938 = vpop.f32.mrb[0].mxu0
      %v10939 = vadd.f32 %v10778, %v10938
      %v10940 = vpop.f32.mrb[0].mxu0
      %v10941 = vpop.f32.mrb[0].mxu0
      %v10942 = vadd.f32 %v10781, %v10941
      %v10943 = vpop.f32.mrb[0].mxu0
      %10944 = vmatprep.mubr.bf16.mxu0 %v10310
      %10945 = vmatmul.mubr.bf16.gmra.mrb[0].mxu0 %v10309
      %v10946 = vpop.f32.mrb[0].mxu0
      %v10947 = vadd.f32 %v10786, %v10946
      %v10948 = vpop.f32.mrb[0].mxu0
      %v10949 = vpop.f32.mrb[0].mxu0
      %v10950 = vadd.f32 %v10789, %v10949
      %v10951 = vpop.f32.mrb[0].mxu0
      %10952 = vmatprep.mubr.bf16.mxu0 %v10315
      %10953 = vmatmul.mubr.bf16.gmra.mrb[0].mxu0 %v10314
      %v10954 = vpop.f32.mrb[0].mxu0
      %v10955 = vadd.f32 %v10794, %v10954
      %v10956 = vpop.f32.mrb[0].mxu0
      %v10957 = vpop.f32.mrb[0].mxu0
      %v10958 = vadd.f32 %v10797, %v10957
      %v10959 = vpop.f32.mrb[0].mxu0
      %10960 = vmatprep.mubr.bf16.mxu0 %v10320
      %10961 = vmatmul.mubr.bf16.gmra.mrb[0].mxu0 %v10319
      %v10962 = vpop.f32.mrb[0].mxu0
      %v10963 = vadd.f32 %v10802, %v10962
      %v10964 = vpop.f32.mrb[0].mxu0
      %v10965 = vpop.f32.mrb[0].mxu0
      %v10966 = vadd.f32 %v10805, %v10965
      %v10967 = vpop.f32.mrb[0].mxu0
      %10968 = vmatprep.mubr.bf16.mxu0 %v10325
      %10969 = vmatmul.mubr.bf16.gmra.mrb[0].mxu0 %v10324
      %v10970 = vpop.f32.mrb[0].mxu0
      %v10971 = vadd.f32 %v10810, %v10970
      %v10972 = vpop.f32.mrb[0].mxu0
      %v10973 = vpop.f32.mrb[0].mxu0
      %v10974 = vadd.f32 %v10813, %v10973
      %v10975 = vpop.f32.mrb[0].mxu0
      %10976 = vmatprep.mubr.bf16.mxu0 %v10330
      %10977 = vmatmul.mubr.bf16.gmra.mrb[0].mxu0 %v10329
      %v10978 = vpop.f32.mrb[0].mxu0
      %v10979 = vadd.f32 %v10818, %v10978
      %v10980 = vpop.f32.mrb[0].mxu0
      %v10981 = vpop.f32.mrb[0].mxu0
      %v10982 = vadd.f32 %v10821, %v10981
      %v10983 = vpop.f32.mrb[0].mxu0
      %10984 = vmatprep.mubr.bf16.mxu0 %v10335
      %10985 = vmatmul.mubr.bf16.gmra.mrb[0].mxu0 %v10334
      %v10986 = vpop.f32.mrb[0].mxu0
      %v10987 = vadd.f32 %v10826, %v10986
      %v10988 = vpop.f32.mrb[0].mxu0
      %v10989 = vpop.f32.mrb[0].mxu0
      %v10990 = vadd.f32 %v10829, %v10989
      %v10991 = vpop.f32.mrb[0].mxu0
      %10992 = vmatprep.mubr.bf16.mxu0 %v10340
      %10993 = vmatmul.mubr.bf16.gmra.mrb[0].mxu0 %v10339
      %v10994 = vpop.f32.mrb[0].mxu0
      %v10995 = vadd.f32 %v10834, %v10994
      %v10996 = vpop.f32.mrb[0].mxu0
      %v10997 = vpop.f32.mrb[0].mxu0
      %v10998 = vadd.f32 %v10837, %v10997
      %v10999 = vpop.f32.mrb[0].mxu0
      %11000 = vmatprep.mubr.bf16.mxu0 %v10345
      %11001 = vmatmul.mubr.bf16.gmra.mrb[0].mxu0 %v10344
      %v11002 = vpop.f32.mrb[0].mxu0
      %v11003 = vadd.f32 %v10842, %v11002
      %v11004 = vpop.f32.mrb[0].mxu0
      %v11005 = vpop.f32.mrb[0].mxu0
      %v11006 = vadd.f32 %v10845, %v11005
      %v11007 = vpop.f32.mrb[0].mxu0
      %11008 = vmatprep.mubr.bf16.mxu0 %v10350
      %11009 = vmatmul.mubr.bf16.gmra.mrb[0].mxu0 %v10349
      %v11010 = vpop.f32.mrb[0].mxu0
      %v11011 = vadd.f32 %v10850, %v11010
      %v11012 = vpop.f32.mrb[0].mxu0
      %v11013 = vpop.f32.mrb[0].mxu0
      %v11014 = vadd.f32 %v10853, %v11013
      %v11015 = vpop.f32.mrb[0].mxu0
      %11016 = vdwg.mxu0
      %11017 = vmatprep.subr.bf16.mxu0 0
      %11018 = vmatpush1.bf16.msra.mxu0 %v10607
      %11019 = vmatprep.subr.bf16.mxu0 0
      %11020 = vmatpush1.bf16.msra.mxu0 %v10608
      %11021 = vmatprep.subr.bf16.mxu0 0
      %11022 = vmatpush1.bf16.msra.mxu0 %v10609
      %11023 = vmatprep.subr.bf16.mxu0 0
      %11024 = vmatpush1.bf16.msra.mxu0 %v10610
      %11025 = vmatprep.subr.bf16.mxu0 0
      %11026 = vmatpush1.bf16.msra.mxu0 0
      %11027 = vmatprep.subr.bf16.mxu0 0
      %11028 = vmatpush1.bf16.msra.mxu0 0
      %11029 = vmatprep.subr.bf16.mxu0 0
      %11030 = vmatpush1.bf16.msra.mxu0 0
      %11031 = vmatprep.subr.bf16.mxu0 0
      %11032 = vmatpush1.bf16.msra.mxu0 0
      %11033 = vmatprep.subr.bf16.mxu0 0
      %11034 = vmatpush1.bf16.msra.mxu0 0
      %11035 = vmatprep.subr.bf16.mxu0 0
      %11036 = vmatpush1.bf16.msra.mxu0 0
      %11037 = vmatprep.subr.bf16.mxu0 0
      %11038 = vmatpush1.bf16.msra.mxu0 0
      %11039 = vmatprep.subr.bf16.mxu0 0
      %11040 = vmatpush1.bf16.msra.mxu0 0
      %11041 = vmatprep.subr.bf16.mxu0 0
      %11042 = vmatpush1.bf16.msra.mxu0 0
      %11043 = vmatprep.subr.bf16.mxu0 0
      %11044 = vmatpush1.bf16.msra.mxu0 0
      %11045 = vmatprep.subr.bf16.mxu0 0
      %11046 = vmatpush1.bf16.msra.mxu0 0
      %11047 = vmatprep.subr.bf16.mxu0 0
      %11048 = vmatpush1.bf16.msra.mxu0 0
      %11049 = vmatprep.mubr.bf16.mxu0 0
      %11050 = vmatmul.mubr.bf16.gmra.mrb[0].mxu0 %v10648
      %v11051 = vpop.f32.mrb[0].mxu0
      %v11052 = vadd.f32 %v10891, %v11051
      %v11053 = vpop.f32.mrb[0].mxu0
      %v11054 = vpop.f32.mrb[0].mxu0
      %v11055 = vadd.f32 %v10894, %v11054
      %v11056 = vpop.f32.mrb[0].mxu0
      %11057 = vmatprep.mubr.bf16.mxu0 0
      %11058 = vmatmul.mubr.bf16.gmra.mrb[0].mxu0 %v10651
      %v11059 = vpop.f32.mrb[0].mxu0
      %v11060 = vadd.f32 %v10899, %v11059
      %v11061 = vpop.f32.mrb[0].mxu0
      %v11062 = vpop.f32.mrb[0].mxu0
      %v11063 = vadd.f32 %v10902, %v11062
      %v11064 = vpop.f32.mrb[0].mxu0
      %11065 = vmatprep.mubr.bf16.mxu0 0
      %11066 = vmatmul.mubr.bf16.gmra.mrb[0].mxu0 %v10654
      %v11067 = vpop.f32.mrb[0].mxu0
      %v11068 = vadd.f32 %v10907, %v11067
      %v11069 = vpop.f32.mrb[0].mxu0
      %v11070 = vpop.f32.mrb[0].mxu0
      %v11071 = vadd.f32 %v10910, %v11070
      %v11072 = vpop.f32.mrb[0].mxu0
      %11073 = vmatprep.mubr.bf16.mxu0 0
      %11074 = vmatmul.mubr.bf16.gmra.mrb[0].mxu0 %v10657
      %v11075 = vpop.f32.mrb[0].mxu0
      %v11076 = vadd.f32 %v10915, %v11075
      %v11077 = vpop.f32.mrb[0].mxu0
      %v11078 = vpop.f32.mrb[0].mxu0
      %v11079 = vadd.f32 %v10918, %v11078
      %v11080 = vpop.f32.mrb[0].mxu0
      %11081 = vmatprep.mubr.bf16.mxu0 0
      %11082 = vmatmul.mubr.bf16.gmra.mrb[0].mxu0 %v10660
      %v11083 = vpop.f32.mrb[0].mxu0
      %v11084 = vadd.f32 %v10923, %v11083
      %v11085 = vpop.f32.mrb[0].mxu0
      %v11086 = vpop.f32.mrb[0].mxu0
      %v11087 = vadd.f32 %v10926, %v11086
      %v11088 = vpop.f32.mrb[0].mxu0
      %11089 = vmatprep.mubr.bf16.mxu0 0
      %11090 = vmatmul.mubr.bf16.gmra.mrb[0].mxu0 %v10663
      %v11091 = vpop.f32.mrb[0].mxu0
      %v11092 = vadd.f32 %v10931, %v11091
      %v11093 = vpop.f32.mrb[0].mxu0
      %v11094 = vpop.f32.mrb[0].mxu0
      %v11095 = vadd.f32 %v10934, %v11094
      %v11096 = vpop.f32.mrb[0].mxu0
      %11097 = vmatprep.mubr.bf16.mxu0 0
      %11098 = vmatmul.mubr.bf16.gmra.mrb[0].mxu0 %v10666
      %v11099 = vpop.f32.mrb[0].mxu0
      %v11100 = vadd.f32 %v10939, %v11099
      %v11101 = vpop.f32.mrb[0].mxu0
      %v11102 = vpop.f32.mrb[0].mxu0
      %v11103 = vadd.f32 %v10942, %v11102
      %v11104 = vpop.f32.mrb[0].mxu0
      %11105 = vmatprep.mubr.bf16.mxu0 0
      %11106 = vmatmul.mubr.bf16.gmra.mrb[0].mxu0 %v10669
      %v11107 = vpop.f32.mrb[0].mxu0
      %v11108 = vadd.f32 %v10947, %v11107
      %v11109 = vpop.f32.mrb[0].mxu0
      %v11110 = vpop.f32.mrb[0].mxu0
      %v11111 = vadd.f32 %v10950, %v11110
      %v11112 = vpop.f32.mrb[0].mxu0
      %11113 = vmatprep.mubr.bf16.mxu0 0
      %11114 = vmatmul.mubr.bf16.gmra.mrb[0].mxu0 %v10672
      %v11115 = vpop.f32.mrb[0].mxu0
      %v11116 = vadd.f32 %v10955, %v11115
      %v11117 = vpop.f32.mrb[0].mxu0
      %v11118 = vpop.f32.mrb[0].mxu0
      %v11119 = vadd.f32 %v10958, %v11118
      %v11120 = vpop.f32.mrb[0].mxu0
      %11121 = vmatprep.mubr.bf16.mxu0 0
      %11122 = vmatmul.mubr.bf16.gmra.mrb[0].mxu0 %v10675
      %v11123 = vpop.f32.mrb[0].mxu0
      %v11124 = vadd.f32 %v10963, %v11123
      %v11125 = vpop.f32.mrb[0].mxu0
      %v11126 = vpop.f32.mrb[0].mxu0
      %v11127 = vadd.f32 %v10966, %v11126
      %v11128 = vpop.f32.mrb[0].mxu0
      %11129 = vmatprep.mubr.bf16.mxu0 0
      %11130 = vmatmul.mubr.bf16.gmra.mrb[0].mxu0 %v10678
      %v11131 = vpop.f32.mrb[0].mxu0
      %v11132 = vadd.f32 %v10971, %v11131
      %v11133 = vpop.f32.mrb[0].mxu0
      %v11134 = vpop.f32.mrb[0].mxu0
      %v11135 = vadd.f32 %v10974, %v11134
      %v11136 = vpop.f32.mrb[0].mxu0
      %11137 = vmatprep.mubr.bf16.mxu0 0
      %11138 = vmatmul.mubr.bf16.gmra.mrb[0].mxu0 %v10681
      %v11139 = vpop.f32.mrb[0].mxu0
      %v11140 = vadd.f32 %v10979, %v11139
      %v11141 = vpop.f32.mrb[0].mxu0
      %v11142 = vpop.f32.mrb[0].mxu0
      %v11143 = vadd.f32 %v10982, %v11142
      %v11144 = vpop.f32.mrb[0].mxu0
      %11145 = vmatprep.mubr.bf16.mxu0 0
      %11146 = vmatmul.mubr.bf16.gmra.mrb[0].mxu0 %v10684
      %v11147 = vpop.f32.mrb[0].mxu0
      %v11148 = vadd.f32 %v10987, %v11147
      %v11149 = vpop.f32.mrb[0].mxu0
      %v11150 = vpop.f32.mrb[0].mxu0
      %v11151 = vadd.f32 %v10990, %v11150
      %v11152 = vpop.f32.mrb[0].mxu0
      %11153 = vmatprep.mubr.bf16.mxu0 0
      %11154 = vmatmul.mubr.bf16.gmra.mrb[0].mxu0 %v10687
      %v11155 = vpop.f32.mrb[0].mxu0
      %v11156 = vadd.f32 %v10995, %v11155
      %v11157 = vpop.f32.mrb[0].mxu0
      %v11158 = vpop.f32.mrb[0].mxu0
      %v11159 = vadd.f32 %v10998, %v11158
      %v11160 = vpop.f32.mrb[0].mxu0
      %11161 = vmatprep.mubr.bf16.mxu0 0
      %11162 = vmatmul.mubr.bf16.gmra.mrb[0].mxu0 %v10690
      %v11163 = vpop.f32.mrb[0].mxu0
      %v11164 = vadd.f32 %v11003, %v11163
      %v11165 = vpop.f32.mrb[0].mxu0
      %v11166 = vpop.f32.mrb[0].mxu0
      %v11167 = vadd.f32 %v11006, %v11166
      %v11168 = vpop.f32.mrb[0].mxu0
      %11169 = vmatprep.mubr.bf16.mxu0 0
      %11170 = vmatmul.mubr.bf16.gmra.mrb[0].mxu0 %v10693
      %v11171 = vpop.f32.mrb[0].mxu0
      %v11172 = vadd.f32 %v11011, %v11171
      %v11173 = vpop.f32.mrb[0].mxu0
      %v11174 = vpop.f32.mrb[0].mxu0
      %v11175 = vadd.f32 %v11014, %v11174
      %v11176 = vpop.f32.mrb[0].mxu0
      %11177 = vdwg.mxu0
      %vm11178 = vcmask 31744
      %11179 = vst.msk [vmem:[%s278] sm:$0xff] %vm11178, %v11052
      %11180 = vst.msk [vmem:[%s278 + $0x8] sm:$0xff] %vm11178, %v11055
      %11181 = vst.msk [vmem:[%s278 + $0x10] sm:$0xff] %vm11178, %v11060
      %11182 = vst.msk [vmem:[%s278 + $0x18] sm:$0xff] %vm11178, %v11063
      %11183 = vst.msk [vmem:[%s278 + $0x20] sm:$0xff] %vm11178, %v11068
      %11184 = vst.msk [vmem:[%s278 + $0x28] sm:$0xff] %vm11178, %v11071
      %11185 = vst.msk [vmem:[%s278 + $0x30] sm:$0xff] %vm11178, %v11076
      %11186 = vst.msk [vmem:[%s278 + $0x38] sm:$0xff] %vm11178, %v11079
      %11187 = vst.msk [vmem:[%s278 + $0x40] sm:$0xff] %vm11178, %v11084
      %11188 = vst.msk [vmem:[%s278 + $0x48] sm:$0xff] %vm11178, %v11087
      %11189 = vst.msk [vmem:[%s278 + $0x50] sm:$0xff] %vm11178, %v11092
      %11190 = vst.msk [vmem:[%s278 + $0x58] sm:$0xff] %vm11178, %v11095
      %11191 = vst.msk [vmem:[%s278 + $0x60] sm:$0xff] %vm11178, %v11100
      %11192 = vst.msk [vmem:[%s278 + $0x68] sm:$0xff] %vm11178, %v11103
      %11193 = vst.msk [vmem:[%s278 + $0x70] sm:$0xff] %vm11178, %v11108
      %11194 = vst.msk [vmem:[%s278 + $0x78] sm:$0xff] %vm11178, %v11111
      %11195 = vst.msk [vmem:[%s278 + $0x80] sm:$0xff] %vm11178, %v11116
      %11196 = vst.msk [vmem:[%s278 + $0x88] sm:$0xff] %vm11178, %v11119
      %11197 = vst.msk [vmem:[%s278 + $0x90] sm:$0xff] %vm11178, %v11124
      %11198 = vst.msk [vmem:[%s278 + $0x98] sm:$0xff] %vm11178, %v11127
      %11199 = vst.msk [vmem:[%s278 + $0xa0] sm:$0xff] %vm11178, %v11132
      %11200 = vst.msk [vmem:[%s278 + $0xa8] sm:$0xff] %vm11178, %v11135
      %11201 = vst.msk [vmem:[%s278 + $0xb0] sm:$0xff] %vm11178, %v11140
      %11202 = vst.msk [vmem:[%s278 + $0xb8] sm:$0xff] %vm11178, %v11143
      %11203 = vst.msk [vmem:[%s278 + $0xc0] sm:$0xff] %vm11178, %v11148
      %11204 = vst.msk [vmem:[%s278 + $0xc8] sm:$0xff] %vm11178, %v11151
      %11205 = vst.msk [vmem:[%s278 + $0xd0] sm:$0xff] %vm11178, %v11156
      %11206 = vst.msk [vmem:[%s278 + $0xd8] sm:$0xff] %vm11178, %v11159
      %11207 = vst.msk [vmem:[%s278 + $0xe0] sm:$0xff] %vm11178, %v11164
      %11208 = vst.msk [vmem:[%s278 + $0xe8] sm:$0xff] %vm11178, %v11167
      %11209 = vst.msk [vmem:[%s278 + $0xf0] sm:$0xff] %vm11178, %v11172
      %11210 = vst.msk [vmem:[%s278 + $0xf8] sm:$0xff] %vm11178, %v11175
      %p11211 = scmp.lt.s32.totalorder %s18, 1
      %s11212 = scalar_select %p11211, %s18, 1
      %s11213 = smul.addr %s11212, 32
      %s11214 = smul.addr %s11213, 8
      %s11215 = scalar_lea.vmem %s7, %s11214
      // Predicated region
      $region49: #{tpu_custom_call.1} parent=47 // pred_check
        %p11216 = pneg %p188
      $region50: #{tpu_custom_call.1} parent=47 // pred_check_branch
        %11218 = sbr.rel (%p11216) target = $region52
      $region51: #{tpu_custom_call.1} parent=47 // pred_region
        _
      $region52: #{tpu_custom_call.1} parent=47 // pred_fallthru
        _
    $region48: #{tpu_custom_call.1} parent=5 // pred_fallthru
      _
    %p11219 = scmp.le.s32.totalorder 2, %s13
    // Predicated region
    $region53: #{tpu_custom_call.1} parent=5 // pred_check
      %p11220 = pneg %p11219
    $region54: #{tpu_custom_call.1} parent=5 // pred_check_branch
      %11222 = sbr.rel (%p11220) target = $region56
    $region55: #{tpu_custom_call.1} parent=5 // pred_region
      %s11223 = ssub.s32 %s13, 2
      // Predicated region
      $region57: #{tpu_custom_call.1} parent=55 // pred_check
        %p11224 = pneg %p194
      $region58: #{tpu_custom_call.1} parent=55 // pred_check_branch
        %11226 = sbr.rel (%p11224) target = $region60
      $region59: #{tpu_custom_call.1} parent=55 // pred_region
        %p11227 = scmp.lt.s32.totalorder %s19, 1
        %s11228 = scalar_select %p11227, %s19, 1
        %s11229 = smul.addr %s11228, 32
        %s11230 = smul.addr %s11229, 8
        %s11231 = scalar_lea.vmem %s7, %s11230
      $region60: #{tpu_custom_call.1} parent=55 // pred_fallthru
        _
    $region56: #{tpu_custom_call.1} parent=5 // pred_fallthru
      _
  $region6: #{tpu_custom_call.1} parent=0 // loop_footer
    %s17 = sadd.s32 1, %s13
  $region7: #{tpu_custom_call.1} parent=0 // loop_footer_branch
    %12 = sbr.rel target = $region3
  $region8: #{tpu_custom_call.1} parent=0 // loop_exit
    _

</llo_original>
